<compile_context>
chip_gen: v7x
topology: tpu7x:2x2x1
jax: 0.10.0
libtpu: 0.0.40
codegen_flags: <defaults>
</compile_context>

<pallas_src>
import functools
import math

import numpy as np
import jax
import jax.numpy as jnp
from jax.experimental import pallas as pl
from jax.experimental.pallas import tpu as pltpu

FEATURE_DIM = 64 * 4 * 4


# ---------------------------------------------------------------------------
# TF-"SAME" padding (mirrors Conv2d_tf._compute_padding + F.pad/conv2d)
# ---------------------------------------------------------------------------
def _tf_same_pads(in_size, k, stride):
    out_size = (in_size + stride - 1) // stride
    total = max(0, (out_size - 1) * stride + k - in_size)
    return total // 2, total - total // 2   # (before, after)


def _pick_batch_tile(B, cap=16):
    divs = [t for t in range(1, min(B, cap) + 1) if B % t == 0]
    pref = [t for t in divs if B // t >= 2]          # keep grid length >= 2
    return max(pref) if pref else max(divs)


# ---------------------------------------------------------------------------
# conv2 "slot" maps: for each (tap koff, output position m) give the conv1
# raster position that feeds it (or the all-zero padding row), plus a 0/1
# validity mask.  conv2 is stride==kernel, so each conv1 position feeds at
# most one slot -> the gather is a pure permutation done wrapper-side.
# ---------------------------------------------------------------------------
def _conv2_slot_maps(Ho1, Wo1, k, p_top, p_left, Ho2, Wo2):
    n_pos2 = Ho2 * Wo2
    idx = np.full((k * k, n_pos2), Ho1 * Wo1, np.int32)   # default -> zero row
    valid = np.zeros((k * k, n_pos2), np.float32)
    for dh in range(k):
        for dw in range(k):
            koff = dh * k + dw
            for oi in range(Ho2):
                for oj in range(Wo2):
                    m = oi * Wo2 + oj
                    si = oi * k + dh - p_top
                    sj = oj * k + dw - p_left
                    if 0 <= si < Ho1 and 0 <= sj < Wo1:
                        idx[koff, m] = si * Wo1 + sj
                        valid[koff, m] = 1.0
    return idx.reshape(-1), valid.reshape(-1)


# ---------------------------------------------------------------------------
# Fused kernel: conv1 (one matmul) -> repack -> conv2 (one K=800 matmul)
# ---------------------------------------------------------------------------
def _se_kernel(pg_ref, mask_ref, w1_ref, b1_ref, w2_ref, b2_ref, out_ref,
               h_ref, g_ref, *, T, n_off, n_pos2):
    R2 = n_pos2 * T                                   # conv2 rows: (m, t)

    # conv1: every (tap, out-pos, image) row of the tile in one MXU matmul.
    h = jnp.dot(pg_ref[...], w1_ref[...], preferred_element_type=jnp.float32)
    h = jnp.maximum(h + b1_ref[...], 0.0) * mask_ref[...]   # zero padded taps
    h_ref[...] = h.astype(jnp.bfloat16)               # (25*R2, 32) bf16

    # Repack: move the tap index from sublanes to lanes (aligned small copies).
    for koff in range(n_off):                          # 25 static, tiny copies
        g_ref[:, koff * 32:(koff + 1) * 32] = h_ref[koff * R2:(koff + 1) * R2, :]

    # conv2: single K = 25*32 = 800 matmul for the whole tile.
    res = jnp.dot(g_ref[...], w2_ref[...], preferred_element_type=jnp.float32)
    res = jnp.maximum(res + b2_ref[...], 0.0)          # (R2, 64), rows (m, t)

    # Lane-dense (T, 1, 1024) store; columns ordered (m, o).
    for m in range(n_pos2):                            # 16 static lane-slice writes
        out_ref[:, 0, m * 64:(m + 1) * 64] = res[m * T:(m + 1) * T, :]


# ---------------------------------------------------------------------------
# Parameters (nn.Conv2d default init shapes/scales)
# ---------------------------------------------------------------------------
def init_params(key, in_channels):
    k1, k2, k3, k4 = jax.random.split(key, 4)
    fan_in1 = in_channels * 5 * 5
    bound1 = 1.0 / math.sqrt(fan_in1)
    w1 = jax.random.uniform(k1, (32, in_channels, 5, 5), jnp.float32, -bound1, bound1)
    b1 = jax.random.uniform(k2, (32,), jnp.float32, -bound1, bound1)
    fan_in2 = 32 * 5 * 5
    bound2 = 1.0 / math.sqrt(fan_in2)
    w2 = jax.random.uniform(k3, (64, 32, 5, 5), jnp.float32, -bound2, bound2)
    b2 = jax.random.uniform(k4, (64,), jnp.float32, -bound2, bound2)
    return dict(w1=w1, b1=b1, w2=w2, b2=b2)


# ---------------------------------------------------------------------------
# SEEncoder forward
# ---------------------------------------------------------------------------
def se_encoder_forward(obs, params, *, batch_tile=None):
    """obs: (B, C, 84, 84), pixels in [0, 255]. Returns (B, 1024)."""
    B, C, H, W = obs.shape
    k = 5

    # conv1 / conv2 geometry (TF-SAME, stride 5).
    pt1, pb1 = _tf_same_pads(H, k, k)
    pl1, pr1 = _tf_same_pads(W, k, k)
    Ho1, Wo1 = (H + pt1 + pb1) // k, (W + pl1 + pr1) // k            # 17, 17
    pt2, _ = _tf_same_pads(Ho1, k, k)
    pl2, _ = _tf_same_pads(Wo1, k, k)
    Ho2 = (Ho1 + sum(_tf_same_pads(Ho1, k, k))) // k                 # 4
    Wo2 = (Wo1 + sum(_tf_same_pads(Wo1, k, k))) // k                 # 4
    n_pos2, n_off, K1 = Ho2 * Wo2, k * k, C * k * k                  # 16, 25, 100

    T = batch_tile if batch_tile is not None else _pick_batch_tile(B)
    assert B % T == 0
    n_tiles = B // T
    R1 = n_off * n_pos2 * T                                          # conv1 rows/tile
    R2 = n_pos2 * T                                                  # conv2 rows/tile

    # --- conv1 patches (raster order), bf16, /255 folded into w1 -------------
    x = jnp.pad(obs.astype(jnp.bfloat16),
                ((0, 0), (0, 0), (pt1, pb1), (pl1, pr1)))
    x = x.reshape(B, C, Ho1, k, Wo1, k).transpose(0, 2, 4, 1, 3, 5)
    x = x.reshape(B, Ho1 * Wo1, K1)                                  # (B, 289, 100)

    # --- conv2-slot gather: rows (koff, m), zero row for padded taps ---------
    idx, valid = _conv2_slot_maps(Ho1, Wo1, k, pt2, pl2, Ho2, Wo2)
    xpad = jnp.concatenate([x, jnp.zeros((B, 1, K1), jnp.bfloat16)], axis=1)
    pg = jnp.take(xpad, jnp.asarray(idx), axis=1)                    # (B, 400, 100)
    # per-tile row order (koff, m, t)
    pg = pg.reshape(n_tiles, T, n_off * n_pos2, K1).transpose(0, 2, 1, 3)
    pg = pg.reshape(n_tiles * R1, K1)

    mask = jnp.asarray(np.repeat(valid, T).reshape(R1, 1).astype(np.float32))

    # --- weights --------------------------------------------------------------
    w1m = (params["w1"].reshape(32, -1).T / 255.0).astype(jnp.bfloat16)   # (100, 32)
    b1 = params["b1"].reshape(1, 32).astype(jnp.float32)
    w2f = jnp.transpose(params["w2"], (2, 3, 1, 0)).reshape(n_off * 32, 64)
    w2f = w2f.astype(jnp.bfloat16)                                        # (800, 64)
    b2 = params["b2"].reshape(1, 64).astype(jnp.float32)

    flops = 2 * B * (n_off * n_pos2 * K1 * 32 + n_pos2 * n_off * 32 * 64)
    bytes_accessed = (B * n_off * n_pos2 * K1 * 2 + R1 * 4 + K1 * 32 * 2
                      + n_off * 32 * 64 * 2 + (32 + 64) * 4
                      + B * n_pos2 * 64 * 4)

    kernel = functools.partial(_se_kernel, T=T, n_off=n_off, n_pos2=n_pos2)
    out3 = pl.pallas_call(
        kernel,
        out_shape=jax.ShapeDtypeStruct((B, 1, n_pos2 * 64), jnp.float32),
        grid=(n_tiles,),
        in_specs=[
            pl.BlockSpec((R1, K1), lambda b: (b, 0)),                # patches (tile)
            pl.BlockSpec((R1, 1), lambda b: (0, 0)),                 # padded-tap mask
            pl.BlockSpec((K1, 32), lambda b: (0, 0)),                # w1 (/255 folded)
            pl.BlockSpec((1, 32), lambda b: (0, 0)),                 # b1
            pl.BlockSpec((n_off * 32, 64), lambda b: (0, 0)),        # w2 (800, 64)
            pl.BlockSpec((1, 64), lambda b: (0, 0)),                 # b2
        ],
        out_specs=pl.BlockSpec((T, 1, n_pos2 * 64), lambda b: (b, 0, 0)),
        scratch_shapes=[
            pltpu.VMEM((R1, 32), jnp.bfloat16),                      # conv1 result
            pltpu.VMEM((R2, n_off * 32), jnp.bfloat16),              # conv2 LHS
        ],
        compiler_params=pltpu.CompilerParams(dimension_semantics=("parallel",)),
        cost_estimate=pl.CostEstimate(flops=flops, transcendentals=0,
                                      bytes_accessed=bytes_accessed),
    )(pg, mask, w1m, b1, w2f, b2)

    # columns are (m, o); convert to PyTorch channel-major .view(B, -1) order.
    out = out3.reshape(B, n_pos2, 64)
    out = jnp.transpose(out, (0, 2, 1)).reshape(B, -1)
    assert out.shape[1] == 64 * n_pos2
    return out


# ---------------------------------------------------------------------------
# Pure-JAX f32 reference (lax conv with the same TF-SAME padding)
# ---------------------------------------------------------------------------
def _reference_forward(obs, params):
    x = obs.astype(jnp.float32) / 255.0

    def conv_tf_same(x, w, b, k, s):
        H, W = x.shape[2], x.shape[3]
        p_top, p_bot = _tf_same_pads(H, k, s)
        p_left, p_right = _tf_same_pads(W, k, s)
        y = jax.lax.conv_general_dilated(
            x, w, window_strides=(s, s),
            padding=((p_top, p_bot), (p_left, p_right)),
            dimension_numbers=("NCHW", "OIHW", "NCHW"))
        return y + b.reshape(1, -1, 1, 1)

    h = jnp.maximum(conv_tf_same(x, params["w1"], params["b1"], 5, 5), 0.0)
    h = jnp.maximum(conv_tf_same(h, params["w2"], params["b2"], 5, 5), 0.0)
    return h.reshape(h.shape[0], -1)


if __name__ == "__main__":
    key = jax.random.PRNGKey(0)
    k_obs, k_par = jax.random.split(key)

    # Spatial must be 84 so that 84 -(s5)-> 17 -(s5)-> 4 gives feature_dim 1024.
    # B=16 -> batch_tile=8, grid=(2,): both v7x TensorCores used, all tiles aligned.
    B, C, H, W = 16, 4, 84, 84
    obs = jax.random.uniform(k_obs, (B, C, H, W), jnp.float32, 0.0, 255.0)
    params = init_params(k_par, C)

    fwd = jax.jit(se_encoder_forward)
    out = jax.block_until_ready(fwd(obs, params))
    assert out.shape == (B, FEATURE_DIM)
    assert bool(jnp.all(out >= 0.0))  # post-ReLU

    ref = jax.block_until_ready(_reference_forward(obs, params))
    max_err = float(jnp.max(jnp.abs(out - ref)))
    assert max_err < 5e-2, f"mismatch vs reference: max abs err {max_err}"
    print("KERNEL_OK")
</pallas_src>

<mosaic_0001>
module attributes {stable_mosaic.version = 11 : i64} {
  func.func @_se_kernel(%arg0: i32, %arg1: memref<3200x100xbf16, #tpu.memory_space<vmem>>, %arg2: memref<3200x1xf32, #tpu.memory_space<vmem>>, %arg3: memref<100x32xbf16, #tpu.memory_space<vmem>>, %arg4: memref<1x32xf32, #tpu.memory_space<vmem>>, %arg5: memref<800x64xbf16, #tpu.memory_space<vmem>>, %arg6: memref<1x64xf32, #tpu.memory_space<vmem>>, %arg7: memref<8x1x1024xf32, #tpu.memory_space<vmem>>, %arg8: memref<3200x32xbf16, #tpu.memory_space<vmem>>, %arg9: memref<128x800xbf16, #tpu.memory_space<vmem>>) attributes {dimension_semantics = [#tpu.dimension_semantics<parallel>], iteration_bounds = array<i64: 2>, scalar_prefetch = 0 : i64, scratch_operands = 2 : i64, tpu.core_type = #tpu.core_type<tc>, window_params = [{transform_indices = @transform_0, window_bounds = array<i64: 3200, 100>}, {pipeline_mode = #tpu.pipeline_mode<synchronous>, transform_indices = @transform_1, window_bounds = array<i64: 3200, 1>}, {pipeline_mode = #tpu.pipeline_mode<synchronous>, transform_indices = @transform_2, window_bounds = array<i64: 100, 32>}, {pipeline_mode = #tpu.pipeline_mode<synchronous>, transform_indices = @transform_3, window_bounds = array<i64: 1, 32>}, {pipeline_mode = #tpu.pipeline_mode<synchronous>, transform_indices = @transform_4, window_bounds = array<i64: 800, 64>}, {pipeline_mode = #tpu.pipeline_mode<synchronous>, transform_indices = @transform_5, window_bounds = array<i64: 1, 64>}, {transform_indices = @transform_6, window_bounds = array<i64: 8, 1, 1024>}]} {
    %c0 = arith.constant 0 : index
    %c0_0 = arith.constant 0 : index
    %0 = vector.load %arg1[%c0, %c0_0] : memref<3200x100xbf16, #tpu.memory_space<vmem>>, vector<3200x100xbf16>
    %c0_1 = arith.constant 0 : index
    %c0_2 = arith.constant 0 : index
    %1 = vector.load %arg3[%c0_1, %c0_2] : memref<100x32xbf16, #tpu.memory_space<vmem>>, vector<100x32xbf16>
    %cst = arith.constant dense<0.000000e+00> : vector<3200x32xf32>
    %2 = tpu.matmul %0, %1, %cst {dimension_numbers = #tpu.dot_dimension_numbers<[1], [0], [0], [1], [0, 0, 1, 1], [], []>} : vector<3200x100xbf16>, vector<100x32xbf16>, vector<3200x32xf32> -> vector<3200x32xf32>
    %c0_3 = arith.constant 0 : index
    %c0_4 = arith.constant 0 : index
    %3 = vector.load %arg4[%c0_3, %c0_4] : memref<1x32xf32, #tpu.memory_space<vmem>>, vector<1x32xf32>
    %4 = vector.broadcast %3 : vector<1x32xf32> to vector<3200x32xf32>
    %5 = arith.addf %2, %4 : vector<3200x32xf32>
    %cst_5 = arith.constant 0.000000e+00 : f32
    %6 = vector.broadcast %cst_5 : f32 to vector<3200x32xf32>
    %7 = arith.maximumf %5, %6 : vector<3200x32xf32>
    %c0_6 = arith.constant 0 : index
    %c0_7 = arith.constant 0 : index
    %8 = vector.load %arg2[%c0_6, %c0_7] : memref<3200x1xf32, #tpu.memory_space<vmem>>, vector<3200x1xf32>
    %9 = vector.broadcast %8 : vector<3200x1xf32> to vector<3200x32xf32>
    %10 = arith.mulf %7, %9 : vector<3200x32xf32>
    %11 = arith.truncf %10 : vector<3200x32xf32> to vector<3200x32xbf16>
    %c0_8 = arith.constant 0 : index
    %c0_9 = arith.constant 0 : index
    %12 = vector.load %arg8[%c0_8, %c0_9] : memref<3200x32xbf16, #tpu.memory_space<vmem>>, vector<3200x32xbf16>
    tpu.vector_store %arg8[%c0_8, %c0_9], %11 {strides = array<i32>} : memref<3200x32xbf16, #tpu.memory_space<vmem>>, vector<3200x32xbf16>,
    %c0_10 = arith.constant 0 : index
    %c0_11 = arith.constant 0 : index
    %13 = vector.load %arg8[%c0_10, %c0_11] : memref<3200x32xbf16, #tpu.memory_space<vmem>>, vector<128x32xbf16>
    %c0_12 = arith.constant 0 : index
    %c0_13 = arith.constant 0 : index
    %14 = vector.load %arg9[%c0_12, %c0_13] : memref<128x800xbf16, #tpu.memory_space<vmem>>, vector<128x32xbf16>
    tpu.vector_store %arg9[%c0_12, %c0_13], %13 {strides = array<i32>} : memref<128x800xbf16, #tpu.memory_space<vmem>>, vector<128x32xbf16>,
    %c128 = arith.constant 128 : index
    %c0_14 = arith.constant 0 : index
    %15 = vector.load %arg8[%c128, %c0_14] : memref<3200x32xbf16, #tpu.memory_space<vmem>>, vector<128x32xbf16>
    %c0_15 = arith.constant 0 : index
    %c32 = arith.constant 32 : index
    %16 = vector.load %arg9[%c0_15, %c32] : memref<128x800xbf16, #tpu.memory_space<vmem>>, vector<128x32xbf16>
    tpu.vector_store %arg9[%c0_15, %c32], %15 {strides = array<i32>} : memref<128x800xbf16, #tpu.memory_space<vmem>>, vector<128x32xbf16>,
    %c256 = arith.constant 256 : index
    %c0_16 = arith.constant 0 : index
    %17 = vector.load %arg8[%c256, %c0_16] : memref<3200x32xbf16, #tpu.memory_space<vmem>>, vector<128x32xbf16>
    %c0_17 = arith.constant 0 : index
    %c64 = arith.constant 64 : index
    %18 = vector.load %arg9[%c0_17, %c64] : memref<128x800xbf16, #tpu.memory_space<vmem>>, vector<128x32xbf16>
    tpu.vector_store %arg9[%c0_17, %c64], %17 {strides = array<i32>} : memref<128x800xbf16, #tpu.memory_space<vmem>>, vector<128x32xbf16>,
    %c384 = arith.constant 384 : index
    %c0_18 = arith.constant 0 : index
    %19 = vector.load %arg8[%c384, %c0_18] : memref<3200x32xbf16, #tpu.memory_space<vmem>>, vector<128x32xbf16>
    %c0_19 = arith.constant 0 : index
    %c96 = arith.constant 96 : index
    %20 = vector.load %arg9[%c0_19, %c96] : memref<128x800xbf16, #tpu.memory_space<vmem>>, vector<128x32xbf16>
    tpu.vector_store %arg9[%c0_19, %c96], %19 {strides = array<i32>} : memref<128x800xbf16, #tpu.memory_space<vmem>>, vector<128x32xbf16>,
    %c512 = arith.constant 512 : index
    %c0_20 = arith.constant 0 : index
    %21 = vector.load %arg8[%c512, %c0_20] : memref<3200x32xbf16, #tpu.memory_space<vmem>>, vector<128x32xbf16>
    %c0_21 = arith.constant 0 : index
    %c128_22 = arith.constant 128 : index
    %22 = vector.load %arg9[%c0_21, %c128_22] : memref<128x800xbf16, #tpu.memory_space<vmem>>, vector<128x32xbf16>
    tpu.vector_store %arg9[%c0_21, %c128_22], %21 {strides = array<i32>} : memref<128x800xbf16, #tpu.memory_space<vmem>>, vector<128x32xbf16>,
    %c640 = arith.constant 640 : index
    %c0_23 = arith.constant 0 : index
    %23 = vector.load %arg8[%c640, %c0_23] : memref<3200x32xbf16, #tpu.memory_space<vmem>>, vector<128x32xbf16>
    %c0_24 = arith.constant 0 : index
    %c160 = arith.constant 160 : index
    %24 = vector.load %arg9[%c0_24, %c160] : memref<128x800xbf16, #tpu.memory_space<vmem>>, vector<128x32xbf16>
    tpu.vector_store %arg9[%c0_24, %c160], %23 {strides = array<i32>} : memref<128x800xbf16, #tpu.memory_space<vmem>>, vector<128x32xbf16>,
    %c768 = arith.constant 768 : index
    %c0_25 = arith.constant 0 : index
    %25 = vector.load %arg8[%c768, %c0_25] : memref<3200x32xbf16, #tpu.memory_space<vmem>>, vector<128x32xbf16>
    %c0_26 = arith.constant 0 : index
    %c192 = arith.constant 192 : index
    %26 = vector.load %arg9[%c0_26, %c192] : memref<128x800xbf16, #tpu.memory_space<vmem>>, vector<128x32xbf16>
    tpu.vector_store %arg9[%c0_26, %c192], %25 {strides = array<i32>} : memref<128x800xbf16, #tpu.memory_space<vmem>>, vector<128x32xbf16>,
    %c896 = arith.constant 896 : index
    %c0_27 = arith.constant 0 : index
    %27 = vector.load %arg8[%c896, %c0_27] : memref<3200x32xbf16, #tpu.memory_space<vmem>>, vector<128x32xbf16>
    %c0_28 = arith.constant 0 : index
    %c224 = arith.constant 224 : index
    %28 = vector.load %arg9[%c0_28, %c224] : memref<128x800xbf16, #tpu.memory_space<vmem>>, vector<128x32xbf16>
    tpu.vector_store %arg9[%c0_28, %c224], %27 {strides = array<i32>} : memref<128x800xbf16, #tpu.memory_space<vmem>>, vector<128x32xbf16>,
    %c1024 = arith.constant 1024 : index
    %c0_29 = arith.constant 0 : index
    %29 = vector.load %arg8[%c1024, %c0_29] : memref<3200x32xbf16, #tpu.memory_space<vmem>>, vector<128x32xbf16>
    %c0_30 = arith.constant 0 : index
    %c256_31 = arith.constant 256 : index
    %30 = vector.load %arg9[%c0_30, %c256_31] : memref<128x800xbf16, #tpu.memory_space<vmem>>, vector<128x32xbf16>
    tpu.vector_store %arg9[%c0_30, %c256_31], %29 {strides = array<i32>} : memref<128x800xbf16, #tpu.memory_space<vmem>>, vector<128x32xbf16>,
    %c1152 = arith.constant 1152 : index
    %c0_32 = arith.constant 0 : index
    %31 = vector.load %arg8[%c1152, %c0_32] : memref<3200x32xbf16, #tpu.memory_space<vmem>>, vector<128x32xbf16>
    %c0_33 = arith.constant 0 : index
    %c288 = arith.constant 288 : index
    %32 = vector.load %arg9[%c0_33, %c288] : memref<128x800xbf16, #tpu.memory_space<vmem>>, vector<128x32xbf16>
    tpu.vector_store %arg9[%c0_33, %c288], %31 {strides = array<i32>} : memref<128x800xbf16, #tpu.memory_space<vmem>>, vector<128x32xbf16>,
    %c1280 = arith.constant 1280 : index
    %c0_34 = arith.constant 0 : index
    %33 = vector.load %arg8[%c1280, %c0_34] : memref<3200x32xbf16, #tpu.memory_space<vmem>>, vector<128x32xbf16>
    %c0_35 = arith.constant 0 : index
    %c320 = arith.constant 320 : index
    %34 = vector.load %arg9[%c0_35, %c320] : memref<128x800xbf16, #tpu.memory_space<vmem>>, vector<128x32xbf16>
    tpu.vector_store %arg9[%c0_35, %c320], %33 {strides = array<i32>} : memref<128x800xbf16, #tpu.memory_space<vmem>>, vector<128x32xbf16>,
    %c1408 = arith.constant 1408 : index
    %c0_36 = arith.constant 0 : index
    %35 = vector.load %arg8[%c1408, %c0_36] : memref<3200x32xbf16, #tpu.memory_space<vmem>>, vector<128x32xbf16>
    %c0_37 = arith.constant 0 : index
    %c352 = arith.constant 352 : index
    %36 = vector.load %arg9[%c0_37, %c352] : memref<128x800xbf16, #tpu.memory_space<vmem>>, vector<128x32xbf16>
    tpu.vector_store %arg9[%c0_37, %c352], %35 {strides = array<i32>} : memref<128x800xbf16, #tpu.memory_space<vmem>>, vector<128x32xbf16>,
    %c1536 = arith.constant 1536 : index
    %c0_38 = arith.constant 0 : index
    %37 = vector.load %arg8[%c1536, %c0_38] : memref<3200x32xbf16, #tpu.memory_space<vmem>>, vector<128x32xbf16>
    %c0_39 = arith.constant 0 : index
    %c384_40 = arith.constant 384 : index
    %38 = vector.load %arg9[%c0_39, %c384_40] : memref<128x800xbf16, #tpu.memory_space<vmem>>, vector<128x32xbf16>
    tpu.vector_store %arg9[%c0_39, %c384_40], %37 {strides = array<i32>} : memref<128x800xbf16, #tpu.memory_space<vmem>>, vector<128x32xbf16>,
    %c1664 = arith.constant 1664 : index
    %c0_41 = arith.constant 0 : index
    %39 = vector.load %arg8[%c1664, %c0_41] : memref<3200x32xbf16, #tpu.memory_space<vmem>>, vector<128x32xbf16>
    %c0_42 = arith.constant 0 : index
    %c416 = arith.constant 416 : index
    %40 = vector.load %arg9[%c0_42, %c416] : memref<128x800xbf16, #tpu.memory_space<vmem>>, vector<128x32xbf16>
    tpu.vector_store %arg9[%c0_42, %c416], %39 {strides = array<i32>} : memref<128x800xbf16, #tpu.memory_space<vmem>>, vector<128x32xbf16>,
    %c1792 = arith.constant 1792 : index
    %c0_43 = arith.constant 0 : index
    %41 = vector.load %arg8[%c1792, %c0_43] : memref<3200x32xbf16, #tpu.memory_space<vmem>>, vector<128x32xbf16>
    %c0_44 = arith.constant 0 : index
    %c448 = arith.constant 448 : index
    %42 = vector.load %arg9[%c0_44, %c448] : memref<128x800xbf16, #tpu.memory_space<vmem>>, vector<128x32xbf16>
    tpu.vector_store %arg9[%c0_44, %c448], %41 {strides = array<i32>} : memref<128x800xbf16, #tpu.memory_space<vmem>>, vector<128x32xbf16>,
    %c1920 = arith.constant 1920 : index
    %c0_45 = arith.constant 0 : index
    %43 = vector.load %arg8[%c1920, %c0_45] : memref<3200x32xbf16, #tpu.memory_space<vmem>>, vector<128x32xbf16>
    %c0_46 = arith.constant 0 : index
    %c480 = arith.constant 480 : index
    %44 = vector.load %arg9[%c0_46, %c480] : memref<128x800xbf16, #tpu.memory_space<vmem>>, vector<128x32xbf16>
    tpu.vector_store %arg9[%c0_46, %c480], %43 {strides = array<i32>} : memref<128x800xbf16, #tpu.memory_space<vmem>>, vector<128x32xbf16>,
    %c2048 = arith.constant 2048 : index
    %c0_47 = arith.constant 0 : index
    %45 = vector.load %arg8[%c2048, %c0_47] : memref<3200x32xbf16, #tpu.memory_space<vmem>>, vector<128x32xbf16>
    %c0_48 = arith.constant 0 : index
    %c512_49 = arith.constant 512 : index
    %46 = vector.load %arg9[%c0_48, %c512_49] : memref<128x800xbf16, #tpu.memory_space<vmem>>, vector<128x32xbf16>
    tpu.vector_store %arg9[%c0_48, %c512_49], %45 {strides = array<i32>} : memref<128x800xbf16, #tpu.memory_space<vmem>>, vector<128x32xbf16>,
    %c2176 = arith.constant 2176 : index
    %c0_50 = arith.constant 0 : index
    %47 = vector.load %arg8[%c2176, %c0_50] : memref<3200x32xbf16, #tpu.memory_space<vmem>>, vector<128x32xbf16>
    %c0_51 = arith.constant 0 : index
    %c544 = arith.constant 544 : index
    %48 = vector.load %arg9[%c0_51, %c544] : memref<128x800xbf16, #tpu.memory_space<vmem>>, vector<128x32xbf16>
    tpu.vector_store %arg9[%c0_51, %c544], %47 {strides = array<i32>} : memref<128x800xbf16, #tpu.memory_space<vmem>>, vector<128x32xbf16>,
    %c2304 = arith.constant 2304 : index
    %c0_52 = arith.constant 0 : index
    %49 = vector.load %arg8[%c2304, %c0_52] : memref<3200x32xbf16, #tpu.memory_space<vmem>>, vector<128x32xbf16>
    %c0_53 = arith.constant 0 : index
    %c576 = arith.constant 576 : index
    %50 = vector.load %arg9[%c0_53, %c576] : memref<128x800xbf16, #tpu.memory_space<vmem>>, vector<128x32xbf16>
    tpu.vector_store %arg9[%c0_53, %c576], %49 {strides = array<i32>} : memref<128x800xbf16, #tpu.memory_space<vmem>>, vector<128x32xbf16>,
    %c2432 = arith.constant 2432 : index
    %c0_54 = arith.constant 0 : index
    %51 = vector.load %arg8[%c2432, %c0_54] : memref<3200x32xbf16, #tpu.memory_space<vmem>>, vector<128x32xbf16>
    %c0_55 = arith.constant 0 : index
    %c608 = arith.constant 608 : index
    %52 = vector.load %arg9[%c0_55, %c608] : memref<128x800xbf16, #tpu.memory_space<vmem>>, vector<128x32xbf16>
    tpu.vector_store %arg9[%c0_55, %c608], %51 {strides = array<i32>} : memref<128x800xbf16, #tpu.memory_space<vmem>>, vector<128x32xbf16>,
    %c2560 = arith.constant 2560 : index
    %c0_56 = arith.constant 0 : index
    %53 = vector.load %arg8[%c2560, %c0_56] : memref<3200x32xbf16, #tpu.memory_space<vmem>>, vector<128x32xbf16>
    %c0_57 = arith.constant 0 : index
    %c640_58 = arith.constant 640 : index
    %54 = vector.load %arg9[%c0_57, %c640_58] : memref<128x800xbf16, #tpu.memory_space<vmem>>, vector<128x32xbf16>
    tpu.vector_store %arg9[%c0_57, %c640_58], %53 {strides = array<i32>} : memref<128x800xbf16, #tpu.memory_space<vmem>>, vector<128x32xbf16>,
    %c2688 = arith.constant 2688 : index
    %c0_59 = arith.constant 0 : index
    %55 = vector.load %arg8[%c2688, %c0_59] : memref<3200x32xbf16, #tpu.memory_space<vmem>>, vector<128x32xbf16>
    %c0_60 = arith.constant 0 : index
    %c672 = arith.constant 672 : index
    %56 = vector.load %arg9[%c0_60, %c672] : memref<128x800xbf16, #tpu.memory_space<vmem>>, vector<128x32xbf16>
    tpu.vector_store %arg9[%c0_60, %c672], %55 {strides = array<i32>} : memref<128x800xbf16, #tpu.memory_space<vmem>>, vector<128x32xbf16>,
    %c2816 = arith.constant 2816 : index
    %c0_61 = arith.constant 0 : index
    %57 = vector.load %arg8[%c2816, %c0_61] : memref<3200x32xbf16, #tpu.memory_space<vmem>>, vector<128x32xbf16>
    %c0_62 = arith.constant 0 : index
    %c704 = arith.constant 704 : index
    %58 = vector.load %arg9[%c0_62, %c704] : memref<128x800xbf16, #tpu.memory_space<vmem>>, vector<128x32xbf16>
    tpu.vector_store %arg9[%c0_62, %c704], %57 {strides = array<i32>} : memref<128x800xbf16, #tpu.memory_space<vmem>>, vector<128x32xbf16>,
    %c2944 = arith.constant 2944 : index
    %c0_63 = arith.constant 0 : index
    %59 = vector.load %arg8[%c2944, %c0_63] : memref<3200x32xbf16, #tpu.memory_space<vmem>>, vector<128x32xbf16>
    %c0_64 = arith.constant 0 : index
    %c736 = arith.constant 736 : index
    %60 = vector.load %arg9[%c0_64, %c736] : memref<128x800xbf16, #tpu.memory_space<vmem>>, vector<128x32xbf16>
    tpu.vector_store %arg9[%c0_64, %c736], %59 {strides = array<i32>} : memref<128x800xbf16, #tpu.memory_space<vmem>>, vector<128x32xbf16>,
    %c3072 = arith.constant 3072 : index
    %c0_65 = arith.constant 0 : index
    %61 = vector.load %arg8[%c3072, %c0_65] : memref<3200x32xbf16, #tpu.memory_space<vmem>>, vector<128x32xbf16>
    %c0_66 = arith.constant 0 : index
    %c768_67 = arith.constant 768 : index
    %62 = vector.load %arg9[%c0_66, %c768_67] : memref<128x800xbf16, #tpu.memory_space<vmem>>, vector<128x32xbf16>
    tpu.vector_store %arg9[%c0_66, %c768_67], %61 {strides = array<i32>} : memref<128x800xbf16, #tpu.memory_space<vmem>>, vector<128x32xbf16>,
    %c0_68 = arith.constant 0 : index
    %c0_69 = arith.constant 0 : index
    %63 = vector.load %arg9[%c0_68, %c0_69] : memref<128x800xbf16, #tpu.memory_space<vmem>>, vector<128x800xbf16>
    %c0_70 = arith.constant 0 : index
    %c0_71 = arith.constant 0 : index
    %64 = vector.load %arg5[%c0_70, %c0_71] : memref<800x64xbf16, #tpu.memory_space<vmem>>, vector<800x64xbf16>
    %cst_72 = arith.constant dense<0.000000e+00> : vector<128x64xf32>
    %65 = tpu.matmul %63, %64, %cst_72 {dimension_numbers = #tpu.dot_dimension_numbers<[1], [0], [0], [1], [0, 0, 1, 1], [], []>} : vector<128x800xbf16>, vector<800x64xbf16>, vector<128x64xf32> -> vector<128x64xf32>
    %c0_73 = arith.constant 0 : index
    %c0_74 = arith.constant 0 : index
    %66 = vector.load %arg6[%c0_73, %c0_74] : memref<1x64xf32, #tpu.memory_space<vmem>>, vector<1x64xf32>
    %67 = vector.broadcast %66 : vector<1x64xf32> to vector<128x64xf32>
    %68 = arith.addf %65, %67 : vector<128x64xf32>
    %cst_75 = arith.constant 0.000000e+00 : f32
    %69 = vector.broadcast %cst_75 : f32 to vector<128x64xf32>
    %70 = arith.maximumf %68, %69 : vector<128x64xf32>
    %71 = vector.extract_strided_slice %70 {offsets = [0, 0], sizes = [8, 64], strides = [1, 1]} : vector<128x64xf32> to vector<8x64xf32>
    %c0_76 = arith.constant 0 : index
    %c0_77 = arith.constant 0 : index
    %c0_78 = arith.constant 0 : index
    %72 = vector.load %arg7[%c0_76, %c0_77, %c0_78] : memref<8x1x1024xf32, #tpu.memory_space<vmem>>, vector<8x1x64xf32>
    %73 = vector.shape_cast %72 : vector<8x1x64xf32> to vector<8x64xf32>
    %74 = vector.shape_cast %71 : vector<8x64xf32> to vector<8x1x64xf32>
    tpu.vector_store %arg7[%c0_76, %c0_77, %c0_78], %74 {strides = array<i32>} : memref<8x1x1024xf32, #tpu.memory_space<vmem>>, vector<8x1x64xf32>,
    %75 = vector.extract_strided_slice %70 {offsets = [8, 0], sizes = [8, 64], strides = [1, 1]} : vector<128x64xf32> to vector<8x64xf32>
    %c0_79 = arith.constant 0 : index
    %c0_80 = arith.constant 0 : index
    %c64_81 = arith.constant 64 : index
    %76 = vector.load %arg7[%c0_79, %c0_80, %c64_81] : memref<8x1x1024xf32, #tpu.memory_space<vmem>>, vector<8x1x64xf32>
    %77 = vector.shape_cast %76 : vector<8x1x64xf32> to vector<8x64xf32>
    %78 = vector.shape_cast %75 : vector<8x64xf32> to vector<8x1x64xf32>
    tpu.vector_store %arg7[%c0_79, %c0_80, %c64_81], %78 {strides = array<i32>} : memref<8x1x1024xf32, #tpu.memory_space<vmem>>, vector<8x1x64xf32>,
    %79 = vector.extract_strided_slice %70 {offsets = [16, 0], sizes = [8, 64], strides = [1, 1]} : vector<128x64xf32> to vector<8x64xf32>
    %c0_82 = arith.constant 0 : index
    %c0_83 = arith.constant 0 : index
    %c128_84 = arith.constant 128 : index
    %80 = vector.load %arg7[%c0_82, %c0_83, %c128_84] : memref<8x1x1024xf32, #tpu.memory_space<vmem>>, vector<8x1x64xf32>
    %81 = vector.shape_cast %80 : vector<8x1x64xf32> to vector<8x64xf32>
    %82 = vector.shape_cast %79 : vector<8x64xf32> to vector<8x1x64xf32>
    tpu.vector_store %arg7[%c0_82, %c0_83, %c128_84], %82 {strides = array<i32>} : memref<8x1x1024xf32, #tpu.memory_space<vmem>>, vector<8x1x64xf32>,
    %83 = vector.extract_strided_slice %70 {offsets = [24, 0], sizes = [8, 64], strides = [1, 1]} : vector<128x64xf32> to vector<8x64xf32>
    %c0_85 = arith.constant 0 : index
    %c0_86 = arith.constant 0 : index
    %c192_87 = arith.constant 192 : index
    %84 = vector.load %arg7[%c0_85, %c0_86, %c192_87] : memref<8x1x1024xf32, #tpu.memory_space<vmem>>, vector<8x1x64xf32>
    %85 = vector.shape_cast %84 : vector<8x1x64xf32> to vector<8x64xf32>
    %86 = vector.shape_cast %83 : vector<8x64xf32> to vector<8x1x64xf32>
    tpu.vector_store %arg7[%c0_85, %c0_86, %c192_87], %86 {strides = array<i32>} : memref<8x1x1024xf32, #tpu.memory_space<vmem>>, vector<8x1x64xf32>,
    %87 = vector.extract_strided_slice %70 {offsets = [32, 0], sizes = [8, 64], strides = [1, 1]} : vector<128x64xf32> to vector<8x64xf32>
    %c0_88 = arith.constant 0 : index
    %c0_89 = arith.constant 0 : index
    %c256_90 = arith.constant 256 : index
    %88 = vector.load %arg7[%c0_88, %c0_89, %c256_90] : memref<8x1x1024xf32, #tpu.memory_space<vmem>>, vector<8x1x64xf32>
    %89 = vector.shape_cast %88 : vector<8x1x64xf32> to vector<8x64xf32>
    %90 = vector.shape_cast %87 : vector<8x64xf32> to vector<8x1x64xf32>
    tpu.vector_store %arg7[%c0_88, %c0_89, %c256_90], %90 {strides = array<i32>} : memref<8x1x1024xf32, #tpu.memory_space<vmem>>, vector<8x1x64xf32>,
    %91 = vector.extract_strided_slice %70 {offsets = [40, 0], sizes = [8, 64], strides = [1, 1]} : vector<128x64xf32> to vector<8x64xf32>
    %c0_91 = arith.constant 0 : index
    %c0_92 = arith.constant 0 : index
    %c320_93 = arith.constant 320 : index
    %92 = vector.load %arg7[%c0_91, %c0_92, %c320_93] : memref<8x1x1024xf32, #tpu.memory_space<vmem>>, vector<8x1x64xf32>
    %93 = vector.shape_cast %92 : vector<8x1x64xf32> to vector<8x64xf32>
    %94 = vector.shape_cast %91 : vector<8x64xf32> to vector<8x1x64xf32>
    tpu.vector_store %arg7[%c0_91, %c0_92, %c320_93], %94 {strides = array<i32>} : memref<8x1x1024xf32, #tpu.memory_space<vmem>>, vector<8x1x64xf32>,
    %95 = vector.extract_strided_slice %70 {offsets = [48, 0], sizes = [8, 64], strides = [1, 1]} : vector<128x64xf32> to vector<8x64xf32>
    %c0_94 = arith.constant 0 : index
    %c0_95 = arith.constant 0 : index
    %c384_96 = arith.constant 384 : index
    %96 = vector.load %arg7[%c0_94, %c0_95, %c384_96] : memref<8x1x1024xf32, #tpu.memory_space<vmem>>, vector<8x1x64xf32>
    %97 = vector.shape_cast %96 : vector<8x1x64xf32> to vector<8x64xf32>
    %98 = vector.shape_cast %95 : vector<8x64xf32> to vector<8x1x64xf32>
    tpu.vector_store %arg7[%c0_94, %c0_95, %c384_96], %98 {strides = array<i32>} : memref<8x1x1024xf32, #tpu.memory_space<vmem>>, vector<8x1x64xf32>,
    %99 = vector.extract_strided_slice %70 {offsets = [56, 0], sizes = [8, 64], strides = [1, 1]} : vector<128x64xf32> to vector<8x64xf32>
    %c0_97 = arith.constant 0 : index
    %c0_98 = arith.constant 0 : index
    %c448_99 = arith.constant 448 : index
    %100 = vector.load %arg7[%c0_97, %c0_98, %c448_99] : memref<8x1x1024xf32, #tpu.memory_space<vmem>>, vector<8x1x64xf32>
    %101 = vector.shape_cast %100 : vector<8x1x64xf32> to vector<8x64xf32>
    %102 = vector.shape_cast %99 : vector<8x64xf32> to vector<8x1x64xf32>
    tpu.vector_store %arg7[%c0_97, %c0_98, %c448_99], %102 {strides = array<i32>} : memref<8x1x1024xf32, #tpu.memory_space<vmem>>, vector<8x1x64xf32>,
    %103 = vector.extract_strided_slice %70 {offsets = [64, 0], sizes = [8, 64], strides = [1, 1]} : vector<128x64xf32> to vector<8x64xf32>
    %c0_100 = arith.constant 0 : index
    %c0_101 = arith.constant 0 : index
    %c512_102 = arith.constant 512 : index
    %104 = vector.load %arg7[%c0_100, %c0_101, %c512_102] : memref<8x1x1024xf32, #tpu.memory_space<vmem>>, vector<8x1x64xf32>
    %105 = vector.shape_cast %104 : vector<8x1x64xf32> to vector<8x64xf32>
    %106 = vector.shape_cast %103 : vector<8x64xf32> to vector<8x1x64xf32>
    tpu.vector_store %arg7[%c0_100, %c0_101, %c512_102], %106 {strides = array<i32>} : memref<8x1x1024xf32, #tpu.memory_space<vmem>>, vector<8x1x64xf32>,
    %107 = vector.extract_strided_slice %70 {offsets = [72, 0], sizes = [8, 64], strides = [1, 1]} : vector<128x64xf32> to vector<8x64xf32>
    %c0_103 = arith.constant 0 : index
    %c0_104 = arith.constant 0 : index
    %c576_105 = arith.constant 576 : index
    %108 = vector.load %arg7[%c0_103, %c0_104, %c576_105] : memref<8x1x1024xf32, #tpu.memory_space<vmem>>, vector<8x1x64xf32>
    %109 = vector.shape_cast %108 : vector<8x1x64xf32> to vector<8x64xf32>
    %110 = vector.shape_cast %107 : vector<8x64xf32> to vector<8x1x64xf32>
    tpu.vector_store %arg7[%c0_103, %c0_104, %c576_105], %110 {strides = array<i32>} : memref<8x1x1024xf32, #tpu.memory_space<vmem>>, vector<8x1x64xf32>,
    %111 = vector.extract_strided_slice %70 {offsets = [80, 0], sizes = [8, 64], strides = [1, 1]} : vector<128x64xf32> to vector<8x64xf32>
    %c0_106 = arith.constant 0 : index
    %c0_107 = arith.constant 0 : index
    %c640_108 = arith.constant 640 : index
    %112 = vector.load %arg7[%c0_106, %c0_107, %c640_108] : memref<8x1x1024xf32, #tpu.memory_space<vmem>>, vector<8x1x64xf32>
    %113 = vector.shape_cast %112 : vector<8x1x64xf32> to vector<8x64xf32>
    %114 = vector.shape_cast %111 : vector<8x64xf32> to vector<8x1x64xf32>
    tpu.vector_store %arg7[%c0_106, %c0_107, %c640_108], %114 {strides = array<i32>} : memref<8x1x1024xf32, #tpu.memory_space<vmem>>, vector<8x1x64xf32>,
    %115 = vector.extract_strided_slice %70 {offsets = [88, 0], sizes = [8, 64], strides = [1, 1]} : vector<128x64xf32> to vector<8x64xf32>
    %c0_109 = arith.constant 0 : index
    %c0_110 = arith.constant 0 : index
    %c704_111 = arith.constant 704 : index
    %116 = vector.load %arg7[%c0_109, %c0_110, %c704_111] : memref<8x1x1024xf32, #tpu.memory_space<vmem>>, vector<8x1x64xf32>
    %117 = vector.shape_cast %116 : vector<8x1x64xf32> to vector<8x64xf32>
    %118 = vector.shape_cast %115 : vector<8x64xf32> to vector<8x1x64xf32>
    tpu.vector_store %arg7[%c0_109, %c0_110, %c704_111], %118 {strides = array<i32>} : memref<8x1x1024xf32, #tpu.memory_space<vmem>>, vector<8x1x64xf32>,
    %119 = vector.extract_strided_slice %70 {offsets = [96, 0], sizes = [8, 64], strides = [1, 1]} : vector<128x64xf32> to vector<8x64xf32>
    %c0_112 = arith.constant 0 : index
    %c0_113 = arith.constant 0 : index
    %c768_114 = arith.constant 768 : index
    %120 = vector.load %arg7[%c0_112, %c0_113, %c768_114] : memref<8x1x1024xf32, #tpu.memory_space<vmem>>, vector<8x1x64xf32>
    %121 = vector.shape_cast %120 : vector<8x1x64xf32> to vector<8x64xf32>
    %122 = vector.shape_cast %119 : vector<8x64xf32> to vector<8x1x64xf32>
    tpu.vector_store %arg7[%c0_112, %c0_113, %c768_114], %122 {strides = array<i32>} : memref<8x1x1024xf32, #tpu.memory_space<vmem>>, vector<8x1x64xf32>,
    %123 = vector.extract_strided_slice %70 {offsets = [104, 0], sizes = [8, 64], strides = [1, 1]} : vector<128x64xf32> to vector<8x64xf32>
    %c0_115 = arith.constant 0 : index
    %c0_116 = arith.constant 0 : index
    %c832 = arith.constant 832 : index
    %124 = vector.load %arg7[%c0_115, %c0_116, %c832] : memref<8x1x1024xf32, #tpu.memory_space<vmem>>, vector<8x1x64xf32>
    %125 = vector.shape_cast %124 : vector<8x1x64xf32> to vector<8x64xf32>
    %126 = vector.shape_cast %123 : vector<8x64xf32> to vector<8x1x64xf32>
    tpu.vector_store %arg7[%c0_115, %c0_116, %c832], %126 {strides = array<i32>} : memref<8x1x1024xf32, #tpu.memory_space<vmem>>, vector<8x1x64xf32>,
    %127 = vector.extract_strided_slice %70 {offsets = [112, 0], sizes = [8, 64], strides = [1, 1]} : vector<128x64xf32> to vector<8x64xf32>
    %c0_117 = arith.constant 0 : index
    %c0_118 = arith.constant 0 : index
    %c896_119 = arith.constant 896 : index
    %128 = vector.load %arg7[%c0_117, %c0_118, %c896_119] : memref<8x1x1024xf32, #tpu.memory_space<vmem>>, vector<8x1x64xf32>
    %129 = vector.shape_cast %128 : vector<8x1x64xf32> to vector<8x64xf32>
    %130 = vector.shape_cast %127 : vector<8x64xf32> to vector<8x1x64xf32>
    tpu.vector_store %arg7[%c0_117, %c0_118, %c896_119], %130 {strides = array<i32>} : memref<8x1x1024xf32, #tpu.memory_space<vmem>>, vector<8x1x64xf32>,
    %131 = vector.extract_strided_slice %70 {offsets = [120, 0], sizes = [8, 64], strides = [1, 1]} : vector<128x64xf32> to vector<8x64xf32>
    %c0_120 = arith.constant 0 : index
    %c0_121 = arith.constant 0 : index
    %c960 = arith.constant 960 : index
    %132 = vector.load %arg7[%c0_120, %c0_121, %c960] : memref<8x1x1024xf32, #tpu.memory_space<vmem>>, vector<8x1x64xf32>
    %133 = vector.shape_cast %132 : vector<8x1x64xf32> to vector<8x64xf32>
    %134 = vector.shape_cast %131 : vector<8x64xf32> to vector<8x1x64xf32>
    tpu.vector_store %arg7[%c0_120, %c0_121, %c960], %134 {strides = array<i32>} : memref<8x1x1024xf32, #tpu.memory_space<vmem>>, vector<8x1x64xf32>,
    return
  }
  func.func @transform_0(%arg0: i32) -> (i32, i32) {
    %c0_i32 = arith.constant 0 : i32
    %c0_i32_0 = arith.constant 0 : i32
    return %arg0, %c0_i32 : i32, i32
  }
  func.func @transform_1(%arg0: i32) -> (i32, i32) {
    %c0_i32 = arith.constant 0 : i32
    %c0_i32_0 = arith.constant 0 : i32
    %c0_i32_1 = arith.constant 0 : i32
    return %c0_i32, %c0_i32_0 : i32, i32
  }
  func.func @transform_2(%arg0: i32) -> (i32, i32) {
    %c0_i32 = arith.constant 0 : i32
    %c0_i32_0 = arith.constant 0 : i32
    %c0_i32_1 = arith.constant 0 : i32
    return %c0_i32, %c0_i32_0 : i32, i32
  }
  func.func @transform_3(%arg0: i32) -> (i32, i32) {
    %c0_i32 = arith.constant 0 : i32
    %c0_i32_0 = arith.constant 0 : i32
    %c0_i32_1 = arith.constant 0 : i32
    return %c0_i32, %c0_i32_0 : i32, i32
  }
  func.func @transform_4(%arg0: i32) -> (i32, i32) {
    %c0_i32 = arith.constant 0 : i32
    %c0_i32_0 = arith.constant 0 : i32
    %c0_i32_1 = arith.constant 0 : i32
    return %c0_i32, %c0_i32_0 : i32, i32
  }
  func.func @transform_5(%arg0: i32) -> (i32, i32) {
    %c0_i32 = arith.constant 0 : i32
    %c0_i32_0 = arith.constant 0 : i32
    %c0_i32_1 = arith.constant 0 : i32
    return %c0_i32, %c0_i32_0 : i32, i32
  }
  func.func @transform_6(%arg0: i32) -> (i32, i32, i32) {
    %c0_i32 = arith.constant 0 : i32
    %c0_i32_0 = arith.constant 0 : i32
    %c0_i32_1 = arith.constant 0 : i32
    return %arg0, %c0_i32, %c0_i32_0 : i32, i32, i32
  }
}

</mosaic_0001>

<llo_original>
// kernel: se_encoder_forward.1
$region0: #{se_encoder_forward.1}
  #allocation0 [shape = 'u32[]', space=smem, size = 0x4, offset = 0x4, fixed_abs, tag = 'smem constant byte address 0x4 - core index']
  #allocation1 [shape = 'u32[144,128]{1,0:T(1,128)}', space=vmem, size = 0x12000, scoped, tag = 'internal scratch']
  #allocation2 [shape = 'bf16[3200,32]{1,0:T(16,128)(2,1)}', space=vmem, size = 0xc8000, scoped, tag = 'scratch operand']
  #allocation3 [shape = 'bf16[128,800]{1,0:T(16,128)(2,1)}', space=vmem, size = 0x38000, scoped, tag = 'scratch operand']
  %s0 = inlined_call_operand.vmem [shape: bf16[6400,100], index: 0, kind: input, shape index: {}]
  %s1 = inlined_call_operand.vmem [shape: f32[3200,1], index: 1, kind: input, shape index: {}]
  %s2 = inlined_call_operand.vmem [shape: bf16[100,32], index: 2, kind: input, shape index: {}]
  %s3 = inlined_call_operand.vmem [shape: f32[1,32], index: 3, kind: input, shape index: {}]
  %s4 = inlined_call_operand.vmem [shape: bf16[800,64], index: 4, kind: input, shape index: {}]
  %s5 = inlined_call_operand.vmem [shape: f32[1,64], index: 5, kind: input, shape index: {}]
  %s6 = inlined_call_operand.vmem [shape: f32[16,1,1024], index: 6, kind: output, shape index: {}]
  %s7 = sld [smem:[#allocation0]]
  $region57: #{se_encoder_forward.1} parent=0
    _
  %s9 = ssub.s32 1, %s7
  %s10 = scalar_select 0, %s9, %s7
  loop: start=0, step=1, limit=4
  $region2: #{se_encoder_forward.1} parent=0 // loop_pre_header
    _
  $region3: #{se_encoder_forward.1} parent=0 // loop_header
    %s12 = sphi 0, %s16
    %p13 = scmp.ge.s32.totalorder %s12, 4
    %s22 = sphi 0, %s24
    %s25 = sphi 0, %s22
    %s26 = sphi 0, %s25
    %s42 = sphi 0, %s26
    %s46 = sphi 0, %s46
    %s48 = sphi 0, %s46
    %s49 = sphi 0, %s48
    %s63 = sphi 0, %s49
    %s67 = sphi 0, %s67
    %s69 = sphi 0, %s67
    %s70 = sphi 0, %s69
    %s84 = sphi 0, %s70
    %s88 = sphi 0, %s88
    %s90 = sphi 0, %s88
    %s91 = sphi 0, %s90
    %s105 = sphi 0, %s91
    %s109 = sphi 0, %s109
    %s111 = sphi 0, %s109
    %s112 = sphi 0, %s111
    %s126 = sphi 0, %s112
    %s130 = sphi 0, %s130
    %s132 = sphi 0, %s130
    %s133 = sphi 0, %s132
    %s147 = sphi 0, %s133
    %s153 = sphi 0, %s155
    %s156 = sphi 0, %s153
    %s157 = sphi 0, %s156
    %s173 = sphi 0, %s157
  $region4: #{se_encoder_forward.1} parent=0 // loop_header_branch
    %15 = sbr.rel (%p13) target = $region8
  $region5: #{se_encoder_forward.1} parent=0 // loop_body
    %s17 = ssub.s32 %s12, 1
    %s18 = ssub.s32 %s12, 2
    %s19 = sadd.s32 %s12, 1
    %s20 = ssub.s32 %s12, %s19
    %p21 = scmp.eq.s32.totalorder %s20, 0
    %s23 = sadd.s32 %s22, 1
    %s24 = scalar_select %p21, %s22, %s23
    %p27 = pneg %p21
    %p28 = scmp.eq.s32.totalorder %s12, 1
    %p29 = por %p27, %p28
    %p30 = scmp.ne.s32.totalorder %s22, %s25
    %p31 = scmp.eq.s32.totalorder %s12, 0
    %p32 = por %p30, %p31
    %p33 = scmp.ne.s32.totalorder %s22, %s25
    %p34 = scmp.eq.s32.totalorder %s17, 1
    %p35 = por %p33, %p34
    %p36 = scmp.ne.s32.totalorder %s25, %s26
    %p37 = scmp.eq.s32.totalorder %s17, 0
    %p38 = por %p36, %p37
    %p39 = scmp.ne.s32.totalorder %s25, %s26
    %p40 = scmp.eq.s32.totalorder %s18, 1
    %p41 = por %p39, %p40
    %p43 = scmp.ne.s32.totalorder %s26, %s42
    %p44 = scmp.eq.s32.totalorder %s18, 0
    %p45 = por %p43, %p44
    %s47 = sadd.s32 %s46, 1
    %p50 = scmp.eq.s32.totalorder %s12, 1
    %p51 = scmp.ne.s32.totalorder %s46, %s48
    %p52 = scmp.eq.s32.totalorder %s12, 0
    %p53 = por %p51, %p52
    %p54 = scmp.ne.s32.totalorder %s46, %s48
    %p55 = scmp.eq.s32.totalorder %s17, 1
    %p56 = por %p54, %p55
    %p57 = scmp.ne.s32.totalorder %s48, %s49
    %p58 = scmp.eq.s32.totalorder %s17, 0
    %p59 = por %p57, %p58
    %p60 = scmp.ne.s32.totalorder %s48, %s49
    %p61 = scmp.eq.s32.totalorder %s18, 1
    %p62 = por %p60, %p61
    %p64 = scmp.ne.s32.totalorder %s49, %s63
    %p65 = scmp.eq.s32.totalorder %s18, 0
    %p66 = por %p64, %p65
    %s68 = sadd.s32 %s67, 1
    %p71 = scmp.eq.s32.totalorder %s12, 1
    %p72 = scmp.ne.s32.totalorder %s67, %s69
    %p73 = scmp.eq.s32.totalorder %s12, 0
    %p74 = por %p72, %p73
    %p75 = scmp.ne.s32.totalorder %s67, %s69
    %p76 = scmp.eq.s32.totalorder %s17, 1
    %p77 = por %p75, %p76
    %p78 = scmp.ne.s32.totalorder %s69, %s70
    %p79 = scmp.eq.s32.totalorder %s17, 0
    %p80 = por %p78, %p79
    %p81 = scmp.ne.s32.totalorder %s69, %s70
    %p82 = scmp.eq.s32.totalorder %s18, 1
    %p83 = por %p81, %p82
    %p85 = scmp.ne.s32.totalorder %s70, %s84
    %p86 = scmp.eq.s32.totalorder %s18, 0
    %p87 = por %p85, %p86
    %s89 = sadd.s32 %s88, 1
    %p92 = scmp.eq.s32.totalorder %s12, 1
    %p93 = scmp.ne.s32.totalorder %s88, %s90
    %p94 = scmp.eq.s32.totalorder %s12, 0
    %p95 = por %p93, %p94
    %p96 = scmp.ne.s32.totalorder %s88, %s90
    %p97 = scmp.eq.s32.totalorder %s17, 1
    %p98 = por %p96, %p97
    %p99 = scmp.ne.s32.totalorder %s90, %s91
    %p100 = scmp.eq.s32.totalorder %s17, 0
    %p101 = por %p99, %p100
    %p102 = scmp.ne.s32.totalorder %s90, %s91
    %p103 = scmp.eq.s32.totalorder %s18, 1
    %p104 = por %p102, %p103
    %p106 = scmp.ne.s32.totalorder %s91, %s105
    %p107 = scmp.eq.s32.totalorder %s18, 0
    %p108 = por %p106, %p107
    %s110 = sadd.s32 %s109, 1
    %p113 = scmp.eq.s32.totalorder %s12, 1
    %p114 = scmp.ne.s32.totalorder %s109, %s111
    %p115 = scmp.eq.s32.totalorder %s12, 0
    %p116 = por %p114, %p115
    %p117 = scmp.ne.s32.totalorder %s109, %s111
    %p118 = scmp.eq.s32.totalorder %s17, 1
    %p119 = por %p117, %p118
    %p120 = scmp.ne.s32.totalorder %s111, %s112
    %p121 = scmp.eq.s32.totalorder %s17, 0
    %p122 = por %p120, %p121
    %p123 = scmp.ne.s32.totalorder %s111, %s112
    %p124 = scmp.eq.s32.totalorder %s18, 1
    %p125 = por %p123, %p124
    %p127 = scmp.ne.s32.totalorder %s112, %s126
    %p128 = scmp.eq.s32.totalorder %s18, 0
    %p129 = por %p127, %p128
    %s131 = sadd.s32 %s130, 1
    %p134 = scmp.eq.s32.totalorder %s12, 1
    %p135 = scmp.ne.s32.totalorder %s130, %s132
    %p136 = scmp.eq.s32.totalorder %s12, 0
    %p137 = por %p135, %p136
    %p138 = scmp.ne.s32.totalorder %s130, %s132
    %p139 = scmp.eq.s32.totalorder %s17, 1
    %p140 = por %p138, %p139
    %p141 = scmp.ne.s32.totalorder %s132, %s133
    %p142 = scmp.eq.s32.totalorder %s17, 0
    %p143 = por %p141, %p142
    %p144 = scmp.ne.s32.totalorder %s132, %s133
    %p145 = scmp.eq.s32.totalorder %s18, 1
    %p146 = por %p144, %p145
    %p148 = scmp.ne.s32.totalorder %s133, %s147
    %p149 = scmp.eq.s32.totalorder %s18, 0
    %p150 = por %p148, %p149
    %s151 = ssub.s32 %s12, %s19
    %p152 = scmp.eq.s32.totalorder %s151, 0
    %s154 = sadd.s32 %s153, 1
    %s155 = scalar_select %p152, %s153, %s154
    %p158 = pneg %p152
    %p159 = scmp.eq.s32.totalorder %s12, 1
    %p160 = por %p158, %p159
    %p161 = scmp.ne.s32.totalorder %s153, %s156
    %p162 = scmp.eq.s32.totalorder %s12, 0
    %p163 = por %p161, %p162
    %p164 = scmp.ne.s32.totalorder %s153, %s156
    %p165 = scmp.eq.s32.totalorder %s17, 1
    %p166 = por %p164, %p165
    %p167 = scmp.ne.s32.totalorder %s156, %s157
    %p168 = scmp.eq.s32.totalorder %s17, 0
    %p169 = por %p167, %p168
    %p170 = scmp.ne.s32.totalorder %s156, %s157
    %p171 = scmp.eq.s32.totalorder %s18, 1
    %p172 = por %p170, %p171
    %p174 = scmp.ne.s32.totalorder %s157, %s173
    %p175 = scmp.eq.s32.totalorder %s18, 0
    %p176 = por %p174, %p175
    %p177 = scmp.le.s32.totalorder 1, %s12
    %p178 = scmp.lt.s32.totalorder %s12, 3
    %p179 = pnand %p177, %p178
    %p180 = pneg %p179
    // Predicated region
    $region9: #{se_encoder_forward.1} parent=5 // pred_check
      _
    $region10: #{se_encoder_forward.1} parent=5 // pred_check_branch
      %182 = sbr.rel (%p179) target = $region12
    $region11: #{se_encoder_forward.1} parent=5 // pred_region
      %s183 = ssub.s32 %s12, 1
      // Predicated region
      $region13: #{se_encoder_forward.1} parent=11 // pred_check
        %p184 = pneg %p59
      $region14: #{se_encoder_forward.1} parent=11 // pred_check_branch
        %186 = sbr.rel (%p184) target = $region16
      $region15: #{se_encoder_forward.1} parent=11 // pred_region
        _
      $region16: #{se_encoder_forward.1} parent=11 // pred_fallthru
        _
      // Predicated region
      $region17: #{se_encoder_forward.1} parent=11 // pred_check
        %p187 = pneg %p80
      $region18: #{se_encoder_forward.1} parent=11 // pred_check_branch
        %189 = sbr.rel (%p187) target = $region20
      $region19: #{se_encoder_forward.1} parent=11 // pred_region
        _
      $region20: #{se_encoder_forward.1} parent=11 // pred_fallthru
        _
      // Predicated region
      $region21: #{se_encoder_forward.1} parent=11 // pred_check
        %p190 = pneg %p101
      $region22: #{se_encoder_forward.1} parent=11 // pred_check_branch
        %192 = sbr.rel (%p190) target = $region24
      $region23: #{se_encoder_forward.1} parent=11 // pred_region
        _
      $region24: #{se_encoder_forward.1} parent=11 // pred_fallthru
        _
      // Predicated region
      $region25: #{se_encoder_forward.1} parent=11 // pred_check
        %p193 = pneg %p122
      $region26: #{se_encoder_forward.1} parent=11 // pred_check_branch
        %195 = sbr.rel (%p193) target = $region28
      $region27: #{se_encoder_forward.1} parent=11 // pred_region
        _
      $region28: #{se_encoder_forward.1} parent=11 // pred_fallthru
        _
      // Predicated region
      $region29: #{se_encoder_forward.1} parent=11 // pred_check
        %p196 = pneg %p143
      $region30: #{se_encoder_forward.1} parent=11 // pred_check_branch
        %198 = sbr.rel (%p196) target = $region32
      $region31: #{se_encoder_forward.1} parent=11 // pred_region
        _
      $region32: #{se_encoder_forward.1} parent=11 // pred_fallthru
        _
    $region12: #{se_encoder_forward.1} parent=5 // pred_fallthru
      _
    %p199 = scmp.lt.s32.totalorder %s12, 2
    // Predicated region
    $region33: #{se_encoder_forward.1} parent=5 // pred_check
      %p200 = pneg %p199
    $region34: #{se_encoder_forward.1} parent=5 // pred_check_branch
      %202 = sbr.rel (%p200) target = $region36
    $region35: #{se_encoder_forward.1} parent=5 // pred_region
      // Predicated region
      $region37: #{se_encoder_forward.1} parent=35 // pred_check
        %p203 = pneg %p32
      $region38: #{se_encoder_forward.1} parent=35 // pred_check_branch
        %205 = sbr.rel (%p203) target = $region40
      $region39: #{se_encoder_forward.1} parent=35 // pred_region
        %s206 = smul.u32 400, %s12
        %p207 = scmp.lt.s32.totalorder %s206, 799
        %s208 = scalar_select %p207, %s206, 799
        %s209 = smul.addr %s208, 4
        %s210 = scalar_lea.vmem %s0, %s209
        %s211 = smul.u32 400, %s12
      $region40: #{se_encoder_forward.1} parent=35 // pred_fallthru
        _
    $region36: #{se_encoder_forward.1} parent=5 // pred_fallthru
      _
    %p212 = scmp.le.s32.totalorder 1, %s12
    %p213 = scmp.lt.s32.totalorder %s12, 3
    %p214 = pnand %p212, %p213
    %p215 = pneg %p214
    // Predicated region
    $region41: #{se_encoder_forward.1} parent=5 // pred_check
      _
    $region42: #{se_encoder_forward.1} parent=5 // pred_check_branch
      %217 = sbr.rel (%p214) target = $region44
    $region43: #{se_encoder_forward.1} parent=5 // pred_region
      %s218 = ssub.s32 %s12, 1
      %s219 = smul.u32 400, %s17
      %p220 = scmp.lt.s32.totalorder %s219, 799
      %s221 = scalar_select %p220, %s219, 799
      %s222 = smul.addr %s221, 4
      %s223 = scalar_lea.vmem %s0, %s222
      %p224 = pneg %p38
      %p225 = pneg %p35
      %p226 = pneg %p59
      %p227 = pneg %p56
      %p228 = pneg %p80
      %p229 = pneg %p77
      %p230 = pneg %p101
      %p231 = pneg %p98
      %p232 = pneg %p122
      %p233 = pneg %p119
      %p234 = pneg %p143
      %p235 = pneg %p140
      %p236 = pneg %p169
      %p237 = pneg %p166
      %s238 = smul.u32 8, %s17
      %p239 = scmp.lt.s32.totalorder %s238, 15
      %s240 = scalar_select %p239, %s238, 15
      %s241 = smul.addr %s240, 8
      %s242 = scalar_lea.vmem %s6, %s241
      %s243 = smul.u32 400, %s17
      %p244 = scmp.lt.s32.totalorder %s243, 799
      %s245 = scalar_select %p244, %s243, 799
      %s246 = smul.addr %s245, 4
      %s247 = scalar_lea.vmem %s0, %s246
      %s248 = smul.u32 400, %s17
      %s249 = smul.u32 8, %s17
      %p250 = scmp.lt.s32.totalorder %s249, 15
      %s251 = scalar_select %p250, %s249, 15
      %s252 = smul.addr %s251, 8
      %s253 = scalar_lea.vmem %s6, %s252
      %s254 = smul.u32 8, %s17
      %v256 = vld [vmem:[%s247] sm:$0xf]
      %v257 = vld [vmem:[%s247 + $0x4] sm:$0xf]
      %v258 = vld [vmem:[%s247 + $0x8] sm:$0xf]
      %v259 = vld [vmem:[%s247 + $0xc] sm:$0xf]
      %v260 = vld [vmem:[%s247 + $0x10] sm:$0xf]
      %v261 = vld [vmem:[%s247 + $0x14] sm:$0xf]
      %v262 = vld [vmem:[%s247 + $0x18] sm:$0xf]
      %v263 = vld [vmem:[%s247 + $0x1c] sm:$0xf]
      %v264 = vld [vmem:[%s247 + $0x20] sm:$0xf]
      %v265 = vld [vmem:[%s247 + $0x24] sm:$0xf]
      %v266 = vld [vmem:[%s247 + $0x28] sm:$0xf]
      %v267 = vld [vmem:[%s247 + $0x2c] sm:$0xf]
      %v268 = vld [vmem:[%s247 + $0x30] sm:$0xf]
      %v269 = vld [vmem:[%s247 + $0x34] sm:$0xf]
      %v270 = vld [vmem:[%s247 + $0x38] sm:$0xf]
      %v271 = vld [vmem:[%s247 + $0x3c] sm:$0xf]
      %v272 = vld [vmem:[%s247 + $0x40] sm:$0xf]
      %v273 = vld [vmem:[%s247 + $0x44] sm:$0xf]
      %v274 = vld [vmem:[%s247 + $0x48] sm:$0xf]
      %v275 = vld [vmem:[%s247 + $0x4c] sm:$0xf]
      %v276 = vld [vmem:[%s247 + $0x50] sm:$0xf]
      %v277 = vld [vmem:[%s247 + $0x54] sm:$0xf]
      %v278 = vld [vmem:[%s247 + $0x58] sm:$0xf]
      %v279 = vld [vmem:[%s247 + $0x5c] sm:$0xf]
      %v280 = vld [vmem:[%s247 + $0x60] sm:$0xf]
      %v281 = vld [vmem:[%s247 + $0x64] sm:$0xf]
      %v282 = vld [vmem:[%s247 + $0x68] sm:$0xf]
      %v283 = vld [vmem:[%s247 + $0x6c] sm:$0xf]
      %v284 = vld [vmem:[%s247 + $0x70] sm:$0xf]
      %v285 = vld [vmem:[%s247 + $0x74] sm:$0xf]
      %v286 = vld [vmem:[%s247 + $0x78] sm:$0xf]
      %v287 = vld [vmem:[%s247 + $0x7c] sm:$0xf]
      %v288 = vld [vmem:[%s247 + $0x80] sm:$0xf]
      %v289 = vld [vmem:[%s247 + $0x84] sm:$0xf]
      %v290 = vld [vmem:[%s247 + $0x88] sm:$0xf]
      %v291 = vld [vmem:[%s247 + $0x8c] sm:$0xf]
      %v292 = vld [vmem:[%s247 + $0x90] sm:$0xf]
      %v293 = vld [vmem:[%s247 + $0x94] sm:$0xf]
      %v294 = vld [vmem:[%s247 + $0x98] sm:$0xf]
      %v295 = vld [vmem:[%s247 + $0x9c] sm:$0xf]
      %v296 = vld [vmem:[%s247 + $0xa0] sm:$0xf]
      %v297 = vld [vmem:[%s247 + $0xa4] sm:$0xf]
      %v298 = vld [vmem:[%s247 + $0xa8] sm:$0xf]
      %v299 = vld [vmem:[%s247 + $0xac] sm:$0xf]
      %v300 = vld [vmem:[%s247 + $0xb0] sm:$0xf]
      %v301 = vld [vmem:[%s247 + $0xb4] sm:$0xf]
      %v302 = vld [vmem:[%s247 + $0xb8] sm:$0xf]
      %v303 = vld [vmem:[%s247 + $0xbc] sm:$0xf]
      %v304 = vld [vmem:[%s247 + $0xc0] sm:$0xf]
      %v305 = vld [vmem:[%s247 + $0xc4] sm:$0xf]
      %v306 = vld [vmem:[%s247 + $0xc8] sm:$0xf]
      %v307 = vld [vmem:[%s247 + $0xcc] sm:$0xf]
      %v308 = vld [vmem:[%s247 + $0xd0] sm:$0xf]
      %v309 = vld [vmem:[%s247 + $0xd4] sm:$0xf]
      %v310 = vld [vmem:[%s247 + $0xd8] sm:$0xf]
      %v311 = vld [vmem:[%s247 + $0xdc] sm:$0xf]
      %v312 = vld [vmem:[%s247 + $0xe0] sm:$0xf]
      %v313 = vld [vmem:[%s247 + $0xe4] sm:$0xf]
      %v314 = vld [vmem:[%s247 + $0xe8] sm:$0xf]
      %v315 = vld [vmem:[%s247 + $0xec] sm:$0xf]
      %v316 = vld [vmem:[%s247 + $0xf0] sm:$0xf]
      %v317 = vld [vmem:[%s247 + $0xf4] sm:$0xf]
      %v318 = vld [vmem:[%s247 + $0xf8] sm:$0xf]
      %v319 = vld [vmem:[%s247 + $0xfc] sm:$0xf]
      %v320 = vld [vmem:[%s247 + $0x100] sm:$0xf]
      %v321 = vld [vmem:[%s247 + $0x104] sm:$0xf]
      %v322 = vld [vmem:[%s247 + $0x108] sm:$0xf]
      %v323 = vld [vmem:[%s247 + $0x10c] sm:$0xf]
      %v324 = vld [vmem:[%s247 + $0x110] sm:$0xf]
      %v325 = vld [vmem:[%s247 + $0x114] sm:$0xf]
      %v326 = vld [vmem:[%s247 + $0x118] sm:$0xf]
      %v327 = vld [vmem:[%s247 + $0x11c] sm:$0xf]
      %v328 = vld [vmem:[%s247 + $0x120] sm:$0xf]
      %v329 = vld [vmem:[%s247 + $0x124] sm:$0xf]
      %v330 = vld [vmem:[%s247 + $0x128] sm:$0xf]
      %v331 = vld [vmem:[%s247 + $0x12c] sm:$0xf]
      %v332 = vld [vmem:[%s247 + $0x130] sm:$0xf]
      %v333 = vld [vmem:[%s247 + $0x134] sm:$0xf]
      %v334 = vld [vmem:[%s247 + $0x138] sm:$0xf]
      %v335 = vld [vmem:[%s247 + $0x13c] sm:$0xf]
      %v336 = vld [vmem:[%s247 + $0x140] sm:$0xf]
      %v337 = vld [vmem:[%s247 + $0x144] sm:$0xf]
      %v338 = vld [vmem:[%s247 + $0x148] sm:$0xf]
      %v339 = vld [vmem:[%s247 + $0x14c] sm:$0xf]
      %v340 = vld [vmem:[%s247 + $0x150] sm:$0xf]
      %v341 = vld [vmem:[%s247 + $0x154] sm:$0xf]
      %v342 = vld [vmem:[%s247 + $0x158] sm:$0xf]
      %v343 = vld [vmem:[%s247 + $0x15c] sm:$0xf]
      %v344 = vld [vmem:[%s247 + $0x160] sm:$0xf]
      %v345 = vld [vmem:[%s247 + $0x164] sm:$0xf]
      %v346 = vld [vmem:[%s247 + $0x168] sm:$0xf]
      %v347 = vld [vmem:[%s247 + $0x16c] sm:$0xf]
      %v348 = vld [vmem:[%s247 + $0x170] sm:$0xf]
      %v349 = vld [vmem:[%s247 + $0x174] sm:$0xf]
      %v350 = vld [vmem:[%s247 + $0x178] sm:$0xf]
      %v351 = vld [vmem:[%s247 + $0x17c] sm:$0xf]
      %v352 = vld [vmem:[%s247 + $0x180] sm:$0xf]
      %v353 = vld [vmem:[%s247 + $0x184] sm:$0xf]
      %v354 = vld [vmem:[%s247 + $0x188] sm:$0xf]
      %v355 = vld [vmem:[%s247 + $0x18c] sm:$0xf]
      %v356 = vld [vmem:[%s247 + $0x190] sm:$0xf]
      %v357 = vld [vmem:[%s247 + $0x194] sm:$0xf]
      %v358 = vld [vmem:[%s247 + $0x198] sm:$0xf]
      %v359 = vld [vmem:[%s247 + $0x19c] sm:$0xf]
      %v360 = vld [vmem:[%s247 + $0x1a0] sm:$0xf]
      %v361 = vld [vmem:[%s247 + $0x1a4] sm:$0xf]
      %v362 = vld [vmem:[%s247 + $0x1a8] sm:$0xf]
      %v363 = vld [vmem:[%s247 + $0x1ac] sm:$0xf]
      %v364 = vld [vmem:[%s247 + $0x1b0] sm:$0xf]
      %v365 = vld [vmem:[%s247 + $0x1b4] sm:$0xf]
      %v366 = vld [vmem:[%s247 + $0x1b8] sm:$0xf]
      %v367 = vld [vmem:[%s247 + $0x1bc] sm:$0xf]
      %v368 = vld [vmem:[%s247 + $0x1c0] sm:$0xf]
      %v369 = vld [vmem:[%s247 + $0x1c4] sm:$0xf]
      %v370 = vld [vmem:[%s247 + $0x1c8] sm:$0xf]
      %v371 = vld [vmem:[%s247 + $0x1cc] sm:$0xf]
      %v372 = vld [vmem:[%s247 + $0x1d0] sm:$0xf]
      %v373 = vld [vmem:[%s247 + $0x1d4] sm:$0xf]
      %v374 = vld [vmem:[%s247 + $0x1d8] sm:$0xf]
      %v375 = vld [vmem:[%s247 + $0x1dc] sm:$0xf]
      %v376 = vld [vmem:[%s247 + $0x1e0] sm:$0xf]
      %v377 = vld [vmem:[%s247 + $0x1e4] sm:$0xf]
      %v378 = vld [vmem:[%s247 + $0x1e8] sm:$0xf]
      %v379 = vld [vmem:[%s247 + $0x1ec] sm:$0xf]
      %v380 = vld [vmem:[%s247 + $0x1f0] sm:$0xf]
      %v381 = vld [vmem:[%s247 + $0x1f4] sm:$0xf]
      %v382 = vld [vmem:[%s247 + $0x1f8] sm:$0xf]
      %v383 = vld [vmem:[%s247 + $0x1fc] sm:$0xf]
      %v384 = vld [vmem:[%s247 + $0x200] sm:$0xf]
      %v385 = vld [vmem:[%s247 + $0x204] sm:$0xf]
      %v386 = vld [vmem:[%s247 + $0x208] sm:$0xf]
      %v387 = vld [vmem:[%s247 + $0x20c] sm:$0xf]
      %v388 = vld [vmem:[%s247 + $0x210] sm:$0xf]
      %v389 = vld [vmem:[%s247 + $0x214] sm:$0xf]
      %v390 = vld [vmem:[%s247 + $0x218] sm:$0xf]
      %v391 = vld [vmem:[%s247 + $0x21c] sm:$0xf]
      %v392 = vld [vmem:[%s247 + $0x220] sm:$0xf]
      %v393 = vld [vmem:[%s247 + $0x224] sm:$0xf]
      %v394 = vld [vmem:[%s247 + $0x228] sm:$0xf]
      %v395 = vld [vmem:[%s247 + $0x22c] sm:$0xf]
      %v396 = vld [vmem:[%s247 + $0x230] sm:$0xf]
      %v397 = vld [vmem:[%s247 + $0x234] sm:$0xf]
      %v398 = vld [vmem:[%s247 + $0x238] sm:$0xf]
      %v399 = vld [vmem:[%s247 + $0x23c] sm:$0xf]
      %v400 = vld [vmem:[%s247 + $0x240] sm:$0xf]
      %v401 = vld [vmem:[%s247 + $0x244] sm:$0xf]
      %v402 = vld [vmem:[%s247 + $0x248] sm:$0xf]
      %v403 = vld [vmem:[%s247 + $0x24c] sm:$0xf]
      %v404 = vld [vmem:[%s247 + $0x250] sm:$0xf]
      %v405 = vld [vmem:[%s247 + $0x254] sm:$0xf]
      %v406 = vld [vmem:[%s247 + $0x258] sm:$0xf]
      %v407 = vld [vmem:[%s247 + $0x25c] sm:$0xf]
      %v408 = vld [vmem:[%s247 + $0x260] sm:$0xf]
      %v409 = vld [vmem:[%s247 + $0x264] sm:$0xf]
      %v410 = vld [vmem:[%s247 + $0x268] sm:$0xf]
      %v411 = vld [vmem:[%s247 + $0x26c] sm:$0xf]
      %v412 = vld [vmem:[%s247 + $0x270] sm:$0xf]
      %v413 = vld [vmem:[%s247 + $0x274] sm:$0xf]
      %v414 = vld [vmem:[%s247 + $0x278] sm:$0xf]
      %v415 = vld [vmem:[%s247 + $0x27c] sm:$0xf]
      %v416 = vld [vmem:[%s247 + $0x280] sm:$0xf]
      %v417 = vld [vmem:[%s247 + $0x284] sm:$0xf]
      %v418 = vld [vmem:[%s247 + $0x288] sm:$0xf]
      %v419 = vld [vmem:[%s247 + $0x28c] sm:$0xf]
      %v420 = vld [vmem:[%s247 + $0x290] sm:$0xf]
      %v421 = vld [vmem:[%s247 + $0x294] sm:$0xf]
      %v422 = vld [vmem:[%s247 + $0x298] sm:$0xf]
      %v423 = vld [vmem:[%s247 + $0x29c] sm:$0xf]
      %v424 = vld [vmem:[%s247 + $0x2a0] sm:$0xf]
      %v425 = vld [vmem:[%s247 + $0x2a4] sm:$0xf]
      %v426 = vld [vmem:[%s247 + $0x2a8] sm:$0xf]
      %v427 = vld [vmem:[%s247 + $0x2ac] sm:$0xf]
      %v428 = vld [vmem:[%s247 + $0x2b0] sm:$0xf]
      %v429 = vld [vmem:[%s247 + $0x2b4] sm:$0xf]
      %v430 = vld [vmem:[%s247 + $0x2b8] sm:$0xf]
      %v431 = vld [vmem:[%s247 + $0x2bc] sm:$0xf]
      %v432 = vld [vmem:[%s247 + $0x2c0] sm:$0xf]
      %v433 = vld [vmem:[%s247 + $0x2c4] sm:$0xf]
      %v434 = vld [vmem:[%s247 + $0x2c8] sm:$0xf]
      %v435 = vld [vmem:[%s247 + $0x2cc] sm:$0xf]
      %v436 = vld [vmem:[%s247 + $0x2d0] sm:$0xf]
      %v437 = vld [vmem:[%s247 + $0x2d4] sm:$0xf]
      %v438 = vld [vmem:[%s247 + $0x2d8] sm:$0xf]
      %v439 = vld [vmem:[%s247 + $0x2dc] sm:$0xf]
      %v440 = vld [vmem:[%s247 + $0x2e0] sm:$0xf]
      %v441 = vld [vmem:[%s247 + $0x2e4] sm:$0xf]
      %v442 = vld [vmem:[%s247 + $0x2e8] sm:$0xf]
      %v443 = vld [vmem:[%s247 + $0x2ec] sm:$0xf]
      %v444 = vld [vmem:[%s247 + $0x2f0] sm:$0xf]
      %v445 = vld [vmem:[%s247 + $0x2f4] sm:$0xf]
      %v446 = vld [vmem:[%s247 + $0x2f8] sm:$0xf]
      %v447 = vld [vmem:[%s247 + $0x2fc] sm:$0xf]
      %v448 = vld [vmem:[%s247 + $0x300] sm:$0xf]
      %v449 = vld [vmem:[%s247 + $0x304] sm:$0xf]
      %v450 = vld [vmem:[%s247 + $0x308] sm:$0xf]
      %v451 = vld [vmem:[%s247 + $0x30c] sm:$0xf]
      %v452 = vld [vmem:[%s247 + $0x310] sm:$0xf]
      %v453 = vld [vmem:[%s247 + $0x314] sm:$0xf]
      %v454 = vld [vmem:[%s247 + $0x318] sm:$0xf]
      %v455 = vld [vmem:[%s247 + $0x31c] sm:$0xf]
      %v456 = vld [vmem:[%s247 + $0x320] sm:$0xf]
      %v457 = vld [vmem:[%s247 + $0x324] sm:$0xf]
      %v458 = vld [vmem:[%s247 + $0x328] sm:$0xf]
      %v459 = vld [vmem:[%s247 + $0x32c] sm:$0xf]
      %v460 = vld [vmem:[%s247 + $0x330] sm:$0xf]
      %v461 = vld [vmem:[%s247 + $0x334] sm:$0xf]
      %v462 = vld [vmem:[%s247 + $0x338] sm:$0xf]
      %v463 = vld [vmem:[%s247 + $0x33c] sm:$0xf]
      %v464 = vld [vmem:[%s247 + $0x340] sm:$0xf]
      %v465 = vld [vmem:[%s247 + $0x344] sm:$0xf]
      %v466 = vld [vmem:[%s247 + $0x348] sm:$0xf]
      %v467 = vld [vmem:[%s247 + $0x34c] sm:$0xf]
      %v468 = vld [vmem:[%s247 + $0x350] sm:$0xf]
      %v469 = vld [vmem:[%s247 + $0x354] sm:$0xf]
      %v470 = vld [vmem:[%s247 + $0x358] sm:$0xf]
      %v471 = vld [vmem:[%s247 + $0x35c] sm:$0xf]
      %v472 = vld [vmem:[%s247 + $0x360] sm:$0xf]
      %v473 = vld [vmem:[%s247 + $0x364] sm:$0xf]
      %v474 = vld [vmem:[%s247 + $0x368] sm:$0xf]
      %v475 = vld [vmem:[%s247 + $0x36c] sm:$0xf]
      %v476 = vld [vmem:[%s247 + $0x370] sm:$0xf]
      %v477 = vld [vmem:[%s247 + $0x374] sm:$0xf]
      %v478 = vld [vmem:[%s247 + $0x378] sm:$0xf]
      %v479 = vld [vmem:[%s247 + $0x37c] sm:$0xf]
      %v480 = vld [vmem:[%s247 + $0x380] sm:$0xf]
      %v481 = vld [vmem:[%s247 + $0x384] sm:$0xf]
      %v482 = vld [vmem:[%s247 + $0x388] sm:$0xf]
      %v483 = vld [vmem:[%s247 + $0x38c] sm:$0xf]
      %v484 = vld [vmem:[%s247 + $0x390] sm:$0xf]
      %v485 = vld [vmem:[%s247 + $0x394] sm:$0xf]
      %v486 = vld [vmem:[%s247 + $0x398] sm:$0xf]
      %v487 = vld [vmem:[%s247 + $0x39c] sm:$0xf]
      %v488 = vld [vmem:[%s247 + $0x3a0] sm:$0xf]
      %v489 = vld [vmem:[%s247 + $0x3a4] sm:$0xf]
      %v490 = vld [vmem:[%s247 + $0x3a8] sm:$0xf]
      %v491 = vld [vmem:[%s247 + $0x3ac] sm:$0xf]
      %v492 = vld [vmem:[%s247 + $0x3b0] sm:$0xf]
      %v493 = vld [vmem:[%s247 + $0x3b4] sm:$0xf]
      %v494 = vld [vmem:[%s247 + $0x3b8] sm:$0xf]
      %v495 = vld [vmem:[%s247 + $0x3bc] sm:$0xf]
      %v496 = vld [vmem:[%s247 + $0x3c0] sm:$0xf]
      %v497 = vld [vmem:[%s247 + $0x3c4] sm:$0xf]
      %v498 = vld [vmem:[%s247 + $0x3c8] sm:$0xf]
      %v499 = vld [vmem:[%s247 + $0x3cc] sm:$0xf]
      %v500 = vld [vmem:[%s247 + $0x3d0] sm:$0xf]
      %v501 = vld [vmem:[%s247 + $0x3d4] sm:$0xf]
      %v502 = vld [vmem:[%s247 + $0x3d8] sm:$0xf]
      %v503 = vld [vmem:[%s247 + $0x3dc] sm:$0xf]
      %v504 = vld [vmem:[%s247 + $0x3e0] sm:$0xf]
      %v505 = vld [vmem:[%s247 + $0x3e4] sm:$0xf]
      %v506 = vld [vmem:[%s247 + $0x3e8] sm:$0xf]
      %v507 = vld [vmem:[%s247 + $0x3ec] sm:$0xf]
      %v508 = vld [vmem:[%s247 + $0x3f0] sm:$0xf]
      %v509 = vld [vmem:[%s247 + $0x3f4] sm:$0xf]
      %v510 = vld [vmem:[%s247 + $0x3f8] sm:$0xf]
      %v511 = vld [vmem:[%s247 + $0x3fc] sm:$0xf]
      %v512 = vld [vmem:[%s247 + $0x400] sm:$0xf]
      %v513 = vld [vmem:[%s247 + $0x404] sm:$0xf]
      %v514 = vld [vmem:[%s247 + $0x408] sm:$0xf]
      %v515 = vld [vmem:[%s247 + $0x40c] sm:$0xf]
      %v516 = vld [vmem:[%s247 + $0x410] sm:$0xf]
      %v517 = vld [vmem:[%s247 + $0x414] sm:$0xf]
      %v518 = vld [vmem:[%s247 + $0x418] sm:$0xf]
      %v519 = vld [vmem:[%s247 + $0x41c] sm:$0xf]
      %v520 = vld [vmem:[%s247 + $0x420] sm:$0xf]
      %v521 = vld [vmem:[%s247 + $0x424] sm:$0xf]
      %v522 = vld [vmem:[%s247 + $0x428] sm:$0xf]
      %v523 = vld [vmem:[%s247 + $0x42c] sm:$0xf]
      %v524 = vld [vmem:[%s247 + $0x430] sm:$0xf]
      %v525 = vld [vmem:[%s247 + $0x434] sm:$0xf]
      %v526 = vld [vmem:[%s247 + $0x438] sm:$0xf]
      %v527 = vld [vmem:[%s247 + $0x43c] sm:$0xf]
      %v528 = vld [vmem:[%s247 + $0x440] sm:$0xf]
      %v529 = vld [vmem:[%s247 + $0x444] sm:$0xf]
      %v530 = vld [vmem:[%s247 + $0x448] sm:$0xf]
      %v531 = vld [vmem:[%s247 + $0x44c] sm:$0xf]
      %v532 = vld [vmem:[%s247 + $0x450] sm:$0xf]
      %v533 = vld [vmem:[%s247 + $0x454] sm:$0xf]
      %v534 = vld [vmem:[%s247 + $0x458] sm:$0xf]
      %v535 = vld [vmem:[%s247 + $0x45c] sm:$0xf]
      %v536 = vld [vmem:[%s247 + $0x460] sm:$0xf]
      %v537 = vld [vmem:[%s247 + $0x464] sm:$0xf]
      %v538 = vld [vmem:[%s247 + $0x468] sm:$0xf]
      %v539 = vld [vmem:[%s247 + $0x46c] sm:$0xf]
      %v540 = vld [vmem:[%s247 + $0x470] sm:$0xf]
      %v541 = vld [vmem:[%s247 + $0x474] sm:$0xf]
      %v542 = vld [vmem:[%s247 + $0x478] sm:$0xf]
      %v543 = vld [vmem:[%s247 + $0x47c] sm:$0xf]
      %v544 = vld [vmem:[%s247 + $0x480] sm:$0xf]
      %v545 = vld [vmem:[%s247 + $0x484] sm:$0xf]
      %v546 = vld [vmem:[%s247 + $0x488] sm:$0xf]
      %v547 = vld [vmem:[%s247 + $0x48c] sm:$0xf]
      %v548 = vld [vmem:[%s247 + $0x490] sm:$0xf]
      %v549 = vld [vmem:[%s247 + $0x494] sm:$0xf]
      %v550 = vld [vmem:[%s247 + $0x498] sm:$0xf]
      %v551 = vld [vmem:[%s247 + $0x49c] sm:$0xf]
      %v552 = vld [vmem:[%s247 + $0x4a0] sm:$0xf]
      %v553 = vld [vmem:[%s247 + $0x4a4] sm:$0xf]
      %v554 = vld [vmem:[%s247 + $0x4a8] sm:$0xf]
      %v555 = vld [vmem:[%s247 + $0x4ac] sm:$0xf]
      %v556 = vld [vmem:[%s247 + $0x4b0] sm:$0xf]
      %v557 = vld [vmem:[%s247 + $0x4b4] sm:$0xf]
      %v558 = vld [vmem:[%s247 + $0x4b8] sm:$0xf]
      %v559 = vld [vmem:[%s247 + $0x4bc] sm:$0xf]
      %v560 = vld [vmem:[%s247 + $0x4c0] sm:$0xf]
      %v561 = vld [vmem:[%s247 + $0x4c4] sm:$0xf]
      %v562 = vld [vmem:[%s247 + $0x4c8] sm:$0xf]
      %v563 = vld [vmem:[%s247 + $0x4cc] sm:$0xf]
      %v564 = vld [vmem:[%s247 + $0x4d0] sm:$0xf]
      %v565 = vld [vmem:[%s247 + $0x4d4] sm:$0xf]
      %v566 = vld [vmem:[%s247 + $0x4d8] sm:$0xf]
      %v567 = vld [vmem:[%s247 + $0x4dc] sm:$0xf]
      %v568 = vld [vmem:[%s247 + $0x4e0] sm:$0xf]
      %v569 = vld [vmem:[%s247 + $0x4e4] sm:$0xf]
      %v570 = vld [vmem:[%s247 + $0x4e8] sm:$0xf]
      %v571 = vld [vmem:[%s247 + $0x4ec] sm:$0xf]
      %v572 = vld [vmem:[%s247 + $0x4f0] sm:$0xf]
      %v573 = vld [vmem:[%s247 + $0x4f4] sm:$0xf]
      %v574 = vld [vmem:[%s247 + $0x4f8] sm:$0xf]
      %v575 = vld [vmem:[%s247 + $0x4fc] sm:$0xf]
      %v576 = vld [vmem:[%s247 + $0x500] sm:$0xf]
      %v577 = vld [vmem:[%s247 + $0x504] sm:$0xf]
      %v578 = vld [vmem:[%s247 + $0x508] sm:$0xf]
      %v579 = vld [vmem:[%s247 + $0x50c] sm:$0xf]
      %v580 = vld [vmem:[%s247 + $0x510] sm:$0xf]
      %v581 = vld [vmem:[%s247 + $0x514] sm:$0xf]
      %v582 = vld [vmem:[%s247 + $0x518] sm:$0xf]
      %v583 = vld [vmem:[%s247 + $0x51c] sm:$0xf]
      %v584 = vld [vmem:[%s247 + $0x520] sm:$0xf]
      %v585 = vld [vmem:[%s247 + $0x524] sm:$0xf]
      %v586 = vld [vmem:[%s247 + $0x528] sm:$0xf]
      %v587 = vld [vmem:[%s247 + $0x52c] sm:$0xf]
      %v588 = vld [vmem:[%s247 + $0x530] sm:$0xf]
      %v589 = vld [vmem:[%s247 + $0x534] sm:$0xf]
      %v590 = vld [vmem:[%s247 + $0x538] sm:$0xf]
      %v591 = vld [vmem:[%s247 + $0x53c] sm:$0xf]
      %v592 = vld [vmem:[%s247 + $0x540] sm:$0xf]
      %v593 = vld [vmem:[%s247 + $0x544] sm:$0xf]
      %v594 = vld [vmem:[%s247 + $0x548] sm:$0xf]
      %v595 = vld [vmem:[%s247 + $0x54c] sm:$0xf]
      %v596 = vld [vmem:[%s247 + $0x550] sm:$0xf]
      %v597 = vld [vmem:[%s247 + $0x554] sm:$0xf]
      %v598 = vld [vmem:[%s247 + $0x558] sm:$0xf]
      %v599 = vld [vmem:[%s247 + $0x55c] sm:$0xf]
      %v600 = vld [vmem:[%s247 + $0x560] sm:$0xf]
      %v601 = vld [vmem:[%s247 + $0x564] sm:$0xf]
      %v602 = vld [vmem:[%s247 + $0x568] sm:$0xf]
      %v603 = vld [vmem:[%s247 + $0x56c] sm:$0xf]
      %v604 = vld [vmem:[%s247 + $0x570] sm:$0xf]
      %v605 = vld [vmem:[%s247 + $0x574] sm:$0xf]
      %v606 = vld [vmem:[%s247 + $0x578] sm:$0xf]
      %v607 = vld [vmem:[%s247 + $0x57c] sm:$0xf]
      %v608 = vld [vmem:[%s247 + $0x580] sm:$0xf]
      %v609 = vld [vmem:[%s247 + $0x584] sm:$0xf]
      %v610 = vld [vmem:[%s247 + $0x588] sm:$0xf]
      %v611 = vld [vmem:[%s247 + $0x58c] sm:$0xf]
      %v612 = vld [vmem:[%s247 + $0x590] sm:$0xf]
      %v613 = vld [vmem:[%s247 + $0x594] sm:$0xf]
      %v614 = vld [vmem:[%s247 + $0x598] sm:$0xf]
      %v615 = vld [vmem:[%s247 + $0x59c] sm:$0xf]
      %v616 = vld [vmem:[%s247 + $0x5a0] sm:$0xf]
      %v617 = vld [vmem:[%s247 + $0x5a4] sm:$0xf]
      %v618 = vld [vmem:[%s247 + $0x5a8] sm:$0xf]
      %v619 = vld [vmem:[%s247 + $0x5ac] sm:$0xf]
      %v620 = vld [vmem:[%s247 + $0x5b0] sm:$0xf]
      %v621 = vld [vmem:[%s247 + $0x5b4] sm:$0xf]
      %v622 = vld [vmem:[%s247 + $0x5b8] sm:$0xf]
      %v623 = vld [vmem:[%s247 + $0x5bc] sm:$0xf]
      %v624 = vld [vmem:[%s247 + $0x5c0] sm:$0xf]
      %v625 = vld [vmem:[%s247 + $0x5c4] sm:$0xf]
      %v626 = vld [vmem:[%s247 + $0x5c8] sm:$0xf]
      %v627 = vld [vmem:[%s247 + $0x5cc] sm:$0xf]
      %v628 = vld [vmem:[%s247 + $0x5d0] sm:$0xf]
      %v629 = vld [vmem:[%s247 + $0x5d4] sm:$0xf]
      %v630 = vld [vmem:[%s247 + $0x5d8] sm:$0xf]
      %v631 = vld [vmem:[%s247 + $0x5dc] sm:$0xf]
      %v632 = vld [vmem:[%s247 + $0x5e0] sm:$0xf]
      %v633 = vld [vmem:[%s247 + $0x5e4] sm:$0xf]
      %v634 = vld [vmem:[%s247 + $0x5e8] sm:$0xf]
      %v635 = vld [vmem:[%s247 + $0x5ec] sm:$0xf]
      %v636 = vld [vmem:[%s247 + $0x5f0] sm:$0xf]
      %v637 = vld [vmem:[%s247 + $0x5f4] sm:$0xf]
      %v638 = vld [vmem:[%s247 + $0x5f8] sm:$0xf]
      %v639 = vld [vmem:[%s247 + $0x5fc] sm:$0xf]
      %v640 = vld [vmem:[%s247 + $0x600] sm:$0xf]
      %v641 = vld [vmem:[%s247 + $0x604] sm:$0xf]
      %v642 = vld [vmem:[%s247 + $0x608] sm:$0xf]
      %v643 = vld [vmem:[%s247 + $0x60c] sm:$0xf]
      %v644 = vld [vmem:[%s247 + $0x610] sm:$0xf]
      %v645 = vld [vmem:[%s247 + $0x614] sm:$0xf]
      %v646 = vld [vmem:[%s247 + $0x618] sm:$0xf]
      %v647 = vld [vmem:[%s247 + $0x61c] sm:$0xf]
      %v648 = vld [vmem:[%s247 + $0x620] sm:$0xf]
      %v649 = vld [vmem:[%s247 + $0x624] sm:$0xf]
      %v650 = vld [vmem:[%s247 + $0x628] sm:$0xf]
      %v651 = vld [vmem:[%s247 + $0x62c] sm:$0xf]
      %v652 = vld [vmem:[%s247 + $0x630] sm:$0xf]
      %v653 = vld [vmem:[%s247 + $0x634] sm:$0xf]
      %v654 = vld [vmem:[%s247 + $0x638] sm:$0xf]
      %v655 = vld [vmem:[%s247 + $0x63c] sm:$0xf]
      %v656 = vld [vmem:[%s2] sm:$0xf]
      %v657 = vld [vmem:[%s2 + $0x4] sm:$0xf]
      %v658 = vld [vmem:[%s2 + $0x8] sm:$0xf]
      %v659 = vld [vmem:[%s2 + $0xc] sm:$0xf]
      %v660 = vld [vmem:[%s2 + $0x10] sm:$0xf]
      %v661 = vld [vmem:[%s2 + $0x14] sm:$0xf]
      %v662 = vld [vmem:[%s2 + $0x18] sm:$0xf]
      %v663 = vld [vmem:[%s2 + $0x1c] sm:$0xf]
      %v664 = vld [vmem:[%s2 + $0x20] sm:$0xf]
      %v665 = vld [vmem:[%s2 + $0x24] sm:$0xf]
      %v666 = vld [vmem:[%s2 + $0x28] sm:$0xf]
      %v667 = vld [vmem:[%s2 + $0x2c] sm:$0xf]
      %v668 = vld [vmem:[%s2 + $0x30] sm:$0x3]
      %v669 = vld [vmem:[%s3] sm:$0x1]
      %v671 = vlaneseq
      %v672 = vshrl.u32 %v671, 7
      %v673 = vsub.s32 0, %v672
      %v674 = vrot.slane %v669, %v673
      %v1076 = vunpack.c.l.b16 %v256
      %v1077 = vunpack.c.l.b16 %v257
      %v1078 = vunpack.c.l.b16 %v258
      %v1079 = vunpack.c.l.b16 %v259
      %v1080 = vunpack.c.l.b16 %v260
      %v1081 = vunpack.c.l.b16 %v261
      %v1082 = vunpack.c.l.b16 %v262
      %v1083 = vunpack.c.l.b16 %v263
      %v1084 = vunpack.c.l.b16 %v264
      %v1085 = vunpack.c.l.b16 %v265
      %v1086 = vunpack.c.l.b16 %v266
      %v1087 = vunpack.c.l.b16 %v267
      %v1088 = vunpack.c.l.b16 %v268
      %v1089 = vunpack.c.l.b16 %v269
      %v1090 = vunpack.c.l.b16 %v270
      %v1091 = vunpack.c.l.b16 %v271
      %v1092 = vunpack.c.l.b16 %v272
      %v1093 = vunpack.c.l.b16 %v273
      %v1094 = vunpack.c.l.b16 %v274
      %v1095 = vunpack.c.l.b16 %v275
      %v1096 = vunpack.c.l.b16 %v276
      %v1097 = vunpack.c.l.b16 %v277
      %v1098 = vunpack.c.l.b16 %v278
      %v1099 = vunpack.c.l.b16 %v279
      %v1100 = vunpack.c.l.b16 %v280
      %v1101 = vunpack.c.l.b16 %v281
      %v1102 = vunpack.c.l.b16 %v282
      %v1103 = vunpack.c.l.b16 %v283
      %v1104 = vunpack.c.l.b16 %v284
      %v1105 = vunpack.c.l.b16 %v285
      %v1106 = vunpack.c.l.b16 %v286
      %v1107 = vunpack.c.l.b16 %v287
      %v1108 = vunpack.c.l.b16 %v288
      %v1109 = vunpack.c.l.b16 %v289
      %v1110 = vunpack.c.l.b16 %v290
      %v1111 = vunpack.c.l.b16 %v291
      %v1112 = vunpack.c.l.b16 %v292
      %v1113 = vunpack.c.l.b16 %v293
      %v1114 = vunpack.c.l.b16 %v294
      %v1115 = vunpack.c.l.b16 %v295
      %v1116 = vunpack.c.l.b16 %v296
      %v1117 = vunpack.c.l.b16 %v297
      %v1118 = vunpack.c.l.b16 %v298
      %v1119 = vunpack.c.l.b16 %v299
      %v1120 = vunpack.c.l.b16 %v300
      %v1121 = vunpack.c.l.b16 %v301
      %v1122 = vunpack.c.l.b16 %v302
      %v1123 = vunpack.c.l.b16 %v303
      %v1124 = vunpack.c.l.b16 %v304
      %v1125 = vunpack.c.l.b16 %v305
      %v1126 = vunpack.c.l.b16 %v306
      %v1127 = vunpack.c.l.b16 %v307
      %v1128 = vunpack.c.l.b16 %v308
      %v1129 = vunpack.c.l.b16 %v309
      %v1130 = vunpack.c.l.b16 %v310
      %v1131 = vunpack.c.l.b16 %v311
      %v1132 = vunpack.c.l.b16 %v312
      %v1133 = vunpack.c.l.b16 %v313
      %v1134 = vunpack.c.l.b16 %v314
      %v1135 = vunpack.c.l.b16 %v315
      %v1136 = vunpack.c.l.b16 %v316
      %v1137 = vunpack.c.l.b16 %v317
      %v1138 = vunpack.c.l.b16 %v318
      %v1139 = vunpack.c.l.b16 %v319
      %v1140 = vunpack.c.l.b16 %v320
      %v1141 = vunpack.c.l.b16 %v321
      %v1142 = vunpack.c.l.b16 %v322
      %v1143 = vunpack.c.l.b16 %v323
      %v1144 = vunpack.c.l.b16 %v324
      %v1145 = vunpack.c.l.b16 %v325
      %v1146 = vunpack.c.l.b16 %v326
      %v1147 = vunpack.c.l.b16 %v327
      %v1148 = vunpack.c.l.b16 %v328
      %v1149 = vunpack.c.l.b16 %v329
      %v1150 = vunpack.c.l.b16 %v330
      %v1151 = vunpack.c.l.b16 %v331
      %v1152 = vunpack.c.l.b16 %v332
      %v1153 = vunpack.c.l.b16 %v333
      %v1154 = vunpack.c.l.b16 %v334
      %v1155 = vunpack.c.l.b16 %v335
      %v1156 = vunpack.c.l.b16 %v336
      %v1157 = vunpack.c.l.b16 %v337
      %v1158 = vunpack.c.l.b16 %v338
      %v1159 = vunpack.c.l.b16 %v339
      %v1160 = vunpack.c.l.b16 %v340
      %v1161 = vunpack.c.l.b16 %v341
      %v1162 = vunpack.c.l.b16 %v342
      %v1163 = vunpack.c.l.b16 %v343
      %v1164 = vunpack.c.l.b16 %v344
      %v1165 = vunpack.c.l.b16 %v345
      %v1166 = vunpack.c.l.b16 %v346
      %v1167 = vunpack.c.l.b16 %v347
      %v1168 = vunpack.c.l.b16 %v348
      %v1169 = vunpack.c.l.b16 %v349
      %v1170 = vunpack.c.l.b16 %v350
      %v1171 = vunpack.c.l.b16 %v351
      %v1172 = vunpack.c.l.b16 %v352
      %v1173 = vunpack.c.l.b16 %v353
      %v1174 = vunpack.c.l.b16 %v354
      %v1175 = vunpack.c.l.b16 %v355
      %v1176 = vunpack.c.l.b16 %v356
      %v1177 = vunpack.c.l.b16 %v357
      %v1178 = vunpack.c.l.b16 %v358
      %v1179 = vunpack.c.l.b16 %v359
      %v1180 = vunpack.c.l.b16 %v360
      %v1181 = vunpack.c.l.b16 %v361
      %v1182 = vunpack.c.l.b16 %v362
      %v1183 = vunpack.c.l.b16 %v363
      %v1184 = vunpack.c.l.b16 %v364
      %v1185 = vunpack.c.l.b16 %v365
      %v1186 = vunpack.c.l.b16 %v366
      %v1187 = vunpack.c.l.b16 %v367
      %v1188 = vunpack.c.l.b16 %v368
      %v1189 = vunpack.c.l.b16 %v369
      %v1190 = vunpack.c.l.b16 %v370
      %v1191 = vunpack.c.l.b16 %v371
      %v1192 = vunpack.c.l.b16 %v372
      %v1193 = vunpack.c.l.b16 %v373
      %v1194 = vunpack.c.l.b16 %v374
      %v1195 = vunpack.c.l.b16 %v375
      %v1196 = vunpack.c.l.b16 %v376
      %v1197 = vunpack.c.l.b16 %v377
      %v1198 = vunpack.c.l.b16 %v378
      %v1199 = vunpack.c.l.b16 %v379
      %v1200 = vunpack.c.l.b16 %v380
      %v1201 = vunpack.c.l.b16 %v381
      %v1202 = vunpack.c.l.b16 %v382
      %v1203 = vunpack.c.l.b16 %v383
      %v1204 = vunpack.c.l.b16 %v384
      %v1205 = vunpack.c.l.b16 %v385
      %v1206 = vunpack.c.l.b16 %v386
      %v1207 = vunpack.c.l.b16 %v387
      %v1208 = vunpack.c.l.b16 %v388
      %v1209 = vunpack.c.l.b16 %v389
      %v1210 = vunpack.c.l.b16 %v390
      %v1211 = vunpack.c.l.b16 %v391
      %v1212 = vunpack.c.l.b16 %v392
      %v1213 = vunpack.c.l.b16 %v393
      %v1214 = vunpack.c.l.b16 %v394
      %v1215 = vunpack.c.l.b16 %v395
      %v1216 = vunpack.c.l.b16 %v396
      %v1217 = vunpack.c.l.b16 %v397
      %v1218 = vunpack.c.l.b16 %v398
      %v1219 = vunpack.c.l.b16 %v399
      %v1220 = vunpack.c.l.b16 %v400
      %v1221 = vunpack.c.l.b16 %v401
      %v1222 = vunpack.c.l.b16 %v402
      %v1223 = vunpack.c.l.b16 %v403
      %v1224 = vunpack.c.l.b16 %v404
      %v1225 = vunpack.c.l.b16 %v405
      %v1226 = vunpack.c.l.b16 %v406
      %v1227 = vunpack.c.l.b16 %v407
      %v1228 = vunpack.c.l.b16 %v408
      %v1229 = vunpack.c.l.b16 %v409
      %v1230 = vunpack.c.l.b16 %v410
      %v1231 = vunpack.c.l.b16 %v411
      %v1232 = vunpack.c.l.b16 %v412
      %v1233 = vunpack.c.l.b16 %v413
      %v1234 = vunpack.c.l.b16 %v414
      %v1235 = vunpack.c.l.b16 %v415
      %v1236 = vunpack.c.l.b16 %v416
      %v1237 = vunpack.c.l.b16 %v417
      %v1238 = vunpack.c.l.b16 %v418
      %v1239 = vunpack.c.l.b16 %v419
      %v1240 = vunpack.c.l.b16 %v420
      %v1241 = vunpack.c.l.b16 %v421
      %v1242 = vunpack.c.l.b16 %v422
      %v1243 = vunpack.c.l.b16 %v423
      %v1244 = vunpack.c.l.b16 %v424
      %v1245 = vunpack.c.l.b16 %v425
      %v1246 = vunpack.c.l.b16 %v426
      %v1247 = vunpack.c.l.b16 %v427
      %v1248 = vunpack.c.l.b16 %v428
      %v1249 = vunpack.c.l.b16 %v429
      %v1250 = vunpack.c.l.b16 %v430
      %v1251 = vunpack.c.l.b16 %v431
      %v1252 = vunpack.c.l.b16 %v432
      %v1253 = vunpack.c.l.b16 %v433
      %v1254 = vunpack.c.l.b16 %v434
      %v1255 = vunpack.c.l.b16 %v435
      %v1256 = vunpack.c.l.b16 %v436
      %v1257 = vunpack.c.l.b16 %v437
      %v1258 = vunpack.c.l.b16 %v438
      %v1259 = vunpack.c.l.b16 %v439
      %v1260 = vunpack.c.l.b16 %v440
      %v1261 = vunpack.c.l.b16 %v441
      %v1262 = vunpack.c.l.b16 %v442
      %v1263 = vunpack.c.l.b16 %v443
      %v1264 = vunpack.c.l.b16 %v444
      %v1265 = vunpack.c.l.b16 %v445
      %v1266 = vunpack.c.l.b16 %v446
      %v1267 = vunpack.c.l.b16 %v447
      %v1268 = vunpack.c.l.b16 %v448
      %v1269 = vunpack.c.l.b16 %v449
      %v1270 = vunpack.c.l.b16 %v450
      %v1271 = vunpack.c.l.b16 %v451
      %v1272 = vunpack.c.l.b16 %v452
      %v1273 = vunpack.c.l.b16 %v453
      %v1274 = vunpack.c.l.b16 %v454
      %v1275 = vunpack.c.l.b16 %v455
      %v1276 = vunpack.c.l.b16 %v456
      %v1277 = vunpack.c.l.b16 %v457
      %v1278 = vunpack.c.l.b16 %v458
      %v1279 = vunpack.c.l.b16 %v459
      %v1280 = vunpack.c.l.b16 %v460
      %v1281 = vunpack.c.l.b16 %v461
      %v1282 = vunpack.c.l.b16 %v462
      %v1283 = vunpack.c.l.b16 %v463
      %v1284 = vunpack.c.l.b16 %v464
      %v1285 = vunpack.c.l.b16 %v465
      %v1286 = vunpack.c.l.b16 %v466
      %v1287 = vunpack.c.l.b16 %v467
      %v1288 = vunpack.c.l.b16 %v468
      %v1289 = vunpack.c.l.b16 %v469
      %v1290 = vunpack.c.l.b16 %v470
      %v1291 = vunpack.c.l.b16 %v471
      %v1292 = vunpack.c.l.b16 %v472
      %v1293 = vunpack.c.l.b16 %v473
      %v1294 = vunpack.c.l.b16 %v474
      %v1295 = vunpack.c.l.b16 %v475
      %v1296 = vunpack.c.l.b16 %v476
      %v1297 = vunpack.c.l.b16 %v477
      %v1298 = vunpack.c.l.b16 %v478
      %v1299 = vunpack.c.l.b16 %v479
      %v1300 = vunpack.c.l.b16 %v480
      %v1301 = vunpack.c.l.b16 %v481
      %v1302 = vunpack.c.l.b16 %v482
      %v1303 = vunpack.c.l.b16 %v483
      %v1304 = vunpack.c.l.b16 %v484
      %v1305 = vunpack.c.l.b16 %v485
      %v1306 = vunpack.c.l.b16 %v486
      %v1307 = vunpack.c.l.b16 %v487
      %v1308 = vunpack.c.l.b16 %v488
      %v1309 = vunpack.c.l.b16 %v489
      %v1310 = vunpack.c.l.b16 %v490
      %v1311 = vunpack.c.l.b16 %v491
      %v1312 = vunpack.c.l.b16 %v492
      %v1313 = vunpack.c.l.b16 %v493
      %v1314 = vunpack.c.l.b16 %v494
      %v1315 = vunpack.c.l.b16 %v495
      %v1316 = vunpack.c.l.b16 %v496
      %v1317 = vunpack.c.l.b16 %v497
      %v1318 = vunpack.c.l.b16 %v498
      %v1319 = vunpack.c.l.b16 %v499
      %v1320 = vunpack.c.l.b16 %v500
      %v1321 = vunpack.c.l.b16 %v501
      %v1322 = vunpack.c.l.b16 %v502
      %v1323 = vunpack.c.l.b16 %v503
      %v1324 = vunpack.c.l.b16 %v504
      %v1325 = vunpack.c.l.b16 %v505
      %v1326 = vunpack.c.l.b16 %v506
      %v1327 = vunpack.c.l.b16 %v507
      %v1328 = vunpack.c.l.b16 %v508
      %v1329 = vunpack.c.l.b16 %v509
      %v1330 = vunpack.c.l.b16 %v510
      %v1331 = vunpack.c.l.b16 %v511
      %v1332 = vunpack.c.l.b16 %v512
      %v1333 = vunpack.c.l.b16 %v513
      %v1334 = vunpack.c.l.b16 %v514
      %v1335 = vunpack.c.l.b16 %v515
      %v1336 = vunpack.c.l.b16 %v516
      %v1337 = vunpack.c.l.b16 %v517
      %v1338 = vunpack.c.l.b16 %v518
      %v1339 = vunpack.c.l.b16 %v519
      %v1340 = vunpack.c.l.b16 %v520
      %v1341 = vunpack.c.l.b16 %v521
      %v1342 = vunpack.c.l.b16 %v522
      %v1343 = vunpack.c.l.b16 %v523
      %v1344 = vunpack.c.l.b16 %v524
      %v1345 = vunpack.c.l.b16 %v525
      %v1346 = vunpack.c.l.b16 %v526
      %v1347 = vunpack.c.l.b16 %v527
      %v1348 = vunpack.c.l.b16 %v528
      %v1349 = vunpack.c.l.b16 %v529
      %v1350 = vunpack.c.l.b16 %v530
      %v1351 = vunpack.c.l.b16 %v531
      %v1352 = vunpack.c.l.b16 %v532
      %v1353 = vunpack.c.l.b16 %v533
      %v1354 = vunpack.c.l.b16 %v534
      %v1355 = vunpack.c.l.b16 %v535
      %v1356 = vunpack.c.l.b16 %v536
      %v1357 = vunpack.c.l.b16 %v537
      %v1358 = vunpack.c.l.b16 %v538
      %v1359 = vunpack.c.l.b16 %v539
      %v1360 = vunpack.c.l.b16 %v540
      %v1361 = vunpack.c.l.b16 %v541
      %v1362 = vunpack.c.l.b16 %v542
      %v1363 = vunpack.c.l.b16 %v543
      %v1364 = vunpack.c.l.b16 %v544
      %v1365 = vunpack.c.l.b16 %v545
      %v1366 = vunpack.c.l.b16 %v546
      %v1367 = vunpack.c.l.b16 %v547
      %v1368 = vunpack.c.l.b16 %v548
      %v1369 = vunpack.c.l.b16 %v549
      %v1370 = vunpack.c.l.b16 %v550
      %v1371 = vunpack.c.l.b16 %v551
      %v1372 = vunpack.c.l.b16 %v552
      %v1373 = vunpack.c.l.b16 %v553
      %v1374 = vunpack.c.l.b16 %v554
      %v1375 = vunpack.c.l.b16 %v555
      %v1376 = vunpack.c.l.b16 %v556
      %v1377 = vunpack.c.l.b16 %v557
      %v1378 = vunpack.c.l.b16 %v558
      %v1379 = vunpack.c.l.b16 %v559
      %v1380 = vunpack.c.l.b16 %v560
      %v1381 = vunpack.c.l.b16 %v561
      %v1382 = vunpack.c.l.b16 %v562
      %v1383 = vunpack.c.l.b16 %v563
      %v1384 = vunpack.c.l.b16 %v564
      %v1385 = vunpack.c.l.b16 %v565
      %v1386 = vunpack.c.l.b16 %v566
      %v1387 = vunpack.c.l.b16 %v567
      %v1388 = vunpack.c.l.b16 %v568
      %v1389 = vunpack.c.l.b16 %v569
      %v1390 = vunpack.c.l.b16 %v570
      %v1391 = vunpack.c.l.b16 %v571
      %v1392 = vunpack.c.l.b16 %v572
      %v1393 = vunpack.c.l.b16 %v573
      %v1394 = vunpack.c.l.b16 %v574
      %v1395 = vunpack.c.l.b16 %v575
      %v1396 = vunpack.c.l.b16 %v576
      %v1397 = vunpack.c.l.b16 %v577
      %v1398 = vunpack.c.l.b16 %v578
      %v1399 = vunpack.c.l.b16 %v579
      %v1400 = vunpack.c.l.b16 %v580
      %v1401 = vunpack.c.l.b16 %v581
      %v1402 = vunpack.c.l.b16 %v582
      %v1403 = vunpack.c.l.b16 %v583
      %v1404 = vunpack.c.l.b16 %v584
      %v1405 = vunpack.c.l.b16 %v585
      %v1406 = vunpack.c.l.b16 %v586
      %v1407 = vunpack.c.l.b16 %v587
      %v1408 = vunpack.c.l.b16 %v588
      %v1409 = vunpack.c.l.b16 %v589
      %v1410 = vunpack.c.l.b16 %v590
      %v1411 = vunpack.c.l.b16 %v591
      %v1412 = vunpack.c.l.b16 %v592
      %v1413 = vunpack.c.l.b16 %v593
      %v1414 = vunpack.c.l.b16 %v594
      %v1415 = vunpack.c.l.b16 %v595
      %v1416 = vunpack.c.l.b16 %v596
      %v1417 = vunpack.c.l.b16 %v597
      %v1418 = vunpack.c.l.b16 %v598
      %v1419 = vunpack.c.l.b16 %v599
      %v1420 = vunpack.c.l.b16 %v600
      %v1421 = vunpack.c.l.b16 %v601
      %v1422 = vunpack.c.l.b16 %v602
      %v1423 = vunpack.c.l.b16 %v603
      %v1424 = vunpack.c.l.b16 %v604
      %v1425 = vunpack.c.l.b16 %v605
      %v1426 = vunpack.c.l.b16 %v606
      %v1427 = vunpack.c.l.b16 %v607
      %v1428 = vunpack.c.l.b16 %v608
      %v1429 = vunpack.c.l.b16 %v609
      %v1430 = vunpack.c.l.b16 %v610
      %v1431 = vunpack.c.l.b16 %v611
      %v1432 = vunpack.c.l.b16 %v612
      %v1433 = vunpack.c.l.b16 %v613
      %v1434 = vunpack.c.l.b16 %v614
      %v1435 = vunpack.c.l.b16 %v615
      %v1436 = vunpack.c.l.b16 %v616
      %v1437 = vunpack.c.l.b16 %v617
      %v1438 = vunpack.c.l.b16 %v618
      %v1439 = vunpack.c.l.b16 %v619
      %v1440 = vunpack.c.l.b16 %v620
      %v1441 = vunpack.c.l.b16 %v621
      %v1442 = vunpack.c.l.b16 %v622
      %v1443 = vunpack.c.l.b16 %v623
      %v1444 = vunpack.c.l.b16 %v624
      %v1445 = vunpack.c.l.b16 %v625
      %v1446 = vunpack.c.l.b16 %v626
      %v1447 = vunpack.c.l.b16 %v627
      %v1448 = vunpack.c.l.b16 %v628
      %v1449 = vunpack.c.l.b16 %v629
      %v1450 = vunpack.c.l.b16 %v630
      %v1451 = vunpack.c.l.b16 %v631
      %v1452 = vunpack.c.l.b16 %v632
      %v1453 = vunpack.c.l.b16 %v633
      %v1454 = vunpack.c.l.b16 %v634
      %v1455 = vunpack.c.l.b16 %v635
      %v1456 = vunpack.c.l.b16 %v636
      %v1457 = vunpack.c.l.b16 %v637
      %v1458 = vunpack.c.l.b16 %v638
      %v1459 = vunpack.c.l.b16 %v639
      %v1460 = vunpack.c.l.b16 %v640
      %v1461 = vunpack.c.l.b16 %v641
      %v1462 = vunpack.c.l.b16 %v642
      %v1463 = vunpack.c.l.b16 %v643
      %v1464 = vunpack.c.l.b16 %v644
      %v1465 = vunpack.c.l.b16 %v645
      %v1466 = vunpack.c.l.b16 %v646
      %v1467 = vunpack.c.l.b16 %v647
      %v1468 = vunpack.c.l.b16 %v648
      %v1469 = vunpack.c.l.b16 %v649
      %v1470 = vunpack.c.l.b16 %v650
      %v1471 = vunpack.c.l.b16 %v651
      %v1472 = vunpack.c.l.b16 %v652
      %v1473 = vunpack.c.l.b16 %v653
      %v1474 = vunpack.c.l.b16 %v654
      %v1475 = vunpack.c.l.b16 %v655
      %v1476 = vpack.c.b16 %v1077, %v1076
      %v1477 = vpack.c.b16 %v1079, %v1078
      %v1478 = vpack.c.b16 %v1081, %v1080
      %v1479 = vpack.c.b16 %v1083, %v1082
      %v1480 = vpack.c.b16 %v1085, %v1084
      %v1481 = vpack.c.b16 %v1087, %v1086
      %v1482 = vpack.c.b16 %v1089, %v1088
      %v1483 = vpack.c.b16 %v1091, %v1090
      %v1484 = vpack.c.b16 %v1093, %v1092
      %v1485 = vpack.c.b16 %v1095, %v1094
      %v1486 = vpack.c.b16 %v1097, %v1096
      %v1487 = vpack.c.b16 %v1099, %v1098
      %v1488 = vpack.c.b16 %v1101, %v1100
      %v1489 = vpack.c.b16 %v1103, %v1102
      %v1490 = vpack.c.b16 %v1105, %v1104
      %v1491 = vpack.c.b16 %v1107, %v1106
      %v1492 = vpack.c.b16 %v1109, %v1108
      %v1493 = vpack.c.b16 %v1111, %v1110
      %v1494 = vpack.c.b16 %v1113, %v1112
      %v1495 = vpack.c.b16 %v1115, %v1114
      %v1496 = vpack.c.b16 %v1117, %v1116
      %v1497 = vpack.c.b16 %v1119, %v1118
      %v1498 = vpack.c.b16 %v1121, %v1120
      %v1499 = vpack.c.b16 %v1123, %v1122
      %v1500 = vpack.c.b16 %v1125, %v1124
      %v1501 = vpack.c.b16 %v1127, %v1126
      %v1502 = vpack.c.b16 %v1129, %v1128
      %v1503 = vpack.c.b16 %v1131, %v1130
      %v1504 = vpack.c.b16 %v1133, %v1132
      %v1505 = vpack.c.b16 %v1135, %v1134
      %v1506 = vpack.c.b16 %v1137, %v1136
      %v1507 = vpack.c.b16 %v1139, %v1138
      %v1508 = vpack.c.b16 %v1141, %v1140
      %v1509 = vpack.c.b16 %v1143, %v1142
      %v1510 = vpack.c.b16 %v1145, %v1144
      %v1511 = vpack.c.b16 %v1147, %v1146
      %v1512 = vpack.c.b16 %v1149, %v1148
      %v1513 = vpack.c.b16 %v1151, %v1150
      %v1514 = vpack.c.b16 %v1153, %v1152
      %v1515 = vpack.c.b16 %v1155, %v1154
      %v1516 = vpack.c.b16 %v1157, %v1156
      %v1517 = vpack.c.b16 %v1159, %v1158
      %v1518 = vpack.c.b16 %v1161, %v1160
      %v1519 = vpack.c.b16 %v1163, %v1162
      %v1520 = vpack.c.b16 %v1165, %v1164
      %v1521 = vpack.c.b16 %v1167, %v1166
      %v1522 = vpack.c.b16 %v1169, %v1168
      %v1523 = vpack.c.b16 %v1171, %v1170
      %v1524 = vpack.c.b16 %v1173, %v1172
      %v1525 = vpack.c.b16 %v1175, %v1174
      %v1526 = vpack.c.b16 %v1177, %v1176
      %v1527 = vpack.c.b16 %v1179, %v1178
      %v1528 = vpack.c.b16 %v1181, %v1180
      %v1529 = vpack.c.b16 %v1183, %v1182
      %v1530 = vpack.c.b16 %v1185, %v1184
      %v1531 = vpack.c.b16 %v1187, %v1186
      %v1532 = vpack.c.b16 %v1189, %v1188
      %v1533 = vpack.c.b16 %v1191, %v1190
      %v1534 = vpack.c.b16 %v1193, %v1192
      %v1535 = vpack.c.b16 %v1195, %v1194
      %v1536 = vpack.c.b16 %v1197, %v1196
      %v1537 = vpack.c.b16 %v1199, %v1198
      %v1538 = vpack.c.b16 %v1201, %v1200
      %v1539 = vpack.c.b16 %v1203, %v1202
      %v1540 = vpack.c.b16 %v1205, %v1204
      %v1541 = vpack.c.b16 %v1207, %v1206
      %v1542 = vpack.c.b16 %v1209, %v1208
      %v1543 = vpack.c.b16 %v1211, %v1210
      %v1544 = vpack.c.b16 %v1213, %v1212
      %v1545 = vpack.c.b16 %v1215, %v1214
      %v1546 = vpack.c.b16 %v1217, %v1216
      %v1547 = vpack.c.b16 %v1219, %v1218
      %v1548 = vpack.c.b16 %v1221, %v1220
      %v1549 = vpack.c.b16 %v1223, %v1222
      %v1550 = vpack.c.b16 %v1225, %v1224
      %v1551 = vpack.c.b16 %v1227, %v1226
      %v1552 = vpack.c.b16 %v1229, %v1228
      %v1553 = vpack.c.b16 %v1231, %v1230
      %v1554 = vpack.c.b16 %v1233, %v1232
      %v1555 = vpack.c.b16 %v1235, %v1234
      %v1556 = vpack.c.b16 %v1237, %v1236
      %v1557 = vpack.c.b16 %v1239, %v1238
      %v1558 = vpack.c.b16 %v1241, %v1240
      %v1559 = vpack.c.b16 %v1243, %v1242
      %v1560 = vpack.c.b16 %v1245, %v1244
      %v1561 = vpack.c.b16 %v1247, %v1246
      %v1562 = vpack.c.b16 %v1249, %v1248
      %v1563 = vpack.c.b16 %v1251, %v1250
      %v1564 = vpack.c.b16 %v1253, %v1252
      %v1565 = vpack.c.b16 %v1255, %v1254
      %v1566 = vpack.c.b16 %v1257, %v1256
      %v1567 = vpack.c.b16 %v1259, %v1258
      %v1568 = vpack.c.b16 %v1261, %v1260
      %v1569 = vpack.c.b16 %v1263, %v1262
      %v1570 = vpack.c.b16 %v1265, %v1264
      %v1571 = vpack.c.b16 %v1267, %v1266
      %v1572 = vpack.c.b16 %v1269, %v1268
      %v1573 = vpack.c.b16 %v1271, %v1270
      %v1574 = vpack.c.b16 %v1273, %v1272
      %v1575 = vpack.c.b16 %v1275, %v1274
      %v1576 = vpack.c.b16 %v1277, %v1276
      %v1577 = vpack.c.b16 %v1279, %v1278
      %v1578 = vpack.c.b16 %v1281, %v1280
      %v1579 = vpack.c.b16 %v1283, %v1282
      %v1580 = vpack.c.b16 %v1285, %v1284
      %v1581 = vpack.c.b16 %v1287, %v1286
      %v1582 = vpack.c.b16 %v1289, %v1288
      %v1583 = vpack.c.b16 %v1291, %v1290
      %v1584 = vpack.c.b16 %v1293, %v1292
      %v1585 = vpack.c.b16 %v1295, %v1294
      %v1586 = vpack.c.b16 %v1297, %v1296
      %v1587 = vpack.c.b16 %v1299, %v1298
      %v1588 = vpack.c.b16 %v1301, %v1300
      %v1589 = vpack.c.b16 %v1303, %v1302
      %v1590 = vpack.c.b16 %v1305, %v1304
      %v1591 = vpack.c.b16 %v1307, %v1306
      %v1592 = vpack.c.b16 %v1309, %v1308
      %v1593 = vpack.c.b16 %v1311, %v1310
      %v1594 = vpack.c.b16 %v1313, %v1312
      %v1595 = vpack.c.b16 %v1315, %v1314
      %v1596 = vpack.c.b16 %v1317, %v1316
      %v1597 = vpack.c.b16 %v1319, %v1318
      %v1598 = vpack.c.b16 %v1321, %v1320
      %v1599 = vpack.c.b16 %v1323, %v1322
      %v1600 = vpack.c.b16 %v1325, %v1324
      %v1601 = vpack.c.b16 %v1327, %v1326
      %v1602 = vpack.c.b16 %v1329, %v1328
      %v1603 = vpack.c.b16 %v1331, %v1330
      %v1604 = vpack.c.b16 %v1333, %v1332
      %v1605 = vpack.c.b16 %v1335, %v1334
      %v1606 = vpack.c.b16 %v1337, %v1336
      %v1607 = vpack.c.b16 %v1339, %v1338
      %v1608 = vpack.c.b16 %v1341, %v1340
      %v1609 = vpack.c.b16 %v1343, %v1342
      %v1610 = vpack.c.b16 %v1345, %v1344
      %v1611 = vpack.c.b16 %v1347, %v1346
      %v1612 = vpack.c.b16 %v1349, %v1348
      %v1613 = vpack.c.b16 %v1351, %v1350
      %v1614 = vpack.c.b16 %v1353, %v1352
      %v1615 = vpack.c.b16 %v1355, %v1354
      %v1616 = vpack.c.b16 %v1357, %v1356
      %v1617 = vpack.c.b16 %v1359, %v1358
      %v1618 = vpack.c.b16 %v1361, %v1360
      %v1619 = vpack.c.b16 %v1363, %v1362
      %v1620 = vpack.c.b16 %v1365, %v1364
      %v1621 = vpack.c.b16 %v1367, %v1366
      %v1622 = vpack.c.b16 %v1369, %v1368
      %v1623 = vpack.c.b16 %v1371, %v1370
      %v1624 = vpack.c.b16 %v1373, %v1372
      %v1625 = vpack.c.b16 %v1375, %v1374
      %v1626 = vpack.c.b16 %v1377, %v1376
      %v1627 = vpack.c.b16 %v1379, %v1378
      %v1628 = vpack.c.b16 %v1381, %v1380
      %v1629 = vpack.c.b16 %v1383, %v1382
      %v1630 = vpack.c.b16 %v1385, %v1384
      %v1631 = vpack.c.b16 %v1387, %v1386
      %v1632 = vpack.c.b16 %v1389, %v1388
      %v1633 = vpack.c.b16 %v1391, %v1390
      %v1634 = vpack.c.b16 %v1393, %v1392
      %v1635 = vpack.c.b16 %v1395, %v1394
      %v1636 = vpack.c.b16 %v1397, %v1396
      %v1637 = vpack.c.b16 %v1399, %v1398
      %v1638 = vpack.c.b16 %v1401, %v1400
      %v1639 = vpack.c.b16 %v1403, %v1402
      %v1640 = vpack.c.b16 %v1405, %v1404
      %v1641 = vpack.c.b16 %v1407, %v1406
      %v1642 = vpack.c.b16 %v1409, %v1408
      %v1643 = vpack.c.b16 %v1411, %v1410
      %v1644 = vpack.c.b16 %v1413, %v1412
      %v1645 = vpack.c.b16 %v1415, %v1414
      %v1646 = vpack.c.b16 %v1417, %v1416
      %v1647 = vpack.c.b16 %v1419, %v1418
      %v1648 = vpack.c.b16 %v1421, %v1420
      %v1649 = vpack.c.b16 %v1423, %v1422
      %v1650 = vpack.c.b16 %v1425, %v1424
      %v1651 = vpack.c.b16 %v1427, %v1426
      %v1652 = vpack.c.b16 %v1429, %v1428
      %v1653 = vpack.c.b16 %v1431, %v1430
      %v1654 = vpack.c.b16 %v1433, %v1432
      %v1655 = vpack.c.b16 %v1435, %v1434
      %v1656 = vpack.c.b16 %v1437, %v1436
      %v1657 = vpack.c.b16 %v1439, %v1438
      %v1658 = vpack.c.b16 %v1441, %v1440
      %v1659 = vpack.c.b16 %v1443, %v1442
      %v1660 = vpack.c.b16 %v1445, %v1444
      %v1661 = vpack.c.b16 %v1447, %v1446
      %v1662 = vpack.c.b16 %v1449, %v1448
      %v1663 = vpack.c.b16 %v1451, %v1450
      %v1664 = vpack.c.b16 %v1453, %v1452
      %v1665 = vpack.c.b16 %v1455, %v1454
      %v1666 = vpack.c.b16 %v1457, %v1456
      %v1667 = vpack.c.b16 %v1459, %v1458
      %v1668 = vpack.c.b16 %v1461, %v1460
      %v1669 = vpack.c.b16 %v1463, %v1462
      %v1670 = vpack.c.b16 %v1465, %v1464
      %v1671 = vpack.c.b16 %v1467, %v1466
      %v1672 = vpack.c.b16 %v1469, %v1468
      %v1673 = vpack.c.b16 %v1471, %v1470
      %v1674 = vpack.c.b16 %v1473, %v1472
      %v1675 = vpack.c.b16 %v1475, %v1474
      %v1689 = vunpack.c.l.b16 %v656
      %v1690 = vunpack.c.l.b16 %v657
      %v1691 = vunpack.c.l.b16 %v658
      %v1692 = vunpack.c.l.b16 %v659
      %v1693 = vunpack.c.l.b16 %v660
      %v1694 = vunpack.c.l.b16 %v661
      %v1695 = vunpack.c.l.b16 %v662
      %v1696 = vunpack.c.l.b16 %v663
      %v1697 = vunpack.c.l.b16 %v664
      %v1698 = vunpack.c.l.b16 %v665
      %v1699 = vunpack.c.l.b16 %v666
      %v1700 = vunpack.c.l.b16 %v667
      %v1701 = vunpack.c.l.b16 %v668
      %v1702 = vpack.c.b16 %v1690, %v1689
      %v1703 = vpack.c.b16 %v1692, %v1691
      %v1704 = vpack.c.b16 %v1694, %v1693
      %v1705 = vpack.c.b16 %v1696, %v1695
      %v1706 = vpack.c.b16 %v1698, %v1697
      %v1707 = vpack.c.b16 %v1700, %v1699
      %v1708 = vpack.c.b16 %v1701, %v1701
      %vm1715 = vcmask 818176
      %v1717 = vsel %vm1715, %v1476, 0
      %v1720 = vsel %vm1715, %v1477, 0
      %v1723 = vsel %vm1715, %v1478, 0
      %v1726 = vsel %vm1715, %v1479, 0
      %v1729 = vsel %vm1715, %v1480, 0
      %v1732 = vsel %vm1715, %v1481, 0
      %v1735 = vsel %vm1715, %v1482, 0
      %v1738 = vsel %vm1715, %v1483, 0
      %v1741 = vsel %vm1715, %v1484, 0
      %v1744 = vsel %vm1715, %v1485, 0
      %v1747 = vsel %vm1715, %v1486, 0
      %v1750 = vsel %vm1715, %v1487, 0
      %v1753 = vsel %vm1715, %v1488, 0
      %v1756 = vsel %vm1715, %v1489, 0
      %v1759 = vsel %vm1715, %v1490, 0
      %v1762 = vsel %vm1715, %v1491, 0
      %v1765 = vsel %vm1715, %v1492, 0
      %v1768 = vsel %vm1715, %v1493, 0
      %v1771 = vsel %vm1715, %v1494, 0
      %v1774 = vsel %vm1715, %v1495, 0
      %v1777 = vsel %vm1715, %v1496, 0
      %v1780 = vsel %vm1715, %v1497, 0
      %v1783 = vsel %vm1715, %v1498, 0
      %v1786 = vsel %vm1715, %v1499, 0
      %v1789 = vsel %vm1715, %v1500, 0
      %v1792 = vsel %vm1715, %v1501, 0
      %v1795 = vsel %vm1715, %v1502, 0
      %v1798 = vsel %vm1715, %v1503, 0
      %v1801 = vsel %vm1715, %v1504, 0
      %v1804 = vsel %vm1715, %v1505, 0
      %v1807 = vsel %vm1715, %v1506, 0
      %v1810 = vsel %vm1715, %v1507, 0
      %v1813 = vsel %vm1715, %v1508, 0
      %v1816 = vsel %vm1715, %v1509, 0
      %v1819 = vsel %vm1715, %v1510, 0
      %v1822 = vsel %vm1715, %v1511, 0
      %v1825 = vsel %vm1715, %v1512, 0
      %v1828 = vsel %vm1715, %v1513, 0
      %v1831 = vsel %vm1715, %v1514, 0
      %v1834 = vsel %vm1715, %v1515, 0
      %v1837 = vsel %vm1715, %v1516, 0
      %v1840 = vsel %vm1715, %v1517, 0
      %v1843 = vsel %vm1715, %v1518, 0
      %v1846 = vsel %vm1715, %v1519, 0
      %v1849 = vsel %vm1715, %v1520, 0
      %v1852 = vsel %vm1715, %v1521, 0
      %v1855 = vsel %vm1715, %v1522, 0
      %v1858 = vsel %vm1715, %v1523, 0
      %v1861 = vsel %vm1715, %v1524, 0
      %v1864 = vsel %vm1715, %v1525, 0
      %v1867 = vsel %vm1715, %v1526, 0
      %v1870 = vsel %vm1715, %v1527, 0
      %v1873 = vsel %vm1715, %v1528, 0
      %v1876 = vsel %vm1715, %v1529, 0
      %v1879 = vsel %vm1715, %v1530, 0
      %v1882 = vsel %vm1715, %v1531, 0
      %v1885 = vsel %vm1715, %v1532, 0
      %v1888 = vsel %vm1715, %v1533, 0
      %v1891 = vsel %vm1715, %v1534, 0
      %v1894 = vsel %vm1715, %v1535, 0
      %v1897 = vsel %vm1715, %v1536, 0
      %v1900 = vsel %vm1715, %v1537, 0
      %v1903 = vsel %vm1715, %v1538, 0
      %v1906 = vsel %vm1715, %v1539, 0
      %v1909 = vsel %vm1715, %v1540, 0
      %v1912 = vsel %vm1715, %v1541, 0
      %v1915 = vsel %vm1715, %v1542, 0
      %v1918 = vsel %vm1715, %v1543, 0
      %v1921 = vsel %vm1715, %v1544, 0
      %v1924 = vsel %vm1715, %v1545, 0
      %v1927 = vsel %vm1715, %v1546, 0
      %v1930 = vsel %vm1715, %v1547, 0
      %v1933 = vsel %vm1715, %v1548, 0
      %v1936 = vsel %vm1715, %v1549, 0
      %v1939 = vsel %vm1715, %v1550, 0
      %v1942 = vsel %vm1715, %v1551, 0
      %v1945 = vsel %vm1715, %v1552, 0
      %v1948 = vsel %vm1715, %v1553, 0
      %v1951 = vsel %vm1715, %v1554, 0
      %v1954 = vsel %vm1715, %v1555, 0
      %v1957 = vsel %vm1715, %v1556, 0
      %v1960 = vsel %vm1715, %v1557, 0
      %v1963 = vsel %vm1715, %v1558, 0
      %v1966 = vsel %vm1715, %v1559, 0
      %v1969 = vsel %vm1715, %v1560, 0
      %v1972 = vsel %vm1715, %v1561, 0
      %v1975 = vsel %vm1715, %v1562, 0
      %v1978 = vsel %vm1715, %v1563, 0
      %v1981 = vsel %vm1715, %v1564, 0
      %v1984 = vsel %vm1715, %v1565, 0
      %v1987 = vsel %vm1715, %v1566, 0
      %v1990 = vsel %vm1715, %v1567, 0
      %v1993 = vsel %vm1715, %v1568, 0
      %v1996 = vsel %vm1715, %v1569, 0
      %v1999 = vsel %vm1715, %v1570, 0
      %v2002 = vsel %vm1715, %v1571, 0
      %v2005 = vsel %vm1715, %v1572, 0
      %v2008 = vsel %vm1715, %v1573, 0
      %v2011 = vsel %vm1715, %v1574, 0
      %v2014 = vsel %vm1715, %v1575, 0
      %v2017 = vsel %vm1715, %v1576, 0
      %v2020 = vsel %vm1715, %v1577, 0
      %v2023 = vsel %vm1715, %v1578, 0
      %v2026 = vsel %vm1715, %v1579, 0
      %v2029 = vsel %vm1715, %v1580, 0
      %v2032 = vsel %vm1715, %v1581, 0
      %v2035 = vsel %vm1715, %v1582, 0
      %v2038 = vsel %vm1715, %v1583, 0
      %v2041 = vsel %vm1715, %v1584, 0
      %v2044 = vsel %vm1715, %v1585, 0
      %v2047 = vsel %vm1715, %v1586, 0
      %v2050 = vsel %vm1715, %v1587, 0
      %v2053 = vsel %vm1715, %v1588, 0
      %v2056 = vsel %vm1715, %v1589, 0
      %v2059 = vsel %vm1715, %v1590, 0
      %v2062 = vsel %vm1715, %v1591, 0
      %v2065 = vsel %vm1715, %v1592, 0
      %v2068 = vsel %vm1715, %v1593, 0
      %v2071 = vsel %vm1715, %v1594, 0
      %v2074 = vsel %vm1715, %v1595, 0
      %v2077 = vsel %vm1715, %v1596, 0
      %v2080 = vsel %vm1715, %v1597, 0
      %v2083 = vsel %vm1715, %v1598, 0
      %v2086 = vsel %vm1715, %v1599, 0
      %v2089 = vsel %vm1715, %v1600, 0
      %v2092 = vsel %vm1715, %v1601, 0
      %v2095 = vsel %vm1715, %v1602, 0
      %v2098 = vsel %vm1715, %v1603, 0
      %v2101 = vsel %vm1715, %v1604, 0
      %v2104 = vsel %vm1715, %v1605, 0
      %v2107 = vsel %vm1715, %v1606, 0
      %v2110 = vsel %vm1715, %v1607, 0
      %v2113 = vsel %vm1715, %v1608, 0
      %v2116 = vsel %vm1715, %v1609, 0
      %v2119 = vsel %vm1715, %v1610, 0
      %v2122 = vsel %vm1715, %v1611, 0
      %v2125 = vsel %vm1715, %v1612, 0
      %v2128 = vsel %vm1715, %v1613, 0
      %v2131 = vsel %vm1715, %v1614, 0
      %v2134 = vsel %vm1715, %v1615, 0
      %v2137 = vsel %vm1715, %v1616, 0
      %v2140 = vsel %vm1715, %v1617, 0
      %v2143 = vsel %vm1715, %v1618, 0
      %v2146 = vsel %vm1715, %v1619, 0
      %v2149 = vsel %vm1715, %v1620, 0
      %v2152 = vsel %vm1715, %v1621, 0
      %v2155 = vsel %vm1715, %v1622, 0
      %v2158 = vsel %vm1715, %v1623, 0
      %v2161 = vsel %vm1715, %v1624, 0
      %v2164 = vsel %vm1715, %v1625, 0
      %v2167 = vsel %vm1715, %v1626, 0
      %v2170 = vsel %vm1715, %v1627, 0
      %v2173 = vsel %vm1715, %v1628, 0
      %v2176 = vsel %vm1715, %v1629, 0
      %v2179 = vsel %vm1715, %v1630, 0
      %v2182 = vsel %vm1715, %v1631, 0
      %v2185 = vsel %vm1715, %v1632, 0
      %v2188 = vsel %vm1715, %v1633, 0
      %v2191 = vsel %vm1715, %v1634, 0
      %v2194 = vsel %vm1715, %v1635, 0
      %v2197 = vsel %vm1715, %v1636, 0
      %v2200 = vsel %vm1715, %v1637, 0
      %v2203 = vsel %vm1715, %v1638, 0
      %v2206 = vsel %vm1715, %v1639, 0
      %v2209 = vsel %vm1715, %v1640, 0
      %v2212 = vsel %vm1715, %v1641, 0
      %v2215 = vsel %vm1715, %v1642, 0
      %v2218 = vsel %vm1715, %v1643, 0
      %v2221 = vsel %vm1715, %v1644, 0
      %v2224 = vsel %vm1715, %v1645, 0
      %v2227 = vsel %vm1715, %v1646, 0
      %v2230 = vsel %vm1715, %v1647, 0
      %v2233 = vsel %vm1715, %v1648, 0
      %v2236 = vsel %vm1715, %v1649, 0
      %v2239 = vsel %vm1715, %v1650, 0
      %v2242 = vsel %vm1715, %v1651, 0
      %v2245 = vsel %vm1715, %v1652, 0
      %v2248 = vsel %vm1715, %v1653, 0
      %v2251 = vsel %vm1715, %v1654, 0
      %v2254 = vsel %vm1715, %v1655, 0
      %v2257 = vsel %vm1715, %v1656, 0
      %v2260 = vsel %vm1715, %v1657, 0
      %v2263 = vsel %vm1715, %v1658, 0
      %v2266 = vsel %vm1715, %v1659, 0
      %v2269 = vsel %vm1715, %v1660, 0
      %v2272 = vsel %vm1715, %v1661, 0
      %v2275 = vsel %vm1715, %v1662, 0
      %v2278 = vsel %vm1715, %v1663, 0
      %v2281 = vsel %vm1715, %v1664, 0
      %v2284 = vsel %vm1715, %v1665, 0
      %v2287 = vsel %vm1715, %v1666, 0
      %v2290 = vsel %vm1715, %v1667, 0
      %v2293 = vsel %vm1715, %v1668, 0
      %v2296 = vsel %vm1715, %v1669, 0
      %v2299 = vsel %vm1715, %v1670, 0
      %v2302 = vsel %vm1715, %v1671, 0
      %v2305 = vsel %vm1715, %v1672, 0
      %v2308 = vsel %vm1715, %v1673, 0
      %v2311 = vsel %vm1715, %v1674, 0
      %v2314 = vsel %vm1715, %v1675, 0
      %vm2316 = vcmask 1041408
      %v2318 = vsel %vm2316, %v1708, 0
      %2320 = vmatprep.subr.bf16.mxu0 0
      %2321 = vmatpush1.bf16.msra.mxu0 %v1702
      %2322 = vmatprep.subr.bf16.mxu0 0
      %2323 = vmatpush1.bf16.msra.mxu0 %v1703
      %2324 = vmatprep.subr.bf16.mxu0 0
      %2325 = vmatpush1.bf16.msra.mxu0 %v1704
      %2326 = vmatprep.subr.bf16.mxu0 0
      %2327 = vmatpush1.bf16.msra.mxu0 %v1705
      %2328 = vmatprep.subr.bf16.mxu0 0
      %2329 = vmatpush1.bf16.msra.mxu0 %v1706
      %2330 = vmatprep.subr.bf16.mxu0 0
      %2331 = vmatpush1.bf16.msra.mxu0 %v1707
      %2332 = vmatprep.subr.bf16.mxu0 0
      %2333 = vmatpush1.bf16.msra.mxu0 %v2318
      %2334 = vmatprep.subr.bf16.mxu0 0
      %2335 = vmatpush1.bf16.msra.mxu0 0
      %2336 = vmatprep.subr.bf16.mxu0 0
      %2337 = vmatpush1.bf16.msra.mxu0 0
      %2338 = vmatprep.subr.bf16.mxu0 0
      %2339 = vmatpush1.bf16.msra.mxu0 0
      %2340 = vmatprep.subr.bf16.mxu0 0
      %2341 = vmatpush1.bf16.msra.mxu0 0
      %2342 = vmatprep.subr.bf16.mxu0 0
      %2343 = vmatpush1.bf16.msra.mxu0 0
      %2344 = vmatprep.subr.bf16.mxu0 0
      %2345 = vmatpush1.bf16.msra.mxu0 0
      %2346 = vmatprep.subr.bf16.mxu0 0
      %2347 = vmatpush1.bf16.msra.mxu0 0
      %2348 = vmatprep.subr.bf16.mxu0 0
      %2349 = vmatpush1.bf16.msra.mxu0 0
      %2350 = vmatprep.subr.bf16.mxu0 0
      %2351 = vmatpush1.bf16.msra.mxu0 0
      %2352 = vmatprep.mubr.bf16.mxu0 0
      %2353 = vmatmul.mubr.bf16.gmra.mrb[0].mxu0 %v1717
      %v2354 = vpop.f32.mrb[0].mxu0
      %v2355 = vadd.f32 %v674, %v2354
      %v2356 = vpop.f32.mrb[0].mxu0
      %v2357 = vpop.f32.mrb[0].mxu0
      %v2358 = vadd.f32 %v674, %v2357
      %v2359 = vpop.f32.mrb[0].mxu0
      %2360 = vmatprep.mubr.bf16.mxu0 0
      %2361 = vmatmul.mubr.bf16.gmra.mrb[0].mxu0 %v1720
      %v2362 = vpop.f32.mrb[0].mxu0
      %v2363 = vadd.f32 %v674, %v2362
      %v2364 = vpop.f32.mrb[0].mxu0
      %v2365 = vpop.f32.mrb[0].mxu0
      %v2366 = vadd.f32 %v674, %v2365
      %v2367 = vpop.f32.mrb[0].mxu0
      %2368 = vmatprep.mubr.bf16.mxu0 0
      %2369 = vmatmul.mubr.bf16.gmra.mrb[0].mxu0 %v1723
      %v2370 = vpop.f32.mrb[0].mxu0
      %v2371 = vadd.f32 %v674, %v2370
      %v2372 = vpop.f32.mrb[0].mxu0
      %v2373 = vpop.f32.mrb[0].mxu0
      %v2374 = vadd.f32 %v674, %v2373
      %v2375 = vpop.f32.mrb[0].mxu0
      %2376 = vmatprep.mubr.bf16.mxu0 0
      %2377 = vmatmul.mubr.bf16.gmra.mrb[0].mxu0 %v1726
      %v2378 = vpop.f32.mrb[0].mxu0
      %v2379 = vadd.f32 %v674, %v2378
      %v2380 = vpop.f32.mrb[0].mxu0
      %v2381 = vpop.f32.mrb[0].mxu0
      %v2382 = vadd.f32 %v674, %v2381
      %v2383 = vpop.f32.mrb[0].mxu0
      %2384 = vmatprep.mubr.bf16.mxu0 0
      %2385 = vmatmul.mubr.bf16.gmra.mrb[0].mxu0 %v1729
      %v2386 = vpop.f32.mrb[0].mxu0
      %v2387 = vadd.f32 %v674, %v2386
      %v2388 = vpop.f32.mrb[0].mxu0
      %v2389 = vpop.f32.mrb[0].mxu0
      %v2390 = vadd.f32 %v674, %v2389
      %v2391 = vpop.f32.mrb[0].mxu0
      %2392 = vmatprep.mubr.bf16.mxu0 0
      %2393 = vmatmul.mubr.bf16.gmra.mrb[0].mxu0 %v1732
      %v2394 = vpop.f32.mrb[0].mxu0
      %v2395 = vadd.f32 %v674, %v2394
      %v2396 = vpop.f32.mrb[0].mxu0
      %v2397 = vpop.f32.mrb[0].mxu0
      %v2398 = vadd.f32 %v674, %v2397
      %v2399 = vpop.f32.mrb[0].mxu0
      %2400 = vmatprep.mubr.bf16.mxu0 0
      %2401 = vmatmul.mubr.bf16.gmra.mrb[0].mxu0 %v1735
      %v2402 = vpop.f32.mrb[0].mxu0
      %v2403 = vadd.f32 %v674, %v2402
      %v2404 = vpop.f32.mrb[0].mxu0
      %v2405 = vpop.f32.mrb[0].mxu0
      %v2406 = vadd.f32 %v674, %v2405
      %v2407 = vpop.f32.mrb[0].mxu0
      %2408 = vmatprep.mubr.bf16.mxu0 0
      %2409 = vmatmul.mubr.bf16.gmra.mrb[0].mxu0 %v1738
      %v2410 = vpop.f32.mrb[0].mxu0
      %v2411 = vadd.f32 %v674, %v2410
      %v2412 = vpop.f32.mrb[0].mxu0
      %v2413 = vpop.f32.mrb[0].mxu0
      %v2414 = vadd.f32 %v674, %v2413
      %v2415 = vpop.f32.mrb[0].mxu0
      %2416 = vmatprep.mubr.bf16.mxu0 0
      %2417 = vmatmul.mubr.bf16.gmra.mrb[0].mxu0 %v1741
      %v2418 = vpop.f32.mrb[0].mxu0
      %v2419 = vadd.f32 %v674, %v2418
      %v2420 = vpop.f32.mrb[0].mxu0
      %v2421 = vpop.f32.mrb[0].mxu0
      %v2422 = vadd.f32 %v674, %v2421
      %v2423 = vpop.f32.mrb[0].mxu0
      %2424 = vmatprep.mubr.bf16.mxu0 0
      %2425 = vmatmul.mubr.bf16.gmra.mrb[0].mxu0 %v1744
      %v2426 = vpop.f32.mrb[0].mxu0
      %v2427 = vadd.f32 %v674, %v2426
      %v2428 = vpop.f32.mrb[0].mxu0
      %v2429 = vpop.f32.mrb[0].mxu0
      %v2430 = vadd.f32 %v674, %v2429
      %v2431 = vpop.f32.mrb[0].mxu0
      %2432 = vmatprep.mubr.bf16.mxu0 0
      %2433 = vmatmul.mubr.bf16.gmra.mrb[0].mxu0 %v1747
      %v2434 = vpop.f32.mrb[0].mxu0
      %v2435 = vadd.f32 %v674, %v2434
      %v2436 = vpop.f32.mrb[0].mxu0
      %v2437 = vpop.f32.mrb[0].mxu0
      %v2438 = vadd.f32 %v674, %v2437
      %v2439 = vpop.f32.mrb[0].mxu0
      %2440 = vmatprep.mubr.bf16.mxu0 0
      %2441 = vmatmul.mubr.bf16.gmra.mrb[0].mxu0 %v1750
      %v2442 = vpop.f32.mrb[0].mxu0
      %v2443 = vadd.f32 %v674, %v2442
      %v2444 = vpop.f32.mrb[0].mxu0
      %v2445 = vpop.f32.mrb[0].mxu0
      %v2446 = vadd.f32 %v674, %v2445
      %v2447 = vpop.f32.mrb[0].mxu0
      %2448 = vmatprep.mubr.bf16.mxu0 0
      %2449 = vmatmul.mubr.bf16.gmra.mrb[0].mxu0 %v1753
      %v2450 = vpop.f32.mrb[0].mxu0
      %v2451 = vadd.f32 %v674, %v2450
      %v2452 = vpop.f32.mrb[0].mxu0
      %v2453 = vpop.f32.mrb[0].mxu0
      %v2454 = vadd.f32 %v674, %v2453
      %v2455 = vpop.f32.mrb[0].mxu0
      %2456 = vmatprep.mubr.bf16.mxu0 0
      %2457 = vmatmul.mubr.bf16.gmra.mrb[0].mxu0 %v1756
      %v2458 = vpop.f32.mrb[0].mxu0
      %v2459 = vadd.f32 %v674, %v2458
      %v2460 = vpop.f32.mrb[0].mxu0
      %v2461 = vpop.f32.mrb[0].mxu0
      %v2462 = vadd.f32 %v674, %v2461
      %v2463 = vpop.f32.mrb[0].mxu0
      %2464 = vmatprep.mubr.bf16.mxu0 0
      %2465 = vmatmul.mubr.bf16.gmra.mrb[0].mxu0 %v1759
      %v2466 = vpop.f32.mrb[0].mxu0
      %v2467 = vadd.f32 %v674, %v2466
      %v2468 = vpop.f32.mrb[0].mxu0
      %v2469 = vpop.f32.mrb[0].mxu0
      %v2470 = vadd.f32 %v674, %v2469
      %v2471 = vpop.f32.mrb[0].mxu0
      %2472 = vmatprep.mubr.bf16.mxu0 0
      %2473 = vmatmul.mubr.bf16.gmra.mrb[0].mxu0 %v1762
      %v2474 = vpop.f32.mrb[0].mxu0
      %v2475 = vadd.f32 %v674, %v2474
      %v2476 = vpop.f32.mrb[0].mxu0
      %v2477 = vpop.f32.mrb[0].mxu0
      %v2478 = vadd.f32 %v674, %v2477
      %v2479 = vpop.f32.mrb[0].mxu0
      %2480 = vmatprep.mubr.bf16.mxu0 0
      %2481 = vmatmul.mubr.bf16.gmra.mrb[0].mxu0 %v1765
      %v2482 = vpop.f32.mrb[0].mxu0
      %v2483 = vadd.f32 %v674, %v2482
      %v2484 = vpop.f32.mrb[0].mxu0
      %v2485 = vpop.f32.mrb[0].mxu0
      %v2486 = vadd.f32 %v674, %v2485
      %v2487 = vpop.f32.mrb[0].mxu0
      %2488 = vmatprep.mubr.bf16.mxu0 0
      %2489 = vmatmul.mubr.bf16.gmra.mrb[0].mxu0 %v1768
      %v2490 = vpop.f32.mrb[0].mxu0
      %v2491 = vadd.f32 %v674, %v2490
      %v2492 = vpop.f32.mrb[0].mxu0
      %v2493 = vpop.f32.mrb[0].mxu0
      %v2494 = vadd.f32 %v674, %v2493
      %v2495 = vpop.f32.mrb[0].mxu0
      %2496 = vmatprep.mubr.bf16.mxu0 0
      %2497 = vmatmul.mubr.bf16.gmra.mrb[0].mxu0 %v1771
      %v2498 = vpop.f32.mrb[0].mxu0
      %v2499 = vadd.f32 %v674, %v2498
      %v2500 = vpop.f32.mrb[0].mxu0
      %v2501 = vpop.f32.mrb[0].mxu0
      %v2502 = vadd.f32 %v674, %v2501
      %v2503 = vpop.f32.mrb[0].mxu0
      %2504 = vmatprep.mubr.bf16.mxu0 0
      %2505 = vmatmul.mubr.bf16.gmra.mrb[0].mxu0 %v1774
      %v2506 = vpop.f32.mrb[0].mxu0
      %v2507 = vadd.f32 %v674, %v2506
      %v2508 = vpop.f32.mrb[0].mxu0
      %v2509 = vpop.f32.mrb[0].mxu0
      %v2510 = vadd.f32 %v674, %v2509
      %v2511 = vpop.f32.mrb[0].mxu0
      %2512 = vmatprep.mubr.bf16.mxu0 0
      %2513 = vmatmul.mubr.bf16.gmra.mrb[0].mxu0 %v1777
      %v2514 = vpop.f32.mrb[0].mxu0
      %v2515 = vadd.f32 %v674, %v2514
      %v2516 = vpop.f32.mrb[0].mxu0
      %v2517 = vpop.f32.mrb[0].mxu0
      %v2518 = vadd.f32 %v674, %v2517
      %v2519 = vpop.f32.mrb[0].mxu0
      %2520 = vmatprep.mubr.bf16.mxu0 0
      %2521 = vmatmul.mubr.bf16.gmra.mrb[0].mxu0 %v1780
      %v2522 = vpop.f32.mrb[0].mxu0
      %v2523 = vadd.f32 %v674, %v2522
      %v2524 = vpop.f32.mrb[0].mxu0
      %v2525 = vpop.f32.mrb[0].mxu0
      %v2526 = vadd.f32 %v674, %v2525
      %v2527 = vpop.f32.mrb[0].mxu0
      %2528 = vmatprep.mubr.bf16.mxu0 0
      %2529 = vmatmul.mubr.bf16.gmra.mrb[0].mxu0 %v1783
      %v2530 = vpop.f32.mrb[0].mxu0
      %v2531 = vadd.f32 %v674, %v2530
      %v2532 = vpop.f32.mrb[0].mxu0
      %v2533 = vpop.f32.mrb[0].mxu0
      %v2534 = vadd.f32 %v674, %v2533
      %v2535 = vpop.f32.mrb[0].mxu0
      %2536 = vmatprep.mubr.bf16.mxu0 0
      %2537 = vmatmul.mubr.bf16.gmra.mrb[0].mxu0 %v1786
      %v2538 = vpop.f32.mrb[0].mxu0
      %v2539 = vadd.f32 %v674, %v2538
      %v2540 = vpop.f32.mrb[0].mxu0
      %v2541 = vpop.f32.mrb[0].mxu0
      %v2542 = vadd.f32 %v674, %v2541
      %v2543 = vpop.f32.mrb[0].mxu0
      %2544 = vmatprep.mubr.bf16.mxu0 0
      %2545 = vmatmul.mubr.bf16.gmra.mrb[0].mxu0 %v1789
      %v2546 = vpop.f32.mrb[0].mxu0
      %v2547 = vadd.f32 %v674, %v2546
      %v2548 = vpop.f32.mrb[0].mxu0
      %v2549 = vpop.f32.mrb[0].mxu0
      %v2550 = vadd.f32 %v674, %v2549
      %v2551 = vpop.f32.mrb[0].mxu0
      %2552 = vmatprep.mubr.bf16.mxu0 0
      %2553 = vmatmul.mubr.bf16.gmra.mrb[0].mxu0 %v1792
      %v2554 = vpop.f32.mrb[0].mxu0
      %v2555 = vadd.f32 %v674, %v2554
      %v2556 = vpop.f32.mrb[0].mxu0
      %v2557 = vpop.f32.mrb[0].mxu0
      %v2558 = vadd.f32 %v674, %v2557
      %v2559 = vpop.f32.mrb[0].mxu0
      %2560 = vmatprep.mubr.bf16.mxu0 0
      %2561 = vmatmul.mubr.bf16.gmra.mrb[0].mxu0 %v1795
      %v2562 = vpop.f32.mrb[0].mxu0
      %v2563 = vadd.f32 %v674, %v2562
      %v2564 = vpop.f32.mrb[0].mxu0
      %v2565 = vpop.f32.mrb[0].mxu0
      %v2566 = vadd.f32 %v674, %v2565
      %v2567 = vpop.f32.mrb[0].mxu0
      %2568 = vmatprep.mubr.bf16.mxu0 0
      %2569 = vmatmul.mubr.bf16.gmra.mrb[0].mxu0 %v1798
      %v2570 = vpop.f32.mrb[0].mxu0
      %v2571 = vadd.f32 %v674, %v2570
      %v2572 = vpop.f32.mrb[0].mxu0
      %v2573 = vpop.f32.mrb[0].mxu0
      %v2574 = vadd.f32 %v674, %v2573
      %v2575 = vpop.f32.mrb[0].mxu0
      %2576 = vmatprep.mubr.bf16.mxu0 0
      %2577 = vmatmul.mubr.bf16.gmra.mrb[0].mxu0 %v1801
      %v2578 = vpop.f32.mrb[0].mxu0
      %v2579 = vadd.f32 %v674, %v2578
      %v2580 = vpop.f32.mrb[0].mxu0
      %v2581 = vpop.f32.mrb[0].mxu0
      %v2582 = vadd.f32 %v674, %v2581
      %v2583 = vpop.f32.mrb[0].mxu0
      %2584 = vmatprep.mubr.bf16.mxu0 0
      %2585 = vmatmul.mubr.bf16.gmra.mrb[0].mxu0 %v1804
      %v2586 = vpop.f32.mrb[0].mxu0
      %v2587 = vadd.f32 %v674, %v2586
      %v2588 = vpop.f32.mrb[0].mxu0
      %v2589 = vpop.f32.mrb[0].mxu0
      %v2590 = vadd.f32 %v674, %v2589
      %v2591 = vpop.f32.mrb[0].mxu0
      %2592 = vmatprep.mubr.bf16.mxu0 0
      %2593 = vmatmul.mubr.bf16.gmra.mrb[0].mxu0 %v1807
      %v2594 = vpop.f32.mrb[0].mxu0
      %v2595 = vadd.f32 %v674, %v2594
      %v2596 = vpop.f32.mrb[0].mxu0
      %v2597 = vpop.f32.mrb[0].mxu0
      %v2598 = vadd.f32 %v674, %v2597
      %v2599 = vpop.f32.mrb[0].mxu0
      %2600 = vmatprep.mubr.bf16.mxu0 0
      %2601 = vmatmul.mubr.bf16.gmra.mrb[0].mxu0 %v1810
      %v2602 = vpop.f32.mrb[0].mxu0
      %v2603 = vadd.f32 %v674, %v2602
      %v2604 = vpop.f32.mrb[0].mxu0
      %v2605 = vpop.f32.mrb[0].mxu0
      %v2606 = vadd.f32 %v674, %v2605
      %v2607 = vpop.f32.mrb[0].mxu0
      %2608 = vmatprep.mubr.bf16.mxu0 0
      %2609 = vmatmul.mubr.bf16.gmra.mrb[0].mxu0 %v1813
      %v2610 = vpop.f32.mrb[0].mxu0
      %v2611 = vadd.f32 %v674, %v2610
      %v2612 = vpop.f32.mrb[0].mxu0
      %v2613 = vpop.f32.mrb[0].mxu0
      %v2614 = vadd.f32 %v674, %v2613
      %v2615 = vpop.f32.mrb[0].mxu0
      %2616 = vmatprep.mubr.bf16.mxu0 0
      %2617 = vmatmul.mubr.bf16.gmra.mrb[0].mxu0 %v1816
      %v2618 = vpop.f32.mrb[0].mxu0
      %v2619 = vadd.f32 %v674, %v2618
      %v2620 = vpop.f32.mrb[0].mxu0
      %v2621 = vpop.f32.mrb[0].mxu0
      %v2622 = vadd.f32 %v674, %v2621
      %v2623 = vpop.f32.mrb[0].mxu0
      %2624 = vmatprep.mubr.bf16.mxu0 0
      %2625 = vmatmul.mubr.bf16.gmra.mrb[0].mxu0 %v1819
      %v2626 = vpop.f32.mrb[0].mxu0
      %v2627 = vadd.f32 %v674, %v2626
      %v2628 = vpop.f32.mrb[0].mxu0
      %v2629 = vpop.f32.mrb[0].mxu0
      %v2630 = vadd.f32 %v674, %v2629
      %v2631 = vpop.f32.mrb[0].mxu0
      %2632 = vmatprep.mubr.bf16.mxu0 0
      %2633 = vmatmul.mubr.bf16.gmra.mrb[0].mxu0 %v1822
      %v2634 = vpop.f32.mrb[0].mxu0
      %v2635 = vadd.f32 %v674, %v2634
      %v2636 = vpop.f32.mrb[0].mxu0
      %v2637 = vpop.f32.mrb[0].mxu0
      %v2638 = vadd.f32 %v674, %v2637
      %v2639 = vpop.f32.mrb[0].mxu0
      %2640 = vmatprep.mubr.bf16.mxu0 0
      %2641 = vmatmul.mubr.bf16.gmra.mrb[0].mxu0 %v1825
      %v2642 = vpop.f32.mrb[0].mxu0
      %v2643 = vadd.f32 %v674, %v2642
      %v2644 = vpop.f32.mrb[0].mxu0
      %v2645 = vpop.f32.mrb[0].mxu0
      %v2646 = vadd.f32 %v674, %v2645
      %v2647 = vpop.f32.mrb[0].mxu0
      %2648 = vmatprep.mubr.bf16.mxu0 0
      %2649 = vmatmul.mubr.bf16.gmra.mrb[0].mxu0 %v1828
      %v2650 = vpop.f32.mrb[0].mxu0
      %v2651 = vadd.f32 %v674, %v2650
      %v2652 = vpop.f32.mrb[0].mxu0
      %v2653 = vpop.f32.mrb[0].mxu0
      %v2654 = vadd.f32 %v674, %v2653
      %v2655 = vpop.f32.mrb[0].mxu0
      %2656 = vmatprep.mubr.bf16.mxu0 0
      %2657 = vmatmul.mubr.bf16.gmra.mrb[0].mxu0 %v1831
      %v2658 = vpop.f32.mrb[0].mxu0
      %v2659 = vadd.f32 %v674, %v2658
      %v2660 = vpop.f32.mrb[0].mxu0
      %v2661 = vpop.f32.mrb[0].mxu0
      %v2662 = vadd.f32 %v674, %v2661
      %v2663 = vpop.f32.mrb[0].mxu0
      %2664 = vmatprep.mubr.bf16.mxu0 0
      %2665 = vmatmul.mubr.bf16.gmra.mrb[0].mxu0 %v1834
      %v2666 = vpop.f32.mrb[0].mxu0
      %v2667 = vadd.f32 %v674, %v2666
      %v2668 = vpop.f32.mrb[0].mxu0
      %v2669 = vpop.f32.mrb[0].mxu0
      %v2670 = vadd.f32 %v674, %v2669
      %v2671 = vpop.f32.mrb[0].mxu0
      %2672 = vmatprep.mubr.bf16.mxu0 0
      %2673 = vmatmul.mubr.bf16.gmra.mrb[0].mxu0 %v1837
      %v2674 = vpop.f32.mrb[0].mxu0
      %v2675 = vadd.f32 %v674, %v2674
      %v2676 = vpop.f32.mrb[0].mxu0
      %v2677 = vpop.f32.mrb[0].mxu0
      %v2678 = vadd.f32 %v674, %v2677
      %v2679 = vpop.f32.mrb[0].mxu0
      %2680 = vmatprep.mubr.bf16.mxu0 0
      %2681 = vmatmul.mubr.bf16.gmra.mrb[0].mxu0 %v1840
      %v2682 = vpop.f32.mrb[0].mxu0
      %v2683 = vadd.f32 %v674, %v2682
      %v2684 = vpop.f32.mrb[0].mxu0
      %v2685 = vpop.f32.mrb[0].mxu0
      %v2686 = vadd.f32 %v674, %v2685
      %v2687 = vpop.f32.mrb[0].mxu0
      %2688 = vmatprep.mubr.bf16.mxu0 0
      %2689 = vmatmul.mubr.bf16.gmra.mrb[0].mxu0 %v1843
      %v2690 = vpop.f32.mrb[0].mxu0
      %v2691 = vadd.f32 %v674, %v2690
      %v2692 = vpop.f32.mrb[0].mxu0
      %v2693 = vpop.f32.mrb[0].mxu0
      %v2694 = vadd.f32 %v674, %v2693
      %v2695 = vpop.f32.mrb[0].mxu0
      %2696 = vmatprep.mubr.bf16.mxu0 0
      %2697 = vmatmul.mubr.bf16.gmra.mrb[0].mxu0 %v1846
      %v2698 = vpop.f32.mrb[0].mxu0
      %v2699 = vadd.f32 %v674, %v2698
      %v2700 = vpop.f32.mrb[0].mxu0
      %v2701 = vpop.f32.mrb[0].mxu0
      %v2702 = vadd.f32 %v674, %v2701
      %v2703 = vpop.f32.mrb[0].mxu0
      %2704 = vmatprep.mubr.bf16.mxu0 0
      %2705 = vmatmul.mubr.bf16.gmra.mrb[0].mxu0 %v1849
      %v2706 = vpop.f32.mrb[0].mxu0
      %v2707 = vadd.f32 %v674, %v2706
      %v2708 = vpop.f32.mrb[0].mxu0
      %v2709 = vpop.f32.mrb[0].mxu0
      %v2710 = vadd.f32 %v674, %v2709
      %v2711 = vpop.f32.mrb[0].mxu0
      %2712 = vmatprep.mubr.bf16.mxu0 0
      %2713 = vmatmul.mubr.bf16.gmra.mrb[0].mxu0 %v1852
      %v2714 = vpop.f32.mrb[0].mxu0
      %v2715 = vadd.f32 %v674, %v2714
      %v2716 = vpop.f32.mrb[0].mxu0
      %v2717 = vpop.f32.mrb[0].mxu0
      %v2718 = vadd.f32 %v674, %v2717
      %v2719 = vpop.f32.mrb[0].mxu0
      %2720 = vmatprep.mubr.bf16.mxu0 0
      %2721 = vmatmul.mubr.bf16.gmra.mrb[0].mxu0 %v1855
      %v2722 = vpop.f32.mrb[0].mxu0
      %v2723 = vadd.f32 %v674, %v2722
      %v2724 = vpop.f32.mrb[0].mxu0
      %v2725 = vpop.f32.mrb[0].mxu0
      %v2726 = vadd.f32 %v674, %v2725
      %v2727 = vpop.f32.mrb[0].mxu0
      %2728 = vmatprep.mubr.bf16.mxu0 0
      %2729 = vmatmul.mubr.bf16.gmra.mrb[0].mxu0 %v1858
      %v2730 = vpop.f32.mrb[0].mxu0
      %v2731 = vadd.f32 %v674, %v2730
      %v2732 = vpop.f32.mrb[0].mxu0
      %v2733 = vpop.f32.mrb[0].mxu0
      %v2734 = vadd.f32 %v674, %v2733
      %v2735 = vpop.f32.mrb[0].mxu0
      %2736 = vmatprep.mubr.bf16.mxu0 0
      %2737 = vmatmul.mubr.bf16.gmra.mrb[0].mxu0 %v1861
      %v2738 = vpop.f32.mrb[0].mxu0
      %v2739 = vadd.f32 %v674, %v2738
      %v2740 = vpop.f32.mrb[0].mxu0
      %v2741 = vpop.f32.mrb[0].mxu0
      %v2742 = vadd.f32 %v674, %v2741
      %v2743 = vpop.f32.mrb[0].mxu0
      %2744 = vmatprep.mubr.bf16.mxu0 0
      %2745 = vmatmul.mubr.bf16.gmra.mrb[0].mxu0 %v1864
      %v2746 = vpop.f32.mrb[0].mxu0
      %v2747 = vadd.f32 %v674, %v2746
      %v2748 = vpop.f32.mrb[0].mxu0
      %v2749 = vpop.f32.mrb[0].mxu0
      %v2750 = vadd.f32 %v674, %v2749
      %v2751 = vpop.f32.mrb[0].mxu0
      %2752 = vmatprep.mubr.bf16.mxu0 0
      %2753 = vmatmul.mubr.bf16.gmra.mrb[0].mxu0 %v1867
      %v2754 = vpop.f32.mrb[0].mxu0
      %v2755 = vadd.f32 %v674, %v2754
      %v2756 = vpop.f32.mrb[0].mxu0
      %v2757 = vpop.f32.mrb[0].mxu0
      %v2758 = vadd.f32 %v674, %v2757
      %v2759 = vpop.f32.mrb[0].mxu0
      %2760 = vmatprep.mubr.bf16.mxu0 0
      %2761 = vmatmul.mubr.bf16.gmra.mrb[0].mxu0 %v1870
      %v2762 = vpop.f32.mrb[0].mxu0
      %v2763 = vadd.f32 %v674, %v2762
      %v2764 = vpop.f32.mrb[0].mxu0
      %v2765 = vpop.f32.mrb[0].mxu0
      %v2766 = vadd.f32 %v674, %v2765
      %v2767 = vpop.f32.mrb[0].mxu0
      %2768 = vmatprep.mubr.bf16.mxu0 0
      %2769 = vmatmul.mubr.bf16.gmra.mrb[0].mxu0 %v1873
      %v2770 = vpop.f32.mrb[0].mxu0
      %v2771 = vadd.f32 %v674, %v2770
      %v2772 = vpop.f32.mrb[0].mxu0
      %v2773 = vpop.f32.mrb[0].mxu0
      %v2774 = vadd.f32 %v674, %v2773
      %v2775 = vpop.f32.mrb[0].mxu0
      %2776 = vmatprep.mubr.bf16.mxu0 0
      %2777 = vmatmul.mubr.bf16.gmra.mrb[0].mxu0 %v1876
      %v2778 = vpop.f32.mrb[0].mxu0
      %v2779 = vadd.f32 %v674, %v2778
      %v2780 = vpop.f32.mrb[0].mxu0
      %v2781 = vpop.f32.mrb[0].mxu0
      %v2782 = vadd.f32 %v674, %v2781
      %v2783 = vpop.f32.mrb[0].mxu0
      %2784 = vmatprep.mubr.bf16.mxu0 0
      %2785 = vmatmul.mubr.bf16.gmra.mrb[0].mxu0 %v1879
      %v2786 = vpop.f32.mrb[0].mxu0
      %v2787 = vadd.f32 %v674, %v2786
      %v2788 = vpop.f32.mrb[0].mxu0
      %v2789 = vpop.f32.mrb[0].mxu0
      %v2790 = vadd.f32 %v674, %v2789
      %v2791 = vpop.f32.mrb[0].mxu0
      %2792 = vmatprep.mubr.bf16.mxu0 0
      %2793 = vmatmul.mubr.bf16.gmra.mrb[0].mxu0 %v1882
      %v2794 = vpop.f32.mrb[0].mxu0
      %v2795 = vadd.f32 %v674, %v2794
      %v2796 = vpop.f32.mrb[0].mxu0
      %v2797 = vpop.f32.mrb[0].mxu0
      %v2798 = vadd.f32 %v674, %v2797
      %v2799 = vpop.f32.mrb[0].mxu0
      %2800 = vmatprep.mubr.bf16.mxu0 0
      %2801 = vmatmul.mubr.bf16.gmra.mrb[0].mxu0 %v1885
      %v2802 = vpop.f32.mrb[0].mxu0
      %v2803 = vadd.f32 %v674, %v2802
      %v2804 = vpop.f32.mrb[0].mxu0
      %v2805 = vpop.f32.mrb[0].mxu0
      %v2806 = vadd.f32 %v674, %v2805
      %v2807 = vpop.f32.mrb[0].mxu0
      %2808 = vmatprep.mubr.bf16.mxu0 0
      %2809 = vmatmul.mubr.bf16.gmra.mrb[0].mxu0 %v1888
      %v2810 = vpop.f32.mrb[0].mxu0
      %v2811 = vadd.f32 %v674, %v2810
      %v2812 = vpop.f32.mrb[0].mxu0
      %v2813 = vpop.f32.mrb[0].mxu0
      %v2814 = vadd.f32 %v674, %v2813
      %v2815 = vpop.f32.mrb[0].mxu0
      %2816 = vmatprep.mubr.bf16.mxu0 0
      %2817 = vmatmul.mubr.bf16.gmra.mrb[0].mxu0 %v1891
      %v2818 = vpop.f32.mrb[0].mxu0
      %v2819 = vadd.f32 %v674, %v2818
      %v2820 = vpop.f32.mrb[0].mxu0
      %v2821 = vpop.f32.mrb[0].mxu0
      %v2822 = vadd.f32 %v674, %v2821
      %v2823 = vpop.f32.mrb[0].mxu0
      %2824 = vmatprep.mubr.bf16.mxu0 0
      %2825 = vmatmul.mubr.bf16.gmra.mrb[0].mxu0 %v1894
      %v2826 = vpop.f32.mrb[0].mxu0
      %v2827 = vadd.f32 %v674, %v2826
      %v2828 = vpop.f32.mrb[0].mxu0
      %v2829 = vpop.f32.mrb[0].mxu0
      %v2830 = vadd.f32 %v674, %v2829
      %v2831 = vpop.f32.mrb[0].mxu0
      %2832 = vmatprep.mubr.bf16.mxu0 0
      %2833 = vmatmul.mubr.bf16.gmra.mrb[0].mxu0 %v1897
      %v2834 = vpop.f32.mrb[0].mxu0
      %v2835 = vadd.f32 %v674, %v2834
      %v2836 = vpop.f32.mrb[0].mxu0
      %v2837 = vpop.f32.mrb[0].mxu0
      %v2838 = vadd.f32 %v674, %v2837
      %v2839 = vpop.f32.mrb[0].mxu0
      %2840 = vmatprep.mubr.bf16.mxu0 0
      %2841 = vmatmul.mubr.bf16.gmra.mrb[0].mxu0 %v1900
      %v2842 = vpop.f32.mrb[0].mxu0
      %v2843 = vadd.f32 %v674, %v2842
      %v2844 = vpop.f32.mrb[0].mxu0
      %v2845 = vpop.f32.mrb[0].mxu0
      %v2846 = vadd.f32 %v674, %v2845
      %v2847 = vpop.f32.mrb[0].mxu0
      %2848 = vmatprep.mubr.bf16.mxu0 0
      %2849 = vmatmul.mubr.bf16.gmra.mrb[0].mxu0 %v1903
      %v2850 = vpop.f32.mrb[0].mxu0
      %v2851 = vadd.f32 %v674, %v2850
      %v2852 = vpop.f32.mrb[0].mxu0
      %v2853 = vpop.f32.mrb[0].mxu0
      %v2854 = vadd.f32 %v674, %v2853
      %v2855 = vpop.f32.mrb[0].mxu0
      %2856 = vmatprep.mubr.bf16.mxu0 0
      %2857 = vmatmul.mubr.bf16.gmra.mrb[0].mxu0 %v1906
      %v2858 = vpop.f32.mrb[0].mxu0
      %v2859 = vadd.f32 %v674, %v2858
      %v2860 = vpop.f32.mrb[0].mxu0
      %v2861 = vpop.f32.mrb[0].mxu0
      %v2862 = vadd.f32 %v674, %v2861
      %v2863 = vpop.f32.mrb[0].mxu0
      %2864 = vmatprep.mubr.bf16.mxu0 0
      %2865 = vmatmul.mubr.bf16.gmra.mrb[0].mxu0 %v1909
      %v2866 = vpop.f32.mrb[0].mxu0
      %v2867 = vadd.f32 %v674, %v2866
      %v2868 = vpop.f32.mrb[0].mxu0
      %v2869 = vpop.f32.mrb[0].mxu0
      %v2870 = vadd.f32 %v674, %v2869
      %v2871 = vpop.f32.mrb[0].mxu0
      %2872 = vmatprep.mubr.bf16.mxu0 0
      %2873 = vmatmul.mubr.bf16.gmra.mrb[0].mxu0 %v1912
      %v2874 = vpop.f32.mrb[0].mxu0
      %v2875 = vadd.f32 %v674, %v2874
      %v2876 = vpop.f32.mrb[0].mxu0
      %v2877 = vpop.f32.mrb[0].mxu0
      %v2878 = vadd.f32 %v674, %v2877
      %v2879 = vpop.f32.mrb[0].mxu0
      %2880 = vmatprep.mubr.bf16.mxu0 0
      %2881 = vmatmul.mubr.bf16.gmra.mrb[0].mxu0 %v1915
      %v2882 = vpop.f32.mrb[0].mxu0
      %v2883 = vadd.f32 %v674, %v2882
      %v2884 = vpop.f32.mrb[0].mxu0
      %v2885 = vpop.f32.mrb[0].mxu0
      %v2886 = vadd.f32 %v674, %v2885
      %v2887 = vpop.f32.mrb[0].mxu0
      %2888 = vmatprep.mubr.bf16.mxu0 0
      %2889 = vmatmul.mubr.bf16.gmra.mrb[0].mxu0 %v1918
      %v2890 = vpop.f32.mrb[0].mxu0
      %v2891 = vadd.f32 %v674, %v2890
      %v2892 = vpop.f32.mrb[0].mxu0
      %v2893 = vpop.f32.mrb[0].mxu0
      %v2894 = vadd.f32 %v674, %v2893
      %v2895 = vpop.f32.mrb[0].mxu0
      %2896 = vmatprep.mubr.bf16.mxu0 0
      %2897 = vmatmul.mubr.bf16.gmra.mrb[0].mxu0 %v1921
      %v2898 = vpop.f32.mrb[0].mxu0
      %v2899 = vadd.f32 %v674, %v2898
      %v2900 = vpop.f32.mrb[0].mxu0
      %v2901 = vpop.f32.mrb[0].mxu0
      %v2902 = vadd.f32 %v674, %v2901
      %v2903 = vpop.f32.mrb[0].mxu0
      %2904 = vmatprep.mubr.bf16.mxu0 0
      %2905 = vmatmul.mubr.bf16.gmra.mrb[0].mxu0 %v1924
      %v2906 = vpop.f32.mrb[0].mxu0
      %v2907 = vadd.f32 %v674, %v2906
      %v2908 = vpop.f32.mrb[0].mxu0
      %v2909 = vpop.f32.mrb[0].mxu0
      %v2910 = vadd.f32 %v674, %v2909
      %v2911 = vpop.f32.mrb[0].mxu0
      %2912 = vmatprep.mubr.bf16.mxu0 0
      %2913 = vmatmul.mubr.bf16.gmra.mrb[0].mxu0 %v1927
      %v2914 = vpop.f32.mrb[0].mxu0
      %v2915 = vadd.f32 %v674, %v2914
      %v2916 = vpop.f32.mrb[0].mxu0
      %v2917 = vpop.f32.mrb[0].mxu0
      %v2918 = vadd.f32 %v674, %v2917
      %v2919 = vpop.f32.mrb[0].mxu0
      %2920 = vmatprep.mubr.bf16.mxu0 0
      %2921 = vmatmul.mubr.bf16.gmra.mrb[0].mxu0 %v1930
      %v2922 = vpop.f32.mrb[0].mxu0
      %v2923 = vadd.f32 %v674, %v2922
      %v2924 = vpop.f32.mrb[0].mxu0
      %v2925 = vpop.f32.mrb[0].mxu0
      %v2926 = vadd.f32 %v674, %v2925
      %v2927 = vpop.f32.mrb[0].mxu0
      %2928 = vmatprep.mubr.bf16.mxu0 0
      %2929 = vmatmul.mubr.bf16.gmra.mrb[0].mxu0 %v1933
      %v2930 = vpop.f32.mrb[0].mxu0
      %v2931 = vadd.f32 %v674, %v2930
      %v2932 = vpop.f32.mrb[0].mxu0
      %v2933 = vpop.f32.mrb[0].mxu0
      %v2934 = vadd.f32 %v674, %v2933
      %v2935 = vpop.f32.mrb[0].mxu0
      %2936 = vmatprep.mubr.bf16.mxu0 0
      %2937 = vmatmul.mubr.bf16.gmra.mrb[0].mxu0 %v1936
      %v2938 = vpop.f32.mrb[0].mxu0
      %v2939 = vadd.f32 %v674, %v2938
      %v2940 = vpop.f32.mrb[0].mxu0
      %v2941 = vpop.f32.mrb[0].mxu0
      %v2942 = vadd.f32 %v674, %v2941
      %v2943 = vpop.f32.mrb[0].mxu0
      %2944 = vmatprep.mubr.bf16.mxu0 0
      %2945 = vmatmul.mubr.bf16.gmra.mrb[0].mxu0 %v1939
      %v2946 = vpop.f32.mrb[0].mxu0
      %v2947 = vadd.f32 %v674, %v2946
      %v2948 = vpop.f32.mrb[0].mxu0
      %v2949 = vpop.f32.mrb[0].mxu0
      %v2950 = vadd.f32 %v674, %v2949
      %v2951 = vpop.f32.mrb[0].mxu0
      %2952 = vmatprep.mubr.bf16.mxu0 0
      %2953 = vmatmul.mubr.bf16.gmra.mrb[0].mxu0 %v1942
      %v2954 = vpop.f32.mrb[0].mxu0
      %v2955 = vadd.f32 %v674, %v2954
      %v2956 = vpop.f32.mrb[0].mxu0
      %v2957 = vpop.f32.mrb[0].mxu0
      %v2958 = vadd.f32 %v674, %v2957
      %v2959 = vpop.f32.mrb[0].mxu0
      %2960 = vmatprep.mubr.bf16.mxu0 0
      %2961 = vmatmul.mubr.bf16.gmra.mrb[0].mxu0 %v1945
      %v2962 = vpop.f32.mrb[0].mxu0
      %v2963 = vadd.f32 %v674, %v2962
      %v2964 = vpop.f32.mrb[0].mxu0
      %v2965 = vpop.f32.mrb[0].mxu0
      %v2966 = vadd.f32 %v674, %v2965
      %v2967 = vpop.f32.mrb[0].mxu0
      %2968 = vmatprep.mubr.bf16.mxu0 0
      %2969 = vmatmul.mubr.bf16.gmra.mrb[0].mxu0 %v1948
      %v2970 = vpop.f32.mrb[0].mxu0
      %v2971 = vadd.f32 %v674, %v2970
      %v2972 = vpop.f32.mrb[0].mxu0
      %v2973 = vpop.f32.mrb[0].mxu0
      %v2974 = vadd.f32 %v674, %v2973
      %v2975 = vpop.f32.mrb[0].mxu0
      %2976 = vmatprep.mubr.bf16.mxu0 0
      %2977 = vmatmul.mubr.bf16.gmra.mrb[0].mxu0 %v1951
      %v2978 = vpop.f32.mrb[0].mxu0
      %v2979 = vadd.f32 %v674, %v2978
      %v2980 = vpop.f32.mrb[0].mxu0
      %v2981 = vpop.f32.mrb[0].mxu0
      %v2982 = vadd.f32 %v674, %v2981
      %v2983 = vpop.f32.mrb[0].mxu0
      %2984 = vmatprep.mubr.bf16.mxu0 0
      %2985 = vmatmul.mubr.bf16.gmra.mrb[0].mxu0 %v1954
      %v2986 = vpop.f32.mrb[0].mxu0
      %v2987 = vadd.f32 %v674, %v2986
      %v2988 = vpop.f32.mrb[0].mxu0
      %v2989 = vpop.f32.mrb[0].mxu0
      %v2990 = vadd.f32 %v674, %v2989
      %v2991 = vpop.f32.mrb[0].mxu0
      %2992 = vmatprep.mubr.bf16.mxu0 0
      %2993 = vmatmul.mubr.bf16.gmra.mrb[0].mxu0 %v1957
      %v2994 = vpop.f32.mrb[0].mxu0
      %v2995 = vadd.f32 %v674, %v2994
      %v2996 = vpop.f32.mrb[0].mxu0
      %v2997 = vpop.f32.mrb[0].mxu0
      %v2998 = vadd.f32 %v674, %v2997
      %v2999 = vpop.f32.mrb[0].mxu0
      %3000 = vmatprep.mubr.bf16.mxu0 0
      %3001 = vmatmul.mubr.bf16.gmra.mrb[0].mxu0 %v1960
      %v3002 = vpop.f32.mrb[0].mxu0
      %v3003 = vadd.f32 %v674, %v3002
      %v3004 = vpop.f32.mrb[0].mxu0
      %v3005 = vpop.f32.mrb[0].mxu0
      %v3006 = vadd.f32 %v674, %v3005
      %v3007 = vpop.f32.mrb[0].mxu0
      %3008 = vmatprep.mubr.bf16.mxu0 0
      %3009 = vmatmul.mubr.bf16.gmra.mrb[0].mxu0 %v1963
      %v3010 = vpop.f32.mrb[0].mxu0
      %v3011 = vadd.f32 %v674, %v3010
      %v3012 = vpop.f32.mrb[0].mxu0
      %v3013 = vpop.f32.mrb[0].mxu0
      %v3014 = vadd.f32 %v674, %v3013
      %v3015 = vpop.f32.mrb[0].mxu0
      %3016 = vmatprep.mubr.bf16.mxu0 0
      %3017 = vmatmul.mubr.bf16.gmra.mrb[0].mxu0 %v1966
      %v3018 = vpop.f32.mrb[0].mxu0
      %v3019 = vadd.f32 %v674, %v3018
      %v3020 = vpop.f32.mrb[0].mxu0
      %v3021 = vpop.f32.mrb[0].mxu0
      %v3022 = vadd.f32 %v674, %v3021
      %v3023 = vpop.f32.mrb[0].mxu0
      %3024 = vmatprep.mubr.bf16.mxu0 0
      %3025 = vmatmul.mubr.bf16.gmra.mrb[0].mxu0 %v1969
      %v3026 = vpop.f32.mrb[0].mxu0
      %v3027 = vadd.f32 %v674, %v3026
      %v3028 = vpop.f32.mrb[0].mxu0
      %v3029 = vpop.f32.mrb[0].mxu0
      %v3030 = vadd.f32 %v674, %v3029
      %v3031 = vpop.f32.mrb[0].mxu0
      %3032 = vmatprep.mubr.bf16.mxu0 0
      %3033 = vmatmul.mubr.bf16.gmra.mrb[0].mxu0 %v1972
      %v3034 = vpop.f32.mrb[0].mxu0
      %v3035 = vadd.f32 %v674, %v3034
      %v3036 = vpop.f32.mrb[0].mxu0
      %v3037 = vpop.f32.mrb[0].mxu0
      %v3038 = vadd.f32 %v674, %v3037
      %v3039 = vpop.f32.mrb[0].mxu0
      %3040 = vmatprep.mubr.bf16.mxu0 0
      %3041 = vmatmul.mubr.bf16.gmra.mrb[0].mxu0 %v1975
      %v3042 = vpop.f32.mrb[0].mxu0
      %v3043 = vadd.f32 %v674, %v3042
      %v3044 = vpop.f32.mrb[0].mxu0
      %v3045 = vpop.f32.mrb[0].mxu0
      %v3046 = vadd.f32 %v674, %v3045
      %v3047 = vpop.f32.mrb[0].mxu0
      %3048 = vmatprep.mubr.bf16.mxu0 0
      %3049 = vmatmul.mubr.bf16.gmra.mrb[0].mxu0 %v1978
      %v3050 = vpop.f32.mrb[0].mxu0
      %v3051 = vadd.f32 %v674, %v3050
      %v3052 = vpop.f32.mrb[0].mxu0
      %v3053 = vpop.f32.mrb[0].mxu0
      %v3054 = vadd.f32 %v674, %v3053
      %v3055 = vpop.f32.mrb[0].mxu0
      %3056 = vmatprep.mubr.bf16.mxu0 0
      %3057 = vmatmul.mubr.bf16.gmra.mrb[0].mxu0 %v1981
      %v3058 = vpop.f32.mrb[0].mxu0
      %v3059 = vadd.f32 %v674, %v3058
      %v3060 = vpop.f32.mrb[0].mxu0
      %v3061 = vpop.f32.mrb[0].mxu0
      %v3062 = vadd.f32 %v674, %v3061
      %v3063 = vpop.f32.mrb[0].mxu0
      %3064 = vmatprep.mubr.bf16.mxu0 0
      %3065 = vmatmul.mubr.bf16.gmra.mrb[0].mxu0 %v1984
      %v3066 = vpop.f32.mrb[0].mxu0
      %v3067 = vadd.f32 %v674, %v3066
      %v3068 = vpop.f32.mrb[0].mxu0
      %v3069 = vpop.f32.mrb[0].mxu0
      %v3070 = vadd.f32 %v674, %v3069
      %v3071 = vpop.f32.mrb[0].mxu0
      %3072 = vmatprep.mubr.bf16.mxu0 0
      %3073 = vmatmul.mubr.bf16.gmra.mrb[0].mxu0 %v1987
      %v3074 = vpop.f32.mrb[0].mxu0
      %v3075 = vadd.f32 %v674, %v3074
      %v3076 = vpop.f32.mrb[0].mxu0
      %v3077 = vpop.f32.mrb[0].mxu0
      %v3078 = vadd.f32 %v674, %v3077
      %v3079 = vpop.f32.mrb[0].mxu0
      %3080 = vmatprep.mubr.bf16.mxu0 0
      %3081 = vmatmul.mubr.bf16.gmra.mrb[0].mxu0 %v1990
      %v3082 = vpop.f32.mrb[0].mxu0
      %v3083 = vadd.f32 %v674, %v3082
      %v3084 = vpop.f32.mrb[0].mxu0
      %v3085 = vpop.f32.mrb[0].mxu0
      %v3086 = vadd.f32 %v674, %v3085
      %v3087 = vpop.f32.mrb[0].mxu0
      %3088 = vmatprep.mubr.bf16.mxu0 0
      %3089 = vmatmul.mubr.bf16.gmra.mrb[0].mxu0 %v1993
      %v3090 = vpop.f32.mrb[0].mxu0
      %v3091 = vadd.f32 %v674, %v3090
      %v3092 = vpop.f32.mrb[0].mxu0
      %v3093 = vpop.f32.mrb[0].mxu0
      %v3094 = vadd.f32 %v674, %v3093
      %v3095 = vpop.f32.mrb[0].mxu0
      %3096 = vmatprep.mubr.bf16.mxu0 0
      %3097 = vmatmul.mubr.bf16.gmra.mrb[0].mxu0 %v1996
      %v3098 = vpop.f32.mrb[0].mxu0
      %v3099 = vadd.f32 %v674, %v3098
      %v3100 = vpop.f32.mrb[0].mxu0
      %v3101 = vpop.f32.mrb[0].mxu0
      %v3102 = vadd.f32 %v674, %v3101
      %v3103 = vpop.f32.mrb[0].mxu0
      %3104 = vmatprep.mubr.bf16.mxu0 0
      %3105 = vmatmul.mubr.bf16.gmra.mrb[0].mxu0 %v1999
      %v3106 = vpop.f32.mrb[0].mxu0
      %v3107 = vadd.f32 %v674, %v3106
      %v3108 = vpop.f32.mrb[0].mxu0
      %v3109 = vpop.f32.mrb[0].mxu0
      %v3110 = vadd.f32 %v674, %v3109
      %v3111 = vpop.f32.mrb[0].mxu0
      %3112 = vmatprep.mubr.bf16.mxu0 0
      %3113 = vmatmul.mubr.bf16.gmra.mrb[0].mxu0 %v2002
      %v3114 = vpop.f32.mrb[0].mxu0
      %v3115 = vadd.f32 %v674, %v3114
      %v3116 = vpop.f32.mrb[0].mxu0
      %v3117 = vpop.f32.mrb[0].mxu0
      %v3118 = vadd.f32 %v674, %v3117
      %v3119 = vpop.f32.mrb[0].mxu0
      %3120 = vmatprep.mubr.bf16.mxu0 0
      %3121 = vmatmul.mubr.bf16.gmra.mrb[0].mxu0 %v2005
      %v3122 = vpop.f32.mrb[0].mxu0
      %v3123 = vadd.f32 %v674, %v3122
      %v3124 = vpop.f32.mrb[0].mxu0
      %v3125 = vpop.f32.mrb[0].mxu0
      %v3126 = vadd.f32 %v674, %v3125
      %v3127 = vpop.f32.mrb[0].mxu0
      %3128 = vmatprep.mubr.bf16.mxu0 0
      %3129 = vmatmul.mubr.bf16.gmra.mrb[0].mxu0 %v2008
      %v3130 = vpop.f32.mrb[0].mxu0
      %v3131 = vadd.f32 %v674, %v3130
      %v3132 = vpop.f32.mrb[0].mxu0
      %v3133 = vpop.f32.mrb[0].mxu0
      %v3134 = vadd.f32 %v674, %v3133
      %v3135 = vpop.f32.mrb[0].mxu0
      %3136 = vmatprep.mubr.bf16.mxu0 0
      %3137 = vmatmul.mubr.bf16.gmra.mrb[0].mxu0 %v2011
      %v3138 = vpop.f32.mrb[0].mxu0
      %v3139 = vadd.f32 %v674, %v3138
      %v3140 = vpop.f32.mrb[0].mxu0
      %v3141 = vpop.f32.mrb[0].mxu0
      %v3142 = vadd.f32 %v674, %v3141
      %v3143 = vpop.f32.mrb[0].mxu0
      %3144 = vmatprep.mubr.bf16.mxu0 0
      %3145 = vmatmul.mubr.bf16.gmra.mrb[0].mxu0 %v2014
      %v3146 = vpop.f32.mrb[0].mxu0
      %v3147 = vadd.f32 %v674, %v3146
      %v3148 = vpop.f32.mrb[0].mxu0
      %v3149 = vpop.f32.mrb[0].mxu0
      %v3150 = vadd.f32 %v674, %v3149
      %v3151 = vpop.f32.mrb[0].mxu0
      %3152 = vmatprep.mubr.bf16.mxu0 0
      %3153 = vmatmul.mubr.bf16.gmra.mrb[0].mxu0 %v2017
      %v3154 = vpop.f32.mrb[0].mxu0
      %v3155 = vadd.f32 %v674, %v3154
      %v3156 = vpop.f32.mrb[0].mxu0
      %v3157 = vpop.f32.mrb[0].mxu0
      %v3158 = vadd.f32 %v674, %v3157
      %v3159 = vpop.f32.mrb[0].mxu0
      %3160 = vmatprep.mubr.bf16.mxu0 0
      %3161 = vmatmul.mubr.bf16.gmra.mrb[0].mxu0 %v2020
      %v3162 = vpop.f32.mrb[0].mxu0
      %v3163 = vadd.f32 %v674, %v3162
      %v3164 = vpop.f32.mrb[0].mxu0
      %v3165 = vpop.f32.mrb[0].mxu0
      %v3166 = vadd.f32 %v674, %v3165
      %v3167 = vpop.f32.mrb[0].mxu0
      %3168 = vmatprep.mubr.bf16.mxu0 0
      %3169 = vmatmul.mubr.bf16.gmra.mrb[0].mxu0 %v2023
      %v3170 = vpop.f32.mrb[0].mxu0
      %v3171 = vadd.f32 %v674, %v3170
      %v3172 = vpop.f32.mrb[0].mxu0
      %v3173 = vpop.f32.mrb[0].mxu0
      %v3174 = vadd.f32 %v674, %v3173
      %v3175 = vpop.f32.mrb[0].mxu0
      %3176 = vmatprep.mubr.bf16.mxu0 0
      %3177 = vmatmul.mubr.bf16.gmra.mrb[0].mxu0 %v2026
      %v3178 = vpop.f32.mrb[0].mxu0
      %v3179 = vadd.f32 %v674, %v3178
      %v3180 = vpop.f32.mrb[0].mxu0
      %v3181 = vpop.f32.mrb[0].mxu0
      %v3182 = vadd.f32 %v674, %v3181
      %v3183 = vpop.f32.mrb[0].mxu0
      %3184 = vmatprep.mubr.bf16.mxu0 0
      %3185 = vmatmul.mubr.bf16.gmra.mrb[0].mxu0 %v2029
      %v3186 = vpop.f32.mrb[0].mxu0
      %v3187 = vadd.f32 %v674, %v3186
      %v3188 = vpop.f32.mrb[0].mxu0
      %v3189 = vpop.f32.mrb[0].mxu0
      %v3190 = vadd.f32 %v674, %v3189
      %v3191 = vpop.f32.mrb[0].mxu0
      %3192 = vmatprep.mubr.bf16.mxu0 0
      %3193 = vmatmul.mubr.bf16.gmra.mrb[0].mxu0 %v2032
      %v3194 = vpop.f32.mrb[0].mxu0
      %v3195 = vadd.f32 %v674, %v3194
      %v3196 = vpop.f32.mrb[0].mxu0
      %v3197 = vpop.f32.mrb[0].mxu0
      %v3198 = vadd.f32 %v674, %v3197
      %v3199 = vpop.f32.mrb[0].mxu0
      %3200 = vmatprep.mubr.bf16.mxu0 0
      %3201 = vmatmul.mubr.bf16.gmra.mrb[0].mxu0 %v2035
      %v3202 = vpop.f32.mrb[0].mxu0
      %v3203 = vadd.f32 %v674, %v3202
      %v3204 = vpop.f32.mrb[0].mxu0
      %v3205 = vpop.f32.mrb[0].mxu0
      %v3206 = vadd.f32 %v674, %v3205
      %v3207 = vpop.f32.mrb[0].mxu0
      %3208 = vmatprep.mubr.bf16.mxu0 0
      %3209 = vmatmul.mubr.bf16.gmra.mrb[0].mxu0 %v2038
      %v3210 = vpop.f32.mrb[0].mxu0
      %v3211 = vadd.f32 %v674, %v3210
      %v3212 = vpop.f32.mrb[0].mxu0
      %v3213 = vpop.f32.mrb[0].mxu0
      %v3214 = vadd.f32 %v674, %v3213
      %v3215 = vpop.f32.mrb[0].mxu0
      %3216 = vmatprep.mubr.bf16.mxu0 0
      %3217 = vmatmul.mubr.bf16.gmra.mrb[0].mxu0 %v2041
      %v3218 = vpop.f32.mrb[0].mxu0
      %v3219 = vadd.f32 %v674, %v3218
      %v3220 = vpop.f32.mrb[0].mxu0
      %v3221 = vpop.f32.mrb[0].mxu0
      %v3222 = vadd.f32 %v674, %v3221
      %v3223 = vpop.f32.mrb[0].mxu0
      %3224 = vmatprep.mubr.bf16.mxu0 0
      %3225 = vmatmul.mubr.bf16.gmra.mrb[0].mxu0 %v2044
      %v3226 = vpop.f32.mrb[0].mxu0
      %v3227 = vadd.f32 %v674, %v3226
      %v3228 = vpop.f32.mrb[0].mxu0
      %v3229 = vpop.f32.mrb[0].mxu0
      %v3230 = vadd.f32 %v674, %v3229
      %v3231 = vpop.f32.mrb[0].mxu0
      %3232 = vmatprep.mubr.bf16.mxu0 0
      %3233 = vmatmul.mubr.bf16.gmra.mrb[0].mxu0 %v2047
      %v3234 = vpop.f32.mrb[0].mxu0
      %v3235 = vadd.f32 %v674, %v3234
      %v3236 = vpop.f32.mrb[0].mxu0
      %v3237 = vpop.f32.mrb[0].mxu0
      %v3238 = vadd.f32 %v674, %v3237
      %v3239 = vpop.f32.mrb[0].mxu0
      %3240 = vmatprep.mubr.bf16.mxu0 0
      %3241 = vmatmul.mubr.bf16.gmra.mrb[0].mxu0 %v2050
      %v3242 = vpop.f32.mrb[0].mxu0
      %v3243 = vadd.f32 %v674, %v3242
      %v3244 = vpop.f32.mrb[0].mxu0
      %v3245 = vpop.f32.mrb[0].mxu0
      %v3246 = vadd.f32 %v674, %v3245
      %v3247 = vpop.f32.mrb[0].mxu0
      %3248 = vmatprep.mubr.bf16.mxu0 0
      %3249 = vmatmul.mubr.bf16.gmra.mrb[0].mxu0 %v2053
      %v3250 = vpop.f32.mrb[0].mxu0
      %v3251 = vadd.f32 %v674, %v3250
      %v3252 = vpop.f32.mrb[0].mxu0
      %v3253 = vpop.f32.mrb[0].mxu0
      %v3254 = vadd.f32 %v674, %v3253
      %v3255 = vpop.f32.mrb[0].mxu0
      %3256 = vmatprep.mubr.bf16.mxu0 0
      %3257 = vmatmul.mubr.bf16.gmra.mrb[0].mxu0 %v2056
      %v3258 = vpop.f32.mrb[0].mxu0
      %v3259 = vadd.f32 %v674, %v3258
      %v3260 = vpop.f32.mrb[0].mxu0
      %v3261 = vpop.f32.mrb[0].mxu0
      %v3262 = vadd.f32 %v674, %v3261
      %v3263 = vpop.f32.mrb[0].mxu0
      %3264 = vmatprep.mubr.bf16.mxu0 0
      %3265 = vmatmul.mubr.bf16.gmra.mrb[0].mxu0 %v2059
      %v3266 = vpop.f32.mrb[0].mxu0
      %v3267 = vadd.f32 %v674, %v3266
      %v3268 = vpop.f32.mrb[0].mxu0
      %v3269 = vpop.f32.mrb[0].mxu0
      %v3270 = vadd.f32 %v674, %v3269
      %v3271 = vpop.f32.mrb[0].mxu0
      %3272 = vmatprep.mubr.bf16.mxu0 0
      %3273 = vmatmul.mubr.bf16.gmra.mrb[0].mxu0 %v2062
      %v3274 = vpop.f32.mrb[0].mxu0
      %v3275 = vadd.f32 %v674, %v3274
      %v3276 = vpop.f32.mrb[0].mxu0
      %v3277 = vpop.f32.mrb[0].mxu0
      %v3278 = vadd.f32 %v674, %v3277
      %v3279 = vpop.f32.mrb[0].mxu0
      %3280 = vmatprep.mubr.bf16.mxu0 0
      %3281 = vmatmul.mubr.bf16.gmra.mrb[0].mxu0 %v2065
      %v3282 = vpop.f32.mrb[0].mxu0
      %v3283 = vadd.f32 %v674, %v3282
      %v3284 = vpop.f32.mrb[0].mxu0
      %v3285 = vpop.f32.mrb[0].mxu0
      %v3286 = vadd.f32 %v674, %v3285
      %v3287 = vpop.f32.mrb[0].mxu0
      %3288 = vmatprep.mubr.bf16.mxu0 0
      %3289 = vmatmul.mubr.bf16.gmra.mrb[0].mxu0 %v2068
      %v3290 = vpop.f32.mrb[0].mxu0
      %v3291 = vadd.f32 %v674, %v3290
      %v3292 = vpop.f32.mrb[0].mxu0
      %v3293 = vpop.f32.mrb[0].mxu0
      %v3294 = vadd.f32 %v674, %v3293
      %v3295 = vpop.f32.mrb[0].mxu0
      %3296 = vmatprep.mubr.bf16.mxu0 0
      %3297 = vmatmul.mubr.bf16.gmra.mrb[0].mxu0 %v2071
      %v3298 = vpop.f32.mrb[0].mxu0
      %v3299 = vadd.f32 %v674, %v3298
      %v3300 = vpop.f32.mrb[0].mxu0
      %v3301 = vpop.f32.mrb[0].mxu0
      %v3302 = vadd.f32 %v674, %v3301
      %v3303 = vpop.f32.mrb[0].mxu0
      %3304 = vmatprep.mubr.bf16.mxu0 0
      %3305 = vmatmul.mubr.bf16.gmra.mrb[0].mxu0 %v2074
      %v3306 = vpop.f32.mrb[0].mxu0
      %v3307 = vadd.f32 %v674, %v3306
      %v3308 = vpop.f32.mrb[0].mxu0
      %v3309 = vpop.f32.mrb[0].mxu0
      %v3310 = vadd.f32 %v674, %v3309
      %v3311 = vpop.f32.mrb[0].mxu0
      %3312 = vmatprep.mubr.bf16.mxu0 0
      %3313 = vmatmul.mubr.bf16.gmra.mrb[0].mxu0 %v2077
      %v3314 = vpop.f32.mrb[0].mxu0
      %v3315 = vadd.f32 %v674, %v3314
      %v3316 = vpop.f32.mrb[0].mxu0
      %v3317 = vpop.f32.mrb[0].mxu0
      %v3318 = vadd.f32 %v674, %v3317
      %v3319 = vpop.f32.mrb[0].mxu0
      %3320 = vmatprep.mubr.bf16.mxu0 0
      %3321 = vmatmul.mubr.bf16.gmra.mrb[0].mxu0 %v2080
      %v3322 = vpop.f32.mrb[0].mxu0
      %v3323 = vadd.f32 %v674, %v3322
      %v3324 = vpop.f32.mrb[0].mxu0
      %v3325 = vpop.f32.mrb[0].mxu0
      %v3326 = vadd.f32 %v674, %v3325
      %v3327 = vpop.f32.mrb[0].mxu0
      %3328 = vmatprep.mubr.bf16.mxu0 0
      %3329 = vmatmul.mubr.bf16.gmra.mrb[0].mxu0 %v2083
      %v3330 = vpop.f32.mrb[0].mxu0
      %v3331 = vadd.f32 %v674, %v3330
      %v3332 = vpop.f32.mrb[0].mxu0
      %v3333 = vpop.f32.mrb[0].mxu0
      %v3334 = vadd.f32 %v674, %v3333
      %v3335 = vpop.f32.mrb[0].mxu0
      %3336 = vmatprep.mubr.bf16.mxu0 0
      %3337 = vmatmul.mubr.bf16.gmra.mrb[0].mxu0 %v2086
      %v3338 = vpop.f32.mrb[0].mxu0
      %v3339 = vadd.f32 %v674, %v3338
      %v3340 = vpop.f32.mrb[0].mxu0
      %v3341 = vpop.f32.mrb[0].mxu0
      %v3342 = vadd.f32 %v674, %v3341
      %v3343 = vpop.f32.mrb[0].mxu0
      %3344 = vmatprep.mubr.bf16.mxu0 0
      %3345 = vmatmul.mubr.bf16.gmra.mrb[0].mxu0 %v2089
      %v3346 = vpop.f32.mrb[0].mxu0
      %v3347 = vadd.f32 %v674, %v3346
      %v3348 = vpop.f32.mrb[0].mxu0
      %v3349 = vpop.f32.mrb[0].mxu0
      %v3350 = vadd.f32 %v674, %v3349
      %v3351 = vpop.f32.mrb[0].mxu0
      %3352 = vmatprep.mubr.bf16.mxu0 0
      %3353 = vmatmul.mubr.bf16.gmra.mrb[0].mxu0 %v2092
      %v3354 = vpop.f32.mrb[0].mxu0
      %v3355 = vadd.f32 %v674, %v3354
      %v3356 = vpop.f32.mrb[0].mxu0
      %v3357 = vpop.f32.mrb[0].mxu0
      %v3358 = vadd.f32 %v674, %v3357
      %v3359 = vpop.f32.mrb[0].mxu0
      %3360 = vmatprep.mubr.bf16.mxu0 0
      %3361 = vmatmul.mubr.bf16.gmra.mrb[0].mxu0 %v2095
      %v3362 = vpop.f32.mrb[0].mxu0
      %v3363 = vadd.f32 %v674, %v3362
      %v3364 = vpop.f32.mrb[0].mxu0
      %v3365 = vpop.f32.mrb[0].mxu0
      %v3366 = vadd.f32 %v674, %v3365
      %v3367 = vpop.f32.mrb[0].mxu0
      %3368 = vmatprep.mubr.bf16.mxu0 0
      %3369 = vmatmul.mubr.bf16.gmra.mrb[0].mxu0 %v2098
      %v3370 = vpop.f32.mrb[0].mxu0
      %v3371 = vadd.f32 %v674, %v3370
      %v3372 = vpop.f32.mrb[0].mxu0
      %v3373 = vpop.f32.mrb[0].mxu0
      %v3374 = vadd.f32 %v674, %v3373
      %v3375 = vpop.f32.mrb[0].mxu0
      %3376 = vmatprep.mubr.bf16.mxu0 0
      %3377 = vmatmul.mubr.bf16.gmra.mrb[0].mxu0 %v2101
      %v3378 = vpop.f32.mrb[0].mxu0
      %v3379 = vadd.f32 %v674, %v3378
      %v3380 = vpop.f32.mrb[0].mxu0
      %v3381 = vpop.f32.mrb[0].mxu0
      %v3382 = vadd.f32 %v674, %v3381
      %v3383 = vpop.f32.mrb[0].mxu0
      %3384 = vmatprep.mubr.bf16.mxu0 0
      %3385 = vmatmul.mubr.bf16.gmra.mrb[0].mxu0 %v2104
      %v3386 = vpop.f32.mrb[0].mxu0
      %v3387 = vadd.f32 %v674, %v3386
      %v3388 = vpop.f32.mrb[0].mxu0
      %v3389 = vpop.f32.mrb[0].mxu0
      %v3390 = vadd.f32 %v674, %v3389
      %v3391 = vpop.f32.mrb[0].mxu0
      %3392 = vmatprep.mubr.bf16.mxu0 0
      %3393 = vmatmul.mubr.bf16.gmra.mrb[0].mxu0 %v2107
      %v3394 = vpop.f32.mrb[0].mxu0
      %v3395 = vadd.f32 %v674, %v3394
      %v3396 = vpop.f32.mrb[0].mxu0
      %v3397 = vpop.f32.mrb[0].mxu0
      %v3398 = vadd.f32 %v674, %v3397
      %v3399 = vpop.f32.mrb[0].mxu0
      %3400 = vmatprep.mubr.bf16.mxu0 0
      %3401 = vmatmul.mubr.bf16.gmra.mrb[0].mxu0 %v2110
      %v3402 = vpop.f32.mrb[0].mxu0
      %v3403 = vadd.f32 %v674, %v3402
      %v3404 = vpop.f32.mrb[0].mxu0
      %v3405 = vpop.f32.mrb[0].mxu0
      %v3406 = vadd.f32 %v674, %v3405
      %v3407 = vpop.f32.mrb[0].mxu0
      %3408 = vmatprep.mubr.bf16.mxu0 0
      %3409 = vmatmul.mubr.bf16.gmra.mrb[0].mxu0 %v2113
      %v3410 = vpop.f32.mrb[0].mxu0
      %v3411 = vadd.f32 %v674, %v3410
      %v3412 = vpop.f32.mrb[0].mxu0
      %v3413 = vpop.f32.mrb[0].mxu0
      %v3414 = vadd.f32 %v674, %v3413
      %v3415 = vpop.f32.mrb[0].mxu0
      %3416 = vmatprep.mubr.bf16.mxu0 0
      %3417 = vmatmul.mubr.bf16.gmra.mrb[0].mxu0 %v2116
      %v3418 = vpop.f32.mrb[0].mxu0
      %v3419 = vadd.f32 %v674, %v3418
      %v3420 = vpop.f32.mrb[0].mxu0
      %v3421 = vpop.f32.mrb[0].mxu0
      %v3422 = vadd.f32 %v674, %v3421
      %v3423 = vpop.f32.mrb[0].mxu0
      %3424 = vmatprep.mubr.bf16.mxu0 0
      %3425 = vmatmul.mubr.bf16.gmra.mrb[0].mxu0 %v2119
      %v3426 = vpop.f32.mrb[0].mxu0
      %v3427 = vadd.f32 %v674, %v3426
      %v3428 = vpop.f32.mrb[0].mxu0
      %v3429 = vpop.f32.mrb[0].mxu0
      %v3430 = vadd.f32 %v674, %v3429
      %v3431 = vpop.f32.mrb[0].mxu0
      %3432 = vmatprep.mubr.bf16.mxu0 0
      %3433 = vmatmul.mubr.bf16.gmra.mrb[0].mxu0 %v2122
      %v3434 = vpop.f32.mrb[0].mxu0
      %v3435 = vadd.f32 %v674, %v3434
      %v3436 = vpop.f32.mrb[0].mxu0
      %v3437 = vpop.f32.mrb[0].mxu0
      %v3438 = vadd.f32 %v674, %v3437
      %v3439 = vpop.f32.mrb[0].mxu0
      %3440 = vmatprep.mubr.bf16.mxu0 0
      %3441 = vmatmul.mubr.bf16.gmra.mrb[0].mxu0 %v2125
      %v3442 = vpop.f32.mrb[0].mxu0
      %v3443 = vadd.f32 %v674, %v3442
      %v3444 = vpop.f32.mrb[0].mxu0
      %v3445 = vpop.f32.mrb[0].mxu0
      %v3446 = vadd.f32 %v674, %v3445
      %v3447 = vpop.f32.mrb[0].mxu0
      %3448 = vmatprep.mubr.bf16.mxu0 0
      %3449 = vmatmul.mubr.bf16.gmra.mrb[0].mxu0 %v2128
      %v3450 = vpop.f32.mrb[0].mxu0
      %v3451 = vadd.f32 %v674, %v3450
      %v3452 = vpop.f32.mrb[0].mxu0
      %v3453 = vpop.f32.mrb[0].mxu0
      %v3454 = vadd.f32 %v674, %v3453
      %v3455 = vpop.f32.mrb[0].mxu0
      %3456 = vmatprep.mubr.bf16.mxu0 0
      %3457 = vmatmul.mubr.bf16.gmra.mrb[0].mxu0 %v2131
      %v3458 = vpop.f32.mrb[0].mxu0
      %v3459 = vadd.f32 %v674, %v3458
      %v3460 = vpop.f32.mrb[0].mxu0
      %v3461 = vpop.f32.mrb[0].mxu0
      %v3462 = vadd.f32 %v674, %v3461
      %v3463 = vpop.f32.mrb[0].mxu0
      %3464 = vmatprep.mubr.bf16.mxu0 0
      %3465 = vmatmul.mubr.bf16.gmra.mrb[0].mxu0 %v2134
      %v3466 = vpop.f32.mrb[0].mxu0
      %v3467 = vadd.f32 %v674, %v3466
      %v3468 = vpop.f32.mrb[0].mxu0
      %v3469 = vpop.f32.mrb[0].mxu0
      %v3470 = vadd.f32 %v674, %v3469
      %v3471 = vpop.f32.mrb[0].mxu0
      %3472 = vmatprep.mubr.bf16.mxu0 0
      %3473 = vmatmul.mubr.bf16.gmra.mrb[0].mxu0 %v2137
      %v3474 = vpop.f32.mrb[0].mxu0
      %v3475 = vadd.f32 %v674, %v3474
      %v3476 = vpop.f32.mrb[0].mxu0
      %v3477 = vpop.f32.mrb[0].mxu0
      %v3478 = vadd.f32 %v674, %v3477
      %v3479 = vpop.f32.mrb[0].mxu0
      %3480 = vmatprep.mubr.bf16.mxu0 0
      %3481 = vmatmul.mubr.bf16.gmra.mrb[0].mxu0 %v2140
      %v3482 = vpop.f32.mrb[0].mxu0
      %v3483 = vadd.f32 %v674, %v3482
      %v3484 = vpop.f32.mrb[0].mxu0
      %v3485 = vpop.f32.mrb[0].mxu0
      %v3486 = vadd.f32 %v674, %v3485
      %v3487 = vpop.f32.mrb[0].mxu0
      %3488 = vmatprep.mubr.bf16.mxu0 0
      %3489 = vmatmul.mubr.bf16.gmra.mrb[0].mxu0 %v2143
      %v3490 = vpop.f32.mrb[0].mxu0
      %v3491 = vadd.f32 %v674, %v3490
      %v3492 = vpop.f32.mrb[0].mxu0
      %v3493 = vpop.f32.mrb[0].mxu0
      %v3494 = vadd.f32 %v674, %v3493
      %v3495 = vpop.f32.mrb[0].mxu0
      %3496 = vmatprep.mubr.bf16.mxu0 0
      %3497 = vmatmul.mubr.bf16.gmra.mrb[0].mxu0 %v2146
      %v3498 = vpop.f32.mrb[0].mxu0
      %v3499 = vadd.f32 %v674, %v3498
      %v3500 = vpop.f32.mrb[0].mxu0
      %v3501 = vpop.f32.mrb[0].mxu0
      %v3502 = vadd.f32 %v674, %v3501
      %v3503 = vpop.f32.mrb[0].mxu0
      %3504 = vmatprep.mubr.bf16.mxu0 0
      %3505 = vmatmul.mubr.bf16.gmra.mrb[0].mxu0 %v2149
      %v3506 = vpop.f32.mrb[0].mxu0
      %v3507 = vadd.f32 %v674, %v3506
      %v3508 = vpop.f32.mrb[0].mxu0
      %v3509 = vpop.f32.mrb[0].mxu0
      %v3510 = vadd.f32 %v674, %v3509
      %v3511 = vpop.f32.mrb[0].mxu0
      %3512 = vmatprep.mubr.bf16.mxu0 0
      %3513 = vmatmul.mubr.bf16.gmra.mrb[0].mxu0 %v2152
      %v3514 = vpop.f32.mrb[0].mxu0
      %v3515 = vadd.f32 %v674, %v3514
      %v3516 = vpop.f32.mrb[0].mxu0
      %v3517 = vpop.f32.mrb[0].mxu0
      %v3518 = vadd.f32 %v674, %v3517
      %v3519 = vpop.f32.mrb[0].mxu0
      %3520 = vmatprep.mubr.bf16.mxu0 0
      %3521 = vmatmul.mubr.bf16.gmra.mrb[0].mxu0 %v2155
      %v3522 = vpop.f32.mrb[0].mxu0
      %v3523 = vadd.f32 %v674, %v3522
      %v3524 = vpop.f32.mrb[0].mxu0
      %v3525 = vpop.f32.mrb[0].mxu0
      %v3526 = vadd.f32 %v674, %v3525
      %v3527 = vpop.f32.mrb[0].mxu0
      %3528 = vmatprep.mubr.bf16.mxu0 0
      %3529 = vmatmul.mubr.bf16.gmra.mrb[0].mxu0 %v2158
      %v3530 = vpop.f32.mrb[0].mxu0
      %v3531 = vadd.f32 %v674, %v3530
      %v3532 = vpop.f32.mrb[0].mxu0
      %v3533 = vpop.f32.mrb[0].mxu0
      %v3534 = vadd.f32 %v674, %v3533
      %v3535 = vpop.f32.mrb[0].mxu0
      %3536 = vmatprep.mubr.bf16.mxu0 0
      %3537 = vmatmul.mubr.bf16.gmra.mrb[0].mxu0 %v2161
      %v3538 = vpop.f32.mrb[0].mxu0
      %v3539 = vadd.f32 %v674, %v3538
      %v3540 = vpop.f32.mrb[0].mxu0
      %v3541 = vpop.f32.mrb[0].mxu0
      %v3542 = vadd.f32 %v674, %v3541
      %v3543 = vpop.f32.mrb[0].mxu0
      %3544 = vmatprep.mubr.bf16.mxu0 0
      %3545 = vmatmul.mubr.bf16.gmra.mrb[0].mxu0 %v2164
      %v3546 = vpop.f32.mrb[0].mxu0
      %v3547 = vadd.f32 %v674, %v3546
      %v3548 = vpop.f32.mrb[0].mxu0
      %v3549 = vpop.f32.mrb[0].mxu0
      %v3550 = vadd.f32 %v674, %v3549
      %v3551 = vpop.f32.mrb[0].mxu0
      %3552 = vmatprep.mubr.bf16.mxu0 0
      %3553 = vmatmul.mubr.bf16.gmra.mrb[0].mxu0 %v2167
      %v3554 = vpop.f32.mrb[0].mxu0
      %v3555 = vadd.f32 %v674, %v3554
      %v3556 = vpop.f32.mrb[0].mxu0
      %v3557 = vpop.f32.mrb[0].mxu0
      %v3558 = vadd.f32 %v674, %v3557
      %v3559 = vpop.f32.mrb[0].mxu0
      %3560 = vmatprep.mubr.bf16.mxu0 0
      %3561 = vmatmul.mubr.bf16.gmra.mrb[0].mxu0 %v2170
      %v3562 = vpop.f32.mrb[0].mxu0
      %v3563 = vadd.f32 %v674, %v3562
      %v3564 = vpop.f32.mrb[0].mxu0
      %v3565 = vpop.f32.mrb[0].mxu0
      %v3566 = vadd.f32 %v674, %v3565
      %v3567 = vpop.f32.mrb[0].mxu0
      %3568 = vmatprep.mubr.bf16.mxu0 0
      %3569 = vmatmul.mubr.bf16.gmra.mrb[0].mxu0 %v2173
      %v3570 = vpop.f32.mrb[0].mxu0
      %v3571 = vadd.f32 %v674, %v3570
      %v3572 = vpop.f32.mrb[0].mxu0
      %v3573 = vpop.f32.mrb[0].mxu0
      %v3574 = vadd.f32 %v674, %v3573
      %v3575 = vpop.f32.mrb[0].mxu0
      %3576 = vmatprep.mubr.bf16.mxu0 0
      %3577 = vmatmul.mubr.bf16.gmra.mrb[0].mxu0 %v2176
      %v3578 = vpop.f32.mrb[0].mxu0
      %v3579 = vadd.f32 %v674, %v3578
      %v3580 = vpop.f32.mrb[0].mxu0
      %v3581 = vpop.f32.mrb[0].mxu0
      %v3582 = vadd.f32 %v674, %v3581
      %v3583 = vpop.f32.mrb[0].mxu0
      %3584 = vmatprep.mubr.bf16.mxu0 0
      %3585 = vmatmul.mubr.bf16.gmra.mrb[0].mxu0 %v2179
      %v3586 = vpop.f32.mrb[0].mxu0
      %v3587 = vadd.f32 %v674, %v3586
      %v3588 = vpop.f32.mrb[0].mxu0
      %v3589 = vpop.f32.mrb[0].mxu0
      %v3590 = vadd.f32 %v674, %v3589
      %v3591 = vpop.f32.mrb[0].mxu0
      %3592 = vmatprep.mubr.bf16.mxu0 0
      %3593 = vmatmul.mubr.bf16.gmra.mrb[0].mxu0 %v2182
      %v3594 = vpop.f32.mrb[0].mxu0
      %v3595 = vadd.f32 %v674, %v3594
      %v3596 = vpop.f32.mrb[0].mxu0
      %v3597 = vpop.f32.mrb[0].mxu0
      %v3598 = vadd.f32 %v674, %v3597
      %v3599 = vpop.f32.mrb[0].mxu0
      %3600 = vmatprep.mubr.bf16.mxu0 0
      %3601 = vmatmul.mubr.bf16.gmra.mrb[0].mxu0 %v2185
      %v3602 = vpop.f32.mrb[0].mxu0
      %v3603 = vadd.f32 %v674, %v3602
      %v3604 = vpop.f32.mrb[0].mxu0
      %v3605 = vpop.f32.mrb[0].mxu0
      %v3606 = vadd.f32 %v674, %v3605
      %v3607 = vpop.f32.mrb[0].mxu0
      %3608 = vmatprep.mubr.bf16.mxu0 0
      %3609 = vmatmul.mubr.bf16.gmra.mrb[0].mxu0 %v2188
      %v3610 = vpop.f32.mrb[0].mxu0
      %v3611 = vadd.f32 %v674, %v3610
      %v3612 = vpop.f32.mrb[0].mxu0
      %v3613 = vpop.f32.mrb[0].mxu0
      %v3614 = vadd.f32 %v674, %v3613
      %v3615 = vpop.f32.mrb[0].mxu0
      %3616 = vmatprep.mubr.bf16.mxu0 0
      %3617 = vmatmul.mubr.bf16.gmra.mrb[0].mxu0 %v2191
      %v3618 = vpop.f32.mrb[0].mxu0
      %v3619 = vadd.f32 %v674, %v3618
      %v3620 = vpop.f32.mrb[0].mxu0
      %v3621 = vpop.f32.mrb[0].mxu0
      %v3622 = vadd.f32 %v674, %v3621
      %v3623 = vpop.f32.mrb[0].mxu0
      %3624 = vmatprep.mubr.bf16.mxu0 0
      %3625 = vmatmul.mubr.bf16.gmra.mrb[0].mxu0 %v2194
      %v3626 = vpop.f32.mrb[0].mxu0
      %v3627 = vadd.f32 %v674, %v3626
      %v3628 = vpop.f32.mrb[0].mxu0
      %v3629 = vpop.f32.mrb[0].mxu0
      %v3630 = vadd.f32 %v674, %v3629
      %v3631 = vpop.f32.mrb[0].mxu0
      %3632 = vmatprep.mubr.bf16.mxu0 0
      %3633 = vmatmul.mubr.bf16.gmra.mrb[0].mxu0 %v2197
      %v3634 = vpop.f32.mrb[0].mxu0
      %v3635 = vadd.f32 %v674, %v3634
      %v3636 = vpop.f32.mrb[0].mxu0
      %v3637 = vpop.f32.mrb[0].mxu0
      %v3638 = vadd.f32 %v674, %v3637
      %v3639 = vpop.f32.mrb[0].mxu0
      %3640 = vmatprep.mubr.bf16.mxu0 0
      %3641 = vmatmul.mubr.bf16.gmra.mrb[0].mxu0 %v2200
      %v3642 = vpop.f32.mrb[0].mxu0
      %v3643 = vadd.f32 %v674, %v3642
      %v3644 = vpop.f32.mrb[0].mxu0
      %v3645 = vpop.f32.mrb[0].mxu0
      %v3646 = vadd.f32 %v674, %v3645
      %v3647 = vpop.f32.mrb[0].mxu0
      %3648 = vmatprep.mubr.bf16.mxu0 0
      %3649 = vmatmul.mubr.bf16.gmra.mrb[0].mxu0 %v2203
      %v3650 = vpop.f32.mrb[0].mxu0
      %v3651 = vadd.f32 %v674, %v3650
      %v3652 = vpop.f32.mrb[0].mxu0
      %v3653 = vpop.f32.mrb[0].mxu0
      %v3654 = vadd.f32 %v674, %v3653
      %v3655 = vpop.f32.mrb[0].mxu0
      %3656 = vmatprep.mubr.bf16.mxu0 0
      %3657 = vmatmul.mubr.bf16.gmra.mrb[0].mxu0 %v2206
      %v3658 = vpop.f32.mrb[0].mxu0
      %v3659 = vadd.f32 %v674, %v3658
      %v3660 = vpop.f32.mrb[0].mxu0
      %v3661 = vpop.f32.mrb[0].mxu0
      %v3662 = vadd.f32 %v674, %v3661
      %v3663 = vpop.f32.mrb[0].mxu0
      %3664 = vmatprep.mubr.bf16.mxu0 0
      %3665 = vmatmul.mubr.bf16.gmra.mrb[0].mxu0 %v2209
      %v3666 = vpop.f32.mrb[0].mxu0
      %v3667 = vadd.f32 %v674, %v3666
      %v3668 = vpop.f32.mrb[0].mxu0
      %v3669 = vpop.f32.mrb[0].mxu0
      %v3670 = vadd.f32 %v674, %v3669
      %v3671 = vpop.f32.mrb[0].mxu0
      %3672 = vmatprep.mubr.bf16.mxu0 0
      %3673 = vmatmul.mubr.bf16.gmra.mrb[0].mxu0 %v2212
      %v3674 = vpop.f32.mrb[0].mxu0
      %v3675 = vadd.f32 %v674, %v3674
      %v3676 = vpop.f32.mrb[0].mxu0
      %v3677 = vpop.f32.mrb[0].mxu0
      %v3678 = vadd.f32 %v674, %v3677
      %v3679 = vpop.f32.mrb[0].mxu0
      %3680 = vmatprep.mubr.bf16.mxu0 0
      %3681 = vmatmul.mubr.bf16.gmra.mrb[0].mxu0 %v2215
      %v3682 = vpop.f32.mrb[0].mxu0
      %v3683 = vadd.f32 %v674, %v3682
      %v3684 = vpop.f32.mrb[0].mxu0
      %v3685 = vpop.f32.mrb[0].mxu0
      %v3686 = vadd.f32 %v674, %v3685
      %v3687 = vpop.f32.mrb[0].mxu0
      %3688 = vmatprep.mubr.bf16.mxu0 0
      %3689 = vmatmul.mubr.bf16.gmra.mrb[0].mxu0 %v2218
      %v3690 = vpop.f32.mrb[0].mxu0
      %v3691 = vadd.f32 %v674, %v3690
      %v3692 = vpop.f32.mrb[0].mxu0
      %v3693 = vpop.f32.mrb[0].mxu0
      %v3694 = vadd.f32 %v674, %v3693
      %v3695 = vpop.f32.mrb[0].mxu0
      %3696 = vmatprep.mubr.bf16.mxu0 0
      %3697 = vmatmul.mubr.bf16.gmra.mrb[0].mxu0 %v2221
      %v3698 = vpop.f32.mrb[0].mxu0
      %v3699 = vadd.f32 %v674, %v3698
      %v3700 = vpop.f32.mrb[0].mxu0
      %v3701 = vpop.f32.mrb[0].mxu0
      %v3702 = vadd.f32 %v674, %v3701
      %v3703 = vpop.f32.mrb[0].mxu0
      %3704 = vmatprep.mubr.bf16.mxu0 0
      %3705 = vmatmul.mubr.bf16.gmra.mrb[0].mxu0 %v2224
      %v3706 = vpop.f32.mrb[0].mxu0
      %v3707 = vadd.f32 %v674, %v3706
      %v3708 = vpop.f32.mrb[0].mxu0
      %v3709 = vpop.f32.mrb[0].mxu0
      %v3710 = vadd.f32 %v674, %v3709
      %v3711 = vpop.f32.mrb[0].mxu0
      %3712 = vmatprep.mubr.bf16.mxu0 0
      %3713 = vmatmul.mubr.bf16.gmra.mrb[0].mxu0 %v2227
      %v3714 = vpop.f32.mrb[0].mxu0
      %v3715 = vadd.f32 %v674, %v3714
      %v3716 = vpop.f32.mrb[0].mxu0
      %v3717 = vpop.f32.mrb[0].mxu0
      %v3718 = vadd.f32 %v674, %v3717
      %v3719 = vpop.f32.mrb[0].mxu0
      %3720 = vmatprep.mubr.bf16.mxu0 0
      %3721 = vmatmul.mubr.bf16.gmra.mrb[0].mxu0 %v2230
      %v3722 = vpop.f32.mrb[0].mxu0
      %v3723 = vadd.f32 %v674, %v3722
      %v3724 = vpop.f32.mrb[0].mxu0
      %v3725 = vpop.f32.mrb[0].mxu0
      %v3726 = vadd.f32 %v674, %v3725
      %v3727 = vpop.f32.mrb[0].mxu0
      %3728 = vmatprep.mubr.bf16.mxu0 0
      %3729 = vmatmul.mubr.bf16.gmra.mrb[0].mxu0 %v2233
      %v3730 = vpop.f32.mrb[0].mxu0
      %v3731 = vadd.f32 %v674, %v3730
      %v3732 = vpop.f32.mrb[0].mxu0
      %v3733 = vpop.f32.mrb[0].mxu0
      %v3734 = vadd.f32 %v674, %v3733
      %v3735 = vpop.f32.mrb[0].mxu0
      %3736 = vmatprep.mubr.bf16.mxu0 0
      %3737 = vmatmul.mubr.bf16.gmra.mrb[0].mxu0 %v2236
      %v3738 = vpop.f32.mrb[0].mxu0
      %v3739 = vadd.f32 %v674, %v3738
      %v3740 = vpop.f32.mrb[0].mxu0
      %v3741 = vpop.f32.mrb[0].mxu0
      %v3742 = vadd.f32 %v674, %v3741
      %v3743 = vpop.f32.mrb[0].mxu0
      %3744 = vmatprep.mubr.bf16.mxu0 0
      %3745 = vmatmul.mubr.bf16.gmra.mrb[0].mxu0 %v2239
      %v3746 = vpop.f32.mrb[0].mxu0
      %v3747 = vadd.f32 %v674, %v3746
      %v3748 = vpop.f32.mrb[0].mxu0
      %v3749 = vpop.f32.mrb[0].mxu0
      %v3750 = vadd.f32 %v674, %v3749
      %v3751 = vpop.f32.mrb[0].mxu0
      %3752 = vmatprep.mubr.bf16.mxu0 0
      %3753 = vmatmul.mubr.bf16.gmra.mrb[0].mxu0 %v2242
      %v3754 = vpop.f32.mrb[0].mxu0
      %v3755 = vadd.f32 %v674, %v3754
      %v3756 = vpop.f32.mrb[0].mxu0
      %v3757 = vpop.f32.mrb[0].mxu0
      %v3758 = vadd.f32 %v674, %v3757
      %v3759 = vpop.f32.mrb[0].mxu0
      %3760 = vmatprep.mubr.bf16.mxu0 0
      %3761 = vmatmul.mubr.bf16.gmra.mrb[0].mxu0 %v2245
      %v3762 = vpop.f32.mrb[0].mxu0
      %v3763 = vadd.f32 %v674, %v3762
      %v3764 = vpop.f32.mrb[0].mxu0
      %v3765 = vpop.f32.mrb[0].mxu0
      %v3766 = vadd.f32 %v674, %v3765
      %v3767 = vpop.f32.mrb[0].mxu0
      %3768 = vmatprep.mubr.bf16.mxu0 0
      %3769 = vmatmul.mubr.bf16.gmra.mrb[0].mxu0 %v2248
      %v3770 = vpop.f32.mrb[0].mxu0
      %v3771 = vadd.f32 %v674, %v3770
      %v3772 = vpop.f32.mrb[0].mxu0
      %v3773 = vpop.f32.mrb[0].mxu0
      %v3774 = vadd.f32 %v674, %v3773
      %v3775 = vpop.f32.mrb[0].mxu0
      %3776 = vmatprep.mubr.bf16.mxu0 0
      %3777 = vmatmul.mubr.bf16.gmra.mrb[0].mxu0 %v2251
      %v3778 = vpop.f32.mrb[0].mxu0
      %v3779 = vadd.f32 %v674, %v3778
      %v3780 = vpop.f32.mrb[0].mxu0
      %v3781 = vpop.f32.mrb[0].mxu0
      %v3782 = vadd.f32 %v674, %v3781
      %v3783 = vpop.f32.mrb[0].mxu0
      %3784 = vmatprep.mubr.bf16.mxu0 0
      %3785 = vmatmul.mubr.bf16.gmra.mrb[0].mxu0 %v2254
      %v3786 = vpop.f32.mrb[0].mxu0
      %v3787 = vadd.f32 %v674, %v3786
      %v3788 = vpop.f32.mrb[0].mxu0
      %v3789 = vpop.f32.mrb[0].mxu0
      %v3790 = vadd.f32 %v674, %v3789
      %v3791 = vpop.f32.mrb[0].mxu0
      %3792 = vmatprep.mubr.bf16.mxu0 0
      %3793 = vmatmul.mubr.bf16.gmra.mrb[0].mxu0 %v2257
      %v3794 = vpop.f32.mrb[0].mxu0
      %v3795 = vadd.f32 %v674, %v3794
      %v3796 = vpop.f32.mrb[0].mxu0
      %v3797 = vpop.f32.mrb[0].mxu0
      %v3798 = vadd.f32 %v674, %v3797
      %v3799 = vpop.f32.mrb[0].mxu0
      %3800 = vmatprep.mubr.bf16.mxu0 0
      %3801 = vmatmul.mubr.bf16.gmra.mrb[0].mxu0 %v2260
      %v3802 = vpop.f32.mrb[0].mxu0
      %v3803 = vadd.f32 %v674, %v3802
      %v3804 = vpop.f32.mrb[0].mxu0
      %v3805 = vpop.f32.mrb[0].mxu0
      %v3806 = vadd.f32 %v674, %v3805
      %v3807 = vpop.f32.mrb[0].mxu0
      %3808 = vmatprep.mubr.bf16.mxu0 0
      %3809 = vmatmul.mubr.bf16.gmra.mrb[0].mxu0 %v2263
      %v3810 = vpop.f32.mrb[0].mxu0
      %v3811 = vadd.f32 %v674, %v3810
      %v3812 = vpop.f32.mrb[0].mxu0
      %v3813 = vpop.f32.mrb[0].mxu0
      %v3814 = vadd.f32 %v674, %v3813
      %v3815 = vpop.f32.mrb[0].mxu0
      %3816 = vmatprep.mubr.bf16.mxu0 0
      %3817 = vmatmul.mubr.bf16.gmra.mrb[0].mxu0 %v2266
      %v3818 = vpop.f32.mrb[0].mxu0
      %v3819 = vadd.f32 %v674, %v3818
      %v3820 = vpop.f32.mrb[0].mxu0
      %v3821 = vpop.f32.mrb[0].mxu0
      %v3822 = vadd.f32 %v674, %v3821
      %v3823 = vpop.f32.mrb[0].mxu0
      %3824 = vmatprep.mubr.bf16.mxu0 0
      %3825 = vmatmul.mubr.bf16.gmra.mrb[0].mxu0 %v2269
      %v3826 = vpop.f32.mrb[0].mxu0
      %v3827 = vadd.f32 %v674, %v3826
      %v3828 = vpop.f32.mrb[0].mxu0
      %v3829 = vpop.f32.mrb[0].mxu0
      %v3830 = vadd.f32 %v674, %v3829
      %v3831 = vpop.f32.mrb[0].mxu0
      %3832 = vmatprep.mubr.bf16.mxu0 0
      %3833 = vmatmul.mubr.bf16.gmra.mrb[0].mxu0 %v2272
      %v3834 = vpop.f32.mrb[0].mxu0
      %v3835 = vadd.f32 %v674, %v3834
      %v3836 = vpop.f32.mrb[0].mxu0
      %v3837 = vpop.f32.mrb[0].mxu0
      %v3838 = vadd.f32 %v674, %v3837
      %v3839 = vpop.f32.mrb[0].mxu0
      %3840 = vmatprep.mubr.bf16.mxu0 0
      %3841 = vmatmul.mubr.bf16.gmra.mrb[0].mxu0 %v2275
      %v3842 = vpop.f32.mrb[0].mxu0
      %v3843 = vadd.f32 %v674, %v3842
      %v3844 = vpop.f32.mrb[0].mxu0
      %v3845 = vpop.f32.mrb[0].mxu0
      %v3846 = vadd.f32 %v674, %v3845
      %v3847 = vpop.f32.mrb[0].mxu0
      %3848 = vmatprep.mubr.bf16.mxu0 0
      %3849 = vmatmul.mubr.bf16.gmra.mrb[0].mxu0 %v2278
      %v3850 = vpop.f32.mrb[0].mxu0
      %v3851 = vadd.f32 %v674, %v3850
      %v3852 = vpop.f32.mrb[0].mxu0
      %v3853 = vpop.f32.mrb[0].mxu0
      %v3854 = vadd.f32 %v674, %v3853
      %v3855 = vpop.f32.mrb[0].mxu0
      %3856 = vmatprep.mubr.bf16.mxu0 0
      %3857 = vmatmul.mubr.bf16.gmra.mrb[0].mxu0 %v2281
      %v3858 = vpop.f32.mrb[0].mxu0
      %v3859 = vadd.f32 %v674, %v3858
      %v3860 = vpop.f32.mrb[0].mxu0
      %v3861 = vpop.f32.mrb[0].mxu0
      %v3862 = vadd.f32 %v674, %v3861
      %v3863 = vpop.f32.mrb[0].mxu0
      %3864 = vmatprep.mubr.bf16.mxu0 0
      %3865 = vmatmul.mubr.bf16.gmra.mrb[0].mxu0 %v2284
      %v3866 = vpop.f32.mrb[0].mxu0
      %v3867 = vadd.f32 %v674, %v3866
      %v3868 = vpop.f32.mrb[0].mxu0
      %v3869 = vpop.f32.mrb[0].mxu0
      %v3870 = vadd.f32 %v674, %v3869
      %v3871 = vpop.f32.mrb[0].mxu0
      %3872 = vmatprep.mubr.bf16.mxu0 0
      %3873 = vmatmul.mubr.bf16.gmra.mrb[0].mxu0 %v2287
      %v3874 = vpop.f32.mrb[0].mxu0
      %v3875 = vadd.f32 %v674, %v3874
      %v3876 = vpop.f32.mrb[0].mxu0
      %v3877 = vpop.f32.mrb[0].mxu0
      %v3878 = vadd.f32 %v674, %v3877
      %v3879 = vpop.f32.mrb[0].mxu0
      %3880 = vmatprep.mubr.bf16.mxu0 0
      %3881 = vmatmul.mubr.bf16.gmra.mrb[0].mxu0 %v2290
      %v3882 = vpop.f32.mrb[0].mxu0
      %v3883 = vadd.f32 %v674, %v3882
      %v3884 = vpop.f32.mrb[0].mxu0
      %v3885 = vpop.f32.mrb[0].mxu0
      %v3886 = vadd.f32 %v674, %v3885
      %v3887 = vpop.f32.mrb[0].mxu0
      %3888 = vmatprep.mubr.bf16.mxu0 0
      %3889 = vmatmul.mubr.bf16.gmra.mrb[0].mxu0 %v2293
      %v3890 = vpop.f32.mrb[0].mxu0
      %v3891 = vadd.f32 %v674, %v3890
      %v3892 = vpop.f32.mrb[0].mxu0
      %v3893 = vpop.f32.mrb[0].mxu0
      %v3894 = vadd.f32 %v674, %v3893
      %v3895 = vpop.f32.mrb[0].mxu0
      %3896 = vmatprep.mubr.bf16.mxu0 0
      %3897 = vmatmul.mubr.bf16.gmra.mrb[0].mxu0 %v2296
      %v3898 = vpop.f32.mrb[0].mxu0
      %v3899 = vadd.f32 %v674, %v3898
      %v3900 = vpop.f32.mrb[0].mxu0
      %v3901 = vpop.f32.mrb[0].mxu0
      %v3902 = vadd.f32 %v674, %v3901
      %v3903 = vpop.f32.mrb[0].mxu0
      %3904 = vmatprep.mubr.bf16.mxu0 0
      %3905 = vmatmul.mubr.bf16.gmra.mrb[0].mxu0 %v2299
      %v3906 = vpop.f32.mrb[0].mxu0
      %v3907 = vadd.f32 %v674, %v3906
      %v3908 = vpop.f32.mrb[0].mxu0
      %v3909 = vpop.f32.mrb[0].mxu0
      %v3910 = vadd.f32 %v674, %v3909
      %v3911 = vpop.f32.mrb[0].mxu0
      %3912 = vmatprep.mubr.bf16.mxu0 0
      %3913 = vmatmul.mubr.bf16.gmra.mrb[0].mxu0 %v2302
      %v3914 = vpop.f32.mrb[0].mxu0
      %v3915 = vadd.f32 %v674, %v3914
      %v3916 = vpop.f32.mrb[0].mxu0
      %v3917 = vpop.f32.mrb[0].mxu0
      %v3918 = vadd.f32 %v674, %v3917
      %v3919 = vpop.f32.mrb[0].mxu0
      %3920 = vmatprep.mubr.bf16.mxu0 0
      %3921 = vmatmul.mubr.bf16.gmra.mrb[0].mxu0 %v2305
      %v3922 = vpop.f32.mrb[0].mxu0
      %v3923 = vadd.f32 %v674, %v3922
      %v3924 = vpop.f32.mrb[0].mxu0
      %v3925 = vpop.f32.mrb[0].mxu0
      %v3926 = vadd.f32 %v674, %v3925
      %v3927 = vpop.f32.mrb[0].mxu0
      %3928 = vmatprep.mubr.bf16.mxu0 0
      %3929 = vmatmul.mubr.bf16.gmra.mrb[0].mxu0 %v2308
      %v3930 = vpop.f32.mrb[0].mxu0
      %v3931 = vadd.f32 %v674, %v3930
      %v3932 = vpop.f32.mrb[0].mxu0
      %v3933 = vpop.f32.mrb[0].mxu0
      %v3934 = vadd.f32 %v674, %v3933
      %v3935 = vpop.f32.mrb[0].mxu0
      %3936 = vmatprep.mubr.bf16.mxu0 0
      %3937 = vmatmul.mubr.bf16.gmra.mrb[0].mxu0 %v2311
      %v3938 = vpop.f32.mrb[0].mxu0
      %v3939 = vadd.f32 %v674, %v3938
      %v3940 = vpop.f32.mrb[0].mxu0
      %v3941 = vpop.f32.mrb[0].mxu0
      %v3942 = vadd.f32 %v674, %v3941
      %v3943 = vpop.f32.mrb[0].mxu0
      %3944 = vmatprep.mubr.bf16.mxu0 0
      %3945 = vmatmul.mubr.bf16.gmra.mrb[0].mxu0 %v2314
      %v3946 = vpop.f32.mrb[0].mxu0
      %v3947 = vadd.f32 %v674, %v3946
      %v3948 = vpop.f32.mrb[0].mxu0
      %v3949 = vpop.f32.mrb[0].mxu0
      %v3950 = vadd.f32 %v674, %v3949
      %v3951 = vpop.f32.mrb[0].mxu0
      %3952 = vdwg.mxu0
      %v3953 = vmax.f32 %v2355, 0.0
      %v3954 = vmax.f32 %v2358, 0.0
      %v3955 = vmax.f32 %v2363, 0.0
      %v3956 = vmax.f32 %v2366, 0.0
      %v3957 = vmax.f32 %v2371, 0.0
      %v3958 = vmax.f32 %v2374, 0.0
      %v3959 = vmax.f32 %v2379, 0.0
      %v3960 = vmax.f32 %v2382, 0.0
      %v3961 = vmax.f32 %v2387, 0.0
      %v3962 = vmax.f32 %v2390, 0.0
      %v3963 = vmax.f32 %v2395, 0.0
      %v3964 = vmax.f32 %v2398, 0.0
      %v3965 = vmax.f32 %v2403, 0.0
      %v3966 = vmax.f32 %v2406, 0.0
      %v3967 = vmax.f32 %v2411, 0.0
      %v3968 = vmax.f32 %v2414, 0.0
      %v3969 = vmax.f32 %v2419, 0.0
      %v3970 = vmax.f32 %v2422, 0.0
      %v3971 = vmax.f32 %v2427, 0.0
      %v3972 = vmax.f32 %v2430, 0.0
      %v3973 = vmax.f32 %v2435, 0.0
      %v3974 = vmax.f32 %v2438, 0.0
      %v3975 = vmax.f32 %v2443, 0.0
      %v3976 = vmax.f32 %v2446, 0.0
      %v3977 = vmax.f32 %v2451, 0.0
      %v3978 = vmax.f32 %v2454, 0.0
      %v3979 = vmax.f32 %v2459, 0.0
      %v3980 = vmax.f32 %v2462, 0.0
      %v3981 = vmax.f32 %v2467, 0.0
      %v3982 = vmax.f32 %v2470, 0.0
      %v3983 = vmax.f32 %v2475, 0.0
      %v3984 = vmax.f32 %v2478, 0.0
      %v3985 = vmax.f32 %v2483, 0.0
      %v3986 = vmax.f32 %v2486, 0.0
      %v3987 = vmax.f32 %v2491, 0.0
      %v3988 = vmax.f32 %v2494, 0.0
      %v3989 = vmax.f32 %v2499, 0.0
      %v3990 = vmax.f32 %v2502, 0.0
      %v3991 = vmax.f32 %v2507, 0.0
      %v3992 = vmax.f32 %v2510, 0.0
      %v3993 = vmax.f32 %v2515, 0.0
      %v3994 = vmax.f32 %v2518, 0.0
      %v3995 = vmax.f32 %v2523, 0.0
      %v3996 = vmax.f32 %v2526, 0.0
      %v3997 = vmax.f32 %v2531, 0.0
      %v3998 = vmax.f32 %v2534, 0.0
      %v3999 = vmax.f32 %v2539, 0.0
      %v4000 = vmax.f32 %v2542, 0.0
      %v4001 = vmax.f32 %v2547, 0.0
      %v4002 = vmax.f32 %v2550, 0.0
      %v4003 = vmax.f32 %v2555, 0.0
      %v4004 = vmax.f32 %v2558, 0.0
      %v4005 = vmax.f32 %v2563, 0.0
      %v4006 = vmax.f32 %v2566, 0.0
      %v4007 = vmax.f32 %v2571, 0.0
      %v4008 = vmax.f32 %v2574, 0.0
      %v4009 = vmax.f32 %v2579, 0.0
      %v4010 = vmax.f32 %v2582, 0.0
      %v4011 = vmax.f32 %v2587, 0.0
      %v4012 = vmax.f32 %v2590, 0.0
      %v4013 = vmax.f32 %v2595, 0.0
      %v4014 = vmax.f32 %v2598, 0.0
      %v4015 = vmax.f32 %v2603, 0.0
      %v4016 = vmax.f32 %v2606, 0.0
      %v4017 = vmax.f32 %v2611, 0.0
      %v4018 = vmax.f32 %v2614, 0.0
      %v4019 = vmax.f32 %v2619, 0.0
      %v4020 = vmax.f32 %v2622, 0.0
      %v4021 = vmax.f32 %v2627, 0.0
      %v4022 = vmax.f32 %v2630, 0.0
      %v4023 = vmax.f32 %v2635, 0.0
      %v4024 = vmax.f32 %v2638, 0.0
      %v4025 = vmax.f32 %v2643, 0.0
      %v4026 = vmax.f32 %v2646, 0.0
      %v4027 = vmax.f32 %v2651, 0.0
      %v4028 = vmax.f32 %v2654, 0.0
      %v4029 = vmax.f32 %v2659, 0.0
      %v4030 = vmax.f32 %v2662, 0.0
      %v4031 = vmax.f32 %v2667, 0.0
      %v4032 = vmax.f32 %v2670, 0.0
      %v4033 = vmax.f32 %v2675, 0.0
      %v4034 = vmax.f32 %v2678, 0.0
      %v4035 = vmax.f32 %v2683, 0.0
      %v4036 = vmax.f32 %v2686, 0.0
      %v4037 = vmax.f32 %v2691, 0.0
      %v4038 = vmax.f32 %v2694, 0.0
      %v4039 = vmax.f32 %v2699, 0.0
      %v4040 = vmax.f32 %v2702, 0.0
      %v4041 = vmax.f32 %v2707, 0.0
      %v4042 = vmax.f32 %v2710, 0.0
      %v4043 = vmax.f32 %v2715, 0.0
      %v4044 = vmax.f32 %v2718, 0.0
      %v4045 = vmax.f32 %v2723, 0.0
      %v4046 = vmax.f32 %v2726, 0.0
      %v4047 = vmax.f32 %v2731, 0.0
      %v4048 = vmax.f32 %v2734, 0.0
      %v4049 = vmax.f32 %v2739, 0.0
      %v4050 = vmax.f32 %v2742, 0.0
      %v4051 = vmax.f32 %v2747, 0.0
      %v4052 = vmax.f32 %v2750, 0.0
      %v4053 = vmax.f32 %v2755, 0.0
      %v4054 = vmax.f32 %v2758, 0.0
      %v4055 = vmax.f32 %v2763, 0.0
      %v4056 = vmax.f32 %v2766, 0.0
      %v4057 = vmax.f32 %v2771, 0.0
      %v4058 = vmax.f32 %v2774, 0.0
      %v4059 = vmax.f32 %v2779, 0.0
      %v4060 = vmax.f32 %v2782, 0.0
      %v4061 = vmax.f32 %v2787, 0.0
      %v4062 = vmax.f32 %v2790, 0.0
      %v4063 = vmax.f32 %v2795, 0.0
      %v4064 = vmax.f32 %v2798, 0.0
      %v4065 = vmax.f32 %v2803, 0.0
      %v4066 = vmax.f32 %v2806, 0.0
      %v4067 = vmax.f32 %v2811, 0.0
      %v4068 = vmax.f32 %v2814, 0.0
      %v4069 = vmax.f32 %v2819, 0.0
      %v4070 = vmax.f32 %v2822, 0.0
      %v4071 = vmax.f32 %v2827, 0.0
      %v4072 = vmax.f32 %v2830, 0.0
      %v4073 = vmax.f32 %v2835, 0.0
      %v4074 = vmax.f32 %v2838, 0.0
      %v4075 = vmax.f32 %v2843, 0.0
      %v4076 = vmax.f32 %v2846, 0.0
      %v4077 = vmax.f32 %v2851, 0.0
      %v4078 = vmax.f32 %v2854, 0.0
      %v4079 = vmax.f32 %v2859, 0.0
      %v4080 = vmax.f32 %v2862, 0.0
      %v4081 = vmax.f32 %v2867, 0.0
      %v4082 = vmax.f32 %v2870, 0.0
      %v4083 = vmax.f32 %v2875, 0.0
      %v4084 = vmax.f32 %v2878, 0.0
      %v4085 = vmax.f32 %v2883, 0.0
      %v4086 = vmax.f32 %v2886, 0.0
      %v4087 = vmax.f32 %v2891, 0.0
      %v4088 = vmax.f32 %v2894, 0.0
      %v4089 = vmax.f32 %v2899, 0.0
      %v4090 = vmax.f32 %v2902, 0.0
      %v4091 = vmax.f32 %v2907, 0.0
      %v4092 = vmax.f32 %v2910, 0.0
      %v4093 = vmax.f32 %v2915, 0.0
      %v4094 = vmax.f32 %v2918, 0.0
      %v4095 = vmax.f32 %v2923, 0.0
      %v4096 = vmax.f32 %v2926, 0.0
      %v4097 = vmax.f32 %v2931, 0.0
      %v4098 = vmax.f32 %v2934, 0.0
      %v4099 = vmax.f32 %v2939, 0.0
      %v4100 = vmax.f32 %v2942, 0.0
      %v4101 = vmax.f32 %v2947, 0.0
      %v4102 = vmax.f32 %v2950, 0.0
      %v4103 = vmax.f32 %v2955, 0.0
      %v4104 = vmax.f32 %v2958, 0.0
      %v4105 = vmax.f32 %v2963, 0.0
      %v4106 = vmax.f32 %v2966, 0.0
      %v4107 = vmax.f32 %v2971, 0.0
      %v4108 = vmax.f32 %v2974, 0.0
      %v4109 = vmax.f32 %v2979, 0.0
      %v4110 = vmax.f32 %v2982, 0.0
      %v4111 = vmax.f32 %v2987, 0.0
      %v4112 = vmax.f32 %v2990, 0.0
      %v4113 = vmax.f32 %v2995, 0.0
      %v4114 = vmax.f32 %v2998, 0.0
      %v4115 = vmax.f32 %v3003, 0.0
      %v4116 = vmax.f32 %v3006, 0.0
      %v4117 = vmax.f32 %v3011, 0.0
      %v4118 = vmax.f32 %v3014, 0.0
      %v4119 = vmax.f32 %v3019, 0.0
      %v4120 = vmax.f32 %v3022, 0.0
      %v4121 = vmax.f32 %v3027, 0.0
      %v4122 = vmax.f32 %v3030, 0.0
      %v4123 = vmax.f32 %v3035, 0.0
      %v4124 = vmax.f32 %v3038, 0.0
      %v4125 = vmax.f32 %v3043, 0.0
      %v4126 = vmax.f32 %v3046, 0.0
      %v4127 = vmax.f32 %v3051, 0.0
      %v4128 = vmax.f32 %v3054, 0.0
      %v4129 = vmax.f32 %v3059, 0.0
      %v4130 = vmax.f32 %v3062, 0.0
      %v4131 = vmax.f32 %v3067, 0.0
      %v4132 = vmax.f32 %v3070, 0.0
      %v4133 = vmax.f32 %v3075, 0.0
      %v4134 = vmax.f32 %v3078, 0.0
      %v4135 = vmax.f32 %v3083, 0.0
      %v4136 = vmax.f32 %v3086, 0.0
      %v4137 = vmax.f32 %v3091, 0.0
      %v4138 = vmax.f32 %v3094, 0.0
      %v4139 = vmax.f32 %v3099, 0.0
      %v4140 = vmax.f32 %v3102, 0.0
      %v4141 = vmax.f32 %v3107, 0.0
      %v4142 = vmax.f32 %v3110, 0.0
      %v4143 = vmax.f32 %v3115, 0.0
      %v4144 = vmax.f32 %v3118, 0.0
      %v4145 = vmax.f32 %v3123, 0.0
      %v4146 = vmax.f32 %v3126, 0.0
      %v4147 = vmax.f32 %v3131, 0.0
      %v4148 = vmax.f32 %v3134, 0.0
      %v4149 = vmax.f32 %v3139, 0.0
      %v4150 = vmax.f32 %v3142, 0.0
      %v4151 = vmax.f32 %v3147, 0.0
      %v4152 = vmax.f32 %v3150, 0.0
      %v4153 = vmax.f32 %v3155, 0.0
      %v4154 = vmax.f32 %v3158, 0.0
      %v4155 = vmax.f32 %v3163, 0.0
      %v4156 = vmax.f32 %v3166, 0.0
      %v4157 = vmax.f32 %v3171, 0.0
      %v4158 = vmax.f32 %v3174, 0.0
      %v4159 = vmax.f32 %v3179, 0.0
      %v4160 = vmax.f32 %v3182, 0.0
      %v4161 = vmax.f32 %v3187, 0.0
      %v4162 = vmax.f32 %v3190, 0.0
      %v4163 = vmax.f32 %v3195, 0.0
      %v4164 = vmax.f32 %v3198, 0.0
      %v4165 = vmax.f32 %v3203, 0.0
      %v4166 = vmax.f32 %v3206, 0.0
      %v4167 = vmax.f32 %v3211, 0.0
      %v4168 = vmax.f32 %v3214, 0.0
      %v4169 = vmax.f32 %v3219, 0.0
      %v4170 = vmax.f32 %v3222, 0.0
      %v4171 = vmax.f32 %v3227, 0.0
      %v4172 = vmax.f32 %v3230, 0.0
      %v4173 = vmax.f32 %v3235, 0.0
      %v4174 = vmax.f32 %v3238, 0.0
      %v4175 = vmax.f32 %v3243, 0.0
      %v4176 = vmax.f32 %v3246, 0.0
      %v4177 = vmax.f32 %v3251, 0.0
      %v4178 = vmax.f32 %v3254, 0.0
      %v4179 = vmax.f32 %v3259, 0.0
      %v4180 = vmax.f32 %v3262, 0.0
      %v4181 = vmax.f32 %v3267, 0.0
      %v4182 = vmax.f32 %v3270, 0.0
      %v4183 = vmax.f32 %v3275, 0.0
      %v4184 = vmax.f32 %v3278, 0.0
      %v4185 = vmax.f32 %v3283, 0.0
      %v4186 = vmax.f32 %v3286, 0.0
      %v4187 = vmax.f32 %v3291, 0.0
      %v4188 = vmax.f32 %v3294, 0.0
      %v4189 = vmax.f32 %v3299, 0.0
      %v4190 = vmax.f32 %v3302, 0.0
      %v4191 = vmax.f32 %v3307, 0.0
      %v4192 = vmax.f32 %v3310, 0.0
      %v4193 = vmax.f32 %v3315, 0.0
      %v4194 = vmax.f32 %v3318, 0.0
      %v4195 = vmax.f32 %v3323, 0.0
      %v4196 = vmax.f32 %v3326, 0.0
      %v4197 = vmax.f32 %v3331, 0.0
      %v4198 = vmax.f32 %v3334, 0.0
      %v4199 = vmax.f32 %v3339, 0.0
      %v4200 = vmax.f32 %v3342, 0.0
      %v4201 = vmax.f32 %v3347, 0.0
      %v4202 = vmax.f32 %v3350, 0.0
      %v4203 = vmax.f32 %v3355, 0.0
      %v4204 = vmax.f32 %v3358, 0.0
      %v4205 = vmax.f32 %v3363, 0.0
      %v4206 = vmax.f32 %v3366, 0.0
      %v4207 = vmax.f32 %v3371, 0.0
      %v4208 = vmax.f32 %v3374, 0.0
      %v4209 = vmax.f32 %v3379, 0.0
      %v4210 = vmax.f32 %v3382, 0.0
      %v4211 = vmax.f32 %v3387, 0.0
      %v4212 = vmax.f32 %v3390, 0.0
      %v4213 = vmax.f32 %v3395, 0.0
      %v4214 = vmax.f32 %v3398, 0.0
      %v4215 = vmax.f32 %v3403, 0.0
      %v4216 = vmax.f32 %v3406, 0.0
      %v4217 = vmax.f32 %v3411, 0.0
      %v4218 = vmax.f32 %v3414, 0.0
      %v4219 = vmax.f32 %v3419, 0.0
      %v4220 = vmax.f32 %v3422, 0.0
      %v4221 = vmax.f32 %v3427, 0.0
      %v4222 = vmax.f32 %v3430, 0.0
      %v4223 = vmax.f32 %v3435, 0.0
      %v4224 = vmax.f32 %v3438, 0.0
      %v4225 = vmax.f32 %v3443, 0.0
      %v4226 = vmax.f32 %v3446, 0.0
      %v4227 = vmax.f32 %v3451, 0.0
      %v4228 = vmax.f32 %v3454, 0.0
      %v4229 = vmax.f32 %v3459, 0.0
      %v4230 = vmax.f32 %v3462, 0.0
      %v4231 = vmax.f32 %v3467, 0.0
      %v4232 = vmax.f32 %v3470, 0.0
      %v4233 = vmax.f32 %v3475, 0.0
      %v4234 = vmax.f32 %v3478, 0.0
      %v4235 = vmax.f32 %v3483, 0.0
      %v4236 = vmax.f32 %v3486, 0.0
      %v4237 = vmax.f32 %v3491, 0.0
      %v4238 = vmax.f32 %v3494, 0.0
      %v4239 = vmax.f32 %v3499, 0.0
      %v4240 = vmax.f32 %v3502, 0.0
      %v4241 = vmax.f32 %v3507, 0.0
      %v4242 = vmax.f32 %v3510, 0.0
      %v4243 = vmax.f32 %v3515, 0.0
      %v4244 = vmax.f32 %v3518, 0.0
      %v4245 = vmax.f32 %v3523, 0.0
      %v4246 = vmax.f32 %v3526, 0.0
      %v4247 = vmax.f32 %v3531, 0.0
      %v4248 = vmax.f32 %v3534, 0.0
      %v4249 = vmax.f32 %v3539, 0.0
      %v4250 = vmax.f32 %v3542, 0.0
      %v4251 = vmax.f32 %v3547, 0.0
      %v4252 = vmax.f32 %v3550, 0.0
      %v4253 = vmax.f32 %v3555, 0.0
      %v4254 = vmax.f32 %v3558, 0.0
      %v4255 = vmax.f32 %v3563, 0.0
      %v4256 = vmax.f32 %v3566, 0.0
      %v4257 = vmax.f32 %v3571, 0.0
      %v4258 = vmax.f32 %v3574, 0.0
      %v4259 = vmax.f32 %v3579, 0.0
      %v4260 = vmax.f32 %v3582, 0.0
      %v4261 = vmax.f32 %v3587, 0.0
      %v4262 = vmax.f32 %v3590, 0.0
      %v4263 = vmax.f32 %v3595, 0.0
      %v4264 = vmax.f32 %v3598, 0.0
      %v4265 = vmax.f32 %v3603, 0.0
      %v4266 = vmax.f32 %v3606, 0.0
      %v4267 = vmax.f32 %v3611, 0.0
      %v4268 = vmax.f32 %v3614, 0.0
      %v4269 = vmax.f32 %v3619, 0.0
      %v4270 = vmax.f32 %v3622, 0.0
      %v4271 = vmax.f32 %v3627, 0.0
      %v4272 = vmax.f32 %v3630, 0.0
      %v4273 = vmax.f32 %v3635, 0.0
      %v4274 = vmax.f32 %v3638, 0.0
      %v4275 = vmax.f32 %v3643, 0.0
      %v4276 = vmax.f32 %v3646, 0.0
      %v4277 = vmax.f32 %v3651, 0.0
      %v4278 = vmax.f32 %v3654, 0.0
      %v4279 = vmax.f32 %v3659, 0.0
      %v4280 = vmax.f32 %v3662, 0.0
      %v4281 = vmax.f32 %v3667, 0.0
      %v4282 = vmax.f32 %v3670, 0.0
      %v4283 = vmax.f32 %v3675, 0.0
      %v4284 = vmax.f32 %v3678, 0.0
      %v4285 = vmax.f32 %v3683, 0.0
      %v4286 = vmax.f32 %v3686, 0.0
      %v4287 = vmax.f32 %v3691, 0.0
      %v4288 = vmax.f32 %v3694, 0.0
      %v4289 = vmax.f32 %v3699, 0.0
      %v4290 = vmax.f32 %v3702, 0.0
      %v4291 = vmax.f32 %v3707, 0.0
      %v4292 = vmax.f32 %v3710, 0.0
      %v4293 = vmax.f32 %v3715, 0.0
      %v4294 = vmax.f32 %v3718, 0.0
      %v4295 = vmax.f32 %v3723, 0.0
      %v4296 = vmax.f32 %v3726, 0.0
      %v4297 = vmax.f32 %v3731, 0.0
      %v4298 = vmax.f32 %v3734, 0.0
      %v4299 = vmax.f32 %v3739, 0.0
      %v4300 = vmax.f32 %v3742, 0.0
      %v4301 = vmax.f32 %v3747, 0.0
      %v4302 = vmax.f32 %v3750, 0.0
      %v4303 = vmax.f32 %v3755, 0.0
      %v4304 = vmax.f32 %v3758, 0.0
      %v4305 = vmax.f32 %v3763, 0.0
      %v4306 = vmax.f32 %v3766, 0.0
      %v4307 = vmax.f32 %v3771, 0.0
      %v4308 = vmax.f32 %v3774, 0.0
      %v4309 = vmax.f32 %v3779, 0.0
      %v4310 = vmax.f32 %v3782, 0.0
      %v4311 = vmax.f32 %v3787, 0.0
      %v4312 = vmax.f32 %v3790, 0.0
      %v4313 = vmax.f32 %v3795, 0.0
      %v4314 = vmax.f32 %v3798, 0.0
      %v4315 = vmax.f32 %v3803, 0.0
      %v4316 = vmax.f32 %v3806, 0.0
      %v4317 = vmax.f32 %v3811, 0.0
      %v4318 = vmax.f32 %v3814, 0.0
      %v4319 = vmax.f32 %v3819, 0.0
      %v4320 = vmax.f32 %v3822, 0.0
      %v4321 = vmax.f32 %v3827, 0.0
      %v4322 = vmax.f32 %v3830, 0.0
      %v4323 = vmax.f32 %v3835, 0.0
      %v4324 = vmax.f32 %v3838, 0.0
      %v4325 = vmax.f32 %v3843, 0.0
      %v4326 = vmax.f32 %v3846, 0.0
      %v4327 = vmax.f32 %v3851, 0.0
      %v4328 = vmax.f32 %v3854, 0.0
      %v4329 = vmax.f32 %v3859, 0.0
      %v4330 = vmax.f32 %v3862, 0.0
      %v4331 = vmax.f32 %v3867, 0.0
      %v4332 = vmax.f32 %v3870, 0.0
      %v4333 = vmax.f32 %v3875, 0.0
      %v4334 = vmax.f32 %v3878, 0.0
      %v4335 = vmax.f32 %v3883, 0.0
      %v4336 = vmax.f32 %v3886, 0.0
      %v4337 = vmax.f32 %v3891, 0.0
      %v4338 = vmax.f32 %v3894, 0.0
      %v4339 = vmax.f32 %v3899, 0.0
      %v4340 = vmax.f32 %v3902, 0.0
      %v4341 = vmax.f32 %v3907, 0.0
      %v4342 = vmax.f32 %v3910, 0.0
      %v4343 = vmax.f32 %v3915, 0.0
      %v4344 = vmax.f32 %v3918, 0.0
      %v4345 = vmax.f32 %v3923, 0.0
      %v4346 = vmax.f32 %v3926, 0.0
      %v4347 = vmax.f32 %v3931, 0.0
      %v4348 = vmax.f32 %v3934, 0.0
      %v4349 = vmax.f32 %v3939, 0.0
      %v4350 = vmax.f32 %v3942, 0.0
      %v4351 = vmax.f32 %v3947, 0.0
      %v4352 = vmax.f32 %v3950, 0.0
      %v4353 = vld [vmem:[%s1] sm:$0xff]
      %v4354 = vld [vmem:[%s1 + $0x8] sm:$0xff]
      %v4355 = vld [vmem:[%s1 + $0x10] sm:$0xff]
      %v4356 = vld [vmem:[%s1 + $0x18] sm:$0xff]
      %v4357 = vld [vmem:[%s1 + $0x20] sm:$0xff]
      %v4358 = vld [vmem:[%s1 + $0x28] sm:$0xff]
      %v4359 = vld [vmem:[%s1 + $0x30] sm:$0xff]
      %v4360 = vld [vmem:[%s1 + $0x38] sm:$0xff]
      %v4361 = vld [vmem:[%s1 + $0x40] sm:$0xff]
      %v4362 = vld [vmem:[%s1 + $0x48] sm:$0xff]
      %v4363 = vld [vmem:[%s1 + $0x50] sm:$0xff]
      %v4364 = vld [vmem:[%s1 + $0x58] sm:$0xff]
      %v4365 = vld [vmem:[%s1 + $0x60] sm:$0xff]
      %v4366 = vld [vmem:[%s1 + $0x68] sm:$0xff]
      %v4367 = vld [vmem:[%s1 + $0x70] sm:$0xff]
      %v4368 = vld [vmem:[%s1 + $0x78] sm:$0xff]
      %v4369 = vld [vmem:[%s1 + $0x80] sm:$0xff]
      %v4370 = vld [vmem:[%s1 + $0x88] sm:$0xff]
      %v4371 = vld [vmem:[%s1 + $0x90] sm:$0xff]
      %v4372 = vld [vmem:[%s1 + $0x98] sm:$0xff]
      %v4373 = vld [vmem:[%s1 + $0xa0] sm:$0xff]
      %v4374 = vld [vmem:[%s1 + $0xa8] sm:$0xff]
      %v4375 = vld [vmem:[%s1 + $0xb0] sm:$0xff]
      %v4376 = vld [vmem:[%s1 + $0xb8] sm:$0xff]
      %v4377 = vld [vmem:[%s1 + $0xc0] sm:$0xff]
      %v4378 = vld [vmem:[%s1 + $0xc8] sm:$0xff]
      %v4379 = vld [vmem:[%s1 + $0xd0] sm:$0xff]
      %v4380 = vld [vmem:[%s1 + $0xd8] sm:$0xff]
      %v4381 = vld [vmem:[%s1 + $0xe0] sm:$0xff]
      %v4382 = vld [vmem:[%s1 + $0xe8] sm:$0xff]
      %v4383 = vld [vmem:[%s1 + $0xf0] sm:$0xff]
      %v4384 = vld [vmem:[%s1 + $0xf8] sm:$0xff]
      %v4385 = vld [vmem:[%s1 + $0x100] sm:$0xff]
      %v4386 = vld [vmem:[%s1 + $0x108] sm:$0xff]
      %v4387 = vld [vmem:[%s1 + $0x110] sm:$0xff]
      %v4388 = vld [vmem:[%s1 + $0x118] sm:$0xff]
      %v4389 = vld [vmem:[%s1 + $0x120] sm:$0xff]
      %v4390 = vld [vmem:[%s1 + $0x128] sm:$0xff]
      %v4391 = vld [vmem:[%s1 + $0x130] sm:$0xff]
      %v4392 = vld [vmem:[%s1 + $0x138] sm:$0xff]
      %v4393 = vld [vmem:[%s1 + $0x140] sm:$0xff]
      %v4394 = vld [vmem:[%s1 + $0x148] sm:$0xff]
      %v4395 = vld [vmem:[%s1 + $0x150] sm:$0xff]
      %v4396 = vld [vmem:[%s1 + $0x158] sm:$0xff]
      %v4397 = vld [vmem:[%s1 + $0x160] sm:$0xff]
      %v4398 = vld [vmem:[%s1 + $0x168] sm:$0xff]
      %v4399 = vld [vmem:[%s1 + $0x170] sm:$0xff]
      %v4400 = vld [vmem:[%s1 + $0x178] sm:$0xff]
      %v4401 = vld [vmem:[%s1 + $0x180] sm:$0xff]
      %v4402 = vld [vmem:[%s1 + $0x188] sm:$0xff]
      %v4403 = vld [vmem:[%s1 + $0x190] sm:$0xff]
      %v4404 = vld [vmem:[%s1 + $0x198] sm:$0xff]
      %v4405 = vld [vmem:[%s1 + $0x1a0] sm:$0xff]
      %v4406 = vld [vmem:[%s1 + $0x1a8] sm:$0xff]
      %v4407 = vld [vmem:[%s1 + $0x1b0] sm:$0xff]
      %v4408 = vld [vmem:[%s1 + $0x1b8] sm:$0xff]
      %v4409 = vld [vmem:[%s1 + $0x1c0] sm:$0xff]
      %v4410 = vld [vmem:[%s1 + $0x1c8] sm:$0xff]
      %v4411 = vld [vmem:[%s1 + $0x1d0] sm:$0xff]
      %v4412 = vld [vmem:[%s1 + $0x1d8] sm:$0xff]
      %v4413 = vld [vmem:[%s1 + $0x1e0] sm:$0xff]
      %v4414 = vld [vmem:[%s1 + $0x1e8] sm:$0xff]
      %v4415 = vld [vmem:[%s1 + $0x1f0] sm:$0xff]
      %v4416 = vld [vmem:[%s1 + $0x1f8] sm:$0xff]
      %v4417 = vld [vmem:[%s1 + $0x200] sm:$0xff]
      %v4418 = vld [vmem:[%s1 + $0x208] sm:$0xff]
      %v4419 = vld [vmem:[%s1 + $0x210] sm:$0xff]
      %v4420 = vld [vmem:[%s1 + $0x218] sm:$0xff]
      %v4421 = vld [vmem:[%s1 + $0x220] sm:$0xff]
      %v4422 = vld [vmem:[%s1 + $0x228] sm:$0xff]
      %v4423 = vld [vmem:[%s1 + $0x230] sm:$0xff]
      %v4424 = vld [vmem:[%s1 + $0x238] sm:$0xff]
      %v4425 = vld [vmem:[%s1 + $0x240] sm:$0xff]
      %v4426 = vld [vmem:[%s1 + $0x248] sm:$0xff]
      %v4427 = vld [vmem:[%s1 + $0x250] sm:$0xff]
      %v4428 = vld [vmem:[%s1 + $0x258] sm:$0xff]
      %v4429 = vld [vmem:[%s1 + $0x260] sm:$0xff]
      %v4430 = vld [vmem:[%s1 + $0x268] sm:$0xff]
      %v4431 = vld [vmem:[%s1 + $0x270] sm:$0xff]
      %v4432 = vld [vmem:[%s1 + $0x278] sm:$0xff]
      %v4433 = vld [vmem:[%s1 + $0x280] sm:$0xff]
      %v4434 = vld [vmem:[%s1 + $0x288] sm:$0xff]
      %v4435 = vld [vmem:[%s1 + $0x290] sm:$0xff]
      %v4436 = vld [vmem:[%s1 + $0x298] sm:$0xff]
      %v4437 = vld [vmem:[%s1 + $0x2a0] sm:$0xff]
      %v4438 = vld [vmem:[%s1 + $0x2a8] sm:$0xff]
      %v4439 = vld [vmem:[%s1 + $0x2b0] sm:$0xff]
      %v4440 = vld [vmem:[%s1 + $0x2b8] sm:$0xff]
      %v4441 = vld [vmem:[%s1 + $0x2c0] sm:$0xff]
      %v4442 = vld [vmem:[%s1 + $0x2c8] sm:$0xff]
      %v4443 = vld [vmem:[%s1 + $0x2d0] sm:$0xff]
      %v4444 = vld [vmem:[%s1 + $0x2d8] sm:$0xff]
      %v4445 = vld [vmem:[%s1 + $0x2e0] sm:$0xff]
      %v4446 = vld [vmem:[%s1 + $0x2e8] sm:$0xff]
      %v4447 = vld [vmem:[%s1 + $0x2f0] sm:$0xff]
      %v4448 = vld [vmem:[%s1 + $0x2f8] sm:$0xff]
      %v4449 = vld [vmem:[%s1 + $0x300] sm:$0xff]
      %v4450 = vld [vmem:[%s1 + $0x308] sm:$0xff]
      %v4451 = vld [vmem:[%s1 + $0x310] sm:$0xff]
      %v4452 = vld [vmem:[%s1 + $0x318] sm:$0xff]
      %v4453 = vld [vmem:[%s1 + $0x320] sm:$0xff]
      %v4454 = vld [vmem:[%s1 + $0x328] sm:$0xff]
      %v4455 = vld [vmem:[%s1 + $0x330] sm:$0xff]
      %v4456 = vld [vmem:[%s1 + $0x338] sm:$0xff]
      %v4457 = vld [vmem:[%s1 + $0x340] sm:$0xff]
      %v4458 = vld [vmem:[%s1 + $0x348] sm:$0xff]
      %v4459 = vld [vmem:[%s1 + $0x350] sm:$0xff]
      %v4460 = vld [vmem:[%s1 + $0x358] sm:$0xff]
      %v4461 = vld [vmem:[%s1 + $0x360] sm:$0xff]
      %v4462 = vld [vmem:[%s1 + $0x368] sm:$0xff]
      %v4463 = vld [vmem:[%s1 + $0x370] sm:$0xff]
      %v4464 = vld [vmem:[%s1 + $0x378] sm:$0xff]
      %v4465 = vld [vmem:[%s1 + $0x380] sm:$0xff]
      %v4466 = vld [vmem:[%s1 + $0x388] sm:$0xff]
      %v4467 = vld [vmem:[%s1 + $0x390] sm:$0xff]
      %v4468 = vld [vmem:[%s1 + $0x398] sm:$0xff]
      %v4469 = vld [vmem:[%s1 + $0x3a0] sm:$0xff]
      %v4470 = vld [vmem:[%s1 + $0x3a8] sm:$0xff]
      %v4471 = vld [vmem:[%s1 + $0x3b0] sm:$0xff]
      %v4472 = vld [vmem:[%s1 + $0x3b8] sm:$0xff]
      %v4473 = vld [vmem:[%s1 + $0x3c0] sm:$0xff]
      %v4474 = vld [vmem:[%s1 + $0x3c8] sm:$0xff]
      %v4475 = vld [vmem:[%s1 + $0x3d0] sm:$0xff]
      %v4476 = vld [vmem:[%s1 + $0x3d8] sm:$0xff]
      %v4477 = vld [vmem:[%s1 + $0x3e0] sm:$0xff]
      %v4478 = vld [vmem:[%s1 + $0x3e8] sm:$0xff]
      %v4479 = vld [vmem:[%s1 + $0x3f0] sm:$0xff]
      %v4480 = vld [vmem:[%s1 + $0x3f8] sm:$0xff]
      %v4481 = vld [vmem:[%s1 + $0x400] sm:$0xff]
      %v4482 = vld [vmem:[%s1 + $0x408] sm:$0xff]
      %v4483 = vld [vmem:[%s1 + $0x410] sm:$0xff]
      %v4484 = vld [vmem:[%s1 + $0x418] sm:$0xff]
      %v4485 = vld [vmem:[%s1 + $0x420] sm:$0xff]
      %v4486 = vld [vmem:[%s1 + $0x428] sm:$0xff]
      %v4487 = vld [vmem:[%s1 + $0x430] sm:$0xff]
      %v4488 = vld [vmem:[%s1 + $0x438] sm:$0xff]
      %v4489 = vld [vmem:[%s1 + $0x440] sm:$0xff]
      %v4490 = vld [vmem:[%s1 + $0x448] sm:$0xff]
      %v4491 = vld [vmem:[%s1 + $0x450] sm:$0xff]
      %v4492 = vld [vmem:[%s1 + $0x458] sm:$0xff]
      %v4493 = vld [vmem:[%s1 + $0x460] sm:$0xff]
      %v4494 = vld [vmem:[%s1 + $0x468] sm:$0xff]
      %v4495 = vld [vmem:[%s1 + $0x470] sm:$0xff]
      %v4496 = vld [vmem:[%s1 + $0x478] sm:$0xff]
      %v4497 = vld [vmem:[%s1 + $0x480] sm:$0xff]
      %v4498 = vld [vmem:[%s1 + $0x488] sm:$0xff]
      %v4499 = vld [vmem:[%s1 + $0x490] sm:$0xff]
      %v4500 = vld [vmem:[%s1 + $0x498] sm:$0xff]
      %v4501 = vld [vmem:[%s1 + $0x4a0] sm:$0xff]
      %v4502 = vld [vmem:[%s1 + $0x4a8] sm:$0xff]
      %v4503 = vld [vmem:[%s1 + $0x4b0] sm:$0xff]
      %v4504 = vld [vmem:[%s1 + $0x4b8] sm:$0xff]
      %v4505 = vld [vmem:[%s1 + $0x4c0] sm:$0xff]
      %v4506 = vld [vmem:[%s1 + $0x4c8] sm:$0xff]
      %v4507 = vld [vmem:[%s1 + $0x4d0] sm:$0xff]
      %v4508 = vld [vmem:[%s1 + $0x4d8] sm:$0xff]
      %v4509 = vld [vmem:[%s1 + $0x4e0] sm:$0xff]
      %v4510 = vld [vmem:[%s1 + $0x4e8] sm:$0xff]
      %v4511 = vld [vmem:[%s1 + $0x4f0] sm:$0xff]
      %v4512 = vld [vmem:[%s1 + $0x4f8] sm:$0xff]
      %v4513 = vld [vmem:[%s1 + $0x500] sm:$0xff]
      %v4514 = vld [vmem:[%s1 + $0x508] sm:$0xff]
      %v4515 = vld [vmem:[%s1 + $0x510] sm:$0xff]
      %v4516 = vld [vmem:[%s1 + $0x518] sm:$0xff]
      %v4517 = vld [vmem:[%s1 + $0x520] sm:$0xff]
      %v4518 = vld [vmem:[%s1 + $0x528] sm:$0xff]
      %v4519 = vld [vmem:[%s1 + $0x530] sm:$0xff]
      %v4520 = vld [vmem:[%s1 + $0x538] sm:$0xff]
      %v4521 = vld [vmem:[%s1 + $0x540] sm:$0xff]
      %v4522 = vld [vmem:[%s1 + $0x548] sm:$0xff]
      %v4523 = vld [vmem:[%s1 + $0x550] sm:$0xff]
      %v4524 = vld [vmem:[%s1 + $0x558] sm:$0xff]
      %v4525 = vld [vmem:[%s1 + $0x560] sm:$0xff]
      %v4526 = vld [vmem:[%s1 + $0x568] sm:$0xff]
      %v4527 = vld [vmem:[%s1 + $0x570] sm:$0xff]
      %v4528 = vld [vmem:[%s1 + $0x578] sm:$0xff]
      %v4529 = vld [vmem:[%s1 + $0x580] sm:$0xff]
      %v4530 = vld [vmem:[%s1 + $0x588] sm:$0xff]
      %v4531 = vld [vmem:[%s1 + $0x590] sm:$0xff]
      %v4532 = vld [vmem:[%s1 + $0x598] sm:$0xff]
      %v4533 = vld [vmem:[%s1 + $0x5a0] sm:$0xff]
      %v4534 = vld [vmem:[%s1 + $0x5a8] sm:$0xff]
      %v4535 = vld [vmem:[%s1 + $0x5b0] sm:$0xff]
      %v4536 = vld [vmem:[%s1 + $0x5b8] sm:$0xff]
      %v4537 = vld [vmem:[%s1 + $0x5c0] sm:$0xff]
      %v4538 = vld [vmem:[%s1 + $0x5c8] sm:$0xff]
      %v4539 = vld [vmem:[%s1 + $0x5d0] sm:$0xff]
      %v4540 = vld [vmem:[%s1 + $0x5d8] sm:$0xff]
      %v4541 = vld [vmem:[%s1 + $0x5e0] sm:$0xff]
      %v4542 = vld [vmem:[%s1 + $0x5e8] sm:$0xff]
      %v4543 = vld [vmem:[%s1 + $0x5f0] sm:$0xff]
      %v4544 = vld [vmem:[%s1 + $0x5f8] sm:$0xff]
      %v4545 = vld [vmem:[%s1 + $0x600] sm:$0xff]
      %v4546 = vld [vmem:[%s1 + $0x608] sm:$0xff]
      %v4547 = vld [vmem:[%s1 + $0x610] sm:$0xff]
      %v4548 = vld [vmem:[%s1 + $0x618] sm:$0xff]
      %v4549 = vld [vmem:[%s1 + $0x620] sm:$0xff]
      %v4550 = vld [vmem:[%s1 + $0x628] sm:$0xff]
      %v4551 = vld [vmem:[%s1 + $0x630] sm:$0xff]
      %v4552 = vld [vmem:[%s1 + $0x638] sm:$0xff]
      %v4553 = vld [vmem:[%s1 + $0x640] sm:$0xff]
      %v4554 = vld [vmem:[%s1 + $0x648] sm:$0xff]
      %v4555 = vld [vmem:[%s1 + $0x650] sm:$0xff]
      %v4556 = vld [vmem:[%s1 + $0x658] sm:$0xff]
      %v4557 = vld [vmem:[%s1 + $0x660] sm:$0xff]
      %v4558 = vld [vmem:[%s1 + $0x668] sm:$0xff]
      %v4559 = vld [vmem:[%s1 + $0x670] sm:$0xff]
      %v4560 = vld [vmem:[%s1 + $0x678] sm:$0xff]
      %v4561 = vld [vmem:[%s1 + $0x680] sm:$0xff]
      %v4562 = vld [vmem:[%s1 + $0x688] sm:$0xff]
      %v4563 = vld [vmem:[%s1 + $0x690] sm:$0xff]
      %v4564 = vld [vmem:[%s1 + $0x698] sm:$0xff]
      %v4565 = vld [vmem:[%s1 + $0x6a0] sm:$0xff]
      %v4566 = vld [vmem:[%s1 + $0x6a8] sm:$0xff]
      %v4567 = vld [vmem:[%s1 + $0x6b0] sm:$0xff]
      %v4568 = vld [vmem:[%s1 + $0x6b8] sm:$0xff]
      %v4569 = vld [vmem:[%s1 + $0x6c0] sm:$0xff]
      %v4570 = vld [vmem:[%s1 + $0x6c8] sm:$0xff]
      %v4571 = vld [vmem:[%s1 + $0x6d0] sm:$0xff]
      %v4572 = vld [vmem:[%s1 + $0x6d8] sm:$0xff]
      %v4573 = vld [vmem:[%s1 + $0x6e0] sm:$0xff]
      %v4574 = vld [vmem:[%s1 + $0x6e8] sm:$0xff]
      %v4575 = vld [vmem:[%s1 + $0x6f0] sm:$0xff]
      %v4576 = vld [vmem:[%s1 + $0x6f8] sm:$0xff]
      %v4577 = vld [vmem:[%s1 + $0x700] sm:$0xff]
      %v4578 = vld [vmem:[%s1 + $0x708] sm:$0xff]
      %v4579 = vld [vmem:[%s1 + $0x710] sm:$0xff]
      %v4580 = vld [vmem:[%s1 + $0x718] sm:$0xff]
      %v4581 = vld [vmem:[%s1 + $0x720] sm:$0xff]
      %v4582 = vld [vmem:[%s1 + $0x728] sm:$0xff]
      %v4583 = vld [vmem:[%s1 + $0x730] sm:$0xff]
      %v4584 = vld [vmem:[%s1 + $0x738] sm:$0xff]
      %v4585 = vld [vmem:[%s1 + $0x740] sm:$0xff]
      %v4586 = vld [vmem:[%s1 + $0x748] sm:$0xff]
      %v4587 = vld [vmem:[%s1 + $0x750] sm:$0xff]
      %v4588 = vld [vmem:[%s1 + $0x758] sm:$0xff]
      %v4589 = vld [vmem:[%s1 + $0x760] sm:$0xff]
      %v4590 = vld [vmem:[%s1 + $0x768] sm:$0xff]
      %v4591 = vld [vmem:[%s1 + $0x770] sm:$0xff]
      %v4592 = vld [vmem:[%s1 + $0x778] sm:$0xff]
      %v4593 = vld [vmem:[%s1 + $0x780] sm:$0xff]
      %v4594 = vld [vmem:[%s1 + $0x788] sm:$0xff]
      %v4595 = vld [vmem:[%s1 + $0x790] sm:$0xff]
      %v4596 = vld [vmem:[%s1 + $0x798] sm:$0xff]
      %v4597 = vld [vmem:[%s1 + $0x7a0] sm:$0xff]
      %v4598 = vld [vmem:[%s1 + $0x7a8] sm:$0xff]
      %v4599 = vld [vmem:[%s1 + $0x7b0] sm:$0xff]
      %v4600 = vld [vmem:[%s1 + $0x7b8] sm:$0xff]
      %v4601 = vld [vmem:[%s1 + $0x7c0] sm:$0xff]
      %v4602 = vld [vmem:[%s1 + $0x7c8] sm:$0xff]
      %v4603 = vld [vmem:[%s1 + $0x7d0] sm:$0xff]
      %v4604 = vld [vmem:[%s1 + $0x7d8] sm:$0xff]
      %v4605 = vld [vmem:[%s1 + $0x7e0] sm:$0xff]
      %v4606 = vld [vmem:[%s1 + $0x7e8] sm:$0xff]
      %v4607 = vld [vmem:[%s1 + $0x7f0] sm:$0xff]
      %v4608 = vld [vmem:[%s1 + $0x7f8] sm:$0xff]
      %v4609 = vld [vmem:[%s1 + $0x800] sm:$0xff]
      %v4610 = vld [vmem:[%s1 + $0x808] sm:$0xff]
      %v4611 = vld [vmem:[%s1 + $0x810] sm:$0xff]
      %v4612 = vld [vmem:[%s1 + $0x818] sm:$0xff]
      %v4613 = vld [vmem:[%s1 + $0x820] sm:$0xff]
      %v4614 = vld [vmem:[%s1 + $0x828] sm:$0xff]
      %v4615 = vld [vmem:[%s1 + $0x830] sm:$0xff]
      %v4616 = vld [vmem:[%s1 + $0x838] sm:$0xff]
      %v4617 = vld [vmem:[%s1 + $0x840] sm:$0xff]
      %v4618 = vld [vmem:[%s1 + $0x848] sm:$0xff]
      %v4619 = vld [vmem:[%s1 + $0x850] sm:$0xff]
      %v4620 = vld [vmem:[%s1 + $0x858] sm:$0xff]
      %v4621 = vld [vmem:[%s1 + $0x860] sm:$0xff]
      %v4622 = vld [vmem:[%s1 + $0x868] sm:$0xff]
      %v4623 = vld [vmem:[%s1 + $0x870] sm:$0xff]
      %v4624 = vld [vmem:[%s1 + $0x878] sm:$0xff]
      %v4625 = vld [vmem:[%s1 + $0x880] sm:$0xff]
      %v4626 = vld [vmem:[%s1 + $0x888] sm:$0xff]
      %v4627 = vld [vmem:[%s1 + $0x890] sm:$0xff]
      %v4628 = vld [vmem:[%s1 + $0x898] sm:$0xff]
      %v4629 = vld [vmem:[%s1 + $0x8a0] sm:$0xff]
      %v4630 = vld [vmem:[%s1 + $0x8a8] sm:$0xff]
      %v4631 = vld [vmem:[%s1 + $0x8b0] sm:$0xff]
      %v4632 = vld [vmem:[%s1 + $0x8b8] sm:$0xff]
      %v4633 = vld [vmem:[%s1 + $0x8c0] sm:$0xff]
      %v4634 = vld [vmem:[%s1 + $0x8c8] sm:$0xff]
      %v4635 = vld [vmem:[%s1 + $0x8d0] sm:$0xff]
      %v4636 = vld [vmem:[%s1 + $0x8d8] sm:$0xff]
      %v4637 = vld [vmem:[%s1 + $0x8e0] sm:$0xff]
      %v4638 = vld [vmem:[%s1 + $0x8e8] sm:$0xff]
      %v4639 = vld [vmem:[%s1 + $0x8f0] sm:$0xff]
      %v4640 = vld [vmem:[%s1 + $0x8f8] sm:$0xff]
      %v4641 = vld [vmem:[%s1 + $0x900] sm:$0xff]
      %v4642 = vld [vmem:[%s1 + $0x908] sm:$0xff]
      %v4643 = vld [vmem:[%s1 + $0x910] sm:$0xff]
      %v4644 = vld [vmem:[%s1 + $0x918] sm:$0xff]
      %v4645 = vld [vmem:[%s1 + $0x920] sm:$0xff]
      %v4646 = vld [vmem:[%s1 + $0x928] sm:$0xff]
      %v4647 = vld [vmem:[%s1 + $0x930] sm:$0xff]
      %v4648 = vld [vmem:[%s1 + $0x938] sm:$0xff]
      %v4649 = vld [vmem:[%s1 + $0x940] sm:$0xff]
      %v4650 = vld [vmem:[%s1 + $0x948] sm:$0xff]
      %v4651 = vld [vmem:[%s1 + $0x950] sm:$0xff]
      %v4652 = vld [vmem:[%s1 + $0x958] sm:$0xff]
      %v4653 = vld [vmem:[%s1 + $0x960] sm:$0xff]
      %v4654 = vld [vmem:[%s1 + $0x968] sm:$0xff]
      %v4655 = vld [vmem:[%s1 + $0x970] sm:$0xff]
      %v4656 = vld [vmem:[%s1 + $0x978] sm:$0xff]
      %v4657 = vld [vmem:[%s1 + $0x980] sm:$0xff]
      %v4658 = vld [vmem:[%s1 + $0x988] sm:$0xff]
      %v4659 = vld [vmem:[%s1 + $0x990] sm:$0xff]
      %v4660 = vld [vmem:[%s1 + $0x998] sm:$0xff]
      %v4661 = vld [vmem:[%s1 + $0x9a0] sm:$0xff]
      %v4662 = vld [vmem:[%s1 + $0x9a8] sm:$0xff]
      %v4663 = vld [vmem:[%s1 + $0x9b0] sm:$0xff]
      %v4664 = vld [vmem:[%s1 + $0x9b8] sm:$0xff]
      %v4665 = vld [vmem:[%s1 + $0x9c0] sm:$0xff]
      %v4666 = vld [vmem:[%s1 + $0x9c8] sm:$0xff]
      %v4667 = vld [vmem:[%s1 + $0x9d0] sm:$0xff]
      %v4668 = vld [vmem:[%s1 + $0x9d8] sm:$0xff]
      %v4669 = vld [vmem:[%s1 + $0x9e0] sm:$0xff]
      %v4670 = vld [vmem:[%s1 + $0x9e8] sm:$0xff]
      %v4671 = vld [vmem:[%s1 + $0x9f0] sm:$0xff]
      %v4672 = vld [vmem:[%s1 + $0x9f8] sm:$0xff]
      %v4673 = vld [vmem:[%s1 + $0xa00] sm:$0xff]
      %v4674 = vld [vmem:[%s1 + $0xa08] sm:$0xff]
      %v4675 = vld [vmem:[%s1 + $0xa10] sm:$0xff]
      %v4676 = vld [vmem:[%s1 + $0xa18] sm:$0xff]
      %v4677 = vld [vmem:[%s1 + $0xa20] sm:$0xff]
      %v4678 = vld [vmem:[%s1 + $0xa28] sm:$0xff]
      %v4679 = vld [vmem:[%s1 + $0xa30] sm:$0xff]
      %v4680 = vld [vmem:[%s1 + $0xa38] sm:$0xff]
      %v4681 = vld [vmem:[%s1 + $0xa40] sm:$0xff]
      %v4682 = vld [vmem:[%s1 + $0xa48] sm:$0xff]
      %v4683 = vld [vmem:[%s1 + $0xa50] sm:$0xff]
      %v4684 = vld [vmem:[%s1 + $0xa58] sm:$0xff]
      %v4685 = vld [vmem:[%s1 + $0xa60] sm:$0xff]
      %v4686 = vld [vmem:[%s1 + $0xa68] sm:$0xff]
      %v4687 = vld [vmem:[%s1 + $0xa70] sm:$0xff]
      %v4688 = vld [vmem:[%s1 + $0xa78] sm:$0xff]
      %v4689 = vld [vmem:[%s1 + $0xa80] sm:$0xff]
      %v4690 = vld [vmem:[%s1 + $0xa88] sm:$0xff]
      %v4691 = vld [vmem:[%s1 + $0xa90] sm:$0xff]
      %v4692 = vld [vmem:[%s1 + $0xa98] sm:$0xff]
      %v4693 = vld [vmem:[%s1 + $0xaa0] sm:$0xff]
      %v4694 = vld [vmem:[%s1 + $0xaa8] sm:$0xff]
      %v4695 = vld [vmem:[%s1 + $0xab0] sm:$0xff]
      %v4696 = vld [vmem:[%s1 + $0xab8] sm:$0xff]
      %v4697 = vld [vmem:[%s1 + $0xac0] sm:$0xff]
      %v4698 = vld [vmem:[%s1 + $0xac8] sm:$0xff]
      %v4699 = vld [vmem:[%s1 + $0xad0] sm:$0xff]
      %v4700 = vld [vmem:[%s1 + $0xad8] sm:$0xff]
      %v4701 = vld [vmem:[%s1 + $0xae0] sm:$0xff]
      %v4702 = vld [vmem:[%s1 + $0xae8] sm:$0xff]
      %v4703 = vld [vmem:[%s1 + $0xaf0] sm:$0xff]
      %v4704 = vld [vmem:[%s1 + $0xaf8] sm:$0xff]
      %v4705 = vld [vmem:[%s1 + $0xb00] sm:$0xff]
      %v4706 = vld [vmem:[%s1 + $0xb08] sm:$0xff]
      %v4707 = vld [vmem:[%s1 + $0xb10] sm:$0xff]
      %v4708 = vld [vmem:[%s1 + $0xb18] sm:$0xff]
      %v4709 = vld [vmem:[%s1 + $0xb20] sm:$0xff]
      %v4710 = vld [vmem:[%s1 + $0xb28] sm:$0xff]
      %v4711 = vld [vmem:[%s1 + $0xb30] sm:$0xff]
      %v4712 = vld [vmem:[%s1 + $0xb38] sm:$0xff]
      %v4713 = vld [vmem:[%s1 + $0xb40] sm:$0xff]
      %v4714 = vld [vmem:[%s1 + $0xb48] sm:$0xff]
      %v4715 = vld [vmem:[%s1 + $0xb50] sm:$0xff]
      %v4716 = vld [vmem:[%s1 + $0xb58] sm:$0xff]
      %v4717 = vld [vmem:[%s1 + $0xb60] sm:$0xff]
      %v4718 = vld [vmem:[%s1 + $0xb68] sm:$0xff]
      %v4719 = vld [vmem:[%s1 + $0xb70] sm:$0xff]
      %v4720 = vld [vmem:[%s1 + $0xb78] sm:$0xff]
      %v4721 = vld [vmem:[%s1 + $0xb80] sm:$0xff]
      %v4722 = vld [vmem:[%s1 + $0xb88] sm:$0xff]
      %v4723 = vld [vmem:[%s1 + $0xb90] sm:$0xff]
      %v4724 = vld [vmem:[%s1 + $0xb98] sm:$0xff]
      %v4725 = vld [vmem:[%s1 + $0xba0] sm:$0xff]
      %v4726 = vld [vmem:[%s1 + $0xba8] sm:$0xff]
      %v4727 = vld [vmem:[%s1 + $0xbb0] sm:$0xff]
      %v4728 = vld [vmem:[%s1 + $0xbb8] sm:$0xff]
      %v4729 = vld [vmem:[%s1 + $0xbc0] sm:$0xff]
      %v4730 = vld [vmem:[%s1 + $0xbc8] sm:$0xff]
      %v4731 = vld [vmem:[%s1 + $0xbd0] sm:$0xff]
      %v4732 = vld [vmem:[%s1 + $0xbd8] sm:$0xff]
      %v4733 = vld [vmem:[%s1 + $0xbe0] sm:$0xff]
      %v4734 = vld [vmem:[%s1 + $0xbe8] sm:$0xff]
      %v4735 = vld [vmem:[%s1 + $0xbf0] sm:$0xff]
      %v4736 = vld [vmem:[%s1 + $0xbf8] sm:$0xff]
      %v4737 = vld [vmem:[%s1 + $0xc00] sm:$0xff]
      %v4738 = vld [vmem:[%s1 + $0xc08] sm:$0xff]
      %v4739 = vld [vmem:[%s1 + $0xc10] sm:$0xff]
      %v4740 = vld [vmem:[%s1 + $0xc18] sm:$0xff]
      %v4741 = vld [vmem:[%s1 + $0xc20] sm:$0xff]
      %v4742 = vld [vmem:[%s1 + $0xc28] sm:$0xff]
      %v4743 = vld [vmem:[%s1 + $0xc30] sm:$0xff]
      %v4744 = vld [vmem:[%s1 + $0xc38] sm:$0xff]
      %v4745 = vld [vmem:[%s1 + $0xc40] sm:$0xff]
      %v4746 = vld [vmem:[%s1 + $0xc48] sm:$0xff]
      %v4747 = vld [vmem:[%s1 + $0xc50] sm:$0xff]
      %v4748 = vld [vmem:[%s1 + $0xc58] sm:$0xff]
      %v4749 = vld [vmem:[%s1 + $0xc60] sm:$0xff]
      %v4750 = vld [vmem:[%s1 + $0xc68] sm:$0xff]
      %v4751 = vld [vmem:[%s1 + $0xc70] sm:$0xff]
      %v4752 = vld [vmem:[%s1 + $0xc78] sm:$0xff]
      %4754 = vset.pattern.permute.xlu0 0
      %4755 = vperm.xlu0 %4754, %v4353
      %v4756 = vpop.permute.xlu0 %4755
      %4759 = vset.pattern.permute.xlu0 0
      %4760 = vperm.xlu0 %4759, %v4354
      %v4761 = vpop.permute.xlu0 %4760
      %4764 = vset.pattern.permute.xlu0 0
      %4765 = vperm.xlu0 %4764, %v4355
      %v4766 = vpop.permute.xlu0 %4765
      %4769 = vset.pattern.permute.xlu0 0
      %4770 = vperm.xlu0 %4769, %v4356
      %v4771 = vpop.permute.xlu0 %4770
      %4774 = vset.pattern.permute.xlu0 0
      %4775 = vperm.xlu0 %4774, %v4357
      %v4776 = vpop.permute.xlu0 %4775
      %4779 = vset.pattern.permute.xlu0 0
      %4780 = vperm.xlu0 %4779, %v4358
      %v4781 = vpop.permute.xlu0 %4780
      %4784 = vset.pattern.permute.xlu0 0
      %4785 = vperm.xlu0 %4784, %v4359
      %v4786 = vpop.permute.xlu0 %4785
      %4789 = vset.pattern.permute.xlu0 0
      %4790 = vperm.xlu0 %4789, %v4360
      %v4791 = vpop.permute.xlu0 %4790
      %4794 = vset.pattern.permute.xlu0 0
      %4795 = vperm.xlu0 %4794, %v4361
      %v4796 = vpop.permute.xlu0 %4795
      %4799 = vset.pattern.permute.xlu0 0
      %4800 = vperm.xlu0 %4799, %v4362
      %v4801 = vpop.permute.xlu0 %4800
      %4804 = vset.pattern.permute.xlu0 0
      %4805 = vperm.xlu0 %4804, %v4363
      %v4806 = vpop.permute.xlu0 %4805
      %4809 = vset.pattern.permute.xlu0 0
      %4810 = vperm.xlu0 %4809, %v4364
      %v4811 = vpop.permute.xlu0 %4810
      %4814 = vset.pattern.permute.xlu0 0
      %4815 = vperm.xlu0 %4814, %v4365
      %v4816 = vpop.permute.xlu0 %4815
      %4819 = vset.pattern.permute.xlu0 0
      %4820 = vperm.xlu0 %4819, %v4366
      %v4821 = vpop.permute.xlu0 %4820
      %4824 = vset.pattern.permute.xlu0 0
      %4825 = vperm.xlu0 %4824, %v4367
      %v4826 = vpop.permute.xlu0 %4825
      %4829 = vset.pattern.permute.xlu0 0
      %4830 = vperm.xlu0 %4829, %v4368
      %v4831 = vpop.permute.xlu0 %4830
      %4834 = vset.pattern.permute.xlu0 0
      %4835 = vperm.xlu0 %4834, %v4369
      %v4836 = vpop.permute.xlu0 %4835
      %4839 = vset.pattern.permute.xlu0 0
      %4840 = vperm.xlu0 %4839, %v4370
      %v4841 = vpop.permute.xlu0 %4840
      %4844 = vset.pattern.permute.xlu0 0
      %4845 = vperm.xlu0 %4844, %v4371
      %v4846 = vpop.permute.xlu0 %4845
      %4849 = vset.pattern.permute.xlu0 0
      %4850 = vperm.xlu0 %4849, %v4372
      %v4851 = vpop.permute.xlu0 %4850
      %4854 = vset.pattern.permute.xlu0 0
      %4855 = vperm.xlu0 %4854, %v4373
      %v4856 = vpop.permute.xlu0 %4855
      %4859 = vset.pattern.permute.xlu0 0
      %4860 = vperm.xlu0 %4859, %v4374
      %v4861 = vpop.permute.xlu0 %4860
      %4864 = vset.pattern.permute.xlu0 0
      %4865 = vperm.xlu0 %4864, %v4375
      %v4866 = vpop.permute.xlu0 %4865
      %4869 = vset.pattern.permute.xlu0 0
      %4870 = vperm.xlu0 %4869, %v4376
      %v4871 = vpop.permute.xlu0 %4870
      %4874 = vset.pattern.permute.xlu0 0
      %4875 = vperm.xlu0 %4874, %v4377
      %v4876 = vpop.permute.xlu0 %4875
      %4879 = vset.pattern.permute.xlu0 0
      %4880 = vperm.xlu0 %4879, %v4378
      %v4881 = vpop.permute.xlu0 %4880
      %4884 = vset.pattern.permute.xlu0 0
      %4885 = vperm.xlu0 %4884, %v4379
      %v4886 = vpop.permute.xlu0 %4885
      %4889 = vset.pattern.permute.xlu0 0
      %4890 = vperm.xlu0 %4889, %v4380
      %v4891 = vpop.permute.xlu0 %4890
      %4894 = vset.pattern.permute.xlu0 0
      %4895 = vperm.xlu0 %4894, %v4381
      %v4896 = vpop.permute.xlu0 %4895
      %4899 = vset.pattern.permute.xlu0 0
      %4900 = vperm.xlu0 %4899, %v4382
      %v4901 = vpop.permute.xlu0 %4900
      %4904 = vset.pattern.permute.xlu0 0
      %4905 = vperm.xlu0 %4904, %v4383
      %v4906 = vpop.permute.xlu0 %4905
      %4909 = vset.pattern.permute.xlu0 0
      %4910 = vperm.xlu0 %4909, %v4384
      %v4911 = vpop.permute.xlu0 %4910
      %4914 = vset.pattern.permute.xlu0 0
      %4915 = vperm.xlu0 %4914, %v4385
      %v4916 = vpop.permute.xlu0 %4915
      %4919 = vset.pattern.permute.xlu0 0
      %4920 = vperm.xlu0 %4919, %v4386
      %v4921 = vpop.permute.xlu0 %4920
      %4924 = vset.pattern.permute.xlu0 0
      %4925 = vperm.xlu0 %4924, %v4387
      %v4926 = vpop.permute.xlu0 %4925
      %4929 = vset.pattern.permute.xlu0 0
      %4930 = vperm.xlu0 %4929, %v4388
      %v4931 = vpop.permute.xlu0 %4930
      %4934 = vset.pattern.permute.xlu0 0
      %4935 = vperm.xlu0 %4934, %v4389
      %v4936 = vpop.permute.xlu0 %4935
      %4939 = vset.pattern.permute.xlu0 0
      %4940 = vperm.xlu0 %4939, %v4390
      %v4941 = vpop.permute.xlu0 %4940
      %4944 = vset.pattern.permute.xlu0 0
      %4945 = vperm.xlu0 %4944, %v4391
      %v4946 = vpop.permute.xlu0 %4945
      %4949 = vset.pattern.permute.xlu0 0
      %4950 = vperm.xlu0 %4949, %v4392
      %v4951 = vpop.permute.xlu0 %4950
      %4954 = vset.pattern.permute.xlu0 0
      %4955 = vperm.xlu0 %4954, %v4393
      %v4956 = vpop.permute.xlu0 %4955
      %4959 = vset.pattern.permute.xlu0 0
      %4960 = vperm.xlu0 %4959, %v4394
      %v4961 = vpop.permute.xlu0 %4960
      %4964 = vset.pattern.permute.xlu0 0
      %4965 = vperm.xlu0 %4964, %v4395
      %v4966 = vpop.permute.xlu0 %4965
      %4969 = vset.pattern.permute.xlu0 0
      %4970 = vperm.xlu0 %4969, %v4396
      %v4971 = vpop.permute.xlu0 %4970
      %4974 = vset.pattern.permute.xlu0 0
      %4975 = vperm.xlu0 %4974, %v4397
      %v4976 = vpop.permute.xlu0 %4975
      %4979 = vset.pattern.permute.xlu0 0
      %4980 = vperm.xlu0 %4979, %v4398
      %v4981 = vpop.permute.xlu0 %4980
      %4984 = vset.pattern.permute.xlu0 0
      %4985 = vperm.xlu0 %4984, %v4399
      %v4986 = vpop.permute.xlu0 %4985
      %4989 = vset.pattern.permute.xlu0 0
      %4990 = vperm.xlu0 %4989, %v4400
      %v4991 = vpop.permute.xlu0 %4990
      %4994 = vset.pattern.permute.xlu0 0
      %4995 = vperm.xlu0 %4994, %v4401
      %v4996 = vpop.permute.xlu0 %4995
      %4999 = vset.pattern.permute.xlu0 0
      %5000 = vperm.xlu0 %4999, %v4402
      %v5001 = vpop.permute.xlu0 %5000
      %5004 = vset.pattern.permute.xlu0 0
      %5005 = vperm.xlu0 %5004, %v4403
      %v5006 = vpop.permute.xlu0 %5005
      %5009 = vset.pattern.permute.xlu0 0
      %5010 = vperm.xlu0 %5009, %v4404
      %v5011 = vpop.permute.xlu0 %5010
      %5014 = vset.pattern.permute.xlu0 0
      %5015 = vperm.xlu0 %5014, %v4405
      %v5016 = vpop.permute.xlu0 %5015
      %5019 = vset.pattern.permute.xlu0 0
      %5020 = vperm.xlu0 %5019, %v4406
      %v5021 = vpop.permute.xlu0 %5020
      %5024 = vset.pattern.permute.xlu0 0
      %5025 = vperm.xlu0 %5024, %v4407
      %v5026 = vpop.permute.xlu0 %5025
      %5029 = vset.pattern.permute.xlu0 0
      %5030 = vperm.xlu0 %5029, %v4408
      %v5031 = vpop.permute.xlu0 %5030
      %5034 = vset.pattern.permute.xlu0 0
      %5035 = vperm.xlu0 %5034, %v4409
      %v5036 = vpop.permute.xlu0 %5035
      %5039 = vset.pattern.permute.xlu0 0
      %5040 = vperm.xlu0 %5039, %v4410
      %v5041 = vpop.permute.xlu0 %5040
      %5044 = vset.pattern.permute.xlu0 0
      %5045 = vperm.xlu0 %5044, %v4411
      %v5046 = vpop.permute.xlu0 %5045
      %5049 = vset.pattern.permute.xlu0 0
      %5050 = vperm.xlu0 %5049, %v4412
      %v5051 = vpop.permute.xlu0 %5050
      %5054 = vset.pattern.permute.xlu0 0
      %5055 = vperm.xlu0 %5054, %v4413
      %v5056 = vpop.permute.xlu0 %5055
      %5059 = vset.pattern.permute.xlu0 0
      %5060 = vperm.xlu0 %5059, %v4414
      %v5061 = vpop.permute.xlu0 %5060
      %5064 = vset.pattern.permute.xlu0 0
      %5065 = vperm.xlu0 %5064, %v4415
      %v5066 = vpop.permute.xlu0 %5065
      %5069 = vset.pattern.permute.xlu0 0
      %5070 = vperm.xlu0 %5069, %v4416
      %v5071 = vpop.permute.xlu0 %5070
      %5074 = vset.pattern.permute.xlu0 0
      %5075 = vperm.xlu0 %5074, %v4417
      %v5076 = vpop.permute.xlu0 %5075
      %5079 = vset.pattern.permute.xlu0 0
      %5080 = vperm.xlu0 %5079, %v4418
      %v5081 = vpop.permute.xlu0 %5080
      %5084 = vset.pattern.permute.xlu0 0
      %5085 = vperm.xlu0 %5084, %v4419
      %v5086 = vpop.permute.xlu0 %5085
      %5089 = vset.pattern.permute.xlu0 0
      %5090 = vperm.xlu0 %5089, %v4420
      %v5091 = vpop.permute.xlu0 %5090
      %5094 = vset.pattern.permute.xlu0 0
      %5095 = vperm.xlu0 %5094, %v4421
      %v5096 = vpop.permute.xlu0 %5095
      %5099 = vset.pattern.permute.xlu0 0
      %5100 = vperm.xlu0 %5099, %v4422
      %v5101 = vpop.permute.xlu0 %5100
      %5104 = vset.pattern.permute.xlu0 0
      %5105 = vperm.xlu0 %5104, %v4423
      %v5106 = vpop.permute.xlu0 %5105
      %5109 = vset.pattern.permute.xlu0 0
      %5110 = vperm.xlu0 %5109, %v4424
      %v5111 = vpop.permute.xlu0 %5110
      %5114 = vset.pattern.permute.xlu0 0
      %5115 = vperm.xlu0 %5114, %v4425
      %v5116 = vpop.permute.xlu0 %5115
      %5119 = vset.pattern.permute.xlu0 0
      %5120 = vperm.xlu0 %5119, %v4426
      %v5121 = vpop.permute.xlu0 %5120
      %5124 = vset.pattern.permute.xlu0 0
      %5125 = vperm.xlu0 %5124, %v4427
      %v5126 = vpop.permute.xlu0 %5125
      %5129 = vset.pattern.permute.xlu0 0
      %5130 = vperm.xlu0 %5129, %v4428
      %v5131 = vpop.permute.xlu0 %5130
      %5134 = vset.pattern.permute.xlu0 0
      %5135 = vperm.xlu0 %5134, %v4429
      %v5136 = vpop.permute.xlu0 %5135
      %5139 = vset.pattern.permute.xlu0 0
      %5140 = vperm.xlu0 %5139, %v4430
      %v5141 = vpop.permute.xlu0 %5140
      %5144 = vset.pattern.permute.xlu0 0
      %5145 = vperm.xlu0 %5144, %v4431
      %v5146 = vpop.permute.xlu0 %5145
      %5149 = vset.pattern.permute.xlu0 0
      %5150 = vperm.xlu0 %5149, %v4432
      %v5151 = vpop.permute.xlu0 %5150
      %5154 = vset.pattern.permute.xlu0 0
      %5155 = vperm.xlu0 %5154, %v4433
      %v5156 = vpop.permute.xlu0 %5155
      %5159 = vset.pattern.permute.xlu0 0
      %5160 = vperm.xlu0 %5159, %v4434
      %v5161 = vpop.permute.xlu0 %5160
      %5164 = vset.pattern.permute.xlu0 0
      %5165 = vperm.xlu0 %5164, %v4435
      %v5166 = vpop.permute.xlu0 %5165
      %5169 = vset.pattern.permute.xlu0 0
      %5170 = vperm.xlu0 %5169, %v4436
      %v5171 = vpop.permute.xlu0 %5170
      %5174 = vset.pattern.permute.xlu0 0
      %5175 = vperm.xlu0 %5174, %v4437
      %v5176 = vpop.permute.xlu0 %5175
      %5179 = vset.pattern.permute.xlu0 0
      %5180 = vperm.xlu0 %5179, %v4438
      %v5181 = vpop.permute.xlu0 %5180
      %5184 = vset.pattern.permute.xlu0 0
      %5185 = vperm.xlu0 %5184, %v4439
      %v5186 = vpop.permute.xlu0 %5185
      %5189 = vset.pattern.permute.xlu0 0
      %5190 = vperm.xlu0 %5189, %v4440
      %v5191 = vpop.permute.xlu0 %5190
      %5194 = vset.pattern.permute.xlu0 0
      %5195 = vperm.xlu0 %5194, %v4441
      %v5196 = vpop.permute.xlu0 %5195
      %5199 = vset.pattern.permute.xlu0 0
      %5200 = vperm.xlu0 %5199, %v4442
      %v5201 = vpop.permute.xlu0 %5200
      %5204 = vset.pattern.permute.xlu0 0
      %5205 = vperm.xlu0 %5204, %v4443
      %v5206 = vpop.permute.xlu0 %5205
      %5209 = vset.pattern.permute.xlu0 0
      %5210 = vperm.xlu0 %5209, %v4444
      %v5211 = vpop.permute.xlu0 %5210
      %5214 = vset.pattern.permute.xlu0 0
      %5215 = vperm.xlu0 %5214, %v4445
      %v5216 = vpop.permute.xlu0 %5215
      %5219 = vset.pattern.permute.xlu0 0
      %5220 = vperm.xlu0 %5219, %v4446
      %v5221 = vpop.permute.xlu0 %5220
      %5224 = vset.pattern.permute.xlu0 0
      %5225 = vperm.xlu0 %5224, %v4447
      %v5226 = vpop.permute.xlu0 %5225
      %5229 = vset.pattern.permute.xlu0 0
      %5230 = vperm.xlu0 %5229, %v4448
      %v5231 = vpop.permute.xlu0 %5230
      %5234 = vset.pattern.permute.xlu0 0
      %5235 = vperm.xlu0 %5234, %v4449
      %v5236 = vpop.permute.xlu0 %5235
      %5239 = vset.pattern.permute.xlu0 0
      %5240 = vperm.xlu0 %5239, %v4450
      %v5241 = vpop.permute.xlu0 %5240
      %5244 = vset.pattern.permute.xlu0 0
      %5245 = vperm.xlu0 %5244, %v4451
      %v5246 = vpop.permute.xlu0 %5245
      %5249 = vset.pattern.permute.xlu0 0
      %5250 = vperm.xlu0 %5249, %v4452
      %v5251 = vpop.permute.xlu0 %5250
      %5254 = vset.pattern.permute.xlu0 0
      %5255 = vperm.xlu0 %5254, %v4453
      %v5256 = vpop.permute.xlu0 %5255
      %5259 = vset.pattern.permute.xlu0 0
      %5260 = vperm.xlu0 %5259, %v4454
      %v5261 = vpop.permute.xlu0 %5260
      %5264 = vset.pattern.permute.xlu0 0
      %5265 = vperm.xlu0 %5264, %v4455
      %v5266 = vpop.permute.xlu0 %5265
      %5269 = vset.pattern.permute.xlu0 0
      %5270 = vperm.xlu0 %5269, %v4456
      %v5271 = vpop.permute.xlu0 %5270
      %5274 = vset.pattern.permute.xlu0 0
      %5275 = vperm.xlu0 %5274, %v4457
      %v5276 = vpop.permute.xlu0 %5275
      %5279 = vset.pattern.permute.xlu0 0
      %5280 = vperm.xlu0 %5279, %v4458
      %v5281 = vpop.permute.xlu0 %5280
      %5284 = vset.pattern.permute.xlu0 0
      %5285 = vperm.xlu0 %5284, %v4459
      %v5286 = vpop.permute.xlu0 %5285
      %5289 = vset.pattern.permute.xlu0 0
      %5290 = vperm.xlu0 %5289, %v4460
      %v5291 = vpop.permute.xlu0 %5290
      %5294 = vset.pattern.permute.xlu0 0
      %5295 = vperm.xlu0 %5294, %v4461
      %v5296 = vpop.permute.xlu0 %5295
      %5299 = vset.pattern.permute.xlu0 0
      %5300 = vperm.xlu0 %5299, %v4462
      %v5301 = vpop.permute.xlu0 %5300
      %5304 = vset.pattern.permute.xlu0 0
      %5305 = vperm.xlu0 %5304, %v4463
      %v5306 = vpop.permute.xlu0 %5305
      %5309 = vset.pattern.permute.xlu0 0
      %5310 = vperm.xlu0 %5309, %v4464
      %v5311 = vpop.permute.xlu0 %5310
      %5314 = vset.pattern.permute.xlu0 0
      %5315 = vperm.xlu0 %5314, %v4465
      %v5316 = vpop.permute.xlu0 %5315
      %5319 = vset.pattern.permute.xlu0 0
      %5320 = vperm.xlu0 %5319, %v4466
      %v5321 = vpop.permute.xlu0 %5320
      %5324 = vset.pattern.permute.xlu0 0
      %5325 = vperm.xlu0 %5324, %v4467
      %v5326 = vpop.permute.xlu0 %5325
      %5329 = vset.pattern.permute.xlu0 0
      %5330 = vperm.xlu0 %5329, %v4468
      %v5331 = vpop.permute.xlu0 %5330
      %5334 = vset.pattern.permute.xlu0 0
      %5335 = vperm.xlu0 %5334, %v4469
      %v5336 = vpop.permute.xlu0 %5335
      %5339 = vset.pattern.permute.xlu0 0
      %5340 = vperm.xlu0 %5339, %v4470
      %v5341 = vpop.permute.xlu0 %5340
      %5344 = vset.pattern.permute.xlu0 0
      %5345 = vperm.xlu0 %5344, %v4471
      %v5346 = vpop.permute.xlu0 %5345
      %5349 = vset.pattern.permute.xlu0 0
      %5350 = vperm.xlu0 %5349, %v4472
      %v5351 = vpop.permute.xlu0 %5350
      %5354 = vset.pattern.permute.xlu0 0
      %5355 = vperm.xlu0 %5354, %v4473
      %v5356 = vpop.permute.xlu0 %5355
      %5359 = vset.pattern.permute.xlu0 0
      %5360 = vperm.xlu0 %5359, %v4474
      %v5361 = vpop.permute.xlu0 %5360
      %5364 = vset.pattern.permute.xlu0 0
      %5365 = vperm.xlu0 %5364, %v4475
      %v5366 = vpop.permute.xlu0 %5365
      %5369 = vset.pattern.permute.xlu0 0
      %5370 = vperm.xlu0 %5369, %v4476
      %v5371 = vpop.permute.xlu0 %5370
      %5374 = vset.pattern.permute.xlu0 0
      %5375 = vperm.xlu0 %5374, %v4477
      %v5376 = vpop.permute.xlu0 %5375
      %5379 = vset.pattern.permute.xlu0 0
      %5380 = vperm.xlu0 %5379, %v4478
      %v5381 = vpop.permute.xlu0 %5380
      %5384 = vset.pattern.permute.xlu0 0
      %5385 = vperm.xlu0 %5384, %v4479
      %v5386 = vpop.permute.xlu0 %5385
      %5389 = vset.pattern.permute.xlu0 0
      %5390 = vperm.xlu0 %5389, %v4480
      %v5391 = vpop.permute.xlu0 %5390
      %5394 = vset.pattern.permute.xlu0 0
      %5395 = vperm.xlu0 %5394, %v4481
      %v5396 = vpop.permute.xlu0 %5395
      %5399 = vset.pattern.permute.xlu0 0
      %5400 = vperm.xlu0 %5399, %v4482
      %v5401 = vpop.permute.xlu0 %5400
      %5404 = vset.pattern.permute.xlu0 0
      %5405 = vperm.xlu0 %5404, %v4483
      %v5406 = vpop.permute.xlu0 %5405
      %5409 = vset.pattern.permute.xlu0 0
      %5410 = vperm.xlu0 %5409, %v4484
      %v5411 = vpop.permute.xlu0 %5410
      %5414 = vset.pattern.permute.xlu0 0
      %5415 = vperm.xlu0 %5414, %v4485
      %v5416 = vpop.permute.xlu0 %5415
      %5419 = vset.pattern.permute.xlu0 0
      %5420 = vperm.xlu0 %5419, %v4486
      %v5421 = vpop.permute.xlu0 %5420
      %5424 = vset.pattern.permute.xlu0 0
      %5425 = vperm.xlu0 %5424, %v4487
      %v5426 = vpop.permute.xlu0 %5425
      %5429 = vset.pattern.permute.xlu0 0
      %5430 = vperm.xlu0 %5429, %v4488
      %v5431 = vpop.permute.xlu0 %5430
      %5434 = vset.pattern.permute.xlu0 0
      %5435 = vperm.xlu0 %5434, %v4489
      %v5436 = vpop.permute.xlu0 %5435
      %5439 = vset.pattern.permute.xlu0 0
      %5440 = vperm.xlu0 %5439, %v4490
      %v5441 = vpop.permute.xlu0 %5440
      %5444 = vset.pattern.permute.xlu0 0
      %5445 = vperm.xlu0 %5444, %v4491
      %v5446 = vpop.permute.xlu0 %5445
      %5449 = vset.pattern.permute.xlu0 0
      %5450 = vperm.xlu0 %5449, %v4492
      %v5451 = vpop.permute.xlu0 %5450
      %5454 = vset.pattern.permute.xlu0 0
      %5455 = vperm.xlu0 %5454, %v4493
      %v5456 = vpop.permute.xlu0 %5455
      %5459 = vset.pattern.permute.xlu0 0
      %5460 = vperm.xlu0 %5459, %v4494
      %v5461 = vpop.permute.xlu0 %5460
      %5464 = vset.pattern.permute.xlu0 0
      %5465 = vperm.xlu0 %5464, %v4495
      %v5466 = vpop.permute.xlu0 %5465
      %5469 = vset.pattern.permute.xlu0 0
      %5470 = vperm.xlu0 %5469, %v4496
      %v5471 = vpop.permute.xlu0 %5470
      %5474 = vset.pattern.permute.xlu0 0
      %5475 = vperm.xlu0 %5474, %v4497
      %v5476 = vpop.permute.xlu0 %5475
      %5479 = vset.pattern.permute.xlu0 0
      %5480 = vperm.xlu0 %5479, %v4498
      %v5481 = vpop.permute.xlu0 %5480
      %5484 = vset.pattern.permute.xlu0 0
      %5485 = vperm.xlu0 %5484, %v4499
      %v5486 = vpop.permute.xlu0 %5485
      %5489 = vset.pattern.permute.xlu0 0
      %5490 = vperm.xlu0 %5489, %v4500
      %v5491 = vpop.permute.xlu0 %5490
      %5494 = vset.pattern.permute.xlu0 0
      %5495 = vperm.xlu0 %5494, %v4501
      %v5496 = vpop.permute.xlu0 %5495
      %5499 = vset.pattern.permute.xlu0 0
      %5500 = vperm.xlu0 %5499, %v4502
      %v5501 = vpop.permute.xlu0 %5500
      %5504 = vset.pattern.permute.xlu0 0
      %5505 = vperm.xlu0 %5504, %v4503
      %v5506 = vpop.permute.xlu0 %5505
      %5509 = vset.pattern.permute.xlu0 0
      %5510 = vperm.xlu0 %5509, %v4504
      %v5511 = vpop.permute.xlu0 %5510
      %5514 = vset.pattern.permute.xlu0 0
      %5515 = vperm.xlu0 %5514, %v4505
      %v5516 = vpop.permute.xlu0 %5515
      %5519 = vset.pattern.permute.xlu0 0
      %5520 = vperm.xlu0 %5519, %v4506
      %v5521 = vpop.permute.xlu0 %5520
      %5524 = vset.pattern.permute.xlu0 0
      %5525 = vperm.xlu0 %5524, %v4507
      %v5526 = vpop.permute.xlu0 %5525
      %5529 = vset.pattern.permute.xlu0 0
      %5530 = vperm.xlu0 %5529, %v4508
      %v5531 = vpop.permute.xlu0 %5530
      %5534 = vset.pattern.permute.xlu0 0
      %5535 = vperm.xlu0 %5534, %v4509
      %v5536 = vpop.permute.xlu0 %5535
      %5539 = vset.pattern.permute.xlu0 0
      %5540 = vperm.xlu0 %5539, %v4510
      %v5541 = vpop.permute.xlu0 %5540
      %5544 = vset.pattern.permute.xlu0 0
      %5545 = vperm.xlu0 %5544, %v4511
      %v5546 = vpop.permute.xlu0 %5545
      %5549 = vset.pattern.permute.xlu0 0
      %5550 = vperm.xlu0 %5549, %v4512
      %v5551 = vpop.permute.xlu0 %5550
      %5554 = vset.pattern.permute.xlu0 0
      %5555 = vperm.xlu0 %5554, %v4513
      %v5556 = vpop.permute.xlu0 %5555
      %5559 = vset.pattern.permute.xlu0 0
      %5560 = vperm.xlu0 %5559, %v4514
      %v5561 = vpop.permute.xlu0 %5560
      %5564 = vset.pattern.permute.xlu0 0
      %5565 = vperm.xlu0 %5564, %v4515
      %v5566 = vpop.permute.xlu0 %5565
      %5569 = vset.pattern.permute.xlu0 0
      %5570 = vperm.xlu0 %5569, %v4516
      %v5571 = vpop.permute.xlu0 %5570
      %5574 = vset.pattern.permute.xlu0 0
      %5575 = vperm.xlu0 %5574, %v4517
      %v5576 = vpop.permute.xlu0 %5575
      %5579 = vset.pattern.permute.xlu0 0
      %5580 = vperm.xlu0 %5579, %v4518
      %v5581 = vpop.permute.xlu0 %5580
      %5584 = vset.pattern.permute.xlu0 0
      %5585 = vperm.xlu0 %5584, %v4519
      %v5586 = vpop.permute.xlu0 %5585
      %5589 = vset.pattern.permute.xlu0 0
      %5590 = vperm.xlu0 %5589, %v4520
      %v5591 = vpop.permute.xlu0 %5590
      %5594 = vset.pattern.permute.xlu0 0
      %5595 = vperm.xlu0 %5594, %v4521
      %v5596 = vpop.permute.xlu0 %5595
      %5599 = vset.pattern.permute.xlu0 0
      %5600 = vperm.xlu0 %5599, %v4522
      %v5601 = vpop.permute.xlu0 %5600
      %5604 = vset.pattern.permute.xlu0 0
      %5605 = vperm.xlu0 %5604, %v4523
      %v5606 = vpop.permute.xlu0 %5605
      %5609 = vset.pattern.permute.xlu0 0
      %5610 = vperm.xlu0 %5609, %v4524
      %v5611 = vpop.permute.xlu0 %5610
      %5614 = vset.pattern.permute.xlu0 0
      %5615 = vperm.xlu0 %5614, %v4525
      %v5616 = vpop.permute.xlu0 %5615
      %5619 = vset.pattern.permute.xlu0 0
      %5620 = vperm.xlu0 %5619, %v4526
      %v5621 = vpop.permute.xlu0 %5620
      %5624 = vset.pattern.permute.xlu0 0
      %5625 = vperm.xlu0 %5624, %v4527
      %v5626 = vpop.permute.xlu0 %5625
      %5629 = vset.pattern.permute.xlu0 0
      %5630 = vperm.xlu0 %5629, %v4528
      %v5631 = vpop.permute.xlu0 %5630
      %5634 = vset.pattern.permute.xlu0 0
      %5635 = vperm.xlu0 %5634, %v4529
      %v5636 = vpop.permute.xlu0 %5635
      %5639 = vset.pattern.permute.xlu0 0
      %5640 = vperm.xlu0 %5639, %v4530
      %v5641 = vpop.permute.xlu0 %5640
      %5644 = vset.pattern.permute.xlu0 0
      %5645 = vperm.xlu0 %5644, %v4531
      %v5646 = vpop.permute.xlu0 %5645
      %5649 = vset.pattern.permute.xlu0 0
      %5650 = vperm.xlu0 %5649, %v4532
      %v5651 = vpop.permute.xlu0 %5650
      %5654 = vset.pattern.permute.xlu0 0
      %5655 = vperm.xlu0 %5654, %v4533
      %v5656 = vpop.permute.xlu0 %5655
      %5659 = vset.pattern.permute.xlu0 0
      %5660 = vperm.xlu0 %5659, %v4534
      %v5661 = vpop.permute.xlu0 %5660
      %5664 = vset.pattern.permute.xlu0 0
      %5665 = vperm.xlu0 %5664, %v4535
      %v5666 = vpop.permute.xlu0 %5665
      %5669 = vset.pattern.permute.xlu0 0
      %5670 = vperm.xlu0 %5669, %v4536
      %v5671 = vpop.permute.xlu0 %5670
      %5674 = vset.pattern.permute.xlu0 0
      %5675 = vperm.xlu0 %5674, %v4537
      %v5676 = vpop.permute.xlu0 %5675
      %5679 = vset.pattern.permute.xlu0 0
      %5680 = vperm.xlu0 %5679, %v4538
      %v5681 = vpop.permute.xlu0 %5680
      %5684 = vset.pattern.permute.xlu0 0
      %5685 = vperm.xlu0 %5684, %v4539
      %v5686 = vpop.permute.xlu0 %5685
      %5689 = vset.pattern.permute.xlu0 0
      %5690 = vperm.xlu0 %5689, %v4540
      %v5691 = vpop.permute.xlu0 %5690
      %5694 = vset.pattern.permute.xlu0 0
      %5695 = vperm.xlu0 %5694, %v4541
      %v5696 = vpop.permute.xlu0 %5695
      %5699 = vset.pattern.permute.xlu0 0
      %5700 = vperm.xlu0 %5699, %v4542
      %v5701 = vpop.permute.xlu0 %5700
      %5704 = vset.pattern.permute.xlu0 0
      %5705 = vperm.xlu0 %5704, %v4543
      %v5706 = vpop.permute.xlu0 %5705
      %5709 = vset.pattern.permute.xlu0 0
      %5710 = vperm.xlu0 %5709, %v4544
      %v5711 = vpop.permute.xlu0 %5710
      %5714 = vset.pattern.permute.xlu0 0
      %5715 = vperm.xlu0 %5714, %v4545
      %v5716 = vpop.permute.xlu0 %5715
      %5719 = vset.pattern.permute.xlu0 0
      %5720 = vperm.xlu0 %5719, %v4546
      %v5721 = vpop.permute.xlu0 %5720
      %5724 = vset.pattern.permute.xlu0 0
      %5725 = vperm.xlu0 %5724, %v4547
      %v5726 = vpop.permute.xlu0 %5725
      %5729 = vset.pattern.permute.xlu0 0
      %5730 = vperm.xlu0 %5729, %v4548
      %v5731 = vpop.permute.xlu0 %5730
      %5734 = vset.pattern.permute.xlu0 0
      %5735 = vperm.xlu0 %5734, %v4549
      %v5736 = vpop.permute.xlu0 %5735
      %5739 = vset.pattern.permute.xlu0 0
      %5740 = vperm.xlu0 %5739, %v4550
      %v5741 = vpop.permute.xlu0 %5740
      %5744 = vset.pattern.permute.xlu0 0
      %5745 = vperm.xlu0 %5744, %v4551
      %v5746 = vpop.permute.xlu0 %5745
      %5749 = vset.pattern.permute.xlu0 0
      %5750 = vperm.xlu0 %5749, %v4552
      %v5751 = vpop.permute.xlu0 %5750
      %5754 = vset.pattern.permute.xlu0 0
      %5755 = vperm.xlu0 %5754, %v4553
      %v5756 = vpop.permute.xlu0 %5755
      %5759 = vset.pattern.permute.xlu0 0
      %5760 = vperm.xlu0 %5759, %v4554
      %v5761 = vpop.permute.xlu0 %5760
      %5764 = vset.pattern.permute.xlu0 0
      %5765 = vperm.xlu0 %5764, %v4555
      %v5766 = vpop.permute.xlu0 %5765
      %5769 = vset.pattern.permute.xlu0 0
      %5770 = vperm.xlu0 %5769, %v4556
      %v5771 = vpop.permute.xlu0 %5770
      %5774 = vset.pattern.permute.xlu0 0
      %5775 = vperm.xlu0 %5774, %v4557
      %v5776 = vpop.permute.xlu0 %5775
      %5779 = vset.pattern.permute.xlu0 0
      %5780 = vperm.xlu0 %5779, %v4558
      %v5781 = vpop.permute.xlu0 %5780
      %5784 = vset.pattern.permute.xlu0 0
      %5785 = vperm.xlu0 %5784, %v4559
      %v5786 = vpop.permute.xlu0 %5785
      %5789 = vset.pattern.permute.xlu0 0
      %5790 = vperm.xlu0 %5789, %v4560
      %v5791 = vpop.permute.xlu0 %5790
      %5794 = vset.pattern.permute.xlu0 0
      %5795 = vperm.xlu0 %5794, %v4561
      %v5796 = vpop.permute.xlu0 %5795
      %5799 = vset.pattern.permute.xlu0 0
      %5800 = vperm.xlu0 %5799, %v4562
      %v5801 = vpop.permute.xlu0 %5800
      %5804 = vset.pattern.permute.xlu0 0
      %5805 = vperm.xlu0 %5804, %v4563
      %v5806 = vpop.permute.xlu0 %5805
      %5809 = vset.pattern.permute.xlu0 0
      %5810 = vperm.xlu0 %5809, %v4564
      %v5811 = vpop.permute.xlu0 %5810
      %5814 = vset.pattern.permute.xlu0 0
      %5815 = vperm.xlu0 %5814, %v4565
      %v5816 = vpop.permute.xlu0 %5815
      %5819 = vset.pattern.permute.xlu0 0
      %5820 = vperm.xlu0 %5819, %v4566
      %v5821 = vpop.permute.xlu0 %5820
      %5824 = vset.pattern.permute.xlu0 0
      %5825 = vperm.xlu0 %5824, %v4567
      %v5826 = vpop.permute.xlu0 %5825
      %5829 = vset.pattern.permute.xlu0 0
      %5830 = vperm.xlu0 %5829, %v4568
      %v5831 = vpop.permute.xlu0 %5830
      %5834 = vset.pattern.permute.xlu0 0
      %5835 = vperm.xlu0 %5834, %v4569
      %v5836 = vpop.permute.xlu0 %5835
      %5839 = vset.pattern.permute.xlu0 0
      %5840 = vperm.xlu0 %5839, %v4570
      %v5841 = vpop.permute.xlu0 %5840
      %5844 = vset.pattern.permute.xlu0 0
      %5845 = vperm.xlu0 %5844, %v4571
      %v5846 = vpop.permute.xlu0 %5845
      %5849 = vset.pattern.permute.xlu0 0
      %5850 = vperm.xlu0 %5849, %v4572
      %v5851 = vpop.permute.xlu0 %5850
      %5854 = vset.pattern.permute.xlu0 0
      %5855 = vperm.xlu0 %5854, %v4573
      %v5856 = vpop.permute.xlu0 %5855
      %5859 = vset.pattern.permute.xlu0 0
      %5860 = vperm.xlu0 %5859, %v4574
      %v5861 = vpop.permute.xlu0 %5860
      %5864 = vset.pattern.permute.xlu0 0
      %5865 = vperm.xlu0 %5864, %v4575
      %v5866 = vpop.permute.xlu0 %5865
      %5869 = vset.pattern.permute.xlu0 0
      %5870 = vperm.xlu0 %5869, %v4576
      %v5871 = vpop.permute.xlu0 %5870
      %5874 = vset.pattern.permute.xlu0 0
      %5875 = vperm.xlu0 %5874, %v4577
      %v5876 = vpop.permute.xlu0 %5875
      %5879 = vset.pattern.permute.xlu0 0
      %5880 = vperm.xlu0 %5879, %v4578
      %v5881 = vpop.permute.xlu0 %5880
      %5884 = vset.pattern.permute.xlu0 0
      %5885 = vperm.xlu0 %5884, %v4579
      %v5886 = vpop.permute.xlu0 %5885
      %5889 = vset.pattern.permute.xlu0 0
      %5890 = vperm.xlu0 %5889, %v4580
      %v5891 = vpop.permute.xlu0 %5890
      %5894 = vset.pattern.permute.xlu0 0
      %5895 = vperm.xlu0 %5894, %v4581
      %v5896 = vpop.permute.xlu0 %5895
      %5899 = vset.pattern.permute.xlu0 0
      %5900 = vperm.xlu0 %5899, %v4582
      %v5901 = vpop.permute.xlu0 %5900
      %5904 = vset.pattern.permute.xlu0 0
      %5905 = vperm.xlu0 %5904, %v4583
      %v5906 = vpop.permute.xlu0 %5905
      %5909 = vset.pattern.permute.xlu0 0
      %5910 = vperm.xlu0 %5909, %v4584
      %v5911 = vpop.permute.xlu0 %5910
      %5914 = vset.pattern.permute.xlu0 0
      %5915 = vperm.xlu0 %5914, %v4585
      %v5916 = vpop.permute.xlu0 %5915
      %5919 = vset.pattern.permute.xlu0 0
      %5920 = vperm.xlu0 %5919, %v4586
      %v5921 = vpop.permute.xlu0 %5920
      %5924 = vset.pattern.permute.xlu0 0
      %5925 = vperm.xlu0 %5924, %v4587
      %v5926 = vpop.permute.xlu0 %5925
      %5929 = vset.pattern.permute.xlu0 0
      %5930 = vperm.xlu0 %5929, %v4588
      %v5931 = vpop.permute.xlu0 %5930
      %5934 = vset.pattern.permute.xlu0 0
      %5935 = vperm.xlu0 %5934, %v4589
      %v5936 = vpop.permute.xlu0 %5935
      %5939 = vset.pattern.permute.xlu0 0
      %5940 = vperm.xlu0 %5939, %v4590
      %v5941 = vpop.permute.xlu0 %5940
      %5944 = vset.pattern.permute.xlu0 0
      %5945 = vperm.xlu0 %5944, %v4591
      %v5946 = vpop.permute.xlu0 %5945
      %5949 = vset.pattern.permute.xlu0 0
      %5950 = vperm.xlu0 %5949, %v4592
      %v5951 = vpop.permute.xlu0 %5950
      %5954 = vset.pattern.permute.xlu0 0
      %5955 = vperm.xlu0 %5954, %v4593
      %v5956 = vpop.permute.xlu0 %5955
      %5959 = vset.pattern.permute.xlu0 0
      %5960 = vperm.xlu0 %5959, %v4594
      %v5961 = vpop.permute.xlu0 %5960
      %5964 = vset.pattern.permute.xlu0 0
      %5965 = vperm.xlu0 %5964, %v4595
      %v5966 = vpop.permute.xlu0 %5965
      %5969 = vset.pattern.permute.xlu0 0
      %5970 = vperm.xlu0 %5969, %v4596
      %v5971 = vpop.permute.xlu0 %5970
      %5974 = vset.pattern.permute.xlu0 0
      %5975 = vperm.xlu0 %5974, %v4597
      %v5976 = vpop.permute.xlu0 %5975
      %5979 = vset.pattern.permute.xlu0 0
      %5980 = vperm.xlu0 %5979, %v4598
      %v5981 = vpop.permute.xlu0 %5980
      %5984 = vset.pattern.permute.xlu0 0
      %5985 = vperm.xlu0 %5984, %v4599
      %v5986 = vpop.permute.xlu0 %5985
      %5989 = vset.pattern.permute.xlu0 0
      %5990 = vperm.xlu0 %5989, %v4600
      %v5991 = vpop.permute.xlu0 %5990
      %5994 = vset.pattern.permute.xlu0 0
      %5995 = vperm.xlu0 %5994, %v4601
      %v5996 = vpop.permute.xlu0 %5995
      %5999 = vset.pattern.permute.xlu0 0
      %6000 = vperm.xlu0 %5999, %v4602
      %v6001 = vpop.permute.xlu0 %6000
      %6004 = vset.pattern.permute.xlu0 0
      %6005 = vperm.xlu0 %6004, %v4603
      %v6006 = vpop.permute.xlu0 %6005
      %6009 = vset.pattern.permute.xlu0 0
      %6010 = vperm.xlu0 %6009, %v4604
      %v6011 = vpop.permute.xlu0 %6010
      %6014 = vset.pattern.permute.xlu0 0
      %6015 = vperm.xlu0 %6014, %v4605
      %v6016 = vpop.permute.xlu0 %6015
      %6019 = vset.pattern.permute.xlu0 0
      %6020 = vperm.xlu0 %6019, %v4606
      %v6021 = vpop.permute.xlu0 %6020
      %6024 = vset.pattern.permute.xlu0 0
      %6025 = vperm.xlu0 %6024, %v4607
      %v6026 = vpop.permute.xlu0 %6025
      %6029 = vset.pattern.permute.xlu0 0
      %6030 = vperm.xlu0 %6029, %v4608
      %v6031 = vpop.permute.xlu0 %6030
      %6034 = vset.pattern.permute.xlu0 0
      %6035 = vperm.xlu0 %6034, %v4609
      %v6036 = vpop.permute.xlu0 %6035
      %6039 = vset.pattern.permute.xlu0 0
      %6040 = vperm.xlu0 %6039, %v4610
      %v6041 = vpop.permute.xlu0 %6040
      %6044 = vset.pattern.permute.xlu0 0
      %6045 = vperm.xlu0 %6044, %v4611
      %v6046 = vpop.permute.xlu0 %6045
      %6049 = vset.pattern.permute.xlu0 0
      %6050 = vperm.xlu0 %6049, %v4612
      %v6051 = vpop.permute.xlu0 %6050
      %6054 = vset.pattern.permute.xlu0 0
      %6055 = vperm.xlu0 %6054, %v4613
      %v6056 = vpop.permute.xlu0 %6055
      %6059 = vset.pattern.permute.xlu0 0
      %6060 = vperm.xlu0 %6059, %v4614
      %v6061 = vpop.permute.xlu0 %6060
      %6064 = vset.pattern.permute.xlu0 0
      %6065 = vperm.xlu0 %6064, %v4615
      %v6066 = vpop.permute.xlu0 %6065
      %6069 = vset.pattern.permute.xlu0 0
      %6070 = vperm.xlu0 %6069, %v4616
      %v6071 = vpop.permute.xlu0 %6070
      %6074 = vset.pattern.permute.xlu0 0
      %6075 = vperm.xlu0 %6074, %v4617
      %v6076 = vpop.permute.xlu0 %6075
      %6079 = vset.pattern.permute.xlu0 0
      %6080 = vperm.xlu0 %6079, %v4618
      %v6081 = vpop.permute.xlu0 %6080
      %6084 = vset.pattern.permute.xlu0 0
      %6085 = vperm.xlu0 %6084, %v4619
      %v6086 = vpop.permute.xlu0 %6085
      %6089 = vset.pattern.permute.xlu0 0
      %6090 = vperm.xlu0 %6089, %v4620
      %v6091 = vpop.permute.xlu0 %6090
      %6094 = vset.pattern.permute.xlu0 0
      %6095 = vperm.xlu0 %6094, %v4621
      %v6096 = vpop.permute.xlu0 %6095
      %6099 = vset.pattern.permute.xlu0 0
      %6100 = vperm.xlu0 %6099, %v4622
      %v6101 = vpop.permute.xlu0 %6100
      %6104 = vset.pattern.permute.xlu0 0
      %6105 = vperm.xlu0 %6104, %v4623
      %v6106 = vpop.permute.xlu0 %6105
      %6109 = vset.pattern.permute.xlu0 0
      %6110 = vperm.xlu0 %6109, %v4624
      %v6111 = vpop.permute.xlu0 %6110
      %6114 = vset.pattern.permute.xlu0 0
      %6115 = vperm.xlu0 %6114, %v4625
      %v6116 = vpop.permute.xlu0 %6115
      %6119 = vset.pattern.permute.xlu0 0
      %6120 = vperm.xlu0 %6119, %v4626
      %v6121 = vpop.permute.xlu0 %6120
      %6124 = vset.pattern.permute.xlu0 0
      %6125 = vperm.xlu0 %6124, %v4627
      %v6126 = vpop.permute.xlu0 %6125
      %6129 = vset.pattern.permute.xlu0 0
      %6130 = vperm.xlu0 %6129, %v4628
      %v6131 = vpop.permute.xlu0 %6130
      %6134 = vset.pattern.permute.xlu0 0
      %6135 = vperm.xlu0 %6134, %v4629
      %v6136 = vpop.permute.xlu0 %6135
      %6139 = vset.pattern.permute.xlu0 0
      %6140 = vperm.xlu0 %6139, %v4630
      %v6141 = vpop.permute.xlu0 %6140
      %6144 = vset.pattern.permute.xlu0 0
      %6145 = vperm.xlu0 %6144, %v4631
      %v6146 = vpop.permute.xlu0 %6145
      %6149 = vset.pattern.permute.xlu0 0
      %6150 = vperm.xlu0 %6149, %v4632
      %v6151 = vpop.permute.xlu0 %6150
      %6154 = vset.pattern.permute.xlu0 0
      %6155 = vperm.xlu0 %6154, %v4633
      %v6156 = vpop.permute.xlu0 %6155
      %6159 = vset.pattern.permute.xlu0 0
      %6160 = vperm.xlu0 %6159, %v4634
      %v6161 = vpop.permute.xlu0 %6160
      %6164 = vset.pattern.permute.xlu0 0
      %6165 = vperm.xlu0 %6164, %v4635
      %v6166 = vpop.permute.xlu0 %6165
      %6169 = vset.pattern.permute.xlu0 0
      %6170 = vperm.xlu0 %6169, %v4636
      %v6171 = vpop.permute.xlu0 %6170
      %6174 = vset.pattern.permute.xlu0 0
      %6175 = vperm.xlu0 %6174, %v4637
      %v6176 = vpop.permute.xlu0 %6175
      %6179 = vset.pattern.permute.xlu0 0
      %6180 = vperm.xlu0 %6179, %v4638
      %v6181 = vpop.permute.xlu0 %6180
      %6184 = vset.pattern.permute.xlu0 0
      %6185 = vperm.xlu0 %6184, %v4639
      %v6186 = vpop.permute.xlu0 %6185
      %6189 = vset.pattern.permute.xlu0 0
      %6190 = vperm.xlu0 %6189, %v4640
      %v6191 = vpop.permute.xlu0 %6190
      %6194 = vset.pattern.permute.xlu0 0
      %6195 = vperm.xlu0 %6194, %v4641
      %v6196 = vpop.permute.xlu0 %6195
      %6199 = vset.pattern.permute.xlu0 0
      %6200 = vperm.xlu0 %6199, %v4642
      %v6201 = vpop.permute.xlu0 %6200
      %6204 = vset.pattern.permute.xlu0 0
      %6205 = vperm.xlu0 %6204, %v4643
      %v6206 = vpop.permute.xlu0 %6205
      %6209 = vset.pattern.permute.xlu0 0
      %6210 = vperm.xlu0 %6209, %v4644
      %v6211 = vpop.permute.xlu0 %6210
      %6214 = vset.pattern.permute.xlu0 0
      %6215 = vperm.xlu0 %6214, %v4645
      %v6216 = vpop.permute.xlu0 %6215
      %6219 = vset.pattern.permute.xlu0 0
      %6220 = vperm.xlu0 %6219, %v4646
      %v6221 = vpop.permute.xlu0 %6220
      %6224 = vset.pattern.permute.xlu0 0
      %6225 = vperm.xlu0 %6224, %v4647
      %v6226 = vpop.permute.xlu0 %6225
      %6229 = vset.pattern.permute.xlu0 0
      %6230 = vperm.xlu0 %6229, %v4648
      %v6231 = vpop.permute.xlu0 %6230
      %6234 = vset.pattern.permute.xlu0 0
      %6235 = vperm.xlu0 %6234, %v4649
      %v6236 = vpop.permute.xlu0 %6235
      %6239 = vset.pattern.permute.xlu0 0
      %6240 = vperm.xlu0 %6239, %v4650
      %v6241 = vpop.permute.xlu0 %6240
      %6244 = vset.pattern.permute.xlu0 0
      %6245 = vperm.xlu0 %6244, %v4651
      %v6246 = vpop.permute.xlu0 %6245
      %6249 = vset.pattern.permute.xlu0 0
      %6250 = vperm.xlu0 %6249, %v4652
      %v6251 = vpop.permute.xlu0 %6250
      %6254 = vset.pattern.permute.xlu0 0
      %6255 = vperm.xlu0 %6254, %v4653
      %v6256 = vpop.permute.xlu0 %6255
      %6259 = vset.pattern.permute.xlu0 0
      %6260 = vperm.xlu0 %6259, %v4654
      %v6261 = vpop.permute.xlu0 %6260
      %6264 = vset.pattern.permute.xlu0 0
      %6265 = vperm.xlu0 %6264, %v4655
      %v6266 = vpop.permute.xlu0 %6265
      %6269 = vset.pattern.permute.xlu0 0
      %6270 = vperm.xlu0 %6269, %v4656
      %v6271 = vpop.permute.xlu0 %6270
      %6274 = vset.pattern.permute.xlu0 0
      %6275 = vperm.xlu0 %6274, %v4657
      %v6276 = vpop.permute.xlu0 %6275
      %6279 = vset.pattern.permute.xlu0 0
      %6280 = vperm.xlu0 %6279, %v4658
      %v6281 = vpop.permute.xlu0 %6280
      %6284 = vset.pattern.permute.xlu0 0
      %6285 = vperm.xlu0 %6284, %v4659
      %v6286 = vpop.permute.xlu0 %6285
      %6289 = vset.pattern.permute.xlu0 0
      %6290 = vperm.xlu0 %6289, %v4660
      %v6291 = vpop.permute.xlu0 %6290
      %6294 = vset.pattern.permute.xlu0 0
      %6295 = vperm.xlu0 %6294, %v4661
      %v6296 = vpop.permute.xlu0 %6295
      %6299 = vset.pattern.permute.xlu0 0
      %6300 = vperm.xlu0 %6299, %v4662
      %v6301 = vpop.permute.xlu0 %6300
      %6304 = vset.pattern.permute.xlu0 0
      %6305 = vperm.xlu0 %6304, %v4663
      %v6306 = vpop.permute.xlu0 %6305
      %6309 = vset.pattern.permute.xlu0 0
      %6310 = vperm.xlu0 %6309, %v4664
      %v6311 = vpop.permute.xlu0 %6310
      %6314 = vset.pattern.permute.xlu0 0
      %6315 = vperm.xlu0 %6314, %v4665
      %v6316 = vpop.permute.xlu0 %6315
      %6319 = vset.pattern.permute.xlu0 0
      %6320 = vperm.xlu0 %6319, %v4666
      %v6321 = vpop.permute.xlu0 %6320
      %6324 = vset.pattern.permute.xlu0 0
      %6325 = vperm.xlu0 %6324, %v4667
      %v6326 = vpop.permute.xlu0 %6325
      %6329 = vset.pattern.permute.xlu0 0
      %6330 = vperm.xlu0 %6329, %v4668
      %v6331 = vpop.permute.xlu0 %6330
      %6334 = vset.pattern.permute.xlu0 0
      %6335 = vperm.xlu0 %6334, %v4669
      %v6336 = vpop.permute.xlu0 %6335
      %6339 = vset.pattern.permute.xlu0 0
      %6340 = vperm.xlu0 %6339, %v4670
      %v6341 = vpop.permute.xlu0 %6340
      %6344 = vset.pattern.permute.xlu0 0
      %6345 = vperm.xlu0 %6344, %v4671
      %v6346 = vpop.permute.xlu0 %6345
      %6349 = vset.pattern.permute.xlu0 0
      %6350 = vperm.xlu0 %6349, %v4672
      %v6351 = vpop.permute.xlu0 %6350
      %6354 = vset.pattern.permute.xlu0 0
      %6355 = vperm.xlu0 %6354, %v4673
      %v6356 = vpop.permute.xlu0 %6355
      %6359 = vset.pattern.permute.xlu0 0
      %6360 = vperm.xlu0 %6359, %v4674
      %v6361 = vpop.permute.xlu0 %6360
      %6364 = vset.pattern.permute.xlu0 0
      %6365 = vperm.xlu0 %6364, %v4675
      %v6366 = vpop.permute.xlu0 %6365
      %6369 = vset.pattern.permute.xlu0 0
      %6370 = vperm.xlu0 %6369, %v4676
      %v6371 = vpop.permute.xlu0 %6370
      %6374 = vset.pattern.permute.xlu0 0
      %6375 = vperm.xlu0 %6374, %v4677
      %v6376 = vpop.permute.xlu0 %6375
      %6379 = vset.pattern.permute.xlu0 0
      %6380 = vperm.xlu0 %6379, %v4678
      %v6381 = vpop.permute.xlu0 %6380
      %6384 = vset.pattern.permute.xlu0 0
      %6385 = vperm.xlu0 %6384, %v4679
      %v6386 = vpop.permute.xlu0 %6385
      %6389 = vset.pattern.permute.xlu0 0
      %6390 = vperm.xlu0 %6389, %v4680
      %v6391 = vpop.permute.xlu0 %6390
      %6394 = vset.pattern.permute.xlu0 0
      %6395 = vperm.xlu0 %6394, %v4681
      %v6396 = vpop.permute.xlu0 %6395
      %6399 = vset.pattern.permute.xlu0 0
      %6400 = vperm.xlu0 %6399, %v4682
      %v6401 = vpop.permute.xlu0 %6400
      %6404 = vset.pattern.permute.xlu0 0
      %6405 = vperm.xlu0 %6404, %v4683
      %v6406 = vpop.permute.xlu0 %6405
      %6409 = vset.pattern.permute.xlu0 0
      %6410 = vperm.xlu0 %6409, %v4684
      %v6411 = vpop.permute.xlu0 %6410
      %6414 = vset.pattern.permute.xlu0 0
      %6415 = vperm.xlu0 %6414, %v4685
      %v6416 = vpop.permute.xlu0 %6415
      %6419 = vset.pattern.permute.xlu0 0
      %6420 = vperm.xlu0 %6419, %v4686
      %v6421 = vpop.permute.xlu0 %6420
      %6424 = vset.pattern.permute.xlu0 0
      %6425 = vperm.xlu0 %6424, %v4687
      %v6426 = vpop.permute.xlu0 %6425
      %6429 = vset.pattern.permute.xlu0 0
      %6430 = vperm.xlu0 %6429, %v4688
      %v6431 = vpop.permute.xlu0 %6430
      %6434 = vset.pattern.permute.xlu0 0
      %6435 = vperm.xlu0 %6434, %v4689
      %v6436 = vpop.permute.xlu0 %6435
      %6439 = vset.pattern.permute.xlu0 0
      %6440 = vperm.xlu0 %6439, %v4690
      %v6441 = vpop.permute.xlu0 %6440
      %6444 = vset.pattern.permute.xlu0 0
      %6445 = vperm.xlu0 %6444, %v4691
      %v6446 = vpop.permute.xlu0 %6445
      %6449 = vset.pattern.permute.xlu0 0
      %6450 = vperm.xlu0 %6449, %v4692
      %v6451 = vpop.permute.xlu0 %6450
      %6454 = vset.pattern.permute.xlu0 0
      %6455 = vperm.xlu0 %6454, %v4693
      %v6456 = vpop.permute.xlu0 %6455
      %6459 = vset.pattern.permute.xlu0 0
      %6460 = vperm.xlu0 %6459, %v4694
      %v6461 = vpop.permute.xlu0 %6460
      %6464 = vset.pattern.permute.xlu0 0
      %6465 = vperm.xlu0 %6464, %v4695
      %v6466 = vpop.permute.xlu0 %6465
      %6469 = vset.pattern.permute.xlu0 0
      %6470 = vperm.xlu0 %6469, %v4696
      %v6471 = vpop.permute.xlu0 %6470
      %6474 = vset.pattern.permute.xlu0 0
      %6475 = vperm.xlu0 %6474, %v4697
      %v6476 = vpop.permute.xlu0 %6475
      %6479 = vset.pattern.permute.xlu0 0
      %6480 = vperm.xlu0 %6479, %v4698
      %v6481 = vpop.permute.xlu0 %6480
      %6484 = vset.pattern.permute.xlu0 0
      %6485 = vperm.xlu0 %6484, %v4699
      %v6486 = vpop.permute.xlu0 %6485
      %6489 = vset.pattern.permute.xlu0 0
      %6490 = vperm.xlu0 %6489, %v4700
      %v6491 = vpop.permute.xlu0 %6490
      %6494 = vset.pattern.permute.xlu0 0
      %6495 = vperm.xlu0 %6494, %v4701
      %v6496 = vpop.permute.xlu0 %6495
      %6499 = vset.pattern.permute.xlu0 0
      %6500 = vperm.xlu0 %6499, %v4702
      %v6501 = vpop.permute.xlu0 %6500
      %6504 = vset.pattern.permute.xlu0 0
      %6505 = vperm.xlu0 %6504, %v4703
      %v6506 = vpop.permute.xlu0 %6505
      %6509 = vset.pattern.permute.xlu0 0
      %6510 = vperm.xlu0 %6509, %v4704
      %v6511 = vpop.permute.xlu0 %6510
      %6514 = vset.pattern.permute.xlu0 0
      %6515 = vperm.xlu0 %6514, %v4705
      %v6516 = vpop.permute.xlu0 %6515
      %6519 = vset.pattern.permute.xlu0 0
      %6520 = vperm.xlu0 %6519, %v4706
      %v6521 = vpop.permute.xlu0 %6520
      %6524 = vset.pattern.permute.xlu0 0
      %6525 = vperm.xlu0 %6524, %v4707
      %v6526 = vpop.permute.xlu0 %6525
      %6529 = vset.pattern.permute.xlu0 0
      %6530 = vperm.xlu0 %6529, %v4708
      %v6531 = vpop.permute.xlu0 %6530
      %6534 = vset.pattern.permute.xlu0 0
      %6535 = vperm.xlu0 %6534, %v4709
      %v6536 = vpop.permute.xlu0 %6535
      %6539 = vset.pattern.permute.xlu0 0
      %6540 = vperm.xlu0 %6539, %v4710
      %v6541 = vpop.permute.xlu0 %6540
      %6544 = vset.pattern.permute.xlu0 0
      %6545 = vperm.xlu0 %6544, %v4711
      %v6546 = vpop.permute.xlu0 %6545
      %6549 = vset.pattern.permute.xlu0 0
      %6550 = vperm.xlu0 %6549, %v4712
      %v6551 = vpop.permute.xlu0 %6550
      %6554 = vset.pattern.permute.xlu0 0
      %6555 = vperm.xlu0 %6554, %v4713
      %v6556 = vpop.permute.xlu0 %6555
      %6559 = vset.pattern.permute.xlu0 0
      %6560 = vperm.xlu0 %6559, %v4714
      %v6561 = vpop.permute.xlu0 %6560
      %6564 = vset.pattern.permute.xlu0 0
      %6565 = vperm.xlu0 %6564, %v4715
      %v6566 = vpop.permute.xlu0 %6565
      %6569 = vset.pattern.permute.xlu0 0
      %6570 = vperm.xlu0 %6569, %v4716
      %v6571 = vpop.permute.xlu0 %6570
      %6574 = vset.pattern.permute.xlu0 0
      %6575 = vperm.xlu0 %6574, %v4717
      %v6576 = vpop.permute.xlu0 %6575
      %6579 = vset.pattern.permute.xlu0 0
      %6580 = vperm.xlu0 %6579, %v4718
      %v6581 = vpop.permute.xlu0 %6580
      %6584 = vset.pattern.permute.xlu0 0
      %6585 = vperm.xlu0 %6584, %v4719
      %v6586 = vpop.permute.xlu0 %6585
      %6589 = vset.pattern.permute.xlu0 0
      %6590 = vperm.xlu0 %6589, %v4720
      %v6591 = vpop.permute.xlu0 %6590
      %6594 = vset.pattern.permute.xlu0 0
      %6595 = vperm.xlu0 %6594, %v4721
      %v6596 = vpop.permute.xlu0 %6595
      %6599 = vset.pattern.permute.xlu0 0
      %6600 = vperm.xlu0 %6599, %v4722
      %v6601 = vpop.permute.xlu0 %6600
      %6604 = vset.pattern.permute.xlu0 0
      %6605 = vperm.xlu0 %6604, %v4723
      %v6606 = vpop.permute.xlu0 %6605
      %6609 = vset.pattern.permute.xlu0 0
      %6610 = vperm.xlu0 %6609, %v4724
      %v6611 = vpop.permute.xlu0 %6610
      %6614 = vset.pattern.permute.xlu0 0
      %6615 = vperm.xlu0 %6614, %v4725
      %v6616 = vpop.permute.xlu0 %6615
      %6619 = vset.pattern.permute.xlu0 0
      %6620 = vperm.xlu0 %6619, %v4726
      %v6621 = vpop.permute.xlu0 %6620
      %6624 = vset.pattern.permute.xlu0 0
      %6625 = vperm.xlu0 %6624, %v4727
      %v6626 = vpop.permute.xlu0 %6625
      %6629 = vset.pattern.permute.xlu0 0
      %6630 = vperm.xlu0 %6629, %v4728
      %v6631 = vpop.permute.xlu0 %6630
      %6634 = vset.pattern.permute.xlu0 0
      %6635 = vperm.xlu0 %6634, %v4729
      %v6636 = vpop.permute.xlu0 %6635
      %6639 = vset.pattern.permute.xlu0 0
      %6640 = vperm.xlu0 %6639, %v4730
      %v6641 = vpop.permute.xlu0 %6640
      %6644 = vset.pattern.permute.xlu0 0
      %6645 = vperm.xlu0 %6644, %v4731
      %v6646 = vpop.permute.xlu0 %6645
      %6649 = vset.pattern.permute.xlu0 0
      %6650 = vperm.xlu0 %6649, %v4732
      %v6651 = vpop.permute.xlu0 %6650
      %6654 = vset.pattern.permute.xlu0 0
      %6655 = vperm.xlu0 %6654, %v4733
      %v6656 = vpop.permute.xlu0 %6655
      %6659 = vset.pattern.permute.xlu0 0
      %6660 = vperm.xlu0 %6659, %v4734
      %v6661 = vpop.permute.xlu0 %6660
      %6664 = vset.pattern.permute.xlu0 0
      %6665 = vperm.xlu0 %6664, %v4735
      %v6666 = vpop.permute.xlu0 %6665
      %6669 = vset.pattern.permute.xlu0 0
      %6670 = vperm.xlu0 %6669, %v4736
      %v6671 = vpop.permute.xlu0 %6670
      %6674 = vset.pattern.permute.xlu0 0
      %6675 = vperm.xlu0 %6674, %v4737
      %v6676 = vpop.permute.xlu0 %6675
      %6679 = vset.pattern.permute.xlu0 0
      %6680 = vperm.xlu0 %6679, %v4738
      %v6681 = vpop.permute.xlu0 %6680
      %6684 = vset.pattern.permute.xlu0 0
      %6685 = vperm.xlu0 %6684, %v4739
      %v6686 = vpop.permute.xlu0 %6685
      %6689 = vset.pattern.permute.xlu0 0
      %6690 = vperm.xlu0 %6689, %v4740
      %v6691 = vpop.permute.xlu0 %6690
      %6694 = vset.pattern.permute.xlu0 0
      %6695 = vperm.xlu0 %6694, %v4741
      %v6696 = vpop.permute.xlu0 %6695
      %6699 = vset.pattern.permute.xlu0 0
      %6700 = vperm.xlu0 %6699, %v4742
      %v6701 = vpop.permute.xlu0 %6700
      %6704 = vset.pattern.permute.xlu0 0
      %6705 = vperm.xlu0 %6704, %v4743
      %v6706 = vpop.permute.xlu0 %6705
      %6709 = vset.pattern.permute.xlu0 0
      %6710 = vperm.xlu0 %6709, %v4744
      %v6711 = vpop.permute.xlu0 %6710
      %6714 = vset.pattern.permute.xlu0 0
      %6715 = vperm.xlu0 %6714, %v4745
      %v6716 = vpop.permute.xlu0 %6715
      %6719 = vset.pattern.permute.xlu0 0
      %6720 = vperm.xlu0 %6719, %v4746
      %v6721 = vpop.permute.xlu0 %6720
      %6724 = vset.pattern.permute.xlu0 0
      %6725 = vperm.xlu0 %6724, %v4747
      %v6726 = vpop.permute.xlu0 %6725
      %6729 = vset.pattern.permute.xlu0 0
      %6730 = vperm.xlu0 %6729, %v4748
      %v6731 = vpop.permute.xlu0 %6730
      %6734 = vset.pattern.permute.xlu0 0
      %6735 = vperm.xlu0 %6734, %v4749
      %v6736 = vpop.permute.xlu0 %6735
      %6739 = vset.pattern.permute.xlu0 0
      %6740 = vperm.xlu0 %6739, %v4750
      %v6741 = vpop.permute.xlu0 %6740
      %6744 = vset.pattern.permute.xlu0 0
      %6745 = vperm.xlu0 %6744, %v4751
      %v6746 = vpop.permute.xlu0 %6745
      %6749 = vset.pattern.permute.xlu0 0
      %6750 = vperm.xlu0 %6749, %v4752
      %v6751 = vpop.permute.xlu0 %6750
      %v6753 = vmul.f32 %v3953, %v4756
      %v6754 = vmul.f32 %v3954, %v4761
      %v6755 = vmul.f32 %v3955, %v4766
      %v6756 = vmul.f32 %v3956, %v4771
      %v6757 = vmul.f32 %v3957, %v4776
      %v6758 = vmul.f32 %v3958, %v4781
      %v6759 = vmul.f32 %v3959, %v4786
      %v6760 = vmul.f32 %v3960, %v4791
      %v6761 = vmul.f32 %v3961, %v4796
      %v6762 = vmul.f32 %v3962, %v4801
      %v6763 = vmul.f32 %v3963, %v4806
      %v6764 = vmul.f32 %v3964, %v4811
      %v6765 = vmul.f32 %v3965, %v4816
      %v6766 = vmul.f32 %v3966, %v4821
      %v6767 = vmul.f32 %v3967, %v4826
      %v6768 = vmul.f32 %v3968, %v4831
      %v6769 = vmul.f32 %v3969, %v4836
      %v6770 = vmul.f32 %v3970, %v4841
      %v6771 = vmul.f32 %v3971, %v4846
      %v6772 = vmul.f32 %v3972, %v4851
      %v6773 = vmul.f32 %v3973, %v4856
      %v6774 = vmul.f32 %v3974, %v4861
      %v6775 = vmul.f32 %v3975, %v4866
      %v6776 = vmul.f32 %v3976, %v4871
      %v6777 = vmul.f32 %v3977, %v4876
      %v6778 = vmul.f32 %v3978, %v4881
      %v6779 = vmul.f32 %v3979, %v4886
      %v6780 = vmul.f32 %v3980, %v4891
      %v6781 = vmul.f32 %v3981, %v4896
      %v6782 = vmul.f32 %v3982, %v4901
      %v6783 = vmul.f32 %v3983, %v4906
      %v6784 = vmul.f32 %v3984, %v4911
      %v6785 = vmul.f32 %v3985, %v4916
      %v6786 = vmul.f32 %v3986, %v4921
      %v6787 = vmul.f32 %v3987, %v4926
      %v6788 = vmul.f32 %v3988, %v4931
      %v6789 = vmul.f32 %v3989, %v4936
      %v6790 = vmul.f32 %v3990, %v4941
      %v6791 = vmul.f32 %v3991, %v4946
      %v6792 = vmul.f32 %v3992, %v4951
      %v6793 = vmul.f32 %v3993, %v4956
      %v6794 = vmul.f32 %v3994, %v4961
      %v6795 = vmul.f32 %v3995, %v4966
      %v6796 = vmul.f32 %v3996, %v4971
      %v6797 = vmul.f32 %v3997, %v4976
      %v6798 = vmul.f32 %v3998, %v4981
      %v6799 = vmul.f32 %v3999, %v4986
      %v6800 = vmul.f32 %v4000, %v4991
      %v6801 = vmul.f32 %v4001, %v4996
      %v6802 = vmul.f32 %v4002, %v5001
      %v6803 = vmul.f32 %v4003, %v5006
      %v6804 = vmul.f32 %v4004, %v5011
      %v6805 = vmul.f32 %v4005, %v5016
      %v6806 = vmul.f32 %v4006, %v5021
      %v6807 = vmul.f32 %v4007, %v5026
      %v6808 = vmul.f32 %v4008, %v5031
      %v6809 = vmul.f32 %v4009, %v5036
      %v6810 = vmul.f32 %v4010, %v5041
      %v6811 = vmul.f32 %v4011, %v5046
      %v6812 = vmul.f32 %v4012, %v5051
      %v6813 = vmul.f32 %v4013, %v5056
      %v6814 = vmul.f32 %v4014, %v5061
      %v6815 = vmul.f32 %v4015, %v5066
      %v6816 = vmul.f32 %v4016, %v5071
      %v6817 = vmul.f32 %v4017, %v5076
      %v6818 = vmul.f32 %v4018, %v5081
      %v6819 = vmul.f32 %v4019, %v5086
      %v6820 = vmul.f32 %v4020, %v5091
      %v6821 = vmul.f32 %v4021, %v5096
      %v6822 = vmul.f32 %v4022, %v5101
      %v6823 = vmul.f32 %v4023, %v5106
      %v6824 = vmul.f32 %v4024, %v5111
      %v6825 = vmul.f32 %v4025, %v5116
      %v6826 = vmul.f32 %v4026, %v5121
      %v6827 = vmul.f32 %v4027, %v5126
      %v6828 = vmul.f32 %v4028, %v5131
      %v6829 = vmul.f32 %v4029, %v5136
      %v6830 = vmul.f32 %v4030, %v5141
      %v6831 = vmul.f32 %v4031, %v5146
      %v6832 = vmul.f32 %v4032, %v5151
      %v6833 = vmul.f32 %v4033, %v5156
      %v6834 = vmul.f32 %v4034, %v5161
      %v6835 = vmul.f32 %v4035, %v5166
      %v6836 = vmul.f32 %v4036, %v5171
      %v6837 = vmul.f32 %v4037, %v5176
      %v6838 = vmul.f32 %v4038, %v5181
      %v6839 = vmul.f32 %v4039, %v5186
      %v6840 = vmul.f32 %v4040, %v5191
      %v6841 = vmul.f32 %v4041, %v5196
      %v6842 = vmul.f32 %v4042, %v5201
      %v6843 = vmul.f32 %v4043, %v5206
      %v6844 = vmul.f32 %v4044, %v5211
      %v6845 = vmul.f32 %v4045, %v5216
      %v6846 = vmul.f32 %v4046, %v5221
      %v6847 = vmul.f32 %v4047, %v5226
      %v6848 = vmul.f32 %v4048, %v5231
      %v6849 = vmul.f32 %v4049, %v5236
      %v6850 = vmul.f32 %v4050, %v5241
      %v6851 = vmul.f32 %v4051, %v5246
      %v6852 = vmul.f32 %v4052, %v5251
      %v6853 = vmul.f32 %v4053, %v5256
      %v6854 = vmul.f32 %v4054, %v5261
      %v6855 = vmul.f32 %v4055, %v5266
      %v6856 = vmul.f32 %v4056, %v5271
      %v6857 = vmul.f32 %v4057, %v5276
      %v6858 = vmul.f32 %v4058, %v5281
      %v6859 = vmul.f32 %v4059, %v5286
      %v6860 = vmul.f32 %v4060, %v5291
      %v6861 = vmul.f32 %v4061, %v5296
      %v6862 = vmul.f32 %v4062, %v5301
      %v6863 = vmul.f32 %v4063, %v5306
      %v6864 = vmul.f32 %v4064, %v5311
      %v6865 = vmul.f32 %v4065, %v5316
      %v6866 = vmul.f32 %v4066, %v5321
      %v6867 = vmul.f32 %v4067, %v5326
      %v6868 = vmul.f32 %v4068, %v5331
      %v6869 = vmul.f32 %v4069, %v5336
      %v6870 = vmul.f32 %v4070, %v5341
      %v6871 = vmul.f32 %v4071, %v5346
      %v6872 = vmul.f32 %v4072, %v5351
      %v6873 = vmul.f32 %v4073, %v5356
      %v6874 = vmul.f32 %v4074, %v5361
      %v6875 = vmul.f32 %v4075, %v5366
      %v6876 = vmul.f32 %v4076, %v5371
      %v6877 = vmul.f32 %v4077, %v5376
      %v6878 = vmul.f32 %v4078, %v5381
      %v6879 = vmul.f32 %v4079, %v5386
      %v6880 = vmul.f32 %v4080, %v5391
      %v6881 = vmul.f32 %v4081, %v5396
      %v6882 = vmul.f32 %v4082, %v5401
      %v6883 = vmul.f32 %v4083, %v5406
      %v6884 = vmul.f32 %v4084, %v5411
      %v6885 = vmul.f32 %v4085, %v5416
      %v6886 = vmul.f32 %v4086, %v5421
      %v6887 = vmul.f32 %v4087, %v5426
      %v6888 = vmul.f32 %v4088, %v5431
      %v6889 = vmul.f32 %v4089, %v5436
      %v6890 = vmul.f32 %v4090, %v5441
      %v6891 = vmul.f32 %v4091, %v5446
      %v6892 = vmul.f32 %v4092, %v5451
      %v6893 = vmul.f32 %v4093, %v5456
      %v6894 = vmul.f32 %v4094, %v5461
      %v6895 = vmul.f32 %v4095, %v5466
      %v6896 = vmul.f32 %v4096, %v5471
      %v6897 = vmul.f32 %v4097, %v5476
      %v6898 = vmul.f32 %v4098, %v5481
      %v6899 = vmul.f32 %v4099, %v5486
      %v6900 = vmul.f32 %v4100, %v5491
      %v6901 = vmul.f32 %v4101, %v5496
      %v6902 = vmul.f32 %v4102, %v5501
      %v6903 = vmul.f32 %v4103, %v5506
      %v6904 = vmul.f32 %v4104, %v5511
      %v6905 = vmul.f32 %v4105, %v5516
      %v6906 = vmul.f32 %v4106, %v5521
      %v6907 = vmul.f32 %v4107, %v5526
      %v6908 = vmul.f32 %v4108, %v5531
      %v6909 = vmul.f32 %v4109, %v5536
      %v6910 = vmul.f32 %v4110, %v5541
      %v6911 = vmul.f32 %v4111, %v5546
      %v6912 = vmul.f32 %v4112, %v5551
      %v6913 = vmul.f32 %v4113, %v5556
      %v6914 = vmul.f32 %v4114, %v5561
      %v6915 = vmul.f32 %v4115, %v5566
      %v6916 = vmul.f32 %v4116, %v5571
      %v6917 = vmul.f32 %v4117, %v5576
      %v6918 = vmul.f32 %v4118, %v5581
      %v6919 = vmul.f32 %v4119, %v5586
      %v6920 = vmul.f32 %v4120, %v5591
      %v6921 = vmul.f32 %v4121, %v5596
      %v6922 = vmul.f32 %v4122, %v5601
      %v6923 = vmul.f32 %v4123, %v5606
      %v6924 = vmul.f32 %v4124, %v5611
      %v6925 = vmul.f32 %v4125, %v5616
      %v6926 = vmul.f32 %v4126, %v5621
      %v6927 = vmul.f32 %v4127, %v5626
      %v6928 = vmul.f32 %v4128, %v5631
      %v6929 = vmul.f32 %v4129, %v5636
      %v6930 = vmul.f32 %v4130, %v5641
      %v6931 = vmul.f32 %v4131, %v5646
      %v6932 = vmul.f32 %v4132, %v5651
      %v6933 = vmul.f32 %v4133, %v5656
      %v6934 = vmul.f32 %v4134, %v5661
      %v6935 = vmul.f32 %v4135, %v5666
      %v6936 = vmul.f32 %v4136, %v5671
      %v6937 = vmul.f32 %v4137, %v5676
      %v6938 = vmul.f32 %v4138, %v5681
      %v6939 = vmul.f32 %v4139, %v5686
      %v6940 = vmul.f32 %v4140, %v5691
      %v6941 = vmul.f32 %v4141, %v5696
      %v6942 = vmul.f32 %v4142, %v5701
      %v6943 = vmul.f32 %v4143, %v5706
      %v6944 = vmul.f32 %v4144, %v5711
      %v6945 = vmul.f32 %v4145, %v5716
      %v6946 = vmul.f32 %v4146, %v5721
      %v6947 = vmul.f32 %v4147, %v5726
      %v6948 = vmul.f32 %v4148, %v5731
      %v6949 = vmul.f32 %v4149, %v5736
      %v6950 = vmul.f32 %v4150, %v5741
      %v6951 = vmul.f32 %v4151, %v5746
      %v6952 = vmul.f32 %v4152, %v5751
      %v6953 = vmul.f32 %v4153, %v5756
      %v6954 = vmul.f32 %v4154, %v5761
      %v6955 = vmul.f32 %v4155, %v5766
      %v6956 = vmul.f32 %v4156, %v5771
      %v6957 = vmul.f32 %v4157, %v5776
      %v6958 = vmul.f32 %v4158, %v5781
      %v6959 = vmul.f32 %v4159, %v5786
      %v6960 = vmul.f32 %v4160, %v5791
      %v6961 = vmul.f32 %v4161, %v5796
      %v6962 = vmul.f32 %v4162, %v5801
      %v6963 = vmul.f32 %v4163, %v5806
      %v6964 = vmul.f32 %v4164, %v5811
      %v6965 = vmul.f32 %v4165, %v5816
      %v6966 = vmul.f32 %v4166, %v5821
      %v6967 = vmul.f32 %v4167, %v5826
      %v6968 = vmul.f32 %v4168, %v5831
      %v6969 = vmul.f32 %v4169, %v5836
      %v6970 = vmul.f32 %v4170, %v5841
      %v6971 = vmul.f32 %v4171, %v5846
      %v6972 = vmul.f32 %v4172, %v5851
      %v6973 = vmul.f32 %v4173, %v5856
      %v6974 = vmul.f32 %v4174, %v5861
      %v6975 = vmul.f32 %v4175, %v5866
      %v6976 = vmul.f32 %v4176, %v5871
      %v6977 = vmul.f32 %v4177, %v5876
      %v6978 = vmul.f32 %v4178, %v5881
      %v6979 = vmul.f32 %v4179, %v5886
      %v6980 = vmul.f32 %v4180, %v5891
      %v6981 = vmul.f32 %v4181, %v5896
      %v6982 = vmul.f32 %v4182, %v5901
      %v6983 = vmul.f32 %v4183, %v5906
      %v6984 = vmul.f32 %v4184, %v5911
      %v6985 = vmul.f32 %v4185, %v5916
      %v6986 = vmul.f32 %v4186, %v5921
      %v6987 = vmul.f32 %v4187, %v5926
      %v6988 = vmul.f32 %v4188, %v5931
      %v6989 = vmul.f32 %v4189, %v5936
      %v6990 = vmul.f32 %v4190, %v5941
      %v6991 = vmul.f32 %v4191, %v5946
      %v6992 = vmul.f32 %v4192, %v5951
      %v6993 = vmul.f32 %v4193, %v5956
      %v6994 = vmul.f32 %v4194, %v5961
      %v6995 = vmul.f32 %v4195, %v5966
      %v6996 = vmul.f32 %v4196, %v5971
      %v6997 = vmul.f32 %v4197, %v5976
      %v6998 = vmul.f32 %v4198, %v5981
      %v6999 = vmul.f32 %v4199, %v5986
      %v7000 = vmul.f32 %v4200, %v5991
      %v7001 = vmul.f32 %v4201, %v5996
      %v7002 = vmul.f32 %v4202, %v6001
      %v7003 = vmul.f32 %v4203, %v6006
      %v7004 = vmul.f32 %v4204, %v6011
      %v7005 = vmul.f32 %v4205, %v6016
      %v7006 = vmul.f32 %v4206, %v6021
      %v7007 = vmul.f32 %v4207, %v6026
      %v7008 = vmul.f32 %v4208, %v6031
      %v7009 = vmul.f32 %v4209, %v6036
      %v7010 = vmul.f32 %v4210, %v6041
      %v7011 = vmul.f32 %v4211, %v6046
      %v7012 = vmul.f32 %v4212, %v6051
      %v7013 = vmul.f32 %v4213, %v6056
      %v7014 = vmul.f32 %v4214, %v6061
      %v7015 = vmul.f32 %v4215, %v6066
      %v7016 = vmul.f32 %v4216, %v6071
      %v7017 = vmul.f32 %v4217, %v6076
      %v7018 = vmul.f32 %v4218, %v6081
      %v7019 = vmul.f32 %v4219, %v6086
      %v7020 = vmul.f32 %v4220, %v6091
      %v7021 = vmul.f32 %v4221, %v6096
      %v7022 = vmul.f32 %v4222, %v6101
      %v7023 = vmul.f32 %v4223, %v6106
      %v7024 = vmul.f32 %v4224, %v6111
      %v7025 = vmul.f32 %v4225, %v6116
      %v7026 = vmul.f32 %v4226, %v6121
      %v7027 = vmul.f32 %v4227, %v6126
      %v7028 = vmul.f32 %v4228, %v6131
      %v7029 = vmul.f32 %v4229, %v6136
      %v7030 = vmul.f32 %v4230, %v6141
      %v7031 = vmul.f32 %v4231, %v6146
      %v7032 = vmul.f32 %v4232, %v6151
      %v7033 = vmul.f32 %v4233, %v6156
      %v7034 = vmul.f32 %v4234, %v6161
      %v7035 = vmul.f32 %v4235, %v6166
      %v7036 = vmul.f32 %v4236, %v6171
      %v7037 = vmul.f32 %v4237, %v6176
      %v7038 = vmul.f32 %v4238, %v6181
      %v7039 = vmul.f32 %v4239, %v6186
      %v7040 = vmul.f32 %v4240, %v6191
      %v7041 = vmul.f32 %v4241, %v6196
      %v7042 = vmul.f32 %v4242, %v6201
      %v7043 = vmul.f32 %v4243, %v6206
      %v7044 = vmul.f32 %v4244, %v6211
      %v7045 = vmul.f32 %v4245, %v6216
      %v7046 = vmul.f32 %v4246, %v6221
      %v7047 = vmul.f32 %v4247, %v6226
      %v7048 = vmul.f32 %v4248, %v6231
      %v7049 = vmul.f32 %v4249, %v6236
      %v7050 = vmul.f32 %v4250, %v6241
      %v7051 = vmul.f32 %v4251, %v6246
      %v7052 = vmul.f32 %v4252, %v6251
      %v7053 = vmul.f32 %v4253, %v6256
      %v7054 = vmul.f32 %v4254, %v6261
      %v7055 = vmul.f32 %v4255, %v6266
      %v7056 = vmul.f32 %v4256, %v6271
      %v7057 = vmul.f32 %v4257, %v6276
      %v7058 = vmul.f32 %v4258, %v6281
      %v7059 = vmul.f32 %v4259, %v6286
      %v7060 = vmul.f32 %v4260, %v6291
      %v7061 = vmul.f32 %v4261, %v6296
      %v7062 = vmul.f32 %v4262, %v6301
      %v7063 = vmul.f32 %v4263, %v6306
      %v7064 = vmul.f32 %v4264, %v6311
      %v7065 = vmul.f32 %v4265, %v6316
      %v7066 = vmul.f32 %v4266, %v6321
      %v7067 = vmul.f32 %v4267, %v6326
      %v7068 = vmul.f32 %v4268, %v6331
      %v7069 = vmul.f32 %v4269, %v6336
      %v7070 = vmul.f32 %v4270, %v6341
      %v7071 = vmul.f32 %v4271, %v6346
      %v7072 = vmul.f32 %v4272, %v6351
      %v7073 = vmul.f32 %v4273, %v6356
      %v7074 = vmul.f32 %v4274, %v6361
      %v7075 = vmul.f32 %v4275, %v6366
      %v7076 = vmul.f32 %v4276, %v6371
      %v7077 = vmul.f32 %v4277, %v6376
      %v7078 = vmul.f32 %v4278, %v6381
      %v7079 = vmul.f32 %v4279, %v6386
      %v7080 = vmul.f32 %v4280, %v6391
      %v7081 = vmul.f32 %v4281, %v6396
      %v7082 = vmul.f32 %v4282, %v6401
      %v7083 = vmul.f32 %v4283, %v6406
      %v7084 = vmul.f32 %v4284, %v6411
      %v7085 = vmul.f32 %v4285, %v6416
      %v7086 = vmul.f32 %v4286, %v6421
      %v7087 = vmul.f32 %v4287, %v6426
      %v7088 = vmul.f32 %v4288, %v6431
      %v7089 = vmul.f32 %v4289, %v6436
      %v7090 = vmul.f32 %v4290, %v6441
      %v7091 = vmul.f32 %v4291, %v6446
      %v7092 = vmul.f32 %v4292, %v6451
      %v7093 = vmul.f32 %v4293, %v6456
      %v7094 = vmul.f32 %v4294, %v6461
      %v7095 = vmul.f32 %v4295, %v6466
      %v7096 = vmul.f32 %v4296, %v6471
      %v7097 = vmul.f32 %v4297, %v6476
      %v7098 = vmul.f32 %v4298, %v6481
      %v7099 = vmul.f32 %v4299, %v6486
      %v7100 = vmul.f32 %v4300, %v6491
      %v7101 = vmul.f32 %v4301, %v6496
      %v7102 = vmul.f32 %v4302, %v6501
      %v7103 = vmul.f32 %v4303, %v6506
      %v7104 = vmul.f32 %v4304, %v6511
      %v7105 = vmul.f32 %v4305, %v6516
      %v7106 = vmul.f32 %v4306, %v6521
      %v7107 = vmul.f32 %v4307, %v6526
      %v7108 = vmul.f32 %v4308, %v6531
      %v7109 = vmul.f32 %v4309, %v6536
      %v7110 = vmul.f32 %v4310, %v6541
      %v7111 = vmul.f32 %v4311, %v6546
      %v7112 = vmul.f32 %v4312, %v6551
      %v7113 = vmul.f32 %v4313, %v6556
      %v7114 = vmul.f32 %v4314, %v6561
      %v7115 = vmul.f32 %v4315, %v6566
      %v7116 = vmul.f32 %v4316, %v6571
      %v7117 = vmul.f32 %v4317, %v6576
      %v7118 = vmul.f32 %v4318, %v6581
      %v7119 = vmul.f32 %v4319, %v6586
      %v7120 = vmul.f32 %v4320, %v6591
      %v7121 = vmul.f32 %v4321, %v6596
      %v7122 = vmul.f32 %v4322, %v6601
      %v7123 = vmul.f32 %v4323, %v6606
      %v7124 = vmul.f32 %v4324, %v6611
      %v7125 = vmul.f32 %v4325, %v6616
      %v7126 = vmul.f32 %v4326, %v6621
      %v7127 = vmul.f32 %v4327, %v6626
      %v7128 = vmul.f32 %v4328, %v6631
      %v7129 = vmul.f32 %v4329, %v6636
      %v7130 = vmul.f32 %v4330, %v6641
      %v7131 = vmul.f32 %v4331, %v6646
      %v7132 = vmul.f32 %v4332, %v6651
      %v7133 = vmul.f32 %v4333, %v6656
      %v7134 = vmul.f32 %v4334, %v6661
      %v7135 = vmul.f32 %v4335, %v6666
      %v7136 = vmul.f32 %v4336, %v6671
      %v7137 = vmul.f32 %v4337, %v6676
      %v7138 = vmul.f32 %v4338, %v6681
      %v7139 = vmul.f32 %v4339, %v6686
      %v7140 = vmul.f32 %v4340, %v6691
      %v7141 = vmul.f32 %v4341, %v6696
      %v7142 = vmul.f32 %v4342, %v6701
      %v7143 = vmul.f32 %v4343, %v6706
      %v7144 = vmul.f32 %v4344, %v6711
      %v7145 = vmul.f32 %v4345, %v6716
      %v7146 = vmul.f32 %v4346, %v6721
      %v7147 = vmul.f32 %v4347, %v6726
      %v7148 = vmul.f32 %v4348, %v6731
      %v7149 = vmul.f32 %v4349, %v6736
      %v7150 = vmul.f32 %v4350, %v6741
      %v7151 = vmul.f32 %v4351, %v6746
      %v7152 = vmul.f32 %v4352, %v6751
      %v7153 = vpack.c.bf16 %v6754, %v6753
      %v7154 = vpack.c.bf16 %v6756, %v6755
      %v7155 = vpack.c.bf16 %v6758, %v6757
      %v7156 = vpack.c.bf16 %v6760, %v6759
      %v7157 = vpack.c.bf16 %v6762, %v6761
      %v7158 = vpack.c.bf16 %v6764, %v6763
      %v7159 = vpack.c.bf16 %v6766, %v6765
      %v7160 = vpack.c.bf16 %v6768, %v6767
      %v7161 = vpack.c.bf16 %v6770, %v6769
      %v7162 = vpack.c.bf16 %v6772, %v6771
      %v7163 = vpack.c.bf16 %v6774, %v6773
      %v7164 = vpack.c.bf16 %v6776, %v6775
      %v7165 = vpack.c.bf16 %v6778, %v6777
      %v7166 = vpack.c.bf16 %v6780, %v6779
      %v7167 = vpack.c.bf16 %v6782, %v6781
      %v7168 = vpack.c.bf16 %v6784, %v6783
      %v7169 = vpack.c.bf16 %v6786, %v6785
      %v7170 = vpack.c.bf16 %v6788, %v6787
      %v7171 = vpack.c.bf16 %v6790, %v6789
      %v7172 = vpack.c.bf16 %v6792, %v6791
      %v7173 = vpack.c.bf16 %v6794, %v6793
      %v7174 = vpack.c.bf16 %v6796, %v6795
      %v7175 = vpack.c.bf16 %v6798, %v6797
      %v7176 = vpack.c.bf16 %v6800, %v6799
      %v7177 = vpack.c.bf16 %v6802, %v6801
      %v7178 = vpack.c.bf16 %v6804, %v6803
      %v7179 = vpack.c.bf16 %v6806, %v6805
      %v7180 = vpack.c.bf16 %v6808, %v6807
      %v7181 = vpack.c.bf16 %v6810, %v6809
      %v7182 = vpack.c.bf16 %v6812, %v6811
      %v7183 = vpack.c.bf16 %v6814, %v6813
      %v7184 = vpack.c.bf16 %v6816, %v6815
      %v7185 = vpack.c.bf16 %v6818, %v6817
      %v7186 = vpack.c.bf16 %v6820, %v6819
      %v7187 = vpack.c.bf16 %v6822, %v6821
      %v7188 = vpack.c.bf16 %v6824, %v6823
      %v7189 = vpack.c.bf16 %v6826, %v6825
      %v7190 = vpack.c.bf16 %v6828, %v6827
      %v7191 = vpack.c.bf16 %v6830, %v6829
      %v7192 = vpack.c.bf16 %v6832, %v6831
      %v7193 = vpack.c.bf16 %v6834, %v6833
      %v7194 = vpack.c.bf16 %v6836, %v6835
      %v7195 = vpack.c.bf16 %v6838, %v6837
      %v7196 = vpack.c.bf16 %v6840, %v6839
      %v7197 = vpack.c.bf16 %v6842, %v6841
      %v7198 = vpack.c.bf16 %v6844, %v6843
      %v7199 = vpack.c.bf16 %v6846, %v6845
      %v7200 = vpack.c.bf16 %v6848, %v6847
      %v7201 = vpack.c.bf16 %v6850, %v6849
      %v7202 = vpack.c.bf16 %v6852, %v6851
      %v7203 = vpack.c.bf16 %v6854, %v6853
      %v7204 = vpack.c.bf16 %v6856, %v6855
      %v7205 = vpack.c.bf16 %v6858, %v6857
      %v7206 = vpack.c.bf16 %v6860, %v6859
      %v7207 = vpack.c.bf16 %v6862, %v6861
      %v7208 = vpack.c.bf16 %v6864, %v6863
      %v7209 = vpack.c.bf16 %v6866, %v6865
      %v7210 = vpack.c.bf16 %v6868, %v6867
      %v7211 = vpack.c.bf16 %v6870, %v6869
      %v7212 = vpack.c.bf16 %v6872, %v6871
      %v7213 = vpack.c.bf16 %v6874, %v6873
      %v7214 = vpack.c.bf16 %v6876, %v6875
      %v7215 = vpack.c.bf16 %v6878, %v6877
      %v7216 = vpack.c.bf16 %v6880, %v6879
      %v7217 = vpack.c.bf16 %v6882, %v6881
      %v7218 = vpack.c.bf16 %v6884, %v6883
      %v7219 = vpack.c.bf16 %v6886, %v6885
      %v7220 = vpack.c.bf16 %v6888, %v6887
      %v7221 = vpack.c.bf16 %v6890, %v6889
      %v7222 = vpack.c.bf16 %v6892, %v6891
      %v7223 = vpack.c.bf16 %v6894, %v6893
      %v7224 = vpack.c.bf16 %v6896, %v6895
      %v7225 = vpack.c.bf16 %v6898, %v6897
      %v7226 = vpack.c.bf16 %v6900, %v6899
      %v7227 = vpack.c.bf16 %v6902, %v6901
      %v7228 = vpack.c.bf16 %v6904, %v6903
      %v7229 = vpack.c.bf16 %v6906, %v6905
      %v7230 = vpack.c.bf16 %v6908, %v6907
      %v7231 = vpack.c.bf16 %v6910, %v6909
      %v7232 = vpack.c.bf16 %v6912, %v6911
      %v7233 = vpack.c.bf16 %v6914, %v6913
      %v7234 = vpack.c.bf16 %v6916, %v6915
      %v7235 = vpack.c.bf16 %v6918, %v6917
      %v7236 = vpack.c.bf16 %v6920, %v6919
      %v7237 = vpack.c.bf16 %v6922, %v6921
      %v7238 = vpack.c.bf16 %v6924, %v6923
      %v7239 = vpack.c.bf16 %v6926, %v6925
      %v7240 = vpack.c.bf16 %v6928, %v6927
      %v7241 = vpack.c.bf16 %v6930, %v6929
      %v7242 = vpack.c.bf16 %v6932, %v6931
      %v7243 = vpack.c.bf16 %v6934, %v6933
      %v7244 = vpack.c.bf16 %v6936, %v6935
      %v7245 = vpack.c.bf16 %v6938, %v6937
      %v7246 = vpack.c.bf16 %v6940, %v6939
      %v7247 = vpack.c.bf16 %v6942, %v6941
      %v7248 = vpack.c.bf16 %v6944, %v6943
      %v7249 = vpack.c.bf16 %v6946, %v6945
      %v7250 = vpack.c.bf16 %v6948, %v6947
      %v7251 = vpack.c.bf16 %v6950, %v6949
      %v7252 = vpack.c.bf16 %v6952, %v6951
      %v7253 = vpack.c.bf16 %v6954, %v6953
      %v7254 = vpack.c.bf16 %v6956, %v6955
      %v7255 = vpack.c.bf16 %v6958, %v6957
      %v7256 = vpack.c.bf16 %v6960, %v6959
      %v7257 = vpack.c.bf16 %v6962, %v6961
      %v7258 = vpack.c.bf16 %v6964, %v6963
      %v7259 = vpack.c.bf16 %v6966, %v6965
      %v7260 = vpack.c.bf16 %v6968, %v6967
      %v7261 = vpack.c.bf16 %v6970, %v6969
      %v7262 = vpack.c.bf16 %v6972, %v6971
      %v7263 = vpack.c.bf16 %v6974, %v6973
      %v7264 = vpack.c.bf16 %v6976, %v6975
      %v7265 = vpack.c.bf16 %v6978, %v6977
      %v7266 = vpack.c.bf16 %v6980, %v6979
      %v7267 = vpack.c.bf16 %v6982, %v6981
      %v7268 = vpack.c.bf16 %v6984, %v6983
      %v7269 = vpack.c.bf16 %v6986, %v6985
      %v7270 = vpack.c.bf16 %v6988, %v6987
      %v7271 = vpack.c.bf16 %v6990, %v6989
      %v7272 = vpack.c.bf16 %v6992, %v6991
      %v7273 = vpack.c.bf16 %v6994, %v6993
      %v7274 = vpack.c.bf16 %v6996, %v6995
      %v7275 = vpack.c.bf16 %v6998, %v6997
      %v7276 = vpack.c.bf16 %v7000, %v6999
      %v7277 = vpack.c.bf16 %v7002, %v7001
      %v7278 = vpack.c.bf16 %v7004, %v7003
      %v7279 = vpack.c.bf16 %v7006, %v7005
      %v7280 = vpack.c.bf16 %v7008, %v7007
      %v7281 = vpack.c.bf16 %v7010, %v7009
      %v7282 = vpack.c.bf16 %v7012, %v7011
      %v7283 = vpack.c.bf16 %v7014, %v7013
      %v7284 = vpack.c.bf16 %v7016, %v7015
      %v7285 = vpack.c.bf16 %v7018, %v7017
      %v7286 = vpack.c.bf16 %v7020, %v7019
      %v7287 = vpack.c.bf16 %v7022, %v7021
      %v7288 = vpack.c.bf16 %v7024, %v7023
      %v7289 = vpack.c.bf16 %v7026, %v7025
      %v7290 = vpack.c.bf16 %v7028, %v7027
      %v7291 = vpack.c.bf16 %v7030, %v7029
      %v7292 = vpack.c.bf16 %v7032, %v7031
      %v7293 = vpack.c.bf16 %v7034, %v7033
      %v7294 = vpack.c.bf16 %v7036, %v7035
      %v7295 = vpack.c.bf16 %v7038, %v7037
      %v7296 = vpack.c.bf16 %v7040, %v7039
      %v7297 = vpack.c.bf16 %v7042, %v7041
      %v7298 = vpack.c.bf16 %v7044, %v7043
      %v7299 = vpack.c.bf16 %v7046, %v7045
      %v7300 = vpack.c.bf16 %v7048, %v7047
      %v7301 = vpack.c.bf16 %v7050, %v7049
      %v7302 = vpack.c.bf16 %v7052, %v7051
      %v7303 = vpack.c.bf16 %v7054, %v7053
      %v7304 = vpack.c.bf16 %v7056, %v7055
      %v7305 = vpack.c.bf16 %v7058, %v7057
      %v7306 = vpack.c.bf16 %v7060, %v7059
      %v7307 = vpack.c.bf16 %v7062, %v7061
      %v7308 = vpack.c.bf16 %v7064, %v7063
      %v7309 = vpack.c.bf16 %v7066, %v7065
      %v7310 = vpack.c.bf16 %v7068, %v7067
      %v7311 = vpack.c.bf16 %v7070, %v7069
      %v7312 = vpack.c.bf16 %v7072, %v7071
      %v7313 = vpack.c.bf16 %v7074, %v7073
      %v7314 = vpack.c.bf16 %v7076, %v7075
      %v7315 = vpack.c.bf16 %v7078, %v7077
      %v7316 = vpack.c.bf16 %v7080, %v7079
      %v7317 = vpack.c.bf16 %v7082, %v7081
      %v7318 = vpack.c.bf16 %v7084, %v7083
      %v7319 = vpack.c.bf16 %v7086, %v7085
      %v7320 = vpack.c.bf16 %v7088, %v7087
      %v7321 = vpack.c.bf16 %v7090, %v7089
      %v7322 = vpack.c.bf16 %v7092, %v7091
      %v7323 = vpack.c.bf16 %v7094, %v7093
      %v7324 = vpack.c.bf16 %v7096, %v7095
      %v7325 = vpack.c.bf16 %v7098, %v7097
      %v7326 = vpack.c.bf16 %v7100, %v7099
      %v7327 = vpack.c.bf16 %v7102, %v7101
      %v7328 = vpack.c.bf16 %v7104, %v7103
      %v7329 = vpack.c.bf16 %v7106, %v7105
      %v7330 = vpack.c.bf16 %v7108, %v7107
      %v7331 = vpack.c.bf16 %v7110, %v7109
      %v7332 = vpack.c.bf16 %v7112, %v7111
      %v7333 = vpack.c.bf16 %v7114, %v7113
      %v7334 = vpack.c.bf16 %v7116, %v7115
      %v7335 = vpack.c.bf16 %v7118, %v7117
      %v7336 = vpack.c.bf16 %v7120, %v7119
      %v7337 = vpack.c.bf16 %v7122, %v7121
      %v7338 = vpack.c.bf16 %v7124, %v7123
      %v7339 = vpack.c.bf16 %v7126, %v7125
      %v7340 = vpack.c.bf16 %v7128, %v7127
      %v7341 = vpack.c.bf16 %v7130, %v7129
      %v7342 = vpack.c.bf16 %v7132, %v7131
      %v7343 = vpack.c.bf16 %v7134, %v7133
      %v7344 = vpack.c.bf16 %v7136, %v7135
      %v7345 = vpack.c.bf16 %v7138, %v7137
      %v7346 = vpack.c.bf16 %v7140, %v7139
      %v7347 = vpack.c.bf16 %v7142, %v7141
      %v7348 = vpack.c.bf16 %v7144, %v7143
      %v7349 = vpack.c.bf16 %v7146, %v7145
      %v7350 = vpack.c.bf16 %v7148, %v7147
      %v7351 = vpack.c.bf16 %v7150, %v7149
      %v7352 = vpack.c.bf16 %v7152, %v7151
      %vm7353 = vcmask 261120
      %7354 = vst.msk [vmem:[#allocation2] sm:$0xff] %vm7353, %v7153
      %7355 = vst.msk [vmem:[#allocation2 + $0x8] sm:$0xff] %vm7353, %v7154
      %7356 = vst.msk [vmem:[#allocation2 + $0x10] sm:$0xff] %vm7353, %v7155
      %7357 = vst.msk [vmem:[#allocation2 + $0x18] sm:$0xff] %vm7353, %v7156
      %7358 = vst.msk [vmem:[#allocation2 + $0x20] sm:$0xff] %vm7353, %v7157
      %7359 = vst.msk [vmem:[#allocation2 + $0x28] sm:$0xff] %vm7353, %v7158
      %7360 = vst.msk [vmem:[#allocation2 + $0x30] sm:$0xff] %vm7353, %v7159
      %7361 = vst.msk [vmem:[#allocation2 + $0x38] sm:$0xff] %vm7353, %v7160
      %7362 = vst.msk [vmem:[#allocation2 + $0x40] sm:$0xff] %vm7353, %v7161
      %7363 = vst.msk [vmem:[#allocation2 + $0x48] sm:$0xff] %vm7353, %v7162
      %7364 = vst.msk [vmem:[#allocation2 + $0x50] sm:$0xff] %vm7353, %v7163
      %7365 = vst.msk [vmem:[#allocation2 + $0x58] sm:$0xff] %vm7353, %v7164
      %7366 = vst.msk [vmem:[#allocation2 + $0x60] sm:$0xff] %vm7353, %v7165
      %7367 = vst.msk [vmem:[#allocation2 + $0x68] sm:$0xff] %vm7353, %v7166
      %7368 = vst.msk [vmem:[#allocation2 + $0x70] sm:$0xff] %vm7353, %v7167
      %7369 = vst.msk [vmem:[#allocation2 + $0x78] sm:$0xff] %vm7353, %v7168
      %7370 = vst.msk [vmem:[#allocation2 + $0x80] sm:$0xff] %vm7353, %v7169
      %7371 = vst.msk [vmem:[#allocation2 + $0x88] sm:$0xff] %vm7353, %v7170
      %7372 = vst.msk [vmem:[#allocation2 + $0x90] sm:$0xff] %vm7353, %v7171
      %7373 = vst.msk [vmem:[#allocation2 + $0x98] sm:$0xff] %vm7353, %v7172
      %7374 = vst.msk [vmem:[#allocation2 + $0xa0] sm:$0xff] %vm7353, %v7173
      %7375 = vst.msk [vmem:[#allocation2 + $0xa8] sm:$0xff] %vm7353, %v7174
      %7376 = vst.msk [vmem:[#allocation2 + $0xb0] sm:$0xff] %vm7353, %v7175
      %7377 = vst.msk [vmem:[#allocation2 + $0xb8] sm:$0xff] %vm7353, %v7176
      %7378 = vst.msk [vmem:[#allocation2 + $0xc0] sm:$0xff] %vm7353, %v7177
      %7379 = vst.msk [vmem:[#allocation2 + $0xc8] sm:$0xff] %vm7353, %v7178
      %7380 = vst.msk [vmem:[#allocation2 + $0xd0] sm:$0xff] %vm7353, %v7179
      %7381 = vst.msk [vmem:[#allocation2 + $0xd8] sm:$0xff] %vm7353, %v7180
      %7382 = vst.msk [vmem:[#allocation2 + $0xe0] sm:$0xff] %vm7353, %v7181
      %7383 = vst.msk [vmem:[#allocation2 + $0xe8] sm:$0xff] %vm7353, %v7182
      %7384 = vst.msk [vmem:[#allocation2 + $0xf0] sm:$0xff] %vm7353, %v7183
      %7385 = vst.msk [vmem:[#allocation2 + $0xf8] sm:$0xff] %vm7353, %v7184
      %7386 = vst.msk [vmem:[#allocation2 + $0x100] sm:$0xff] %vm7353, %v7185
      %7387 = vst.msk [vmem:[#allocation2 + $0x108] sm:$0xff] %vm7353, %v7186
      %7388 = vst.msk [vmem:[#allocation2 + $0x110] sm:$0xff] %vm7353, %v7187
      %7389 = vst.msk [vmem:[#allocation2 + $0x118] sm:$0xff] %vm7353, %v7188
      %7390 = vst.msk [vmem:[#allocation2 + $0x120] sm:$0xff] %vm7353, %v7189
      %7391 = vst.msk [vmem:[#allocation2 + $0x128] sm:$0xff] %vm7353, %v7190
      %7392 = vst.msk [vmem:[#allocation2 + $0x130] sm:$0xff] %vm7353, %v7191
      %7393 = vst.msk [vmem:[#allocation2 + $0x138] sm:$0xff] %vm7353, %v7192
      %7394 = vst.msk [vmem:[#allocation2 + $0x140] sm:$0xff] %vm7353, %v7193
      %7395 = vst.msk [vmem:[#allocation2 + $0x148] sm:$0xff] %vm7353, %v7194
      %7396 = vst.msk [vmem:[#allocation2 + $0x150] sm:$0xff] %vm7353, %v7195
      %7397 = vst.msk [vmem:[#allocation2 + $0x158] sm:$0xff] %vm7353, %v7196
      %7398 = vst.msk [vmem:[#allocation2 + $0x160] sm:$0xff] %vm7353, %v7197
      %7399 = vst.msk [vmem:[#allocation2 + $0x168] sm:$0xff] %vm7353, %v7198
      %7400 = vst.msk [vmem:[#allocation2 + $0x170] sm:$0xff] %vm7353, %v7199
      %7401 = vst.msk [vmem:[#allocation2 + $0x178] sm:$0xff] %vm7353, %v7200
      %7402 = vst.msk [vmem:[#allocation2 + $0x180] sm:$0xff] %vm7353, %v7201
      %7403 = vst.msk [vmem:[#allocation2 + $0x188] sm:$0xff] %vm7353, %v7202
      %7404 = vst.msk [vmem:[#allocation2 + $0x190] sm:$0xff] %vm7353, %v7203
      %7405 = vst.msk [vmem:[#allocation2 + $0x198] sm:$0xff] %vm7353, %v7204
      %7406 = vst.msk [vmem:[#allocation2 + $0x1a0] sm:$0xff] %vm7353, %v7205
      %7407 = vst.msk [vmem:[#allocation2 + $0x1a8] sm:$0xff] %vm7353, %v7206
      %7408 = vst.msk [vmem:[#allocation2 + $0x1b0] sm:$0xff] %vm7353, %v7207
      %7409 = vst.msk [vmem:[#allocation2 + $0x1b8] sm:$0xff] %vm7353, %v7208
      %7410 = vst.msk [vmem:[#allocation2 + $0x1c0] sm:$0xff] %vm7353, %v7209
      %7411 = vst.msk [vmem:[#allocation2 + $0x1c8] sm:$0xff] %vm7353, %v7210
      %7412 = vst.msk [vmem:[#allocation2 + $0x1d0] sm:$0xff] %vm7353, %v7211
      %7413 = vst.msk [vmem:[#allocation2 + $0x1d8] sm:$0xff] %vm7353, %v7212
      %7414 = vst.msk [vmem:[#allocation2 + $0x1e0] sm:$0xff] %vm7353, %v7213
      %7415 = vst.msk [vmem:[#allocation2 + $0x1e8] sm:$0xff] %vm7353, %v7214
      %7416 = vst.msk [vmem:[#allocation2 + $0x1f0] sm:$0xff] %vm7353, %v7215
      %7417 = vst.msk [vmem:[#allocation2 + $0x1f8] sm:$0xff] %vm7353, %v7216
      %7418 = vst.msk [vmem:[#allocation2 + $0x200] sm:$0xff] %vm7353, %v7217
      %7419 = vst.msk [vmem:[#allocation2 + $0x208] sm:$0xff] %vm7353, %v7218
      %7420 = vst.msk [vmem:[#allocation2 + $0x210] sm:$0xff] %vm7353, %v7219
      %7421 = vst.msk [vmem:[#allocation2 + $0x218] sm:$0xff] %vm7353, %v7220
      %7422 = vst.msk [vmem:[#allocation2 + $0x220] sm:$0xff] %vm7353, %v7221
      %7423 = vst.msk [vmem:[#allocation2 + $0x228] sm:$0xff] %vm7353, %v7222
      %7424 = vst.msk [vmem:[#allocation2 + $0x230] sm:$0xff] %vm7353, %v7223
      %7425 = vst.msk [vmem:[#allocation2 + $0x238] sm:$0xff] %vm7353, %v7224
      %7426 = vst.msk [vmem:[#allocation2 + $0x240] sm:$0xff] %vm7353, %v7225
      %7427 = vst.msk [vmem:[#allocation2 + $0x248] sm:$0xff] %vm7353, %v7226
      %7428 = vst.msk [vmem:[#allocation2 + $0x250] sm:$0xff] %vm7353, %v7227
      %7429 = vst.msk [vmem:[#allocation2 + $0x258] sm:$0xff] %vm7353, %v7228
      %7430 = vst.msk [vmem:[#allocation2 + $0x260] sm:$0xff] %vm7353, %v7229
      %7431 = vst.msk [vmem:[#allocation2 + $0x268] sm:$0xff] %vm7353, %v7230
      %7432 = vst.msk [vmem:[#allocation2 + $0x270] sm:$0xff] %vm7353, %v7231
      %7433 = vst.msk [vmem:[#allocation2 + $0x278] sm:$0xff] %vm7353, %v7232
      %7434 = vst.msk [vmem:[#allocation2 + $0x280] sm:$0xff] %vm7353, %v7233
      %7435 = vst.msk [vmem:[#allocation2 + $0x288] sm:$0xff] %vm7353, %v7234
      %7436 = vst.msk [vmem:[#allocation2 + $0x290] sm:$0xff] %vm7353, %v7235
      %7437 = vst.msk [vmem:[#allocation2 + $0x298] sm:$0xff] %vm7353, %v7236
      %7438 = vst.msk [vmem:[#allocation2 + $0x2a0] sm:$0xff] %vm7353, %v7237
      %7439 = vst.msk [vmem:[#allocation2 + $0x2a8] sm:$0xff] %vm7353, %v7238
      %7440 = vst.msk [vmem:[#allocation2 + $0x2b0] sm:$0xff] %vm7353, %v7239
      %7441 = vst.msk [vmem:[#allocation2 + $0x2b8] sm:$0xff] %vm7353, %v7240
      %7442 = vst.msk [vmem:[#allocation2 + $0x2c0] sm:$0xff] %vm7353, %v7241
      %7443 = vst.msk [vmem:[#allocation2 + $0x2c8] sm:$0xff] %vm7353, %v7242
      %7444 = vst.msk [vmem:[#allocation2 + $0x2d0] sm:$0xff] %vm7353, %v7243
      %7445 = vst.msk [vmem:[#allocation2 + $0x2d8] sm:$0xff] %vm7353, %v7244
      %7446 = vst.msk [vmem:[#allocation2 + $0x2e0] sm:$0xff] %vm7353, %v7245
      %7447 = vst.msk [vmem:[#allocation2 + $0x2e8] sm:$0xff] %vm7353, %v7246
      %7448 = vst.msk [vmem:[#allocation2 + $0x2f0] sm:$0xff] %vm7353, %v7247
      %7449 = vst.msk [vmem:[#allocation2 + $0x2f8] sm:$0xff] %vm7353, %v7248
      %7450 = vst.msk [vmem:[#allocation2 + $0x300] sm:$0xff] %vm7353, %v7249
      %7451 = vst.msk [vmem:[#allocation2 + $0x308] sm:$0xff] %vm7353, %v7250
      %7452 = vst.msk [vmem:[#allocation2 + $0x310] sm:$0xff] %vm7353, %v7251
      %7453 = vst.msk [vmem:[#allocation2 + $0x318] sm:$0xff] %vm7353, %v7252
      %7454 = vst.msk [vmem:[#allocation2 + $0x320] sm:$0xff] %vm7353, %v7253
      %7455 = vst.msk [vmem:[#allocation2 + $0x328] sm:$0xff] %vm7353, %v7254
      %7456 = vst.msk [vmem:[#allocation2 + $0x330] sm:$0xff] %vm7353, %v7255
      %7457 = vst.msk [vmem:[#allocation2 + $0x338] sm:$0xff] %vm7353, %v7256
      %7458 = vst.msk [vmem:[#allocation2 + $0x340] sm:$0xff] %vm7353, %v7257
      %7459 = vst.msk [vmem:[#allocation2 + $0x348] sm:$0xff] %vm7353, %v7258
      %7460 = vst.msk [vmem:[#allocation2 + $0x350] sm:$0xff] %vm7353, %v7259
      %7461 = vst.msk [vmem:[#allocation2 + $0x358] sm:$0xff] %vm7353, %v7260
      %7462 = vst.msk [vmem:[#allocation2 + $0x360] sm:$0xff] %vm7353, %v7261
      %7463 = vst.msk [vmem:[#allocation2 + $0x368] sm:$0xff] %vm7353, %v7262
      %7464 = vst.msk [vmem:[#allocation2 + $0x370] sm:$0xff] %vm7353, %v7263
      %7465 = vst.msk [vmem:[#allocation2 + $0x378] sm:$0xff] %vm7353, %v7264
      %7466 = vst.msk [vmem:[#allocation2 + $0x380] sm:$0xff] %vm7353, %v7265
      %7467 = vst.msk [vmem:[#allocation2 + $0x388] sm:$0xff] %vm7353, %v7266
      %7468 = vst.msk [vmem:[#allocation2 + $0x390] sm:$0xff] %vm7353, %v7267
      %7469 = vst.msk [vmem:[#allocation2 + $0x398] sm:$0xff] %vm7353, %v7268
      %7470 = vst.msk [vmem:[#allocation2 + $0x3a0] sm:$0xff] %vm7353, %v7269
      %7471 = vst.msk [vmem:[#allocation2 + $0x3a8] sm:$0xff] %vm7353, %v7270
      %7472 = vst.msk [vmem:[#allocation2 + $0x3b0] sm:$0xff] %vm7353, %v7271
      %7473 = vst.msk [vmem:[#allocation2 + $0x3b8] sm:$0xff] %vm7353, %v7272
      %7474 = vst.msk [vmem:[#allocation2 + $0x3c0] sm:$0xff] %vm7353, %v7273
      %7475 = vst.msk [vmem:[#allocation2 + $0x3c8] sm:$0xff] %vm7353, %v7274
      %7476 = vst.msk [vmem:[#allocation2 + $0x3d0] sm:$0xff] %vm7353, %v7275
      %7477 = vst.msk [vmem:[#allocation2 + $0x3d8] sm:$0xff] %vm7353, %v7276
      %7478 = vst.msk [vmem:[#allocation2 + $0x3e0] sm:$0xff] %vm7353, %v7277
      %7479 = vst.msk [vmem:[#allocation2 + $0x3e8] sm:$0xff] %vm7353, %v7278
      %7480 = vst.msk [vmem:[#allocation2 + $0x3f0] sm:$0xff] %vm7353, %v7279
      %7481 = vst.msk [vmem:[#allocation2 + $0x3f8] sm:$0xff] %vm7353, %v7280
      %7482 = vst.msk [vmem:[#allocation2 + $0x400] sm:$0xff] %vm7353, %v7281
      %7483 = vst.msk [vmem:[#allocation2 + $0x408] sm:$0xff] %vm7353, %v7282
      %7484 = vst.msk [vmem:[#allocation2 + $0x410] sm:$0xff] %vm7353, %v7283
      %7485 = vst.msk [vmem:[#allocation2 + $0x418] sm:$0xff] %vm7353, %v7284
      %7486 = vst.msk [vmem:[#allocation2 + $0x420] sm:$0xff] %vm7353, %v7285
      %7487 = vst.msk [vmem:[#allocation2 + $0x428] sm:$0xff] %vm7353, %v7286
      %7488 = vst.msk [vmem:[#allocation2 + $0x430] sm:$0xff] %vm7353, %v7287
      %7489 = vst.msk [vmem:[#allocation2 + $0x438] sm:$0xff] %vm7353, %v7288
      %7490 = vst.msk [vmem:[#allocation2 + $0x440] sm:$0xff] %vm7353, %v7289
      %7491 = vst.msk [vmem:[#allocation2 + $0x448] sm:$0xff] %vm7353, %v7290
      %7492 = vst.msk [vmem:[#allocation2 + $0x450] sm:$0xff] %vm7353, %v7291
      %7493 = vst.msk [vmem:[#allocation2 + $0x458] sm:$0xff] %vm7353, %v7292
      %7494 = vst.msk [vmem:[#allocation2 + $0x460] sm:$0xff] %vm7353, %v7293
      %7495 = vst.msk [vmem:[#allocation2 + $0x468] sm:$0xff] %vm7353, %v7294
      %7496 = vst.msk [vmem:[#allocation2 + $0x470] sm:$0xff] %vm7353, %v7295
      %7497 = vst.msk [vmem:[#allocation2 + $0x478] sm:$0xff] %vm7353, %v7296
      %7498 = vst.msk [vmem:[#allocation2 + $0x480] sm:$0xff] %vm7353, %v7297
      %7499 = vst.msk [vmem:[#allocation2 + $0x488] sm:$0xff] %vm7353, %v7298
      %7500 = vst.msk [vmem:[#allocation2 + $0x490] sm:$0xff] %vm7353, %v7299
      %7501 = vst.msk [vmem:[#allocation2 + $0x498] sm:$0xff] %vm7353, %v7300
      %7502 = vst.msk [vmem:[#allocation2 + $0x4a0] sm:$0xff] %vm7353, %v7301
      %7503 = vst.msk [vmem:[#allocation2 + $0x4a8] sm:$0xff] %vm7353, %v7302
      %7504 = vst.msk [vmem:[#allocation2 + $0x4b0] sm:$0xff] %vm7353, %v7303
      %7505 = vst.msk [vmem:[#allocation2 + $0x4b8] sm:$0xff] %vm7353, %v7304
      %7506 = vst.msk [vmem:[#allocation2 + $0x4c0] sm:$0xff] %vm7353, %v7305
      %7507 = vst.msk [vmem:[#allocation2 + $0x4c8] sm:$0xff] %vm7353, %v7306
      %7508 = vst.msk [vmem:[#allocation2 + $0x4d0] sm:$0xff] %vm7353, %v7307
      %7509 = vst.msk [vmem:[#allocation2 + $0x4d8] sm:$0xff] %vm7353, %v7308
      %7510 = vst.msk [vmem:[#allocation2 + $0x4e0] sm:$0xff] %vm7353, %v7309
      %7511 = vst.msk [vmem:[#allocation2 + $0x4e8] sm:$0xff] %vm7353, %v7310
      %7512 = vst.msk [vmem:[#allocation2 + $0x4f0] sm:$0xff] %vm7353, %v7311
      %7513 = vst.msk [vmem:[#allocation2 + $0x4f8] sm:$0xff] %vm7353, %v7312
      %7514 = vst.msk [vmem:[#allocation2 + $0x500] sm:$0xff] %vm7353, %v7313
      %7515 = vst.msk [vmem:[#allocation2 + $0x508] sm:$0xff] %vm7353, %v7314
      %7516 = vst.msk [vmem:[#allocation2 + $0x510] sm:$0xff] %vm7353, %v7315
      %7517 = vst.msk [vmem:[#allocation2 + $0x518] sm:$0xff] %vm7353, %v7316
      %7518 = vst.msk [vmem:[#allocation2 + $0x520] sm:$0xff] %vm7353, %v7317
      %7519 = vst.msk [vmem:[#allocation2 + $0x528] sm:$0xff] %vm7353, %v7318
      %7520 = vst.msk [vmem:[#allocation2 + $0x530] sm:$0xff] %vm7353, %v7319
      %7521 = vst.msk [vmem:[#allocation2 + $0x538] sm:$0xff] %vm7353, %v7320
      %7522 = vst.msk [vmem:[#allocation2 + $0x540] sm:$0xff] %vm7353, %v7321
      %7523 = vst.msk [vmem:[#allocation2 + $0x548] sm:$0xff] %vm7353, %v7322
      %7524 = vst.msk [vmem:[#allocation2 + $0x550] sm:$0xff] %vm7353, %v7323
      %7525 = vst.msk [vmem:[#allocation2 + $0x558] sm:$0xff] %vm7353, %v7324
      %7526 = vst.msk [vmem:[#allocation2 + $0x560] sm:$0xff] %vm7353, %v7325
      %7527 = vst.msk [vmem:[#allocation2 + $0x568] sm:$0xff] %vm7353, %v7326
      %7528 = vst.msk [vmem:[#allocation2 + $0x570] sm:$0xff] %vm7353, %v7327
      %7529 = vst.msk [vmem:[#allocation2 + $0x578] sm:$0xff] %vm7353, %v7328
      %7530 = vst.msk [vmem:[#allocation2 + $0x580] sm:$0xff] %vm7353, %v7329
      %7531 = vst.msk [vmem:[#allocation2 + $0x588] sm:$0xff] %vm7353, %v7330
      %7532 = vst.msk [vmem:[#allocation2 + $0x590] sm:$0xff] %vm7353, %v7331
      %7533 = vst.msk [vmem:[#allocation2 + $0x598] sm:$0xff] %vm7353, %v7332
      %7534 = vst.msk [vmem:[#allocation2 + $0x5a0] sm:$0xff] %vm7353, %v7333
      %7535 = vst.msk [vmem:[#allocation2 + $0x5a8] sm:$0xff] %vm7353, %v7334
      %7536 = vst.msk [vmem:[#allocation2 + $0x5b0] sm:$0xff] %vm7353, %v7335
      %7537 = vst.msk [vmem:[#allocation2 + $0x5b8] sm:$0xff] %vm7353, %v7336
      %7538 = vst.msk [vmem:[#allocation2 + $0x5c0] sm:$0xff] %vm7353, %v7337
      %7539 = vst.msk [vmem:[#allocation2 + $0x5c8] sm:$0xff] %vm7353, %v7338
      %7540 = vst.msk [vmem:[#allocation2 + $0x5d0] sm:$0xff] %vm7353, %v7339
      %7541 = vst.msk [vmem:[#allocation2 + $0x5d8] sm:$0xff] %vm7353, %v7340
      %7542 = vst.msk [vmem:[#allocation2 + $0x5e0] sm:$0xff] %vm7353, %v7341
      %7543 = vst.msk [vmem:[#allocation2 + $0x5e8] sm:$0xff] %vm7353, %v7342
      %7544 = vst.msk [vmem:[#allocation2 + $0x5f0] sm:$0xff] %vm7353, %v7343
      %7545 = vst.msk [vmem:[#allocation2 + $0x5f8] sm:$0xff] %vm7353, %v7344
      %7546 = vst.msk [vmem:[#allocation2 + $0x600] sm:$0xff] %vm7353, %v7345
      %7547 = vst.msk [vmem:[#allocation2 + $0x608] sm:$0xff] %vm7353, %v7346
      %7548 = vst.msk [vmem:[#allocation2 + $0x610] sm:$0xff] %vm7353, %v7347
      %7549 = vst.msk [vmem:[#allocation2 + $0x618] sm:$0xff] %vm7353, %v7348
      %7550 = vst.msk [vmem:[#allocation2 + $0x620] sm:$0xff] %vm7353, %v7349
      %7551 = vst.msk [vmem:[#allocation2 + $0x628] sm:$0xff] %vm7353, %v7350
      %7552 = vst.msk [vmem:[#allocation2 + $0x630] sm:$0xff] %vm7353, %v7351
      %7553 = vst.msk [vmem:[#allocation2 + $0x638] sm:$0xff] %vm7353, %v7352
      %v7554 = vld [vmem:[#allocation2] sm:$0xff]
      %v7555 = vld [vmem:[#allocation2 + $0x8] sm:$0xff]
      %v7556 = vld [vmem:[#allocation2 + $0x10] sm:$0xff]
      %v7557 = vld [vmem:[#allocation2 + $0x18] sm:$0xff]
      %v7558 = vld [vmem:[#allocation2 + $0x20] sm:$0xff]
      %v7559 = vld [vmem:[#allocation2 + $0x28] sm:$0xff]
      %v7560 = vld [vmem:[#allocation2 + $0x30] sm:$0xff]
      %v7561 = vld [vmem:[#allocation2 + $0x38] sm:$0xff]
      %7562 = vst.msk [vmem:[#allocation3] sm:$0xff] %vm7353, %v7554
      %7563 = vst.msk [vmem:[#allocation3 + $0x38] sm:$0xff] %vm7353, %v7555
      %7564 = vst.msk [vmem:[#allocation3 + $0x70] sm:$0xff] %vm7353, %v7556
      %7565 = vst.msk [vmem:[#allocation3 + $0xa8] sm:$0xff] %vm7353, %v7557
      %7566 = vst.msk [vmem:[#allocation3 + $0xe0] sm:$0xff] %vm7353, %v7558
      %7567 = vst.msk [vmem:[#allocation3 + $0x118] sm:$0xff] %vm7353, %v7559
      %7568 = vst.msk [vmem:[#allocation3 + $0x150] sm:$0xff] %vm7353, %v7560
      %7569 = vst.msk [vmem:[#allocation3 + $0x188] sm:$0xff] %vm7353, %v7561
      %v7570 = vld [vmem:[#allocation2 + $0x40] sm:$0xff]
      %v7571 = vld [vmem:[#allocation2 + $0x48] sm:$0xff]
      %v7572 = vld [vmem:[#allocation2 + $0x50] sm:$0xff]
      %v7573 = vld [vmem:[#allocation2 + $0x58] sm:$0xff]
      %v7574 = vld [vmem:[#allocation2 + $0x60] sm:$0xff]
      %v7575 = vld [vmem:[#allocation2 + $0x68] sm:$0xff]
      %v7576 = vld [vmem:[#allocation2 + $0x70] sm:$0xff]
      %v7577 = vld [vmem:[#allocation2 + $0x78] sm:$0xff]
      %7586 = vrot.lane.b32.xlu0 %v7570, 32
      %v7587 = vpop.permute.xlu0 %7586
      %7588 = vrot.lane.b32.xlu0 %v7571, 32
      %v7589 = vpop.permute.xlu0 %7588
      %7590 = vrot.lane.b32.xlu0 %v7572, 32
      %v7591 = vpop.permute.xlu0 %7590
      %7592 = vrot.lane.b32.xlu0 %v7573, 32
      %v7593 = vpop.permute.xlu0 %7592
      %7594 = vrot.lane.b32.xlu0 %v7574, 32
      %v7595 = vpop.permute.xlu0 %7594
      %7596 = vrot.lane.b32.xlu0 %v7575, 32
      %v7597 = vpop.permute.xlu0 %7596
      %7598 = vrot.lane.b32.xlu0 %v7576, 32
      %v7599 = vpop.permute.xlu0 %7598
      %7600 = vrot.lane.b32.xlu0 %v7577, 32
      %v7601 = vpop.permute.xlu0 %7600
      %vm7610 = vcmask 523520
      %7611 = vst.msk [vmem:[#allocation3] sm:$0xff] %vm7610, %v7587
      %7612 = vst.msk [vmem:[#allocation3 + $0x38] sm:$0xff] %vm7610, %v7589
      %7613 = vst.msk [vmem:[#allocation3 + $0x70] sm:$0xff] %vm7610, %v7591
      %7614 = vst.msk [vmem:[#allocation3 + $0xa8] sm:$0xff] %vm7610, %v7593
      %7615 = vst.msk [vmem:[#allocation3 + $0xe0] sm:$0xff] %vm7610, %v7595
      %7616 = vst.msk [vmem:[#allocation3 + $0x118] sm:$0xff] %vm7610, %v7597
      %7617 = vst.msk [vmem:[#allocation3 + $0x150] sm:$0xff] %vm7610, %v7599
      %7618 = vst.msk [vmem:[#allocation3 + $0x188] sm:$0xff] %vm7610, %v7601
      %v7619 = vld [vmem:[#allocation2 + $0x80] sm:$0xff]
      %v7620 = vld [vmem:[#allocation2 + $0x88] sm:$0xff]
      %v7621 = vld [vmem:[#allocation2 + $0x90] sm:$0xff]
      %v7622 = vld [vmem:[#allocation2 + $0x98] sm:$0xff]
      %v7623 = vld [vmem:[#allocation2 + $0xa0] sm:$0xff]
      %v7624 = vld [vmem:[#allocation2 + $0xa8] sm:$0xff]
      %v7625 = vld [vmem:[#allocation2 + $0xb0] sm:$0xff]
      %v7626 = vld [vmem:[#allocation2 + $0xb8] sm:$0xff]
      %7635 = vrot.lane.b32.xlu0 %v7619, 64
      %v7636 = vpop.permute.xlu0 %7635
      %7637 = vrot.lane.b32.xlu0 %v7620, 64
      %v7638 = vpop.permute.xlu0 %7637
      %7639 = vrot.lane.b32.xlu0 %v7621, 64
      %v7640 = vpop.permute.xlu0 %7639
      %7641 = vrot.lane.b32.xlu0 %v7622, 64
      %v7642 = vpop.permute.xlu0 %7641
      %7643 = vrot.lane.b32.xlu0 %v7623, 64
      %v7644 = vpop.permute.xlu0 %7643
      %7645 = vrot.lane.b32.xlu0 %v7624, 64
      %v7646 = vpop.permute.xlu0 %7645
      %7647 = vrot.lane.b32.xlu0 %v7625, 64
      %v7648 = vpop.permute.xlu0 %7647
      %7649 = vrot.lane.b32.xlu0 %v7626, 64
      %v7650 = vpop.permute.xlu0 %7649
      %vm7659 = vcmask 785920
      %7660 = vst.msk [vmem:[#allocation3] sm:$0xff] %vm7659, %v7636
      %7661 = vst.msk [vmem:[#allocation3 + $0x38] sm:$0xff] %vm7659, %v7638
      %7662 = vst.msk [vmem:[#allocation3 + $0x70] sm:$0xff] %vm7659, %v7640
      %7663 = vst.msk [vmem:[#allocation3 + $0xa8] sm:$0xff] %vm7659, %v7642
      %7664 = vst.msk [vmem:[#allocation3 + $0xe0] sm:$0xff] %vm7659, %v7644
      %7665 = vst.msk [vmem:[#allocation3 + $0x118] sm:$0xff] %vm7659, %v7646
      %7666 = vst.msk [vmem:[#allocation3 + $0x150] sm:$0xff] %vm7659, %v7648
      %7667 = vst.msk [vmem:[#allocation3 + $0x188] sm:$0xff] %vm7659, %v7650
      %v7668 = vld [vmem:[#allocation2 + $0xc0] sm:$0xff]
      %v7669 = vld [vmem:[#allocation2 + $0xc8] sm:$0xff]
      %v7670 = vld [vmem:[#allocation2 + $0xd0] sm:$0xff]
      %v7671 = vld [vmem:[#allocation2 + $0xd8] sm:$0xff]
      %v7672 = vld [vmem:[#allocation2 + $0xe0] sm:$0xff]
      %v7673 = vld [vmem:[#allocation2 + $0xe8] sm:$0xff]
      %v7674 = vld [vmem:[#allocation2 + $0xf0] sm:$0xff]
      %v7675 = vld [vmem:[#allocation2 + $0xf8] sm:$0xff]
      %7684 = vrot.lane.b32.xlu0 %v7668, 96
      %v7685 = vpop.permute.xlu0 %7684
      %7686 = vrot.lane.b32.xlu0 %v7669, 96
      %v7687 = vpop.permute.xlu0 %7686
      %7688 = vrot.lane.b32.xlu0 %v7670, 96
      %v7689 = vpop.permute.xlu0 %7688
      %7690 = vrot.lane.b32.xlu0 %v7671, 96
      %v7691 = vpop.permute.xlu0 %7690
      %7692 = vrot.lane.b32.xlu0 %v7672, 96
      %v7693 = vpop.permute.xlu0 %7692
      %7694 = vrot.lane.b32.xlu0 %v7673, 96
      %v7695 = vpop.permute.xlu0 %7694
      %7696 = vrot.lane.b32.xlu0 %v7674, 96
      %v7697 = vpop.permute.xlu0 %7696
      %7698 = vrot.lane.b32.xlu0 %v7675, 96
      %v7699 = vpop.permute.xlu0 %7698
      %vm7708 = vcmask 1048320
      %7709 = vst.msk [vmem:[#allocation3] sm:$0xff] %vm7708, %v7685
      %7710 = vst.msk [vmem:[#allocation3 + $0x38] sm:$0xff] %vm7708, %v7687
      %7711 = vst.msk [vmem:[#allocation3 + $0x70] sm:$0xff] %vm7708, %v7689
      %7712 = vst.msk [vmem:[#allocation3 + $0xa8] sm:$0xff] %vm7708, %v7691
      %7713 = vst.msk [vmem:[#allocation3 + $0xe0] sm:$0xff] %vm7708, %v7693
      %7714 = vst.msk [vmem:[#allocation3 + $0x118] sm:$0xff] %vm7708, %v7695
      %7715 = vst.msk [vmem:[#allocation3 + $0x150] sm:$0xff] %vm7708, %v7697
      %7716 = vst.msk [vmem:[#allocation3 + $0x188] sm:$0xff] %vm7708, %v7699
      %v7717 = vld [vmem:[#allocation2 + $0x100] sm:$0xff]
      %v7718 = vld [vmem:[#allocation2 + $0x108] sm:$0xff]
      %v7719 = vld [vmem:[#allocation2 + $0x110] sm:$0xff]
      %v7720 = vld [vmem:[#allocation2 + $0x118] sm:$0xff]
      %v7721 = vld [vmem:[#allocation2 + $0x120] sm:$0xff]
      %v7722 = vld [vmem:[#allocation2 + $0x128] sm:$0xff]
      %v7723 = vld [vmem:[#allocation2 + $0x130] sm:$0xff]
      %v7724 = vld [vmem:[#allocation2 + $0x138] sm:$0xff]
      %7725 = vst.msk [vmem:[#allocation3 + $0x8] sm:$0xff] %vm7353, %v7717
      %7726 = vst.msk [vmem:[#allocation3 + $0x40] sm:$0xff] %vm7353, %v7718
      %7727 = vst.msk [vmem:[#allocation3 + $0x78] sm:$0xff] %vm7353, %v7719
      %7728 = vst.msk [vmem:[#allocation3 + $0xb0] sm:$0xff] %vm7353, %v7720
      %7729 = vst.msk [vmem:[#allocation3 + $0xe8] sm:$0xff] %vm7353, %v7721
      %7730 = vst.msk [vmem:[#allocation3 + $0x120] sm:$0xff] %vm7353, %v7722
      %7731 = vst.msk [vmem:[#allocation3 + $0x158] sm:$0xff] %vm7353, %v7723
      %7732 = vst.msk [vmem:[#allocation3 + $0x190] sm:$0xff] %vm7353, %v7724
      %v7733 = vld [vmem:[#allocation2 + $0x140] sm:$0xff]
      %v7734 = vld [vmem:[#allocation2 + $0x148] sm:$0xff]
      %v7735 = vld [vmem:[#allocation2 + $0x150] sm:$0xff]
      %v7736 = vld [vmem:[#allocation2 + $0x158] sm:$0xff]
      %v7737 = vld [vmem:[#allocation2 + $0x160] sm:$0xff]
      %v7738 = vld [vmem:[#allocation2 + $0x168] sm:$0xff]
      %v7739 = vld [vmem:[#allocation2 + $0x170] sm:$0xff]
      %v7740 = vld [vmem:[#allocation2 + $0x178] sm:$0xff]
      %7749 = vrot.lane.b32.xlu0 %v7733, 32
      %v7750 = vpop.permute.xlu0 %7749
      %7751 = vrot.lane.b32.xlu0 %v7734, 32
      %v7752 = vpop.permute.xlu0 %7751
      %7753 = vrot.lane.b32.xlu0 %v7735, 32
      %v7754 = vpop.permute.xlu0 %7753
      %7755 = vrot.lane.b32.xlu0 %v7736, 32
      %v7756 = vpop.permute.xlu0 %7755
      %7757 = vrot.lane.b32.xlu0 %v7737, 32
      %v7758 = vpop.permute.xlu0 %7757
      %7759 = vrot.lane.b32.xlu0 %v7738, 32
      %v7760 = vpop.permute.xlu0 %7759
      %7761 = vrot.lane.b32.xlu0 %v7739, 32
      %v7762 = vpop.permute.xlu0 %7761
      %7763 = vrot.lane.b32.xlu0 %v7740, 32
      %v7764 = vpop.permute.xlu0 %7763
      %7773 = vst.msk [vmem:[#allocation3 + $0x8] sm:$0xff] %vm7610, %v7750
      %7774 = vst.msk [vmem:[#allocation3 + $0x40] sm:$0xff] %vm7610, %v7752
      %7775 = vst.msk [vmem:[#allocation3 + $0x78] sm:$0xff] %vm7610, %v7754
      %7776 = vst.msk [vmem:[#allocation3 + $0xb0] sm:$0xff] %vm7610, %v7756
      %7777 = vst.msk [vmem:[#allocation3 + $0xe8] sm:$0xff] %vm7610, %v7758
      %7778 = vst.msk [vmem:[#allocation3 + $0x120] sm:$0xff] %vm7610, %v7760
      %7779 = vst.msk [vmem:[#allocation3 + $0x158] sm:$0xff] %vm7610, %v7762
      %7780 = vst.msk [vmem:[#allocation3 + $0x190] sm:$0xff] %vm7610, %v7764
      %v7781 = vld [vmem:[#allocation2 + $0x180] sm:$0xff]
      %v7782 = vld [vmem:[#allocation2 + $0x188] sm:$0xff]
      %v7783 = vld [vmem:[#allocation2 + $0x190] sm:$0xff]
      %v7784 = vld [vmem:[#allocation2 + $0x198] sm:$0xff]
      %v7785 = vld [vmem:[#allocation2 + $0x1a0] sm:$0xff]
      %v7786 = vld [vmem:[#allocation2 + $0x1a8] sm:$0xff]
      %v7787 = vld [vmem:[#allocation2 + $0x1b0] sm:$0xff]
      %v7788 = vld [vmem:[#allocation2 + $0x1b8] sm:$0xff]
      %7797 = vrot.lane.b32.xlu0 %v7781, 64
      %v7798 = vpop.permute.xlu0 %7797
      %7799 = vrot.lane.b32.xlu0 %v7782, 64
      %v7800 = vpop.permute.xlu0 %7799
      %7801 = vrot.lane.b32.xlu0 %v7783, 64
      %v7802 = vpop.permute.xlu0 %7801
      %7803 = vrot.lane.b32.xlu0 %v7784, 64
      %v7804 = vpop.permute.xlu0 %7803
      %7805 = vrot.lane.b32.xlu0 %v7785, 64
      %v7806 = vpop.permute.xlu0 %7805
      %7807 = vrot.lane.b32.xlu0 %v7786, 64
      %v7808 = vpop.permute.xlu0 %7807
      %7809 = vrot.lane.b32.xlu0 %v7787, 64
      %v7810 = vpop.permute.xlu0 %7809
      %7811 = vrot.lane.b32.xlu0 %v7788, 64
      %v7812 = vpop.permute.xlu0 %7811
      %7821 = vst.msk [vmem:[#allocation3 + $0x8] sm:$0xff] %vm7659, %v7798
      %7822 = vst.msk [vmem:[#allocation3 + $0x40] sm:$0xff] %vm7659, %v7800
      %7823 = vst.msk [vmem:[#allocation3 + $0x78] sm:$0xff] %vm7659, %v7802
      %7824 = vst.msk [vmem:[#allocation3 + $0xb0] sm:$0xff] %vm7659, %v7804
      %7825 = vst.msk [vmem:[#allocation3 + $0xe8] sm:$0xff] %vm7659, %v7806
      %7826 = vst.msk [vmem:[#allocation3 + $0x120] sm:$0xff] %vm7659, %v7808
      %7827 = vst.msk [vmem:[#allocation3 + $0x158] sm:$0xff] %vm7659, %v7810
      %7828 = vst.msk [vmem:[#allocation3 + $0x190] sm:$0xff] %vm7659, %v7812
      %v7829 = vld [vmem:[#allocation2 + $0x1c0] sm:$0xff]
      %v7830 = vld [vmem:[#allocation2 + $0x1c8] sm:$0xff]
      %v7831 = vld [vmem:[#allocation2 + $0x1d0] sm:$0xff]
      %v7832 = vld [vmem:[#allocation2 + $0x1d8] sm:$0xff]
      %v7833 = vld [vmem:[#allocation2 + $0x1e0] sm:$0xff]
      %v7834 = vld [vmem:[#allocation2 + $0x1e8] sm:$0xff]
      %v7835 = vld [vmem:[#allocation2 + $0x1f0] sm:$0xff]
      %v7836 = vld [vmem:[#allocation2 + $0x1f8] sm:$0xff]
      %7845 = vrot.lane.b32.xlu0 %v7829, 96
      %v7846 = vpop.permute.xlu0 %7845
      %7847 = vrot.lane.b32.xlu0 %v7830, 96
      %v7848 = vpop.permute.xlu0 %7847
      %7849 = vrot.lane.b32.xlu0 %v7831, 96
      %v7850 = vpop.permute.xlu0 %7849
      %7851 = vrot.lane.b32.xlu0 %v7832, 96
      %v7852 = vpop.permute.xlu0 %7851
      %7853 = vrot.lane.b32.xlu0 %v7833, 96
      %v7854 = vpop.permute.xlu0 %7853
      %7855 = vrot.lane.b32.xlu0 %v7834, 96
      %v7856 = vpop.permute.xlu0 %7855
      %7857 = vrot.lane.b32.xlu0 %v7835, 96
      %v7858 = vpop.permute.xlu0 %7857
      %7859 = vrot.lane.b32.xlu0 %v7836, 96
      %v7860 = vpop.permute.xlu0 %7859
      %7869 = vst.msk [vmem:[#allocation3 + $0x8] sm:$0xff] %vm7708, %v7846
      %7870 = vst.msk [vmem:[#allocation3 + $0x40] sm:$0xff] %vm7708, %v7848
      %7871 = vst.msk [vmem:[#allocation3 + $0x78] sm:$0xff] %vm7708, %v7850
      %7872 = vst.msk [vmem:[#allocation3 + $0xb0] sm:$0xff] %vm7708, %v7852
      %7873 = vst.msk [vmem:[#allocation3 + $0xe8] sm:$0xff] %vm7708, %v7854
      %7874 = vst.msk [vmem:[#allocation3 + $0x120] sm:$0xff] %vm7708, %v7856
      %7875 = vst.msk [vmem:[#allocation3 + $0x158] sm:$0xff] %vm7708, %v7858
      %7876 = vst.msk [vmem:[#allocation3 + $0x190] sm:$0xff] %vm7708, %v7860
      %v7877 = vld [vmem:[#allocation2 + $0x200] sm:$0xff]
      %v7878 = vld [vmem:[#allocation2 + $0x208] sm:$0xff]
      %v7879 = vld [vmem:[#allocation2 + $0x210] sm:$0xff]
      %v7880 = vld [vmem:[#allocation2 + $0x218] sm:$0xff]
      %v7881 = vld [vmem:[#allocation2 + $0x220] sm:$0xff]
      %v7882 = vld [vmem:[#allocation2 + $0x228] sm:$0xff]
      %v7883 = vld [vmem:[#allocation2 + $0x230] sm:$0xff]
      %v7884 = vld [vmem:[#allocation2 + $0x238] sm:$0xff]
      %7885 = vst.msk [vmem:[#allocation3 + $0x10] sm:$0xff] %vm7353, %v7877
      %7886 = vst.msk [vmem:[#allocation3 + $0x48] sm:$0xff] %vm7353, %v7878
      %7887 = vst.msk [vmem:[#allocation3 + $0x80] sm:$0xff] %vm7353, %v7879
      %7888 = vst.msk [vmem:[#allocation3 + $0xb8] sm:$0xff] %vm7353, %v7880
      %7889 = vst.msk [vmem:[#allocation3 + $0xf0] sm:$0xff] %vm7353, %v7881
      %7890 = vst.msk [vmem:[#allocation3 + $0x128] sm:$0xff] %vm7353, %v7882
      %7891 = vst.msk [vmem:[#allocation3 + $0x160] sm:$0xff] %vm7353, %v7883
      %7892 = vst.msk [vmem:[#allocation3 + $0x198] sm:$0xff] %vm7353, %v7884
      %v7893 = vld [vmem:[#allocation2 + $0x240] sm:$0xff]
      %v7894 = vld [vmem:[#allocation2 + $0x248] sm:$0xff]
      %v7895 = vld [vmem:[#allocation2 + $0x250] sm:$0xff]
      %v7896 = vld [vmem:[#allocation2 + $0x258] sm:$0xff]
      %v7897 = vld [vmem:[#allocation2 + $0x260] sm:$0xff]
      %v7898 = vld [vmem:[#allocation2 + $0x268] sm:$0xff]
      %v7899 = vld [vmem:[#allocation2 + $0x270] sm:$0xff]
      %v7900 = vld [vmem:[#allocation2 + $0x278] sm:$0xff]
      %7909 = vrot.lane.b32.xlu0 %v7893, 32
      %v7910 = vpop.permute.xlu0 %7909
      %7911 = vrot.lane.b32.xlu0 %v7894, 32
      %v7912 = vpop.permute.xlu0 %7911
      %7913 = vrot.lane.b32.xlu0 %v7895, 32
      %v7914 = vpop.permute.xlu0 %7913
      %7915 = vrot.lane.b32.xlu0 %v7896, 32
      %v7916 = vpop.permute.xlu0 %7915
      %7917 = vrot.lane.b32.xlu0 %v7897, 32
      %v7918 = vpop.permute.xlu0 %7917
      %7919 = vrot.lane.b32.xlu0 %v7898, 32
      %v7920 = vpop.permute.xlu0 %7919
      %7921 = vrot.lane.b32.xlu0 %v7899, 32
      %v7922 = vpop.permute.xlu0 %7921
      %7923 = vrot.lane.b32.xlu0 %v7900, 32
      %v7924 = vpop.permute.xlu0 %7923
      %7933 = vst.msk [vmem:[#allocation3 + $0x10] sm:$0xff] %vm7610, %v7910
      %7934 = vst.msk [vmem:[#allocation3 + $0x48] sm:$0xff] %vm7610, %v7912
      %7935 = vst.msk [vmem:[#allocation3 + $0x80] sm:$0xff] %vm7610, %v7914
      %7936 = vst.msk [vmem:[#allocation3 + $0xb8] sm:$0xff] %vm7610, %v7916
      %7937 = vst.msk [vmem:[#allocation3 + $0xf0] sm:$0xff] %vm7610, %v7918
      %7938 = vst.msk [vmem:[#allocation3 + $0x128] sm:$0xff] %vm7610, %v7920
      %7939 = vst.msk [vmem:[#allocation3 + $0x160] sm:$0xff] %vm7610, %v7922
      %7940 = vst.msk [vmem:[#allocation3 + $0x198] sm:$0xff] %vm7610, %v7924
      %v7941 = vld [vmem:[#allocation2 + $0x280] sm:$0xff]
      %v7942 = vld [vmem:[#allocation2 + $0x288] sm:$0xff]
      %v7943 = vld [vmem:[#allocation2 + $0x290] sm:$0xff]
      %v7944 = vld [vmem:[#allocation2 + $0x298] sm:$0xff]
      %v7945 = vld [vmem:[#allocation2 + $0x2a0] sm:$0xff]
      %v7946 = vld [vmem:[#allocation2 + $0x2a8] sm:$0xff]
      %v7947 = vld [vmem:[#allocation2 + $0x2b0] sm:$0xff]
      %v7948 = vld [vmem:[#allocation2 + $0x2b8] sm:$0xff]
      %7957 = vrot.lane.b32.xlu0 %v7941, 64
      %v7958 = vpop.permute.xlu0 %7957
      %7959 = vrot.lane.b32.xlu0 %v7942, 64
      %v7960 = vpop.permute.xlu0 %7959
      %7961 = vrot.lane.b32.xlu0 %v7943, 64
      %v7962 = vpop.permute.xlu0 %7961
      %7963 = vrot.lane.b32.xlu0 %v7944, 64
      %v7964 = vpop.permute.xlu0 %7963
      %7965 = vrot.lane.b32.xlu0 %v7945, 64
      %v7966 = vpop.permute.xlu0 %7965
      %7967 = vrot.lane.b32.xlu0 %v7946, 64
      %v7968 = vpop.permute.xlu0 %7967
      %7969 = vrot.lane.b32.xlu0 %v7947, 64
      %v7970 = vpop.permute.xlu0 %7969
      %7971 = vrot.lane.b32.xlu0 %v7948, 64
      %v7972 = vpop.permute.xlu0 %7971
      %7981 = vst.msk [vmem:[#allocation3 + $0x10] sm:$0xff] %vm7659, %v7958
      %7982 = vst.msk [vmem:[#allocation3 + $0x48] sm:$0xff] %vm7659, %v7960
      %7983 = vst.msk [vmem:[#allocation3 + $0x80] sm:$0xff] %vm7659, %v7962
      %7984 = vst.msk [vmem:[#allocation3 + $0xb8] sm:$0xff] %vm7659, %v7964
      %7985 = vst.msk [vmem:[#allocation3 + $0xf0] sm:$0xff] %vm7659, %v7966
      %7986 = vst.msk [vmem:[#allocation3 + $0x128] sm:$0xff] %vm7659, %v7968
      %7987 = vst.msk [vmem:[#allocation3 + $0x160] sm:$0xff] %vm7659, %v7970
      %7988 = vst.msk [vmem:[#allocation3 + $0x198] sm:$0xff] %vm7659, %v7972
      %v7989 = vld [vmem:[#allocation2 + $0x2c0] sm:$0xff]
      %v7990 = vld [vmem:[#allocation2 + $0x2c8] sm:$0xff]
      %v7991 = vld [vmem:[#allocation2 + $0x2d0] sm:$0xff]
      %v7992 = vld [vmem:[#allocation2 + $0x2d8] sm:$0xff]
      %v7993 = vld [vmem:[#allocation2 + $0x2e0] sm:$0xff]
      %v7994 = vld [vmem:[#allocation2 + $0x2e8] sm:$0xff]
      %v7995 = vld [vmem:[#allocation2 + $0x2f0] sm:$0xff]
      %v7996 = vld [vmem:[#allocation2 + $0x2f8] sm:$0xff]
      %8005 = vrot.lane.b32.xlu0 %v7989, 96
      %v8006 = vpop.permute.xlu0 %8005
      %8007 = vrot.lane.b32.xlu0 %v7990, 96
      %v8008 = vpop.permute.xlu0 %8007
      %8009 = vrot.lane.b32.xlu0 %v7991, 96
      %v8010 = vpop.permute.xlu0 %8009
      %8011 = vrot.lane.b32.xlu0 %v7992, 96
      %v8012 = vpop.permute.xlu0 %8011
      %8013 = vrot.lane.b32.xlu0 %v7993, 96
      %v8014 = vpop.permute.xlu0 %8013
      %8015 = vrot.lane.b32.xlu0 %v7994, 96
      %v8016 = vpop.permute.xlu0 %8015
      %8017 = vrot.lane.b32.xlu0 %v7995, 96
      %v8018 = vpop.permute.xlu0 %8017
      %8019 = vrot.lane.b32.xlu0 %v7996, 96
      %v8020 = vpop.permute.xlu0 %8019
      %8029 = vst.msk [vmem:[#allocation3 + $0x10] sm:$0xff] %vm7708, %v8006
      %8030 = vst.msk [vmem:[#allocation3 + $0x48] sm:$0xff] %vm7708, %v8008
      %8031 = vst.msk [vmem:[#allocation3 + $0x80] sm:$0xff] %vm7708, %v8010
      %8032 = vst.msk [vmem:[#allocation3 + $0xb8] sm:$0xff] %vm7708, %v8012
      %8033 = vst.msk [vmem:[#allocation3 + $0xf0] sm:$0xff] %vm7708, %v8014
      %8034 = vst.msk [vmem:[#allocation3 + $0x128] sm:$0xff] %vm7708, %v8016
      %8035 = vst.msk [vmem:[#allocation3 + $0x160] sm:$0xff] %vm7708, %v8018
      %8036 = vst.msk [vmem:[#allocation3 + $0x198] sm:$0xff] %vm7708, %v8020
      %v8037 = vld [vmem:[#allocation2 + $0x300] sm:$0xff]
      %v8038 = vld [vmem:[#allocation2 + $0x308] sm:$0xff]
      %v8039 = vld [vmem:[#allocation2 + $0x310] sm:$0xff]
      %v8040 = vld [vmem:[#allocation2 + $0x318] sm:$0xff]
      %v8041 = vld [vmem:[#allocation2 + $0x320] sm:$0xff]
      %v8042 = vld [vmem:[#allocation2 + $0x328] sm:$0xff]
      %v8043 = vld [vmem:[#allocation2 + $0x330] sm:$0xff]
      %v8044 = vld [vmem:[#allocation2 + $0x338] sm:$0xff]
      %8045 = vst.msk [vmem:[#allocation3 + $0x18] sm:$0xff] %vm7353, %v8037
      %8046 = vst.msk [vmem:[#allocation3 + $0x50] sm:$0xff] %vm7353, %v8038
      %8047 = vst.msk [vmem:[#allocation3 + $0x88] sm:$0xff] %vm7353, %v8039
      %8048 = vst.msk [vmem:[#allocation3 + $0xc0] sm:$0xff] %vm7353, %v8040
      %8049 = vst.msk [vmem:[#allocation3 + $0xf8] sm:$0xff] %vm7353, %v8041
      %8050 = vst.msk [vmem:[#allocation3 + $0x130] sm:$0xff] %vm7353, %v8042
      %8051 = vst.msk [vmem:[#allocation3 + $0x168] sm:$0xff] %vm7353, %v8043
      %8052 = vst.msk [vmem:[#allocation3 + $0x1a0] sm:$0xff] %vm7353, %v8044
      %v8053 = vld [vmem:[#allocation2 + $0x340] sm:$0xff]
      %v8054 = vld [vmem:[#allocation2 + $0x348] sm:$0xff]
      %v8055 = vld [vmem:[#allocation2 + $0x350] sm:$0xff]
      %v8056 = vld [vmem:[#allocation2 + $0x358] sm:$0xff]
      %v8057 = vld [vmem:[#allocation2 + $0x360] sm:$0xff]
      %v8058 = vld [vmem:[#allocation2 + $0x368] sm:$0xff]
      %v8059 = vld [vmem:[#allocation2 + $0x370] sm:$0xff]
      %v8060 = vld [vmem:[#allocation2 + $0x378] sm:$0xff]
      %8069 = vrot.lane.b32.xlu0 %v8053, 32
      %v8070 = vpop.permute.xlu0 %8069
      %8071 = vrot.lane.b32.xlu0 %v8054, 32
      %v8072 = vpop.permute.xlu0 %8071
      %8073 = vrot.lane.b32.xlu0 %v8055, 32
      %v8074 = vpop.permute.xlu0 %8073
      %8075 = vrot.lane.b32.xlu0 %v8056, 32
      %v8076 = vpop.permute.xlu0 %8075
      %8077 = vrot.lane.b32.xlu0 %v8057, 32
      %v8078 = vpop.permute.xlu0 %8077
      %8079 = vrot.lane.b32.xlu0 %v8058, 32
      %v8080 = vpop.permute.xlu0 %8079
      %8081 = vrot.lane.b32.xlu0 %v8059, 32
      %v8082 = vpop.permute.xlu0 %8081
      %8083 = vrot.lane.b32.xlu0 %v8060, 32
      %v8084 = vpop.permute.xlu0 %8083
      %8093 = vst.msk [vmem:[#allocation3 + $0x18] sm:$0xff] %vm7610, %v8070
      %8094 = vst.msk [vmem:[#allocation3 + $0x50] sm:$0xff] %vm7610, %v8072
      %8095 = vst.msk [vmem:[#allocation3 + $0x88] sm:$0xff] %vm7610, %v8074
      %8096 = vst.msk [vmem:[#allocation3 + $0xc0] sm:$0xff] %vm7610, %v8076
      %8097 = vst.msk [vmem:[#allocation3 + $0xf8] sm:$0xff] %vm7610, %v8078
      %8098 = vst.msk [vmem:[#allocation3 + $0x130] sm:$0xff] %vm7610, %v8080
      %8099 = vst.msk [vmem:[#allocation3 + $0x168] sm:$0xff] %vm7610, %v8082
      %8100 = vst.msk [vmem:[#allocation3 + $0x1a0] sm:$0xff] %vm7610, %v8084
      %v8101 = vld [vmem:[#allocation2 + $0x380] sm:$0xff]
      %v8102 = vld [vmem:[#allocation2 + $0x388] sm:$0xff]
      %v8103 = vld [vmem:[#allocation2 + $0x390] sm:$0xff]
      %v8104 = vld [vmem:[#allocation2 + $0x398] sm:$0xff]
      %v8105 = vld [vmem:[#allocation2 + $0x3a0] sm:$0xff]
      %v8106 = vld [vmem:[#allocation2 + $0x3a8] sm:$0xff]
      %v8107 = vld [vmem:[#allocation2 + $0x3b0] sm:$0xff]
      %v8108 = vld [vmem:[#allocation2 + $0x3b8] sm:$0xff]
      %8117 = vrot.lane.b32.xlu0 %v8101, 64
      %v8118 = vpop.permute.xlu0 %8117
      %8119 = vrot.lane.b32.xlu0 %v8102, 64
      %v8120 = vpop.permute.xlu0 %8119
      %8121 = vrot.lane.b32.xlu0 %v8103, 64
      %v8122 = vpop.permute.xlu0 %8121
      %8123 = vrot.lane.b32.xlu0 %v8104, 64
      %v8124 = vpop.permute.xlu0 %8123
      %8125 = vrot.lane.b32.xlu0 %v8105, 64
      %v8126 = vpop.permute.xlu0 %8125
      %8127 = vrot.lane.b32.xlu0 %v8106, 64
      %v8128 = vpop.permute.xlu0 %8127
      %8129 = vrot.lane.b32.xlu0 %v8107, 64
      %v8130 = vpop.permute.xlu0 %8129
      %8131 = vrot.lane.b32.xlu0 %v8108, 64
      %v8132 = vpop.permute.xlu0 %8131
      %8141 = vst.msk [vmem:[#allocation3 + $0x18] sm:$0xff] %vm7659, %v8118
      %8142 = vst.msk [vmem:[#allocation3 + $0x50] sm:$0xff] %vm7659, %v8120
      %8143 = vst.msk [vmem:[#allocation3 + $0x88] sm:$0xff] %vm7659, %v8122
      %8144 = vst.msk [vmem:[#allocation3 + $0xc0] sm:$0xff] %vm7659, %v8124
      %8145 = vst.msk [vmem:[#allocation3 + $0xf8] sm:$0xff] %vm7659, %v8126
      %8146 = vst.msk [vmem:[#allocation3 + $0x130] sm:$0xff] %vm7659, %v8128
      %8147 = vst.msk [vmem:[#allocation3 + $0x168] sm:$0xff] %vm7659, %v8130
      %8148 = vst.msk [vmem:[#allocation3 + $0x1a0] sm:$0xff] %vm7659, %v8132
      %v8149 = vld [vmem:[#allocation2 + $0x3c0] sm:$0xff]
      %v8150 = vld [vmem:[#allocation2 + $0x3c8] sm:$0xff]
      %v8151 = vld [vmem:[#allocation2 + $0x3d0] sm:$0xff]
      %v8152 = vld [vmem:[#allocation2 + $0x3d8] sm:$0xff]
      %v8153 = vld [vmem:[#allocation2 + $0x3e0] sm:$0xff]
      %v8154 = vld [vmem:[#allocation2 + $0x3e8] sm:$0xff]
      %v8155 = vld [vmem:[#allocation2 + $0x3f0] sm:$0xff]
      %v8156 = vld [vmem:[#allocation2 + $0x3f8] sm:$0xff]
      %8165 = vrot.lane.b32.xlu0 %v8149, 96
      %v8166 = vpop.permute.xlu0 %8165
      %8167 = vrot.lane.b32.xlu0 %v8150, 96
      %v8168 = vpop.permute.xlu0 %8167
      %8169 = vrot.lane.b32.xlu0 %v8151, 96
      %v8170 = vpop.permute.xlu0 %8169
      %8171 = vrot.lane.b32.xlu0 %v8152, 96
      %v8172 = vpop.permute.xlu0 %8171
      %8173 = vrot.lane.b32.xlu0 %v8153, 96
      %v8174 = vpop.permute.xlu0 %8173
      %8175 = vrot.lane.b32.xlu0 %v8154, 96
      %v8176 = vpop.permute.xlu0 %8175
      %8177 = vrot.lane.b32.xlu0 %v8155, 96
      %v8178 = vpop.permute.xlu0 %8177
      %8179 = vrot.lane.b32.xlu0 %v8156, 96
      %v8180 = vpop.permute.xlu0 %8179
      %8189 = vst.msk [vmem:[#allocation3 + $0x18] sm:$0xff] %vm7708, %v8166
      %8190 = vst.msk [vmem:[#allocation3 + $0x50] sm:$0xff] %vm7708, %v8168
      %8191 = vst.msk [vmem:[#allocation3 + $0x88] sm:$0xff] %vm7708, %v8170
      %8192 = vst.msk [vmem:[#allocation3 + $0xc0] sm:$0xff] %vm7708, %v8172
      %8193 = vst.msk [vmem:[#allocation3 + $0xf8] sm:$0xff] %vm7708, %v8174
      %8194 = vst.msk [vmem:[#allocation3 + $0x130] sm:$0xff] %vm7708, %v8176
      %8195 = vst.msk [vmem:[#allocation3 + $0x168] sm:$0xff] %vm7708, %v8178
      %8196 = vst.msk [vmem:[#allocation3 + $0x1a0] sm:$0xff] %vm7708, %v8180
      %v8197 = vld [vmem:[#allocation2 + $0x400] sm:$0xff]
      %v8198 = vld [vmem:[#allocation2 + $0x408] sm:$0xff]
      %v8199 = vld [vmem:[#allocation2 + $0x410] sm:$0xff]
      %v8200 = vld [vmem:[#allocation2 + $0x418] sm:$0xff]
      %v8201 = vld [vmem:[#allocation2 + $0x420] sm:$0xff]
      %v8202 = vld [vmem:[#allocation2 + $0x428] sm:$0xff]
      %v8203 = vld [vmem:[#allocation2 + $0x430] sm:$0xff]
      %v8204 = vld [vmem:[#allocation2 + $0x438] sm:$0xff]
      %8205 = vst.msk [vmem:[#allocation3 + $0x20] sm:$0xff] %vm7353, %v8197
      %8206 = vst.msk [vmem:[#allocation3 + $0x58] sm:$0xff] %vm7353, %v8198
      %8207 = vst.msk [vmem:[#allocation3 + $0x90] sm:$0xff] %vm7353, %v8199
      %8208 = vst.msk [vmem:[#allocation3 + $0xc8] sm:$0xff] %vm7353, %v8200
      %8209 = vst.msk [vmem:[#allocation3 + $0x100] sm:$0xff] %vm7353, %v8201
      %8210 = vst.msk [vmem:[#allocation3 + $0x138] sm:$0xff] %vm7353, %v8202
      %8211 = vst.msk [vmem:[#allocation3 + $0x170] sm:$0xff] %vm7353, %v8203
      %8212 = vst.msk [vmem:[#allocation3 + $0x1a8] sm:$0xff] %vm7353, %v8204
      %v8213 = vld [vmem:[#allocation2 + $0x440] sm:$0xff]
      %v8214 = vld [vmem:[#allocation2 + $0x448] sm:$0xff]
      %v8215 = vld [vmem:[#allocation2 + $0x450] sm:$0xff]
      %v8216 = vld [vmem:[#allocation2 + $0x458] sm:$0xff]
      %v8217 = vld [vmem:[#allocation2 + $0x460] sm:$0xff]
      %v8218 = vld [vmem:[#allocation2 + $0x468] sm:$0xff]
      %v8219 = vld [vmem:[#allocation2 + $0x470] sm:$0xff]
      %v8220 = vld [vmem:[#allocation2 + $0x478] sm:$0xff]
      %8229 = vrot.lane.b32.xlu0 %v8213, 32
      %v8230 = vpop.permute.xlu0 %8229
      %8231 = vrot.lane.b32.xlu0 %v8214, 32
      %v8232 = vpop.permute.xlu0 %8231
      %8233 = vrot.lane.b32.xlu0 %v8215, 32
      %v8234 = vpop.permute.xlu0 %8233
      %8235 = vrot.lane.b32.xlu0 %v8216, 32
      %v8236 = vpop.permute.xlu0 %8235
      %8237 = vrot.lane.b32.xlu0 %v8217, 32
      %v8238 = vpop.permute.xlu0 %8237
      %8239 = vrot.lane.b32.xlu0 %v8218, 32
      %v8240 = vpop.permute.xlu0 %8239
      %8241 = vrot.lane.b32.xlu0 %v8219, 32
      %v8242 = vpop.permute.xlu0 %8241
      %8243 = vrot.lane.b32.xlu0 %v8220, 32
      %v8244 = vpop.permute.xlu0 %8243
      %8253 = vst.msk [vmem:[#allocation3 + $0x20] sm:$0xff] %vm7610, %v8230
      %8254 = vst.msk [vmem:[#allocation3 + $0x58] sm:$0xff] %vm7610, %v8232
      %8255 = vst.msk [vmem:[#allocation3 + $0x90] sm:$0xff] %vm7610, %v8234
      %8256 = vst.msk [vmem:[#allocation3 + $0xc8] sm:$0xff] %vm7610, %v8236
      %8257 = vst.msk [vmem:[#allocation3 + $0x100] sm:$0xff] %vm7610, %v8238
      %8258 = vst.msk [vmem:[#allocation3 + $0x138] sm:$0xff] %vm7610, %v8240
      %8259 = vst.msk [vmem:[#allocation3 + $0x170] sm:$0xff] %vm7610, %v8242
      %8260 = vst.msk [vmem:[#allocation3 + $0x1a8] sm:$0xff] %vm7610, %v8244
      %v8261 = vld [vmem:[#allocation2 + $0x480] sm:$0xff]
      %v8262 = vld [vmem:[#allocation2 + $0x488] sm:$0xff]
      %v8263 = vld [vmem:[#allocation2 + $0x490] sm:$0xff]
      %v8264 = vld [vmem:[#allocation2 + $0x498] sm:$0xff]
      %v8265 = vld [vmem:[#allocation2 + $0x4a0] sm:$0xff]
      %v8266 = vld [vmem:[#allocation2 + $0x4a8] sm:$0xff]
      %v8267 = vld [vmem:[#allocation2 + $0x4b0] sm:$0xff]
      %v8268 = vld [vmem:[#allocation2 + $0x4b8] sm:$0xff]
      %8277 = vrot.lane.b32.xlu0 %v8261, 64
      %v8278 = vpop.permute.xlu0 %8277
      %8279 = vrot.lane.b32.xlu0 %v8262, 64
      %v8280 = vpop.permute.xlu0 %8279
      %8281 = vrot.lane.b32.xlu0 %v8263, 64
      %v8282 = vpop.permute.xlu0 %8281
      %8283 = vrot.lane.b32.xlu0 %v8264, 64
      %v8284 = vpop.permute.xlu0 %8283
      %8285 = vrot.lane.b32.xlu0 %v8265, 64
      %v8286 = vpop.permute.xlu0 %8285
      %8287 = vrot.lane.b32.xlu0 %v8266, 64
      %v8288 = vpop.permute.xlu0 %8287
      %8289 = vrot.lane.b32.xlu0 %v8267, 64
      %v8290 = vpop.permute.xlu0 %8289
      %8291 = vrot.lane.b32.xlu0 %v8268, 64
      %v8292 = vpop.permute.xlu0 %8291
      %8301 = vst.msk [vmem:[#allocation3 + $0x20] sm:$0xff] %vm7659, %v8278
      %8302 = vst.msk [vmem:[#allocation3 + $0x58] sm:$0xff] %vm7659, %v8280
      %8303 = vst.msk [vmem:[#allocation3 + $0x90] sm:$0xff] %vm7659, %v8282
      %8304 = vst.msk [vmem:[#allocation3 + $0xc8] sm:$0xff] %vm7659, %v8284
      %8305 = vst.msk [vmem:[#allocation3 + $0x100] sm:$0xff] %vm7659, %v8286
      %8306 = vst.msk [vmem:[#allocation3 + $0x138] sm:$0xff] %vm7659, %v8288
      %8307 = vst.msk [vmem:[#allocation3 + $0x170] sm:$0xff] %vm7659, %v8290
      %8308 = vst.msk [vmem:[#allocation3 + $0x1a8] sm:$0xff] %vm7659, %v8292
      %v8309 = vld [vmem:[#allocation2 + $0x4c0] sm:$0xff]
      %v8310 = vld [vmem:[#allocation2 + $0x4c8] sm:$0xff]
      %v8311 = vld [vmem:[#allocation2 + $0x4d0] sm:$0xff]
      %v8312 = vld [vmem:[#allocation2 + $0x4d8] sm:$0xff]
      %v8313 = vld [vmem:[#allocation2 + $0x4e0] sm:$0xff]
      %v8314 = vld [vmem:[#allocation2 + $0x4e8] sm:$0xff]
      %v8315 = vld [vmem:[#allocation2 + $0x4f0] sm:$0xff]
      %v8316 = vld [vmem:[#allocation2 + $0x4f8] sm:$0xff]
      %8325 = vrot.lane.b32.xlu0 %v8309, 96
      %v8326 = vpop.permute.xlu0 %8325
      %8327 = vrot.lane.b32.xlu0 %v8310, 96
      %v8328 = vpop.permute.xlu0 %8327
      %8329 = vrot.lane.b32.xlu0 %v8311, 96
      %v8330 = vpop.permute.xlu0 %8329
      %8331 = vrot.lane.b32.xlu0 %v8312, 96
      %v8332 = vpop.permute.xlu0 %8331
      %8333 = vrot.lane.b32.xlu0 %v8313, 96
      %v8334 = vpop.permute.xlu0 %8333
      %8335 = vrot.lane.b32.xlu0 %v8314, 96
      %v8336 = vpop.permute.xlu0 %8335
      %8337 = vrot.lane.b32.xlu0 %v8315, 96
      %v8338 = vpop.permute.xlu0 %8337
      %8339 = vrot.lane.b32.xlu0 %v8316, 96
      %v8340 = vpop.permute.xlu0 %8339
      %8349 = vst.msk [vmem:[#allocation3 + $0x20] sm:$0xff] %vm7708, %v8326
      %8350 = vst.msk [vmem:[#allocation3 + $0x58] sm:$0xff] %vm7708, %v8328
      %8351 = vst.msk [vmem:[#allocation3 + $0x90] sm:$0xff] %vm7708, %v8330
      %8352 = vst.msk [vmem:[#allocation3 + $0xc8] sm:$0xff] %vm7708, %v8332
      %8353 = vst.msk [vmem:[#allocation3 + $0x100] sm:$0xff] %vm7708, %v8334
      %8354 = vst.msk [vmem:[#allocation3 + $0x138] sm:$0xff] %vm7708, %v8336
      %8355 = vst.msk [vmem:[#allocation3 + $0x170] sm:$0xff] %vm7708, %v8338
      %8356 = vst.msk [vmem:[#allocation3 + $0x1a8] sm:$0xff] %vm7708, %v8340
      %v8357 = vld [vmem:[#allocation2 + $0x500] sm:$0xff]
      %v8358 = vld [vmem:[#allocation2 + $0x508] sm:$0xff]
      %v8359 = vld [vmem:[#allocation2 + $0x510] sm:$0xff]
      %v8360 = vld [vmem:[#allocation2 + $0x518] sm:$0xff]
      %v8361 = vld [vmem:[#allocation2 + $0x520] sm:$0xff]
      %v8362 = vld [vmem:[#allocation2 + $0x528] sm:$0xff]
      %v8363 = vld [vmem:[#allocation2 + $0x530] sm:$0xff]
      %v8364 = vld [vmem:[#allocation2 + $0x538] sm:$0xff]
      %8365 = vst.msk [vmem:[#allocation3 + $0x28] sm:$0xff] %vm7353, %v8357
      %8366 = vst.msk [vmem:[#allocation3 + $0x60] sm:$0xff] %vm7353, %v8358
      %8367 = vst.msk [vmem:[#allocation3 + $0x98] sm:$0xff] %vm7353, %v8359
      %8368 = vst.msk [vmem:[#allocation3 + $0xd0] sm:$0xff] %vm7353, %v8360
      %8369 = vst.msk [vmem:[#allocation3 + $0x108] sm:$0xff] %vm7353, %v8361
      %8370 = vst.msk [vmem:[#allocation3 + $0x140] sm:$0xff] %vm7353, %v8362
      %8371 = vst.msk [vmem:[#allocation3 + $0x178] sm:$0xff] %vm7353, %v8363
      %8372 = vst.msk [vmem:[#allocation3 + $0x1b0] sm:$0xff] %vm7353, %v8364
      %v8373 = vld [vmem:[#allocation2 + $0x540] sm:$0xff]
      %v8374 = vld [vmem:[#allocation2 + $0x548] sm:$0xff]
      %v8375 = vld [vmem:[#allocation2 + $0x550] sm:$0xff]
      %v8376 = vld [vmem:[#allocation2 + $0x558] sm:$0xff]
      %v8377 = vld [vmem:[#allocation2 + $0x560] sm:$0xff]
      %v8378 = vld [vmem:[#allocation2 + $0x568] sm:$0xff]
      %v8379 = vld [vmem:[#allocation2 + $0x570] sm:$0xff]
      %v8380 = vld [vmem:[#allocation2 + $0x578] sm:$0xff]
      %8389 = vrot.lane.b32.xlu0 %v8373, 32
      %v8390 = vpop.permute.xlu0 %8389
      %8391 = vrot.lane.b32.xlu0 %v8374, 32
      %v8392 = vpop.permute.xlu0 %8391
      %8393 = vrot.lane.b32.xlu0 %v8375, 32
      %v8394 = vpop.permute.xlu0 %8393
      %8395 = vrot.lane.b32.xlu0 %v8376, 32
      %v8396 = vpop.permute.xlu0 %8395
      %8397 = vrot.lane.b32.xlu0 %v8377, 32
      %v8398 = vpop.permute.xlu0 %8397
      %8399 = vrot.lane.b32.xlu0 %v8378, 32
      %v8400 = vpop.permute.xlu0 %8399
      %8401 = vrot.lane.b32.xlu0 %v8379, 32
      %v8402 = vpop.permute.xlu0 %8401
      %8403 = vrot.lane.b32.xlu0 %v8380, 32
      %v8404 = vpop.permute.xlu0 %8403
      %8413 = vst.msk [vmem:[#allocation3 + $0x28] sm:$0xff] %vm7610, %v8390
      %8414 = vst.msk [vmem:[#allocation3 + $0x60] sm:$0xff] %vm7610, %v8392
      %8415 = vst.msk [vmem:[#allocation3 + $0x98] sm:$0xff] %vm7610, %v8394
      %8416 = vst.msk [vmem:[#allocation3 + $0xd0] sm:$0xff] %vm7610, %v8396
      %8417 = vst.msk [vmem:[#allocation3 + $0x108] sm:$0xff] %vm7610, %v8398
      %8418 = vst.msk [vmem:[#allocation3 + $0x140] sm:$0xff] %vm7610, %v8400
      %8419 = vst.msk [vmem:[#allocation3 + $0x178] sm:$0xff] %vm7610, %v8402
      %8420 = vst.msk [vmem:[#allocation3 + $0x1b0] sm:$0xff] %vm7610, %v8404
      %v8421 = vld [vmem:[#allocation2 + $0x580] sm:$0xff]
      %v8422 = vld [vmem:[#allocation2 + $0x588] sm:$0xff]
      %v8423 = vld [vmem:[#allocation2 + $0x590] sm:$0xff]
      %v8424 = vld [vmem:[#allocation2 + $0x598] sm:$0xff]
      %v8425 = vld [vmem:[#allocation2 + $0x5a0] sm:$0xff]
      %v8426 = vld [vmem:[#allocation2 + $0x5a8] sm:$0xff]
      %v8427 = vld [vmem:[#allocation2 + $0x5b0] sm:$0xff]
      %v8428 = vld [vmem:[#allocation2 + $0x5b8] sm:$0xff]
      %8437 = vrot.lane.b32.xlu0 %v8421, 64
      %v8438 = vpop.permute.xlu0 %8437
      %8439 = vrot.lane.b32.xlu0 %v8422, 64
      %v8440 = vpop.permute.xlu0 %8439
      %8441 = vrot.lane.b32.xlu0 %v8423, 64
      %v8442 = vpop.permute.xlu0 %8441
      %8443 = vrot.lane.b32.xlu0 %v8424, 64
      %v8444 = vpop.permute.xlu0 %8443
      %8445 = vrot.lane.b32.xlu0 %v8425, 64
      %v8446 = vpop.permute.xlu0 %8445
      %8447 = vrot.lane.b32.xlu0 %v8426, 64
      %v8448 = vpop.permute.xlu0 %8447
      %8449 = vrot.lane.b32.xlu0 %v8427, 64
      %v8450 = vpop.permute.xlu0 %8449
      %8451 = vrot.lane.b32.xlu0 %v8428, 64
      %v8452 = vpop.permute.xlu0 %8451
      %8461 = vst.msk [vmem:[#allocation3 + $0x28] sm:$0xff] %vm7659, %v8438
      %8462 = vst.msk [vmem:[#allocation3 + $0x60] sm:$0xff] %vm7659, %v8440
      %8463 = vst.msk [vmem:[#allocation3 + $0x98] sm:$0xff] %vm7659, %v8442
      %8464 = vst.msk [vmem:[#allocation3 + $0xd0] sm:$0xff] %vm7659, %v8444
      %8465 = vst.msk [vmem:[#allocation3 + $0x108] sm:$0xff] %vm7659, %v8446
      %8466 = vst.msk [vmem:[#allocation3 + $0x140] sm:$0xff] %vm7659, %v8448
      %8467 = vst.msk [vmem:[#allocation3 + $0x178] sm:$0xff] %vm7659, %v8450
      %8468 = vst.msk [vmem:[#allocation3 + $0x1b0] sm:$0xff] %vm7659, %v8452
      %v8469 = vld [vmem:[#allocation2 + $0x5c0] sm:$0xff]
      %v8470 = vld [vmem:[#allocation2 + $0x5c8] sm:$0xff]
      %v8471 = vld [vmem:[#allocation2 + $0x5d0] sm:$0xff]
      %v8472 = vld [vmem:[#allocation2 + $0x5d8] sm:$0xff]
      %v8473 = vld [vmem:[#allocation2 + $0x5e0] sm:$0xff]
      %v8474 = vld [vmem:[#allocation2 + $0x5e8] sm:$0xff]
      %v8475 = vld [vmem:[#allocation2 + $0x5f0] sm:$0xff]
      %v8476 = vld [vmem:[#allocation2 + $0x5f8] sm:$0xff]
      %8485 = vrot.lane.b32.xlu0 %v8469, 96
      %v8486 = vpop.permute.xlu0 %8485
      %8487 = vrot.lane.b32.xlu0 %v8470, 96
      %v8488 = vpop.permute.xlu0 %8487
      %8489 = vrot.lane.b32.xlu0 %v8471, 96
      %v8490 = vpop.permute.xlu0 %8489
      %8491 = vrot.lane.b32.xlu0 %v8472, 96
      %v8492 = vpop.permute.xlu0 %8491
      %8493 = vrot.lane.b32.xlu0 %v8473, 96
      %v8494 = vpop.permute.xlu0 %8493
      %8495 = vrot.lane.b32.xlu0 %v8474, 96
      %v8496 = vpop.permute.xlu0 %8495
      %8497 = vrot.lane.b32.xlu0 %v8475, 96
      %v8498 = vpop.permute.xlu0 %8497
      %8499 = vrot.lane.b32.xlu0 %v8476, 96
      %v8500 = vpop.permute.xlu0 %8499
      %8509 = vst.msk [vmem:[#allocation3 + $0x28] sm:$0xff] %vm7708, %v8486
      %8510 = vst.msk [vmem:[#allocation3 + $0x60] sm:$0xff] %vm7708, %v8488
      %8511 = vst.msk [vmem:[#allocation3 + $0x98] sm:$0xff] %vm7708, %v8490
      %8512 = vst.msk [vmem:[#allocation3 + $0xd0] sm:$0xff] %vm7708, %v8492
      %8513 = vst.msk [vmem:[#allocation3 + $0x108] sm:$0xff] %vm7708, %v8494
      %8514 = vst.msk [vmem:[#allocation3 + $0x140] sm:$0xff] %vm7708, %v8496
      %8515 = vst.msk [vmem:[#allocation3 + $0x178] sm:$0xff] %vm7708, %v8498
      %8516 = vst.msk [vmem:[#allocation3 + $0x1b0] sm:$0xff] %vm7708, %v8500
      %v8517 = vld [vmem:[#allocation2 + $0x600] sm:$0xff]
      %v8518 = vld [vmem:[#allocation2 + $0x608] sm:$0xff]
      %v8519 = vld [vmem:[#allocation2 + $0x610] sm:$0xff]
      %v8520 = vld [vmem:[#allocation2 + $0x618] sm:$0xff]
      %v8521 = vld [vmem:[#allocation2 + $0x620] sm:$0xff]
      %v8522 = vld [vmem:[#allocation2 + $0x628] sm:$0xff]
      %v8523 = vld [vmem:[#allocation2 + $0x630] sm:$0xff]
      %v8524 = vld [vmem:[#allocation2 + $0x638] sm:$0xff]
      %8525 = vst.msk [vmem:[#allocation3 + $0x30] sm:$0xff] %vm7353, %v8517
      %8526 = vst.msk [vmem:[#allocation3 + $0x68] sm:$0xff] %vm7353, %v8518
      %8527 = vst.msk [vmem:[#allocation3 + $0xa0] sm:$0xff] %vm7353, %v8519
      %8528 = vst.msk [vmem:[#allocation3 + $0xd8] sm:$0xff] %vm7353, %v8520
      %8529 = vst.msk [vmem:[#allocation3 + $0x110] sm:$0xff] %vm7353, %v8521
      %8530 = vst.msk [vmem:[#allocation3 + $0x148] sm:$0xff] %vm7353, %v8522
      %8531 = vst.msk [vmem:[#allocation3 + $0x180] sm:$0xff] %vm7353, %v8523
      %8532 = vst.msk [vmem:[#allocation3 + $0x1b8] sm:$0xff] %vm7353, %v8524
      %v8533 = vld [vmem:[#allocation3] sm:$0xff]
      %v8534 = vld [vmem:[#allocation3 + $0x8] sm:$0xff]
      %v8535 = vld [vmem:[#allocation3 + $0x10] sm:$0xff]
      %v8536 = vld [vmem:[#allocation3 + $0x18] sm:$0xff]
      %v8537 = vld [vmem:[#allocation3 + $0x20] sm:$0xff]
      %v8538 = vld [vmem:[#allocation3 + $0x28] sm:$0xff]
      %v8539 = vld [vmem:[#allocation3 + $0x30] sm:$0xff]
      %v8540 = vld [vmem:[#allocation3 + $0x38] sm:$0xff]
      %v8541 = vld [vmem:[#allocation3 + $0x40] sm:$0xff]
      %v8542 = vld [vmem:[#allocation3 + $0x48] sm:$0xff]
      %v8543 = vld [vmem:[#allocation3 + $0x50] sm:$0xff]
      %v8544 = vld [vmem:[#allocation3 + $0x58] sm:$0xff]
      %v8545 = vld [vmem:[#allocation3 + $0x60] sm:$0xff]
      %v8546 = vld [vmem:[#allocation3 + $0x68] sm:$0xff]
      %v8547 = vld [vmem:[#allocation3 + $0x70] sm:$0xff]
      %v8548 = vld [vmem:[#allocation3 + $0x78] sm:$0xff]
      %v8549 = vld [vmem:[#allocation3 + $0x80] sm:$0xff]
      %v8550 = vld [vmem:[#allocation3 + $0x88] sm:$0xff]
      %v8551 = vld [vmem:[#allocation3 + $0x90] sm:$0xff]
      %v8552 = vld [vmem:[#allocation3 + $0x98] sm:$0xff]
      %v8553 = vld [vmem:[#allocation3 + $0xa0] sm:$0xff]
      %v8554 = vld [vmem:[#allocation3 + $0xa8] sm:$0xff]
      %v8555 = vld [vmem:[#allocation3 + $0xb0] sm:$0xff]
      %v8556 = vld [vmem:[#allocation3 + $0xb8] sm:$0xff]
      %v8557 = vld [vmem:[#allocation3 + $0xc0] sm:$0xff]
      %v8558 = vld [vmem:[#allocation3 + $0xc8] sm:$0xff]
      %v8559 = vld [vmem:[#allocation3 + $0xd0] sm:$0xff]
      %v8560 = vld [vmem:[#allocation3 + $0xd8] sm:$0xff]
      %v8561 = vld [vmem:[#allocation3 + $0xe0] sm:$0xff]
      %v8562 = vld [vmem:[#allocation3 + $0xe8] sm:$0xff]
      %v8563 = vld [vmem:[#allocation3 + $0xf0] sm:$0xff]
      %v8564 = vld [vmem:[#allocation3 + $0xf8] sm:$0xff]
      %v8565 = vld [vmem:[#allocation3 + $0x100] sm:$0xff]
      %v8566 = vld [vmem:[#allocation3 + $0x108] sm:$0xff]
      %v8567 = vld [vmem:[#allocation3 + $0x110] sm:$0xff]
      %v8568 = vld [vmem:[#allocation3 + $0x118] sm:$0xff]
      %v8569 = vld [vmem:[#allocation3 + $0x120] sm:$0xff]
      %v8570 = vld [vmem:[#allocation3 + $0x128] sm:$0xff]
      %v8571 = vld [vmem:[#allocation3 + $0x130] sm:$0xff]
      %v8572 = vld [vmem:[#allocation3 + $0x138] sm:$0xff]
      %v8573 = vld [vmem:[#allocation3 + $0x140] sm:$0xff]
      %v8574 = vld [vmem:[#allocation3 + $0x148] sm:$0xff]
      %v8575 = vld [vmem:[#allocation3 + $0x150] sm:$0xff]
      %v8576 = vld [vmem:[#allocation3 + $0x158] sm:$0xff]
      %v8577 = vld [vmem:[#allocation3 + $0x160] sm:$0xff]
      %v8578 = vld [vmem:[#allocation3 + $0x168] sm:$0xff]
      %v8579 = vld [vmem:[#allocation3 + $0x170] sm:$0xff]
      %v8580 = vld [vmem:[#allocation3 + $0x178] sm:$0xff]
      %v8581 = vld [vmem:[#allocation3 + $0x180] sm:$0xff]
      %v8582 = vld [vmem:[#allocation3 + $0x188] sm:$0xff]
      %v8583 = vld [vmem:[#allocation3 + $0x190] sm:$0xff]
      %v8584 = vld [vmem:[#allocation3 + $0x198] sm:$0xff]
      %v8585 = vld [vmem:[#allocation3 + $0x1a0] sm:$0xff]
      %v8586 = vld [vmem:[#allocation3 + $0x1a8] sm:$0xff]
      %v8587 = vld [vmem:[#allocation3 + $0x1b0] sm:$0xff]
      %v8588 = vld [vmem:[#allocation3 + $0x1b8] sm:$0xff]
      %v8589 = vld [vmem:[%s4] sm:$0xf]
      %v8590 = vld [vmem:[%s4 + $0x4] sm:$0xf]
      %v8591 = vld [vmem:[%s4 + $0x8] sm:$0xf]
      %v8592 = vld [vmem:[%s4 + $0xc] sm:$0xf]
      %v8593 = vld [vmem:[%s4 + $0x10] sm:$0xf]
      %v8594 = vld [vmem:[%s4 + $0x14] sm:$0xf]
      %v8595 = vld [vmem:[%s4 + $0x18] sm:$0xf]
      %v8596 = vld [vmem:[%s4 + $0x1c] sm:$0xf]
      %v8597 = vld [vmem:[%s4 + $0x20] sm:$0xf]
      %v8598 = vld [vmem:[%s4 + $0x24] sm:$0xf]
      %v8599 = vld [vmem:[%s4 + $0x28] sm:$0xf]
      %v8600 = vld [vmem:[%s4 + $0x2c] sm:$0xf]
      %v8601 = vld [vmem:[%s4 + $0x30] sm:$0xf]
      %v8602 = vld [vmem:[%s4 + $0x34] sm:$0xf]
      %v8603 = vld [vmem:[%s4 + $0x38] sm:$0xf]
      %v8604 = vld [vmem:[%s4 + $0x3c] sm:$0xf]
      %v8605 = vld [vmem:[%s4 + $0x40] sm:$0xf]
      %v8606 = vld [vmem:[%s4 + $0x44] sm:$0xf]
      %v8607 = vld [vmem:[%s4 + $0x48] sm:$0xf]
      %v8608 = vld [vmem:[%s4 + $0x4c] sm:$0xf]
      %v8609 = vld [vmem:[%s4 + $0x50] sm:$0xf]
      %v8610 = vld [vmem:[%s4 + $0x54] sm:$0xf]
      %v8611 = vld [vmem:[%s4 + $0x58] sm:$0xf]
      %v8612 = vld [vmem:[%s4 + $0x5c] sm:$0xf]
      %v8613 = vld [vmem:[%s4 + $0x60] sm:$0xf]
      %v8614 = vld [vmem:[%s4 + $0x64] sm:$0xf]
      %v8615 = vld [vmem:[%s4 + $0x68] sm:$0xf]
      %v8616 = vld [vmem:[%s4 + $0x6c] sm:$0xf]
      %v8617 = vld [vmem:[%s4 + $0x70] sm:$0xf]
      %v8618 = vld [vmem:[%s4 + $0x74] sm:$0xf]
      %v8619 = vld [vmem:[%s4 + $0x78] sm:$0xf]
      %v8620 = vld [vmem:[%s4 + $0x7c] sm:$0xf]
      %v8621 = vld [vmem:[%s4 + $0x80] sm:$0xf]
      %v8622 = vld [vmem:[%s4 + $0x84] sm:$0xf]
      %v8623 = vld [vmem:[%s4 + $0x88] sm:$0xf]
      %v8624 = vld [vmem:[%s4 + $0x8c] sm:$0xf]
      %v8625 = vld [vmem:[%s4 + $0x90] sm:$0xf]
      %v8626 = vld [vmem:[%s4 + $0x94] sm:$0xf]
      %v8627 = vld [vmem:[%s4 + $0x98] sm:$0xf]
      %v8628 = vld [vmem:[%s4 + $0x9c] sm:$0xf]
      %v8629 = vld [vmem:[%s4 + $0xa0] sm:$0xf]
      %v8630 = vld [vmem:[%s4 + $0xa4] sm:$0xf]
      %v8631 = vld [vmem:[%s4 + $0xa8] sm:$0xf]
      %v8632 = vld [vmem:[%s4 + $0xac] sm:$0xf]
      %v8633 = vld [vmem:[%s4 + $0xb0] sm:$0xf]
      %v8634 = vld [vmem:[%s4 + $0xb4] sm:$0xf]
      %v8635 = vld [vmem:[%s4 + $0xb8] sm:$0xf]
      %v8636 = vld [vmem:[%s4 + $0xbc] sm:$0xf]
      %v8637 = vld [vmem:[%s4 + $0xc0] sm:$0xf]
      %v8638 = vld [vmem:[%s4 + $0xc4] sm:$0xf]
      %v8639 = vld [vmem:[%s4 + $0xc8] sm:$0xf]
      %v8640 = vld [vmem:[%s4 + $0xcc] sm:$0xf]
      %v8641 = vld [vmem:[%s4 + $0xd0] sm:$0xf]
      %v8642 = vld [vmem:[%s4 + $0xd4] sm:$0xf]
      %v8643 = vld [vmem:[%s4 + $0xd8] sm:$0xf]
      %v8644 = vld [vmem:[%s4 + $0xdc] sm:$0xf]
      %v8645 = vld [vmem:[%s4 + $0xe0] sm:$0xf]
      %v8646 = vld [vmem:[%s4 + $0xe4] sm:$0xf]
      %v8647 = vld [vmem:[%s4 + $0xe8] sm:$0xf]
      %v8648 = vld [vmem:[%s4 + $0xec] sm:$0xf]
      %v8649 = vld [vmem:[%s4 + $0xf0] sm:$0xf]
      %v8650 = vld [vmem:[%s4 + $0xf4] sm:$0xf]
      %v8651 = vld [vmem:[%s4 + $0xf8] sm:$0xf]
      %v8652 = vld [vmem:[%s4 + $0xfc] sm:$0xf]
      %v8653 = vld [vmem:[%s4 + $0x100] sm:$0xf]
      %v8654 = vld [vmem:[%s4 + $0x104] sm:$0xf]
      %v8655 = vld [vmem:[%s4 + $0x108] sm:$0xf]
      %v8656 = vld [vmem:[%s4 + $0x10c] sm:$0xf]
      %v8657 = vld [vmem:[%s4 + $0x110] sm:$0xf]
      %v8658 = vld [vmem:[%s4 + $0x114] sm:$0xf]
      %v8659 = vld [vmem:[%s4 + $0x118] sm:$0xf]
      %v8660 = vld [vmem:[%s4 + $0x11c] sm:$0xf]
      %v8661 = vld [vmem:[%s4 + $0x120] sm:$0xf]
      %v8662 = vld [vmem:[%s4 + $0x124] sm:$0xf]
      %v8663 = vld [vmem:[%s4 + $0x128] sm:$0xf]
      %v8664 = vld [vmem:[%s4 + $0x12c] sm:$0xf]
      %v8665 = vld [vmem:[%s4 + $0x130] sm:$0xf]
      %v8666 = vld [vmem:[%s4 + $0x134] sm:$0xf]
      %v8667 = vld [vmem:[%s4 + $0x138] sm:$0xf]
      %v8668 = vld [vmem:[%s4 + $0x13c] sm:$0xf]
      %v8669 = vld [vmem:[%s4 + $0x140] sm:$0xf]
      %v8670 = vld [vmem:[%s4 + $0x144] sm:$0xf]
      %v8671 = vld [vmem:[%s4 + $0x148] sm:$0xf]
      %v8672 = vld [vmem:[%s4 + $0x14c] sm:$0xf]
      %v8673 = vld [vmem:[%s4 + $0x150] sm:$0xf]
      %v8674 = vld [vmem:[%s4 + $0x154] sm:$0xf]
      %v8675 = vld [vmem:[%s4 + $0x158] sm:$0xf]
      %v8676 = vld [vmem:[%s4 + $0x15c] sm:$0xf]
      %v8677 = vld [vmem:[%s4 + $0x160] sm:$0xf]
      %v8678 = vld [vmem:[%s4 + $0x164] sm:$0xf]
      %v8679 = vld [vmem:[%s4 + $0x168] sm:$0xf]
      %v8680 = vld [vmem:[%s4 + $0x16c] sm:$0xf]
      %v8681 = vld [vmem:[%s4 + $0x170] sm:$0xf]
      %v8682 = vld [vmem:[%s4 + $0x174] sm:$0xf]
      %v8683 = vld [vmem:[%s4 + $0x178] sm:$0xf]
      %v8684 = vld [vmem:[%s4 + $0x17c] sm:$0xf]
      %v8685 = vld [vmem:[%s4 + $0x180] sm:$0xf]
      %v8686 = vld [vmem:[%s4 + $0x184] sm:$0xf]
      %v8687 = vld [vmem:[%s4 + $0x188] sm:$0xf]
      %v8688 = vld [vmem:[%s4 + $0x18c] sm:$0xf]
      %v8689 = vld [vmem:[%s5] sm:$0x1]
      %v8691 = vlaneseq
      %v8692 = vshrl.u32 %v8691, 7
      %v8693 = vsub.s32 0, %v8692
      %v8694 = vrot.slane %v8689, %v8693
      %v8796 = vunpack.c.l.b16 %v8589
      %v8797 = vunpack.c.l.b16 %v8590
      %v8798 = vunpack.c.l.b16 %v8591
      %v8799 = vunpack.c.l.b16 %v8592
      %v8800 = vunpack.c.l.b16 %v8593
      %v8801 = vunpack.c.l.b16 %v8594
      %v8802 = vunpack.c.l.b16 %v8595
      %v8803 = vunpack.c.l.b16 %v8596
      %v8804 = vunpack.c.l.b16 %v8597
      %v8805 = vunpack.c.l.b16 %v8598
      %v8806 = vunpack.c.l.b16 %v8599
      %v8807 = vunpack.c.l.b16 %v8600
      %v8808 = vunpack.c.l.b16 %v8601
      %v8809 = vunpack.c.l.b16 %v8602
      %v8810 = vunpack.c.l.b16 %v8603
      %v8811 = vunpack.c.l.b16 %v8604
      %v8812 = vunpack.c.l.b16 %v8605
      %v8813 = vunpack.c.l.b16 %v8606
      %v8814 = vunpack.c.l.b16 %v8607
      %v8815 = vunpack.c.l.b16 %v8608
      %v8816 = vunpack.c.l.b16 %v8609
      %v8817 = vunpack.c.l.b16 %v8610
      %v8818 = vunpack.c.l.b16 %v8611
      %v8819 = vunpack.c.l.b16 %v8612
      %v8820 = vunpack.c.l.b16 %v8613
      %v8821 = vunpack.c.l.b16 %v8614
      %v8822 = vunpack.c.l.b16 %v8615
      %v8823 = vunpack.c.l.b16 %v8616
      %v8824 = vunpack.c.l.b16 %v8617
      %v8825 = vunpack.c.l.b16 %v8618
      %v8826 = vunpack.c.l.b16 %v8619
      %v8827 = vunpack.c.l.b16 %v8620
      %v8828 = vunpack.c.l.b16 %v8621
      %v8829 = vunpack.c.l.b16 %v8622
      %v8830 = vunpack.c.l.b16 %v8623
      %v8831 = vunpack.c.l.b16 %v8624
      %v8832 = vunpack.c.l.b16 %v8625
      %v8833 = vunpack.c.l.b16 %v8626
      %v8834 = vunpack.c.l.b16 %v8627
      %v8835 = vunpack.c.l.b16 %v8628
      %v8836 = vunpack.c.l.b16 %v8629
      %v8837 = vunpack.c.l.b16 %v8630
      %v8838 = vunpack.c.l.b16 %v8631
      %v8839 = vunpack.c.l.b16 %v8632
      %v8840 = vunpack.c.l.b16 %v8633
      %v8841 = vunpack.c.l.b16 %v8634
      %v8842 = vunpack.c.l.b16 %v8635
      %v8843 = vunpack.c.l.b16 %v8636
      %v8844 = vunpack.c.l.b16 %v8637
      %v8845 = vunpack.c.l.b16 %v8638
      %v8846 = vunpack.c.l.b16 %v8639
      %v8847 = vunpack.c.l.b16 %v8640
      %v8848 = vunpack.c.l.b16 %v8641
      %v8849 = vunpack.c.l.b16 %v8642
      %v8850 = vunpack.c.l.b16 %v8643
      %v8851 = vunpack.c.l.b16 %v8644
      %v8852 = vunpack.c.l.b16 %v8645
      %v8853 = vunpack.c.l.b16 %v8646
      %v8854 = vunpack.c.l.b16 %v8647
      %v8855 = vunpack.c.l.b16 %v8648
      %v8856 = vunpack.c.l.b16 %v8649
      %v8857 = vunpack.c.l.b16 %v8650
      %v8858 = vunpack.c.l.b16 %v8651
      %v8859 = vunpack.c.l.b16 %v8652
      %v8860 = vunpack.c.l.b16 %v8653
      %v8861 = vunpack.c.l.b16 %v8654
      %v8862 = vunpack.c.l.b16 %v8655
      %v8863 = vunpack.c.l.b16 %v8656
      %v8864 = vunpack.c.l.b16 %v8657
      %v8865 = vunpack.c.l.b16 %v8658
      %v8866 = vunpack.c.l.b16 %v8659
      %v8867 = vunpack.c.l.b16 %v8660
      %v8868 = vunpack.c.l.b16 %v8661
      %v8869 = vunpack.c.l.b16 %v8662
      %v8870 = vunpack.c.l.b16 %v8663
      %v8871 = vunpack.c.l.b16 %v8664
      %v8872 = vunpack.c.l.b16 %v8665
      %v8873 = vunpack.c.l.b16 %v8666
      %v8874 = vunpack.c.l.b16 %v8667
      %v8875 = vunpack.c.l.b16 %v8668
      %v8876 = vunpack.c.l.b16 %v8669
      %v8877 = vunpack.c.l.b16 %v8670
      %v8878 = vunpack.c.l.b16 %v8671
      %v8879 = vunpack.c.l.b16 %v8672
      %v8880 = vunpack.c.l.b16 %v8673
      %v8881 = vunpack.c.l.b16 %v8674
      %v8882 = vunpack.c.l.b16 %v8675
      %v8883 = vunpack.c.l.b16 %v8676
      %v8884 = vunpack.c.l.b16 %v8677
      %v8885 = vunpack.c.l.b16 %v8678
      %v8886 = vunpack.c.l.b16 %v8679
      %v8887 = vunpack.c.l.b16 %v8680
      %v8888 = vunpack.c.l.b16 %v8681
      %v8889 = vunpack.c.l.b16 %v8682
      %v8890 = vunpack.c.l.b16 %v8683
      %v8891 = vunpack.c.l.b16 %v8684
      %v8892 = vunpack.c.l.b16 %v8685
      %v8893 = vunpack.c.l.b16 %v8686
      %v8894 = vunpack.c.l.b16 %v8687
      %v8895 = vunpack.c.l.b16 %v8688
      %v8896 = vpack.c.b16 %v8797, %v8796
      %v8897 = vpack.c.b16 %v8799, %v8798
      %v8898 = vpack.c.b16 %v8801, %v8800
      %v8899 = vpack.c.b16 %v8803, %v8802
      %v8900 = vpack.c.b16 %v8805, %v8804
      %v8901 = vpack.c.b16 %v8807, %v8806
      %v8902 = vpack.c.b16 %v8809, %v8808
      %v8903 = vpack.c.b16 %v8811, %v8810
      %v8904 = vpack.c.b16 %v8813, %v8812
      %v8905 = vpack.c.b16 %v8815, %v8814
      %v8906 = vpack.c.b16 %v8817, %v8816
      %v8907 = vpack.c.b16 %v8819, %v8818
      %v8908 = vpack.c.b16 %v8821, %v8820
      %v8909 = vpack.c.b16 %v8823, %v8822
      %v8910 = vpack.c.b16 %v8825, %v8824
      %v8911 = vpack.c.b16 %v8827, %v8826
      %v8912 = vpack.c.b16 %v8829, %v8828
      %v8913 = vpack.c.b16 %v8831, %v8830
      %v8914 = vpack.c.b16 %v8833, %v8832
      %v8915 = vpack.c.b16 %v8835, %v8834
      %v8916 = vpack.c.b16 %v8837, %v8836
      %v8917 = vpack.c.b16 %v8839, %v8838
      %v8918 = vpack.c.b16 %v8841, %v8840
      %v8919 = vpack.c.b16 %v8843, %v8842
      %v8920 = vpack.c.b16 %v8845, %v8844
      %v8921 = vpack.c.b16 %v8847, %v8846
      %v8922 = vpack.c.b16 %v8849, %v8848
      %v8923 = vpack.c.b16 %v8851, %v8850
      %v8924 = vpack.c.b16 %v8853, %v8852
      %v8925 = vpack.c.b16 %v8855, %v8854
      %v8926 = vpack.c.b16 %v8857, %v8856
      %v8927 = vpack.c.b16 %v8859, %v8858
      %v8928 = vpack.c.b16 %v8861, %v8860
      %v8929 = vpack.c.b16 %v8863, %v8862
      %v8930 = vpack.c.b16 %v8865, %v8864
      %v8931 = vpack.c.b16 %v8867, %v8866
      %v8932 = vpack.c.b16 %v8869, %v8868
      %v8933 = vpack.c.b16 %v8871, %v8870
      %v8934 = vpack.c.b16 %v8873, %v8872
      %v8935 = vpack.c.b16 %v8875, %v8874
      %v8936 = vpack.c.b16 %v8877, %v8876
      %v8937 = vpack.c.b16 %v8879, %v8878
      %v8938 = vpack.c.b16 %v8881, %v8880
      %v8939 = vpack.c.b16 %v8883, %v8882
      %v8940 = vpack.c.b16 %v8885, %v8884
      %v8941 = vpack.c.b16 %v8887, %v8886
      %v8942 = vpack.c.b16 %v8889, %v8888
      %v8943 = vpack.c.b16 %v8891, %v8890
      %v8944 = vpack.c.b16 %v8893, %v8892
      %v8945 = vpack.c.b16 %v8895, %v8894
      %v8997 = vsel %vm7353, %v8539, 0
      %v9000 = vsel %vm7353, %v8546, 0
      %v9003 = vsel %vm7353, %v8553, 0
      %v9006 = vsel %vm7353, %v8560, 0
      %v9009 = vsel %vm7353, %v8567, 0
      %v9012 = vsel %vm7353, %v8574, 0
      %v9015 = vsel %vm7353, %v8581, 0
      %v9018 = vsel %vm7353, %v8588, 0
      %9020 = vmatprep.subr.bf16.mxu0 0
      %9021 = vmatpush1.bf16.msra.mxu0 %v8896
      %9022 = vmatprep.subr.bf16.mxu0 0
      %9023 = vmatpush1.bf16.msra.mxu0 %v8897
      %9024 = vmatprep.subr.bf16.mxu0 0
      %9025 = vmatpush1.bf16.msra.mxu0 %v8898
      %9026 = vmatprep.subr.bf16.mxu0 0
      %9027 = vmatpush1.bf16.msra.mxu0 %v8899
      %9028 = vmatprep.subr.bf16.mxu0 0
      %9029 = vmatpush1.bf16.msra.mxu0 %v8900
      %9030 = vmatprep.subr.bf16.mxu0 0
      %9031 = vmatpush1.bf16.msra.mxu0 %v8901
      %9032 = vmatprep.subr.bf16.mxu0 0
      %9033 = vmatpush1.bf16.msra.mxu0 %v8902
      %9034 = vmatprep.subr.bf16.mxu0 0
      %9035 = vmatpush1.bf16.msra.mxu0 %v8903
      %9036 = vmatprep.subr.bf16.mxu0 0
      %9037 = vmatpush1.bf16.msra.mxu0 %v8904
      %9038 = vmatprep.subr.bf16.mxu0 0
      %9039 = vmatpush1.bf16.msra.mxu0 %v8905
      %9040 = vmatprep.subr.bf16.mxu0 0
      %9041 = vmatpush1.bf16.msra.mxu0 %v8906
      %9042 = vmatprep.subr.bf16.mxu0 0
      %9043 = vmatpush1.bf16.msra.mxu0 %v8907
      %9044 = vmatprep.subr.bf16.mxu0 0
      %9045 = vmatpush1.bf16.msra.mxu0 %v8908
      %9046 = vmatprep.subr.bf16.mxu0 0
      %9047 = vmatpush1.bf16.msra.mxu0 %v8909
      %9048 = vmatprep.subr.bf16.mxu0 0
      %9049 = vmatpush1.bf16.msra.mxu0 %v8910
      %9050 = vmatprep.subr.bf16.mxu0 0
      %9051 = vmatpush1.bf16.msra.mxu0 %v8911
      %9052 = vmatprep.mubr.bf16.mxu0 %v8534
      %9053 = vmatmul.mubr.bf16.gmra.mrb[0].mxu0 %v8533
      %v9054 = vpop.f32.mrb[0].mxu0
      %v9055 = vadd.f32 %v8694, %v9054
      %v9056 = vpop.f32.mrb[0].mxu0
      %v9057 = vpop.f32.mrb[0].mxu0
      %v9058 = vadd.f32 %v8694, %v9057
      %v9059 = vpop.f32.mrb[0].mxu0
      %9060 = vmatprep.mubr.bf16.mxu0 %v8541
      %9061 = vmatmul.mubr.bf16.gmra.mrb[0].mxu0 %v8540
      %v9062 = vpop.f32.mrb[0].mxu0
      %v9063 = vadd.f32 %v8694, %v9062
      %v9064 = vpop.f32.mrb[0].mxu0
      %v9065 = vpop.f32.mrb[0].mxu0
      %v9066 = vadd.f32 %v8694, %v9065
      %v9067 = vpop.f32.mrb[0].mxu0
      %9068 = vmatprep.mubr.bf16.mxu0 %v8548
      %9069 = vmatmul.mubr.bf16.gmra.mrb[0].mxu0 %v8547
      %v9070 = vpop.f32.mrb[0].mxu0
      %v9071 = vadd.f32 %v8694, %v9070
      %v9072 = vpop.f32.mrb[0].mxu0
      %v9073 = vpop.f32.mrb[0].mxu0
      %v9074 = vadd.f32 %v8694, %v9073
      %v9075 = vpop.f32.mrb[0].mxu0
      %9076 = vmatprep.mubr.bf16.mxu0 %v8555
      %9077 = vmatmul.mubr.bf16.gmra.mrb[0].mxu0 %v8554
      %v9078 = vpop.f32.mrb[0].mxu0
      %v9079 = vadd.f32 %v8694, %v9078
      %v9080 = vpop.f32.mrb[0].mxu0
      %v9081 = vpop.f32.mrb[0].mxu0
      %v9082 = vadd.f32 %v8694, %v9081
      %v9083 = vpop.f32.mrb[0].mxu0
      %9084 = vmatprep.mubr.bf16.mxu0 %v8562
      %9085 = vmatmul.mubr.bf16.gmra.mrb[0].mxu0 %v8561
      %v9086 = vpop.f32.mrb[0].mxu0
      %v9087 = vadd.f32 %v8694, %v9086
      %v9088 = vpop.f32.mrb[0].mxu0
      %v9089 = vpop.f32.mrb[0].mxu0
      %v9090 = vadd.f32 %v8694, %v9089
      %v9091 = vpop.f32.mrb[0].mxu0
      %9092 = vmatprep.mubr.bf16.mxu0 %v8569
      %9093 = vmatmul.mubr.bf16.gmra.mrb[0].mxu0 %v8568
      %v9094 = vpop.f32.mrb[0].mxu0
      %v9095 = vadd.f32 %v8694, %v9094
      %v9096 = vpop.f32.mrb[0].mxu0
      %v9097 = vpop.f32.mrb[0].mxu0
      %v9098 = vadd.f32 %v8694, %v9097
      %v9099 = vpop.f32.mrb[0].mxu0
      %9100 = vmatprep.mubr.bf16.mxu0 %v8576
      %9101 = vmatmul.mubr.bf16.gmra.mrb[0].mxu0 %v8575
      %v9102 = vpop.f32.mrb[0].mxu0
      %v9103 = vadd.f32 %v8694, %v9102
      %v9104 = vpop.f32.mrb[0].mxu0
      %v9105 = vpop.f32.mrb[0].mxu0
      %v9106 = vadd.f32 %v8694, %v9105
      %v9107 = vpop.f32.mrb[0].mxu0
      %9108 = vmatprep.mubr.bf16.mxu0 %v8583
      %9109 = vmatmul.mubr.bf16.gmra.mrb[0].mxu0 %v8582
      %v9110 = vpop.f32.mrb[0].mxu0
      %v9111 = vadd.f32 %v8694, %v9110
      %v9112 = vpop.f32.mrb[0].mxu0
      %v9113 = vpop.f32.mrb[0].mxu0
      %v9114 = vadd.f32 %v8694, %v9113
      %v9115 = vpop.f32.mrb[0].mxu0
      %9116 = vdwg.mxu0
      %9117 = vmatprep.subr.bf16.mxu0 0
      %9118 = vmatpush1.bf16.msra.mxu0 %v8912
      %9119 = vmatprep.subr.bf16.mxu0 0
      %9120 = vmatpush1.bf16.msra.mxu0 %v8913
      %9121 = vmatprep.subr.bf16.mxu0 0
      %9122 = vmatpush1.bf16.msra.mxu0 %v8914
      %9123 = vmatprep.subr.bf16.mxu0 0
      %9124 = vmatpush1.bf16.msra.mxu0 %v8915
      %9125 = vmatprep.subr.bf16.mxu0 0
      %9126 = vmatpush1.bf16.msra.mxu0 %v8916
      %9127 = vmatprep.subr.bf16.mxu0 0
      %9128 = vmatpush1.bf16.msra.mxu0 %v8917
      %9129 = vmatprep.subr.bf16.mxu0 0
      %9130 = vmatpush1.bf16.msra.mxu0 %v8918
      %9131 = vmatprep.subr.bf16.mxu0 0
      %9132 = vmatpush1.bf16.msra.mxu0 %v8919
      %9133 = vmatprep.subr.bf16.mxu0 0
      %9134 = vmatpush1.bf16.msra.mxu0 %v8920
      %9135 = vmatprep.subr.bf16.mxu0 0
      %9136 = vmatpush1.bf16.msra.mxu0 %v8921
      %9137 = vmatprep.subr.bf16.mxu0 0
      %9138 = vmatpush1.bf16.msra.mxu0 %v8922
      %9139 = vmatprep.subr.bf16.mxu0 0
      %9140 = vmatpush1.bf16.msra.mxu0 %v8923
      %9141 = vmatprep.subr.bf16.mxu0 0
      %9142 = vmatpush1.bf16.msra.mxu0 %v8924
      %9143 = vmatprep.subr.bf16.mxu0 0
      %9144 = vmatpush1.bf16.msra.mxu0 %v8925
      %9145 = vmatprep.subr.bf16.mxu0 0
      %9146 = vmatpush1.bf16.msra.mxu0 %v8926
      %9147 = vmatprep.subr.bf16.mxu0 0
      %9148 = vmatpush1.bf16.msra.mxu0 %v8927
      %9149 = vmatprep.mubr.bf16.mxu0 %v8536
      %9150 = vmatmul.mubr.bf16.gmra.mrb[0].mxu0 %v8535
      %v9151 = vpop.f32.mrb[0].mxu0
      %v9152 = vadd.f32 %v9055, %v9151
      %v9153 = vpop.f32.mrb[0].mxu0
      %v9154 = vpop.f32.mrb[0].mxu0
      %v9155 = vadd.f32 %v9058, %v9154
      %v9156 = vpop.f32.mrb[0].mxu0
      %9157 = vmatprep.mubr.bf16.mxu0 %v8543
      %9158 = vmatmul.mubr.bf16.gmra.mrb[0].mxu0 %v8542
      %v9159 = vpop.f32.mrb[0].mxu0
      %v9160 = vadd.f32 %v9063, %v9159
      %v9161 = vpop.f32.mrb[0].mxu0
      %v9162 = vpop.f32.mrb[0].mxu0
      %v9163 = vadd.f32 %v9066, %v9162
      %v9164 = vpop.f32.mrb[0].mxu0
      %9165 = vmatprep.mubr.bf16.mxu0 %v8550
      %9166 = vmatmul.mubr.bf16.gmra.mrb[0].mxu0 %v8549
      %v9167 = vpop.f32.mrb[0].mxu0
      %v9168 = vadd.f32 %v9071, %v9167
      %v9169 = vpop.f32.mrb[0].mxu0
      %v9170 = vpop.f32.mrb[0].mxu0
      %v9171 = vadd.f32 %v9074, %v9170
      %v9172 = vpop.f32.mrb[0].mxu0
      %9173 = vmatprep.mubr.bf16.mxu0 %v8557
      %9174 = vmatmul.mubr.bf16.gmra.mrb[0].mxu0 %v8556
      %v9175 = vpop.f32.mrb[0].mxu0
      %v9176 = vadd.f32 %v9079, %v9175
      %v9177 = vpop.f32.mrb[0].mxu0
      %v9178 = vpop.f32.mrb[0].mxu0
      %v9179 = vadd.f32 %v9082, %v9178
      %v9180 = vpop.f32.mrb[0].mxu0
      %9181 = vmatprep.mubr.bf16.mxu0 %v8564
      %9182 = vmatmul.mubr.bf16.gmra.mrb[0].mxu0 %v8563
      %v9183 = vpop.f32.mrb[0].mxu0
      %v9184 = vadd.f32 %v9087, %v9183
      %v9185 = vpop.f32.mrb[0].mxu0
      %v9186 = vpop.f32.mrb[0].mxu0
      %v9187 = vadd.f32 %v9090, %v9186
      %v9188 = vpop.f32.mrb[0].mxu0
      %9189 = vmatprep.mubr.bf16.mxu0 %v8571
      %9190 = vmatmul.mubr.bf16.gmra.mrb[0].mxu0 %v8570
      %v9191 = vpop.f32.mrb[0].mxu0
      %v9192 = vadd.f32 %v9095, %v9191
      %v9193 = vpop.f32.mrb[0].mxu0
      %v9194 = vpop.f32.mrb[0].mxu0
      %v9195 = vadd.f32 %v9098, %v9194
      %v9196 = vpop.f32.mrb[0].mxu0
      %9197 = vmatprep.mubr.bf16.mxu0 %v8578
      %9198 = vmatmul.mubr.bf16.gmra.mrb[0].mxu0 %v8577
      %v9199 = vpop.f32.mrb[0].mxu0
      %v9200 = vadd.f32 %v9103, %v9199
      %v9201 = vpop.f32.mrb[0].mxu0
      %v9202 = vpop.f32.mrb[0].mxu0
      %v9203 = vadd.f32 %v9106, %v9202
      %v9204 = vpop.f32.mrb[0].mxu0
      %9205 = vmatprep.mubr.bf16.mxu0 %v8585
      %9206 = vmatmul.mubr.bf16.gmra.mrb[0].mxu0 %v8584
      %v9207 = vpop.f32.mrb[0].mxu0
      %v9208 = vadd.f32 %v9111, %v9207
      %v9209 = vpop.f32.mrb[0].mxu0
      %v9210 = vpop.f32.mrb[0].mxu0
      %v9211 = vadd.f32 %v9114, %v9210
      %v9212 = vpop.f32.mrb[0].mxu0
      %9213 = vdwg.mxu0
      %9214 = vmatprep.subr.bf16.mxu0 0
      %9215 = vmatpush1.bf16.msra.mxu0 %v8928
      %9216 = vmatprep.subr.bf16.mxu0 0
      %9217 = vmatpush1.bf16.msra.mxu0 %v8929
      %9218 = vmatprep.subr.bf16.mxu0 0
      %9219 = vmatpush1.bf16.msra.mxu0 %v8930
      %9220 = vmatprep.subr.bf16.mxu0 0
      %9221 = vmatpush1.bf16.msra.mxu0 %v8931
      %9222 = vmatprep.subr.bf16.mxu0 0
      %9223 = vmatpush1.bf16.msra.mxu0 %v8932
      %9224 = vmatprep.subr.bf16.mxu0 0
      %9225 = vmatpush1.bf16.msra.mxu0 %v8933
      %9226 = vmatprep.subr.bf16.mxu0 0
      %9227 = vmatpush1.bf16.msra.mxu0 %v8934
      %9228 = vmatprep.subr.bf16.mxu0 0
      %9229 = vmatpush1.bf16.msra.mxu0 %v8935
      %9230 = vmatprep.subr.bf16.mxu0 0
      %9231 = vmatpush1.bf16.msra.mxu0 %v8936
      %9232 = vmatprep.subr.bf16.mxu0 0
      %9233 = vmatpush1.bf16.msra.mxu0 %v8937
      %9234 = vmatprep.subr.bf16.mxu0 0
      %9235 = vmatpush1.bf16.msra.mxu0 %v8938
      %9236 = vmatprep.subr.bf16.mxu0 0
      %9237 = vmatpush1.bf16.msra.mxu0 %v8939
      %9238 = vmatprep.subr.bf16.mxu0 0
      %9239 = vmatpush1.bf16.msra.mxu0 %v8940
      %9240 = vmatprep.subr.bf16.mxu0 0
      %9241 = vmatpush1.bf16.msra.mxu0 %v8941
      %9242 = vmatprep.subr.bf16.mxu0 0
      %9243 = vmatpush1.bf16.msra.mxu0 %v8942
      %9244 = vmatprep.subr.bf16.mxu0 0
      %9245 = vmatpush1.bf16.msra.mxu0 %v8943
      %9246 = vmatprep.mubr.bf16.mxu0 %v8538
      %9247 = vmatmul.mubr.bf16.gmra.mrb[0].mxu0 %v8537
      %v9248 = vpop.f32.mrb[0].mxu0
      %v9249 = vadd.f32 %v9152, %v9248
      %v9250 = vpop.f32.mrb[0].mxu0
      %v9251 = vpop.f32.mrb[0].mxu0
      %v9252 = vadd.f32 %v9155, %v9251
      %v9253 = vpop.f32.mrb[0].mxu0
      %9254 = vmatprep.mubr.bf16.mxu0 %v8545
      %9255 = vmatmul.mubr.bf16.gmra.mrb[0].mxu0 %v8544
      %v9256 = vpop.f32.mrb[0].mxu0
      %v9257 = vadd.f32 %v9160, %v9256
      %v9258 = vpop.f32.mrb[0].mxu0
      %v9259 = vpop.f32.mrb[0].mxu0
      %v9260 = vadd.f32 %v9163, %v9259
      %v9261 = vpop.f32.mrb[0].mxu0
      %9262 = vmatprep.mubr.bf16.mxu0 %v8552
      %9263 = vmatmul.mubr.bf16.gmra.mrb[0].mxu0 %v8551
      %v9264 = vpop.f32.mrb[0].mxu0
      %v9265 = vadd.f32 %v9168, %v9264
      %v9266 = vpop.f32.mrb[0].mxu0
      %v9267 = vpop.f32.mrb[0].mxu0
      %v9268 = vadd.f32 %v9171, %v9267
      %v9269 = vpop.f32.mrb[0].mxu0
      %9270 = vmatprep.mubr.bf16.mxu0 %v8559
      %9271 = vmatmul.mubr.bf16.gmra.mrb[0].mxu0 %v8558
      %v9272 = vpop.f32.mrb[0].mxu0
      %v9273 = vadd.f32 %v9176, %v9272
      %v9274 = vpop.f32.mrb[0].mxu0
      %v9275 = vpop.f32.mrb[0].mxu0
      %v9276 = vadd.f32 %v9179, %v9275
      %v9277 = vpop.f32.mrb[0].mxu0
      %9278 = vmatprep.mubr.bf16.mxu0 %v8566
      %9279 = vmatmul.mubr.bf16.gmra.mrb[0].mxu0 %v8565
      %v9280 = vpop.f32.mrb[0].mxu0
      %v9281 = vadd.f32 %v9184, %v9280
      %v9282 = vpop.f32.mrb[0].mxu0
      %v9283 = vpop.f32.mrb[0].mxu0
      %v9284 = vadd.f32 %v9187, %v9283
      %v9285 = vpop.f32.mrb[0].mxu0
      %9286 = vmatprep.mubr.bf16.mxu0 %v8573
      %9287 = vmatmul.mubr.bf16.gmra.mrb[0].mxu0 %v8572
      %v9288 = vpop.f32.mrb[0].mxu0
      %v9289 = vadd.f32 %v9192, %v9288
      %v9290 = vpop.f32.mrb[0].mxu0
      %v9291 = vpop.f32.mrb[0].mxu0
      %v9292 = vadd.f32 %v9195, %v9291
      %v9293 = vpop.f32.mrb[0].mxu0
      %9294 = vmatprep.mubr.bf16.mxu0 %v8580
      %9295 = vmatmul.mubr.bf16.gmra.mrb[0].mxu0 %v8579
      %v9296 = vpop.f32.mrb[0].mxu0
      %v9297 = vadd.f32 %v9200, %v9296
      %v9298 = vpop.f32.mrb[0].mxu0
      %v9299 = vpop.f32.mrb[0].mxu0
      %v9300 = vadd.f32 %v9203, %v9299
      %v9301 = vpop.f32.mrb[0].mxu0
      %9302 = vmatprep.mubr.bf16.mxu0 %v8587
      %9303 = vmatmul.mubr.bf16.gmra.mrb[0].mxu0 %v8586
      %v9304 = vpop.f32.mrb[0].mxu0
      %v9305 = vadd.f32 %v9208, %v9304
      %v9306 = vpop.f32.mrb[0].mxu0
      %v9307 = vpop.f32.mrb[0].mxu0
      %v9308 = vadd.f32 %v9211, %v9307
      %v9309 = vpop.f32.mrb[0].mxu0
      %9310 = vdwg.mxu0
      %9311 = vmatprep.subr.bf16.mxu0 0
      %9312 = vmatpush1.bf16.msra.mxu0 %v8944
      %9313 = vmatprep.subr.bf16.mxu0 0
      %9314 = vmatpush1.bf16.msra.mxu0 %v8945
      %9315 = vmatprep.subr.bf16.mxu0 0
      %9316 = vmatpush1.bf16.msra.mxu0 0
      %9317 = vmatprep.subr.bf16.mxu0 0
      %9318 = vmatpush1.bf16.msra.mxu0 0
      %9319 = vmatprep.subr.bf16.mxu0 0
      %9320 = vmatpush1.bf16.msra.mxu0 0
      %9321 = vmatprep.subr.bf16.mxu0 0
      %9322 = vmatpush1.bf16.msra.mxu0 0
      %9323 = vmatprep.subr.bf16.mxu0 0
      %9324 = vmatpush1.bf16.msra.mxu0 0
      %9325 = vmatprep.subr.bf16.mxu0 0
      %9326 = vmatpush1.bf16.msra.mxu0 0
      %9327 = vmatprep.subr.bf16.mxu0 0
      %9328 = vmatpush1.bf16.msra.mxu0 0
      %9329 = vmatprep.subr.bf16.mxu0 0
      %9330 = vmatpush1.bf16.msra.mxu0 0
      %9331 = vmatprep.subr.bf16.mxu0 0
      %9332 = vmatpush1.bf16.msra.mxu0 0
      %9333 = vmatprep.subr.bf16.mxu0 0
      %9334 = vmatpush1.bf16.msra.mxu0 0
      %9335 = vmatprep.subr.bf16.mxu0 0
      %9336 = vmatpush1.bf16.msra.mxu0 0
      %9337 = vmatprep.subr.bf16.mxu0 0
      %9338 = vmatpush1.bf16.msra.mxu0 0
      %9339 = vmatprep.subr.bf16.mxu0 0
      %9340 = vmatpush1.bf16.msra.mxu0 0
      %9341 = vmatprep.subr.bf16.mxu0 0
      %9342 = vmatpush1.bf16.msra.mxu0 0
      %9343 = vmatprep.mubr.bf16.mxu0 0
      %9344 = vmatmul.mubr.bf16.gmra.mrb[0].mxu0 %v8997
      %v9345 = vpop.f32.mrb[0].mxu0
      %v9346 = vadd.f32 %v9249, %v9345
      %v9347 = vpop.f32.mrb[0].mxu0
      %v9348 = vpop.f32.mrb[0].mxu0
      %v9349 = vadd.f32 %v9252, %v9348
      %v9350 = vpop.f32.mrb[0].mxu0
      %9351 = vmatprep.mubr.bf16.mxu0 0
      %9352 = vmatmul.mubr.bf16.gmra.mrb[0].mxu0 %v9000
      %v9353 = vpop.f32.mrb[0].mxu0
      %v9354 = vadd.f32 %v9257, %v9353
      %v9355 = vpop.f32.mrb[0].mxu0
      %v9356 = vpop.f32.mrb[0].mxu0
      %v9357 = vadd.f32 %v9260, %v9356
      %v9358 = vpop.f32.mrb[0].mxu0
      %9359 = vmatprep.mubr.bf16.mxu0 0
      %9360 = vmatmul.mubr.bf16.gmra.mrb[0].mxu0 %v9003
      %v9361 = vpop.f32.mrb[0].mxu0
      %v9362 = vadd.f32 %v9265, %v9361
      %v9363 = vpop.f32.mrb[0].mxu0
      %v9364 = vpop.f32.mrb[0].mxu0
      %v9365 = vadd.f32 %v9268, %v9364
      %v9366 = vpop.f32.mrb[0].mxu0
      %9367 = vmatprep.mubr.bf16.mxu0 0
      %9368 = vmatmul.mubr.bf16.gmra.mrb[0].mxu0 %v9006
      %v9369 = vpop.f32.mrb[0].mxu0
      %v9370 = vadd.f32 %v9273, %v9369
      %v9371 = vpop.f32.mrb[0].mxu0
      %v9372 = vpop.f32.mrb[0].mxu0
      %v9373 = vadd.f32 %v9276, %v9372
      %v9374 = vpop.f32.mrb[0].mxu0
      %9375 = vmatprep.mubr.bf16.mxu0 0
      %9376 = vmatmul.mubr.bf16.gmra.mrb[0].mxu0 %v9009
      %v9377 = vpop.f32.mrb[0].mxu0
      %v9378 = vadd.f32 %v9281, %v9377
      %v9379 = vpop.f32.mrb[0].mxu0
      %v9380 = vpop.f32.mrb[0].mxu0
      %v9381 = vadd.f32 %v9284, %v9380
      %v9382 = vpop.f32.mrb[0].mxu0
      %9383 = vmatprep.mubr.bf16.mxu0 0
      %9384 = vmatmul.mubr.bf16.gmra.mrb[0].mxu0 %v9012
      %v9385 = vpop.f32.mrb[0].mxu0
      %v9386 = vadd.f32 %v9289, %v9385
      %v9387 = vpop.f32.mrb[0].mxu0
      %v9388 = vpop.f32.mrb[0].mxu0
      %v9389 = vadd.f32 %v9292, %v9388
      %v9390 = vpop.f32.mrb[0].mxu0
      %9391 = vmatprep.mubr.bf16.mxu0 0
      %9392 = vmatmul.mubr.bf16.gmra.mrb[0].mxu0 %v9015
      %v9393 = vpop.f32.mrb[0].mxu0
      %v9394 = vadd.f32 %v9297, %v9393
      %v9395 = vpop.f32.mrb[0].mxu0
      %v9396 = vpop.f32.mrb[0].mxu0
      %v9397 = vadd.f32 %v9300, %v9396
      %v9398 = vpop.f32.mrb[0].mxu0
      %9399 = vmatprep.mubr.bf16.mxu0 0
      %9400 = vmatmul.mubr.bf16.gmra.mrb[0].mxu0 %v9018
      %v9401 = vpop.f32.mrb[0].mxu0
      %v9402 = vadd.f32 %v9305, %v9401
      %v9403 = vpop.f32.mrb[0].mxu0
      %v9404 = vpop.f32.mrb[0].mxu0
      %v9405 = vadd.f32 %v9308, %v9404
      %v9406 = vpop.f32.mrb[0].mxu0
      %9407 = vdwg.mxu0
      %v9408 = vmax.f32 %v9346, 0.0
      %v9409 = vmax.f32 %v9349, 0.0
      %v9410 = vmax.f32 %v9354, 0.0
      %v9411 = vmax.f32 %v9357, 0.0
      %v9412 = vmax.f32 %v9362, 0.0
      %v9413 = vmax.f32 %v9365, 0.0
      %v9414 = vmax.f32 %v9370, 0.0
      %v9415 = vmax.f32 %v9373, 0.0
      %v9416 = vmax.f32 %v9378, 0.0
      %v9417 = vmax.f32 %v9381, 0.0
      %v9418 = vmax.f32 %v9386, 0.0
      %v9419 = vmax.f32 %v9389, 0.0
      %v9420 = vmax.f32 %v9394, 0.0
      %v9421 = vmax.f32 %v9397, 0.0
      %v9422 = vmax.f32 %v9402, 0.0
      %v9423 = vmax.f32 %v9405, 0.0
      %v9425 = vcombine.high %v9408, %v9408
      %v9427 = vunpack.c.l.s4 1966171168
      %v9428 = vunpack.c.0.s8 %v9427
      %v9429 = vlaneseq
      %v9430 = vshrl.u32 %v9429, 7
      %v9431 = vsub.s32 %v9428, %v9430
      %v9432 = vrot.slane %v9408, %v9431
      %v9434 = vunpack.c.l.s4 1966171168
      %v9435 = vunpack.c.0.s8 %v9434
      %v9436 = vlaneseq
      %v9437 = vshrl.u32 %v9436, 7
      %v9438 = vsub.s32 %v9435, %v9437
      %v9439 = vrot.slane %v9425, %v9438
      %v9440 = vcombine.high %v9432, %v9432
      %v9441 = vcombine.high %v9439, %v9439
      %v9443 = vunpack.c.l.s4 1966171168
      %v9444 = vunpack.c.0.s8 %v9443
      %v9445 = vlaneseq
      %v9446 = vshrl.u32 %v9445, 7
      %v9447 = vsub.s32 %v9444, %v9446
      %v9448 = vrot.slane %v9432, %v9447
      %v9450 = vunpack.c.l.s4 1966171168
      %v9451 = vunpack.c.0.s8 %v9450
      %v9452 = vlaneseq
      %v9453 = vshrl.u32 %v9452, 7
      %v9454 = vsub.s32 %v9451, %v9453
      %v9455 = vrot.slane %v9439, %v9454
      %v9457 = vunpack.c.l.s4 1966171168
      %v9458 = vunpack.c.0.s8 %v9457
      %v9459 = vlaneseq
      %v9460 = vshrl.u32 %v9459, 7
      %v9461 = vsub.s32 %v9458, %v9460
      %v9462 = vrot.slane %v9440, %v9461
      %v9464 = vunpack.c.l.s4 1966171168
      %v9465 = vunpack.c.0.s8 %v9464
      %v9466 = vlaneseq
      %v9467 = vshrl.u32 %v9466, 7
      %v9468 = vsub.s32 %v9465, %v9467
      %v9469 = vrot.slane %v9441, %v9468
      %v9470 = vcombine.high %v9448, %v9448
      %v9471 = vcombine.high %v9455, %v9455
      %v9472 = vcombine.high %v9462, %v9462
      %v9473 = vcombine.high %v9469, %v9469
      %v9482 = vlaneseq
      %vm9483 = vcmp.ge.s32.totalorder %v9482, 0
      %vm9484 = vcmp.lt.s32.totalorder %v9482, 64
      %vm9485 = vmand %vm9483, %vm9484
      %9486 = vst.msk [vmem:[%s253] sm:$0x1] %vm9485, %v9448
      %9487 = vst.msk [vmem:[%s253 + $0x8] sm:$0x1] %vm9485, %v9462
      %9488 = vst.msk [vmem:[%s253 + $0x10] sm:$0x1] %vm9485, %v9470
      %9489 = vst.msk [vmem:[%s253 + $0x18] sm:$0x1] %vm9485, %v9472
      %9490 = vst.msk [vmem:[%s253 + $0x20] sm:$0x1] %vm9485, %v9455
      %9491 = vst.msk [vmem:[%s253 + $0x28] sm:$0x1] %vm9485, %v9469
      %9492 = vst.msk [vmem:[%s253 + $0x30] sm:$0x1] %vm9485, %v9471
      %9493 = vst.msk [vmem:[%s253 + $0x38] sm:$0x1] %vm9485, %v9473
      %v9495 = vcombine.high %v9409, %v9409
      %v9497 = vunpack.c.l.s4 1966171168
      %v9498 = vunpack.c.0.s8 %v9497
      %v9499 = vlaneseq
      %v9500 = vshrl.u32 %v9499, 7
      %v9501 = vsub.s32 %v9498, %v9500
      %v9502 = vrot.slane %v9409, %v9501
      %v9504 = vunpack.c.l.s4 1966171168
      %v9505 = vunpack.c.0.s8 %v9504
      %v9506 = vlaneseq
      %v9507 = vshrl.u32 %v9506, 7
      %v9508 = vsub.s32 %v9505, %v9507
      %v9509 = vrot.slane %v9495, %v9508
      %v9510 = vcombine.high %v9502, %v9502
      %v9511 = vcombine.high %v9509, %v9509
      %v9513 = vunpack.c.l.s4 1966171168
      %v9514 = vunpack.c.0.s8 %v9513
      %v9515 = vlaneseq
      %v9516 = vshrl.u32 %v9515, 7
      %v9517 = vsub.s32 %v9514, %v9516
      %v9518 = vrot.slane %v9502, %v9517
      %v9520 = vunpack.c.l.s4 1966171168
      %v9521 = vunpack.c.0.s8 %v9520
      %v9522 = vlaneseq
      %v9523 = vshrl.u32 %v9522, 7
      %v9524 = vsub.s32 %v9521, %v9523
      %v9525 = vrot.slane %v9509, %v9524
      %v9527 = vunpack.c.l.s4 1966171168
      %v9528 = vunpack.c.0.s8 %v9527
      %v9529 = vlaneseq
      %v9530 = vshrl.u32 %v9529, 7
      %v9531 = vsub.s32 %v9528, %v9530
      %v9532 = vrot.slane %v9510, %v9531
      %v9534 = vunpack.c.l.s4 1966171168
      %v9535 = vunpack.c.0.s8 %v9534
      %v9536 = vlaneseq
      %v9537 = vshrl.u32 %v9536, 7
      %v9538 = vsub.s32 %v9535, %v9537
      %v9539 = vrot.slane %v9511, %v9538
      %v9540 = vcombine.high %v9518, %v9518
      %v9541 = vcombine.high %v9525, %v9525
      %v9542 = vcombine.high %v9532, %v9532
      %v9543 = vcombine.high %v9539, %v9539
      %9544 = vrot.lane.b32.xlu0 %v9518, 64
      %v9545 = vpop.permute.xlu0 %9544
      %9546 = vrot.lane.b32.xlu0 %v9532, 64
      %v9547 = vpop.permute.xlu0 %9546
      %9548 = vrot.lane.b32.xlu0 %v9540, 64
      %v9549 = vpop.permute.xlu0 %9548
      %9550 = vrot.lane.b32.xlu0 %v9542, 64
      %v9551 = vpop.permute.xlu0 %9550
      %9552 = vrot.lane.b32.xlu0 %v9525, 64
      %v9553 = vpop.permute.xlu0 %9552
      %9554 = vrot.lane.b32.xlu0 %v9539, 64
      %v9555 = vpop.permute.xlu0 %9554
      %9556 = vrot.lane.b32.xlu0 %v9541, 64
      %v9557 = vpop.permute.xlu0 %9556
      %9558 = vrot.lane.b32.xlu0 %v9543, 64
      %v9559 = vpop.permute.xlu0 %9558
      %vm9568 = vcmp.ge.s32.totalorder %v9482, 64
      %vm9569 = vcmp.lt.s32.totalorder %v9482, 128
      %vm9570 = vmand %vm9568, %vm9569
      %9571 = vst.msk [vmem:[%s253] sm:$0x1] %vm9570, %v9545
      %9572 = vst.msk [vmem:[%s253 + $0x8] sm:$0x1] %vm9570, %v9547
      %9573 = vst.msk [vmem:[%s253 + $0x10] sm:$0x1] %vm9570, %v9549
      %9574 = vst.msk [vmem:[%s253 + $0x18] sm:$0x1] %vm9570, %v9551
      %9575 = vst.msk [vmem:[%s253 + $0x20] sm:$0x1] %vm9570, %v9553
      %9576 = vst.msk [vmem:[%s253 + $0x28] sm:$0x1] %vm9570, %v9555
      %9577 = vst.msk [vmem:[%s253 + $0x30] sm:$0x1] %vm9570, %v9557
      %9578 = vst.msk [vmem:[%s253 + $0x38] sm:$0x1] %vm9570, %v9559
      %v9580 = vcombine.high %v9410, %v9410
      %v9582 = vunpack.c.l.s4 1966171168
      %v9583 = vunpack.c.0.s8 %v9582
      %v9584 = vlaneseq
      %v9585 = vshrl.u32 %v9584, 7
      %v9586 = vsub.s32 %v9583, %v9585
      %v9587 = vrot.slane %v9410, %v9586
      %v9589 = vunpack.c.l.s4 1966171168
      %v9590 = vunpack.c.0.s8 %v9589
      %v9591 = vlaneseq
      %v9592 = vshrl.u32 %v9591, 7
      %v9593 = vsub.s32 %v9590, %v9592
      %v9594 = vrot.slane %v9580, %v9593
      %v9595 = vcombine.high %v9587, %v9587
      %v9596 = vcombine.high %v9594, %v9594
      %v9598 = vunpack.c.l.s4 1966171168
      %v9599 = vunpack.c.0.s8 %v9598
      %v9600 = vlaneseq
      %v9601 = vshrl.u32 %v9600, 7
      %v9602 = vsub.s32 %v9599, %v9601
      %v9603 = vrot.slane %v9587, %v9602
      %v9605 = vunpack.c.l.s4 1966171168
      %v9606 = vunpack.c.0.s8 %v9605
      %v9607 = vlaneseq
      %v9608 = vshrl.u32 %v9607, 7
      %v9609 = vsub.s32 %v9606, %v9608
      %v9610 = vrot.slane %v9594, %v9609
      %v9612 = vunpack.c.l.s4 1966171168
      %v9613 = vunpack.c.0.s8 %v9612
      %v9614 = vlaneseq
      %v9615 = vshrl.u32 %v9614, 7
      %v9616 = vsub.s32 %v9613, %v9615
      %v9617 = vrot.slane %v9595, %v9616
      %v9619 = vunpack.c.l.s4 1966171168
      %v9620 = vunpack.c.0.s8 %v9619
      %v9621 = vlaneseq
      %v9622 = vshrl.u32 %v9621, 7
      %v9623 = vsub.s32 %v9620, %v9622
      %v9624 = vrot.slane %v9596, %v9623
      %v9625 = vcombine.high %v9603, %v9603
      %v9626 = vcombine.high %v9610, %v9610
      %v9627 = vcombine.high %v9617, %v9617
      %v9628 = vcombine.high %v9624, %v9624
      %9637 = vst.msk [vmem:[%s253 + $0x1] sm:$0x1] %vm9485, %v9603
      %9638 = vst.msk [vmem:[%s253 + $0x9] sm:$0x1] %vm9485, %v9617
      %9639 = vst.msk [vmem:[%s253 + $0x11] sm:$0x1] %vm9485, %v9625
      %9640 = vst.msk [vmem:[%s253 + $0x19] sm:$0x1] %vm9485, %v9627
      %9641 = vst.msk [vmem:[%s253 + $0x21] sm:$0x1] %vm9485, %v9610
      %9642 = vst.msk [vmem:[%s253 + $0x29] sm:$0x1] %vm9485, %v9624
      %9643 = vst.msk [vmem:[%s253 + $0x31] sm:$0x1] %vm9485, %v9626
      %9644 = vst.msk [vmem:[%s253 + $0x39] sm:$0x1] %vm9485, %v9628
      %v9646 = vcombine.high %v9411, %v9411
      %v9648 = vunpack.c.l.s4 1966171168
      %v9649 = vunpack.c.0.s8 %v9648
      %v9650 = vlaneseq
      %v9651 = vshrl.u32 %v9650, 7
      %v9652 = vsub.s32 %v9649, %v9651
      %v9653 = vrot.slane %v9411, %v9652
      %v9655 = vunpack.c.l.s4 1966171168
      %v9656 = vunpack.c.0.s8 %v9655
      %v9657 = vlaneseq
      %v9658 = vshrl.u32 %v9657, 7
      %v9659 = vsub.s32 %v9656, %v9658
      %v9660 = vrot.slane %v9646, %v9659
      %v9661 = vcombine.high %v9653, %v9653
      %v9662 = vcombine.high %v9660, %v9660
      %v9664 = vunpack.c.l.s4 1966171168
      %v9665 = vunpack.c.0.s8 %v9664
      %v9666 = vlaneseq
      %v9667 = vshrl.u32 %v9666, 7
      %v9668 = vsub.s32 %v9665, %v9667
      %v9669 = vrot.slane %v9653, %v9668
      %v9671 = vunpack.c.l.s4 1966171168
      %v9672 = vunpack.c.0.s8 %v9671
      %v9673 = vlaneseq
      %v9674 = vshrl.u32 %v9673, 7
      %v9675 = vsub.s32 %v9672, %v9674
      %v9676 = vrot.slane %v9660, %v9675
      %v9678 = vunpack.c.l.s4 1966171168
      %v9679 = vunpack.c.0.s8 %v9678
      %v9680 = vlaneseq
      %v9681 = vshrl.u32 %v9680, 7
      %v9682 = vsub.s32 %v9679, %v9681
      %v9683 = vrot.slane %v9661, %v9682
      %v9685 = vunpack.c.l.s4 1966171168
      %v9686 = vunpack.c.0.s8 %v9685
      %v9687 = vlaneseq
      %v9688 = vshrl.u32 %v9687, 7
      %v9689 = vsub.s32 %v9686, %v9688
      %v9690 = vrot.slane %v9662, %v9689
      %v9691 = vcombine.high %v9669, %v9669
      %v9692 = vcombine.high %v9676, %v9676
      %v9693 = vcombine.high %v9683, %v9683
      %v9694 = vcombine.high %v9690, %v9690
      %9695 = vrot.lane.b32.xlu0 %v9669, 64
      %v9696 = vpop.permute.xlu0 %9695
      %9697 = vrot.lane.b32.xlu0 %v9683, 64
      %v9698 = vpop.permute.xlu0 %9697
      %9699 = vrot.lane.b32.xlu0 %v9691, 64
      %v9700 = vpop.permute.xlu0 %9699
      %9701 = vrot.lane.b32.xlu0 %v9693, 64
      %v9702 = vpop.permute.xlu0 %9701
      %9703 = vrot.lane.b32.xlu0 %v9676, 64
      %v9704 = vpop.permute.xlu0 %9703
      %9705 = vrot.lane.b32.xlu0 %v9690, 64
      %v9706 = vpop.permute.xlu0 %9705
      %9707 = vrot.lane.b32.xlu0 %v9692, 64
      %v9708 = vpop.permute.xlu0 %9707
      %9709 = vrot.lane.b32.xlu0 %v9694, 64
      %v9710 = vpop.permute.xlu0 %9709
      %9719 = vst.msk [vmem:[%s253 + $0x1] sm:$0x1] %vm9570, %v9696
      %9720 = vst.msk [vmem:[%s253 + $0x9] sm:$0x1] %vm9570, %v9698
      %9721 = vst.msk [vmem:[%s253 + $0x11] sm:$0x1] %vm9570, %v9700
      %9722 = vst.msk [vmem:[%s253 + $0x19] sm:$0x1] %vm9570, %v9702
      %9723 = vst.msk [vmem:[%s253 + $0x21] sm:$0x1] %vm9570, %v9704
      %9724 = vst.msk [vmem:[%s253 + $0x29] sm:$0x1] %vm9570, %v9706
      %9725 = vst.msk [vmem:[%s253 + $0x31] sm:$0x1] %vm9570, %v9708
      %9726 = vst.msk [vmem:[%s253 + $0x39] sm:$0x1] %vm9570, %v9710
      %v9728 = vcombine.high %v9412, %v9412
      %v9730 = vunpack.c.l.s4 1966171168
      %v9731 = vunpack.c.0.s8 %v9730
      %v9732 = vlaneseq
      %v9733 = vshrl.u32 %v9732, 7
      %v9734 = vsub.s32 %v9731, %v9733
      %v9735 = vrot.slane %v9412, %v9734
      %v9737 = vunpack.c.l.s4 1966171168
      %v9738 = vunpack.c.0.s8 %v9737
      %v9739 = vlaneseq
      %v9740 = vshrl.u32 %v9739, 7
      %v9741 = vsub.s32 %v9738, %v9740
      %v9742 = vrot.slane %v9728, %v9741
      %v9743 = vcombine.high %v9735, %v9735
      %v9744 = vcombine.high %v9742, %v9742
      %v9746 = vunpack.c.l.s4 1966171168
      %v9747 = vunpack.c.0.s8 %v9746
      %v9748 = vlaneseq
      %v9749 = vshrl.u32 %v9748, 7
      %v9750 = vsub.s32 %v9747, %v9749
      %v9751 = vrot.slane %v9735, %v9750
      %v9753 = vunpack.c.l.s4 1966171168
      %v9754 = vunpack.c.0.s8 %v9753
      %v9755 = vlaneseq
      %v9756 = vshrl.u32 %v9755, 7
      %v9757 = vsub.s32 %v9754, %v9756
      %v9758 = vrot.slane %v9742, %v9757
      %v9760 = vunpack.c.l.s4 1966171168
      %v9761 = vunpack.c.0.s8 %v9760
      %v9762 = vlaneseq
      %v9763 = vshrl.u32 %v9762, 7
      %v9764 = vsub.s32 %v9761, %v9763
      %v9765 = vrot.slane %v9743, %v9764
      %v9767 = vunpack.c.l.s4 1966171168
      %v9768 = vunpack.c.0.s8 %v9767
      %v9769 = vlaneseq
      %v9770 = vshrl.u32 %v9769, 7
      %v9771 = vsub.s32 %v9768, %v9770
      %v9772 = vrot.slane %v9744, %v9771
      %v9773 = vcombine.high %v9751, %v9751
      %v9774 = vcombine.high %v9758, %v9758
      %v9775 = vcombine.high %v9765, %v9765
      %v9776 = vcombine.high %v9772, %v9772
      %9785 = vst.msk [vmem:[%s253 + $0x2] sm:$0x1] %vm9485, %v9751
      %9786 = vst.msk [vmem:[%s253 + $0xa] sm:$0x1] %vm9485, %v9765
      %9787 = vst.msk [vmem:[%s253 + $0x12] sm:$0x1] %vm9485, %v9773
      %9788 = vst.msk [vmem:[%s253 + $0x1a] sm:$0x1] %vm9485, %v9775
      %9789 = vst.msk [vmem:[%s253 + $0x22] sm:$0x1] %vm9485, %v9758
      %9790 = vst.msk [vmem:[%s253 + $0x2a] sm:$0x1] %vm9485, %v9772
      %9791 = vst.msk [vmem:[%s253 + $0x32] sm:$0x1] %vm9485, %v9774
      %9792 = vst.msk [vmem:[%s253 + $0x3a] sm:$0x1] %vm9485, %v9776
      %v9794 = vcombine.high %v9413, %v9413
      %v9796 = vunpack.c.l.s4 1966171168
      %v9797 = vunpack.c.0.s8 %v9796
      %v9798 = vlaneseq
      %v9799 = vshrl.u32 %v9798, 7
      %v9800 = vsub.s32 %v9797, %v9799
      %v9801 = vrot.slane %v9413, %v9800
      %v9803 = vunpack.c.l.s4 1966171168
      %v9804 = vunpack.c.0.s8 %v9803
      %v9805 = vlaneseq
      %v9806 = vshrl.u32 %v9805, 7
      %v9807 = vsub.s32 %v9804, %v9806
      %v9808 = vrot.slane %v9794, %v9807
      %v9809 = vcombine.high %v9801, %v9801
      %v9810 = vcombine.high %v9808, %v9808
      %v9812 = vunpack.c.l.s4 1966171168
      %v9813 = vunpack.c.0.s8 %v9812
      %v9814 = vlaneseq
      %v9815 = vshrl.u32 %v9814, 7
      %v9816 = vsub.s32 %v9813, %v9815
      %v9817 = vrot.slane %v9801, %v9816
      %v9819 = vunpack.c.l.s4 1966171168
      %v9820 = vunpack.c.0.s8 %v9819
      %v9821 = vlaneseq
      %v9822 = vshrl.u32 %v9821, 7
      %v9823 = vsub.s32 %v9820, %v9822
      %v9824 = vrot.slane %v9808, %v9823
      %v9826 = vunpack.c.l.s4 1966171168
      %v9827 = vunpack.c.0.s8 %v9826
      %v9828 = vlaneseq
      %v9829 = vshrl.u32 %v9828, 7
      %v9830 = vsub.s32 %v9827, %v9829
      %v9831 = vrot.slane %v9809, %v9830
      %v9833 = vunpack.c.l.s4 1966171168
      %v9834 = vunpack.c.0.s8 %v9833
      %v9835 = vlaneseq
      %v9836 = vshrl.u32 %v9835, 7
      %v9837 = vsub.s32 %v9834, %v9836
      %v9838 = vrot.slane %v9810, %v9837
      %v9839 = vcombine.high %v9817, %v9817
      %v9840 = vcombine.high %v9824, %v9824
      %v9841 = vcombine.high %v9831, %v9831
      %v9842 = vcombine.high %v9838, %v9838
      %9843 = vrot.lane.b32.xlu0 %v9817, 64
      %v9844 = vpop.permute.xlu0 %9843
      %9845 = vrot.lane.b32.xlu0 %v9831, 64
      %v9846 = vpop.permute.xlu0 %9845
      %9847 = vrot.lane.b32.xlu0 %v9839, 64
      %v9848 = vpop.permute.xlu0 %9847
      %9849 = vrot.lane.b32.xlu0 %v9841, 64
      %v9850 = vpop.permute.xlu0 %9849
      %9851 = vrot.lane.b32.xlu0 %v9824, 64
      %v9852 = vpop.permute.xlu0 %9851
      %9853 = vrot.lane.b32.xlu0 %v9838, 64
      %v9854 = vpop.permute.xlu0 %9853
      %9855 = vrot.lane.b32.xlu0 %v9840, 64
      %v9856 = vpop.permute.xlu0 %9855
      %9857 = vrot.lane.b32.xlu0 %v9842, 64
      %v9858 = vpop.permute.xlu0 %9857
      %9867 = vst.msk [vmem:[%s253 + $0x2] sm:$0x1] %vm9570, %v9844
      %9868 = vst.msk [vmem:[%s253 + $0xa] sm:$0x1] %vm9570, %v9846
      %9869 = vst.msk [vmem:[%s253 + $0x12] sm:$0x1] %vm9570, %v9848
      %9870 = vst.msk [vmem:[%s253 + $0x1a] sm:$0x1] %vm9570, %v9850
      %9871 = vst.msk [vmem:[%s253 + $0x22] sm:$0x1] %vm9570, %v9852
      %9872 = vst.msk [vmem:[%s253 + $0x2a] sm:$0x1] %vm9570, %v9854
      %9873 = vst.msk [vmem:[%s253 + $0x32] sm:$0x1] %vm9570, %v9856
      %9874 = vst.msk [vmem:[%s253 + $0x3a] sm:$0x1] %vm9570, %v9858
      %v9876 = vcombine.high %v9414, %v9414
      %v9878 = vunpack.c.l.s4 1966171168
      %v9879 = vunpack.c.0.s8 %v9878
      %v9880 = vlaneseq
      %v9881 = vshrl.u32 %v9880, 7
      %v9882 = vsub.s32 %v9879, %v9881
      %v9883 = vrot.slane %v9414, %v9882
      %v9885 = vunpack.c.l.s4 1966171168
      %v9886 = vunpack.c.0.s8 %v9885
      %v9887 = vlaneseq
      %v9888 = vshrl.u32 %v9887, 7
      %v9889 = vsub.s32 %v9886, %v9888
      %v9890 = vrot.slane %v9876, %v9889
      %v9891 = vcombine.high %v9883, %v9883
      %v9892 = vcombine.high %v9890, %v9890
      %v9894 = vunpack.c.l.s4 1966171168
      %v9895 = vunpack.c.0.s8 %v9894
      %v9896 = vlaneseq
      %v9897 = vshrl.u32 %v9896, 7
      %v9898 = vsub.s32 %v9895, %v9897
      %v9899 = vrot.slane %v9883, %v9898
      %v9901 = vunpack.c.l.s4 1966171168
      %v9902 = vunpack.c.0.s8 %v9901
      %v9903 = vlaneseq
      %v9904 = vshrl.u32 %v9903, 7
      %v9905 = vsub.s32 %v9902, %v9904
      %v9906 = vrot.slane %v9890, %v9905
      %v9908 = vunpack.c.l.s4 1966171168
      %v9909 = vunpack.c.0.s8 %v9908
      %v9910 = vlaneseq
      %v9911 = vshrl.u32 %v9910, 7
      %v9912 = vsub.s32 %v9909, %v9911
      %v9913 = vrot.slane %v9891, %v9912
      %v9915 = vunpack.c.l.s4 1966171168
      %v9916 = vunpack.c.0.s8 %v9915
      %v9917 = vlaneseq
      %v9918 = vshrl.u32 %v9917, 7
      %v9919 = vsub.s32 %v9916, %v9918
      %v9920 = vrot.slane %v9892, %v9919
      %v9921 = vcombine.high %v9899, %v9899
      %v9922 = vcombine.high %v9906, %v9906
      %v9923 = vcombine.high %v9913, %v9913
      %v9924 = vcombine.high %v9920, %v9920
      %9933 = vst.msk [vmem:[%s253 + $0x3] sm:$0x1] %vm9485, %v9899
      %9934 = vst.msk [vmem:[%s253 + $0xb] sm:$0x1] %vm9485, %v9913
      %9935 = vst.msk [vmem:[%s253 + $0x13] sm:$0x1] %vm9485, %v9921
      %9936 = vst.msk [vmem:[%s253 + $0x1b] sm:$0x1] %vm9485, %v9923
      %9937 = vst.msk [vmem:[%s253 + $0x23] sm:$0x1] %vm9485, %v9906
      %9938 = vst.msk [vmem:[%s253 + $0x2b] sm:$0x1] %vm9485, %v9920
      %9939 = vst.msk [vmem:[%s253 + $0x33] sm:$0x1] %vm9485, %v9922
      %9940 = vst.msk [vmem:[%s253 + $0x3b] sm:$0x1] %vm9485, %v9924
      %v9942 = vcombine.high %v9415, %v9415
      %v9944 = vunpack.c.l.s4 1966171168
      %v9945 = vunpack.c.0.s8 %v9944
      %v9946 = vlaneseq
      %v9947 = vshrl.u32 %v9946, 7
      %v9948 = vsub.s32 %v9945, %v9947
      %v9949 = vrot.slane %v9415, %v9948
      %v9951 = vunpack.c.l.s4 1966171168
      %v9952 = vunpack.c.0.s8 %v9951
      %v9953 = vlaneseq
      %v9954 = vshrl.u32 %v9953, 7
      %v9955 = vsub.s32 %v9952, %v9954
      %v9956 = vrot.slane %v9942, %v9955
      %v9957 = vcombine.high %v9949, %v9949
      %v9958 = vcombine.high %v9956, %v9956
      %v9960 = vunpack.c.l.s4 1966171168
      %v9961 = vunpack.c.0.s8 %v9960
      %v9962 = vlaneseq
      %v9963 = vshrl.u32 %v9962, 7
      %v9964 = vsub.s32 %v9961, %v9963
      %v9965 = vrot.slane %v9949, %v9964
      %v9967 = vunpack.c.l.s4 1966171168
      %v9968 = vunpack.c.0.s8 %v9967
      %v9969 = vlaneseq
      %v9970 = vshrl.u32 %v9969, 7
      %v9971 = vsub.s32 %v9968, %v9970
      %v9972 = vrot.slane %v9956, %v9971
      %v9974 = vunpack.c.l.s4 1966171168
      %v9975 = vunpack.c.0.s8 %v9974
      %v9976 = vlaneseq
      %v9977 = vshrl.u32 %v9976, 7
      %v9978 = vsub.s32 %v9975, %v9977
      %v9979 = vrot.slane %v9957, %v9978
      %v9981 = vunpack.c.l.s4 1966171168
      %v9982 = vunpack.c.0.s8 %v9981
      %v9983 = vlaneseq
      %v9984 = vshrl.u32 %v9983, 7
      %v9985 = vsub.s32 %v9982, %v9984
      %v9986 = vrot.slane %v9958, %v9985
      %v9987 = vcombine.high %v9965, %v9965
      %v9988 = vcombine.high %v9972, %v9972
      %v9989 = vcombine.high %v9979, %v9979
      %v9990 = vcombine.high %v9986, %v9986
      %9991 = vrot.lane.b32.xlu0 %v9965, 64
      %v9992 = vpop.permute.xlu0 %9991
      %9993 = vrot.lane.b32.xlu0 %v9979, 64
      %v9994 = vpop.permute.xlu0 %9993
      %9995 = vrot.lane.b32.xlu0 %v9987, 64
      %v9996 = vpop.permute.xlu0 %9995
      %9997 = vrot.lane.b32.xlu0 %v9989, 64
      %v9998 = vpop.permute.xlu0 %9997
      %9999 = vrot.lane.b32.xlu0 %v9972, 64
      %v10000 = vpop.permute.xlu0 %9999
      %10001 = vrot.lane.b32.xlu0 %v9986, 64
      %v10002 = vpop.permute.xlu0 %10001
      %10003 = vrot.lane.b32.xlu0 %v9988, 64
      %v10004 = vpop.permute.xlu0 %10003
      %10005 = vrot.lane.b32.xlu0 %v9990, 64
      %v10006 = vpop.permute.xlu0 %10005
      %10015 = vst.msk [vmem:[%s253 + $0x3] sm:$0x1] %vm9570, %v9992
      %10016 = vst.msk [vmem:[%s253 + $0xb] sm:$0x1] %vm9570, %v9994
      %10017 = vst.msk [vmem:[%s253 + $0x13] sm:$0x1] %vm9570, %v9996
      %10018 = vst.msk [vmem:[%s253 + $0x1b] sm:$0x1] %vm9570, %v9998
      %10019 = vst.msk [vmem:[%s253 + $0x23] sm:$0x1] %vm9570, %v10000
      %10020 = vst.msk [vmem:[%s253 + $0x2b] sm:$0x1] %vm9570, %v10002
      %10021 = vst.msk [vmem:[%s253 + $0x33] sm:$0x1] %vm9570, %v10004
      %10022 = vst.msk [vmem:[%s253 + $0x3b] sm:$0x1] %vm9570, %v10006
      %v10024 = vcombine.high %v9416, %v9416
      %v10026 = vunpack.c.l.s4 1966171168
      %v10027 = vunpack.c.0.s8 %v10026
      %v10028 = vlaneseq
      %v10029 = vshrl.u32 %v10028, 7
      %v10030 = vsub.s32 %v10027, %v10029
      %v10031 = vrot.slane %v9416, %v10030
      %v10033 = vunpack.c.l.s4 1966171168
      %v10034 = vunpack.c.0.s8 %v10033
      %v10035 = vlaneseq
      %v10036 = vshrl.u32 %v10035, 7
      %v10037 = vsub.s32 %v10034, %v10036
      %v10038 = vrot.slane %v10024, %v10037
      %v10039 = vcombine.high %v10031, %v10031
      %v10040 = vcombine.high %v10038, %v10038
      %v10042 = vunpack.c.l.s4 1966171168
      %v10043 = vunpack.c.0.s8 %v10042
      %v10044 = vlaneseq
      %v10045 = vshrl.u32 %v10044, 7
      %v10046 = vsub.s32 %v10043, %v10045
      %v10047 = vrot.slane %v10031, %v10046
      %v10049 = vunpack.c.l.s4 1966171168
      %v10050 = vunpack.c.0.s8 %v10049
      %v10051 = vlaneseq
      %v10052 = vshrl.u32 %v10051, 7
      %v10053 = vsub.s32 %v10050, %v10052
      %v10054 = vrot.slane %v10038, %v10053
      %v10056 = vunpack.c.l.s4 1966171168
      %v10057 = vunpack.c.0.s8 %v10056
      %v10058 = vlaneseq
      %v10059 = vshrl.u32 %v10058, 7
      %v10060 = vsub.s32 %v10057, %v10059
      %v10061 = vrot.slane %v10039, %v10060
      %v10063 = vunpack.c.l.s4 1966171168
      %v10064 = vunpack.c.0.s8 %v10063
      %v10065 = vlaneseq
      %v10066 = vshrl.u32 %v10065, 7
      %v10067 = vsub.s32 %v10064, %v10066
      %v10068 = vrot.slane %v10040, %v10067
      %v10069 = vcombine.high %v10047, %v10047
      %v10070 = vcombine.high %v10054, %v10054
      %v10071 = vcombine.high %v10061, %v10061
      %v10072 = vcombine.high %v10068, %v10068
      %10081 = vst.msk [vmem:[%s253 + $0x4] sm:$0x1] %vm9485, %v10047
      %10082 = vst.msk [vmem:[%s253 + $0xc] sm:$0x1] %vm9485, %v10061
      %10083 = vst.msk [vmem:[%s253 + $0x14] sm:$0x1] %vm9485, %v10069
      %10084 = vst.msk [vmem:[%s253 + $0x1c] sm:$0x1] %vm9485, %v10071
      %10085 = vst.msk [vmem:[%s253 + $0x24] sm:$0x1] %vm9485, %v10054
      %10086 = vst.msk [vmem:[%s253 + $0x2c] sm:$0x1] %vm9485, %v10068
      %10087 = vst.msk [vmem:[%s253 + $0x34] sm:$0x1] %vm9485, %v10070
      %10088 = vst.msk [vmem:[%s253 + $0x3c] sm:$0x1] %vm9485, %v10072
      %v10090 = vcombine.high %v9417, %v9417
      %v10092 = vunpack.c.l.s4 1966171168
      %v10093 = vunpack.c.0.s8 %v10092
      %v10094 = vlaneseq
      %v10095 = vshrl.u32 %v10094, 7
      %v10096 = vsub.s32 %v10093, %v10095
      %v10097 = vrot.slane %v9417, %v10096
      %v10099 = vunpack.c.l.s4 1966171168
      %v10100 = vunpack.c.0.s8 %v10099
      %v10101 = vlaneseq
      %v10102 = vshrl.u32 %v10101, 7
      %v10103 = vsub.s32 %v10100, %v10102
      %v10104 = vrot.slane %v10090, %v10103
      %v10105 = vcombine.high %v10097, %v10097
      %v10106 = vcombine.high %v10104, %v10104
      %v10108 = vunpack.c.l.s4 1966171168
      %v10109 = vunpack.c.0.s8 %v10108
      %v10110 = vlaneseq
      %v10111 = vshrl.u32 %v10110, 7
      %v10112 = vsub.s32 %v10109, %v10111
      %v10113 = vrot.slane %v10097, %v10112
      %v10115 = vunpack.c.l.s4 1966171168
      %v10116 = vunpack.c.0.s8 %v10115
      %v10117 = vlaneseq
      %v10118 = vshrl.u32 %v10117, 7
      %v10119 = vsub.s32 %v10116, %v10118
      %v10120 = vrot.slane %v10104, %v10119
      %v10122 = vunpack.c.l.s4 1966171168
      %v10123 = vunpack.c.0.s8 %v10122
      %v10124 = vlaneseq
      %v10125 = vshrl.u32 %v10124, 7
      %v10126 = vsub.s32 %v10123, %v10125
      %v10127 = vrot.slane %v10105, %v10126
      %v10129 = vunpack.c.l.s4 1966171168
      %v10130 = vunpack.c.0.s8 %v10129
      %v10131 = vlaneseq
      %v10132 = vshrl.u32 %v10131, 7
      %v10133 = vsub.s32 %v10130, %v10132
      %v10134 = vrot.slane %v10106, %v10133
      %v10135 = vcombine.high %v10113, %v10113
      %v10136 = vcombine.high %v10120, %v10120
      %v10137 = vcombine.high %v10127, %v10127
      %v10138 = vcombine.high %v10134, %v10134
      %10139 = vrot.lane.b32.xlu0 %v10113, 64
      %v10140 = vpop.permute.xlu0 %10139
      %10141 = vrot.lane.b32.xlu0 %v10127, 64
      %v10142 = vpop.permute.xlu0 %10141
      %10143 = vrot.lane.b32.xlu0 %v10135, 64
      %v10144 = vpop.permute.xlu0 %10143
      %10145 = vrot.lane.b32.xlu0 %v10137, 64
      %v10146 = vpop.permute.xlu0 %10145
      %10147 = vrot.lane.b32.xlu0 %v10120, 64
      %v10148 = vpop.permute.xlu0 %10147
      %10149 = vrot.lane.b32.xlu0 %v10134, 64
      %v10150 = vpop.permute.xlu0 %10149
      %10151 = vrot.lane.b32.xlu0 %v10136, 64
      %v10152 = vpop.permute.xlu0 %10151
      %10153 = vrot.lane.b32.xlu0 %v10138, 64
      %v10154 = vpop.permute.xlu0 %10153
      %10163 = vst.msk [vmem:[%s253 + $0x4] sm:$0x1] %vm9570, %v10140
      %10164 = vst.msk [vmem:[%s253 + $0xc] sm:$0x1] %vm9570, %v10142
      %10165 = vst.msk [vmem:[%s253 + $0x14] sm:$0x1] %vm9570, %v10144
      %10166 = vst.msk [vmem:[%s253 + $0x1c] sm:$0x1] %vm9570, %v10146
      %10167 = vst.msk [vmem:[%s253 + $0x24] sm:$0x1] %vm9570, %v10148
      %10168 = vst.msk [vmem:[%s253 + $0x2c] sm:$0x1] %vm9570, %v10150
      %10169 = vst.msk [vmem:[%s253 + $0x34] sm:$0x1] %vm9570, %v10152
      %10170 = vst.msk [vmem:[%s253 + $0x3c] sm:$0x1] %vm9570, %v10154
      %v10172 = vcombine.high %v9418, %v9418
      %v10174 = vunpack.c.l.s4 1966171168
      %v10175 = vunpack.c.0.s8 %v10174
      %v10176 = vlaneseq
      %v10177 = vshrl.u32 %v10176, 7
      %v10178 = vsub.s32 %v10175, %v10177
      %v10179 = vrot.slane %v9418, %v10178
      %v10181 = vunpack.c.l.s4 1966171168
      %v10182 = vunpack.c.0.s8 %v10181
      %v10183 = vlaneseq
      %v10184 = vshrl.u32 %v10183, 7
      %v10185 = vsub.s32 %v10182, %v10184
      %v10186 = vrot.slane %v10172, %v10185
      %v10187 = vcombine.high %v10179, %v10179
      %v10188 = vcombine.high %v10186, %v10186
      %v10190 = vunpack.c.l.s4 1966171168
      %v10191 = vunpack.c.0.s8 %v10190
      %v10192 = vlaneseq
      %v10193 = vshrl.u32 %v10192, 7
      %v10194 = vsub.s32 %v10191, %v10193
      %v10195 = vrot.slane %v10179, %v10194
      %v10197 = vunpack.c.l.s4 1966171168
      %v10198 = vunpack.c.0.s8 %v10197
      %v10199 = vlaneseq
      %v10200 = vshrl.u32 %v10199, 7
      %v10201 = vsub.s32 %v10198, %v10200
      %v10202 = vrot.slane %v10186, %v10201
      %v10204 = vunpack.c.l.s4 1966171168
      %v10205 = vunpack.c.0.s8 %v10204
      %v10206 = vlaneseq
      %v10207 = vshrl.u32 %v10206, 7
      %v10208 = vsub.s32 %v10205, %v10207
      %v10209 = vrot.slane %v10187, %v10208
      %v10211 = vunpack.c.l.s4 1966171168
      %v10212 = vunpack.c.0.s8 %v10211
      %v10213 = vlaneseq
      %v10214 = vshrl.u32 %v10213, 7
      %v10215 = vsub.s32 %v10212, %v10214
      %v10216 = vrot.slane %v10188, %v10215
      %v10217 = vcombine.high %v10195, %v10195
      %v10218 = vcombine.high %v10202, %v10202
      %v10219 = vcombine.high %v10209, %v10209
      %v10220 = vcombine.high %v10216, %v10216
      %10229 = vst.msk [vmem:[%s253 + $0x5] sm:$0x1] %vm9485, %v10195
      %10230 = vst.msk [vmem:[%s253 + $0xd] sm:$0x1] %vm9485, %v10209
      %10231 = vst.msk [vmem:[%s253 + $0x15] sm:$0x1] %vm9485, %v10217
      %10232 = vst.msk [vmem:[%s253 + $0x1d] sm:$0x1] %vm9485, %v10219
      %10233 = vst.msk [vmem:[%s253 + $0x25] sm:$0x1] %vm9485, %v10202
      %10234 = vst.msk [vmem:[%s253 + $0x2d] sm:$0x1] %vm9485, %v10216
      %10235 = vst.msk [vmem:[%s253 + $0x35] sm:$0x1] %vm9485, %v10218
      %10236 = vst.msk [vmem:[%s253 + $0x3d] sm:$0x1] %vm9485, %v10220
      %v10238 = vcombine.high %v9419, %v9419
      %v10240 = vunpack.c.l.s4 1966171168
      %v10241 = vunpack.c.0.s8 %v10240
      %v10242 = vlaneseq
      %v10243 = vshrl.u32 %v10242, 7
      %v10244 = vsub.s32 %v10241, %v10243
      %v10245 = vrot.slane %v9419, %v10244
      %v10247 = vunpack.c.l.s4 1966171168
      %v10248 = vunpack.c.0.s8 %v10247
      %v10249 = vlaneseq
      %v10250 = vshrl.u32 %v10249, 7
      %v10251 = vsub.s32 %v10248, %v10250
      %v10252 = vrot.slane %v10238, %v10251
      %v10253 = vcombine.high %v10245, %v10245
      %v10254 = vcombine.high %v10252, %v10252
      %v10256 = vunpack.c.l.s4 1966171168
      %v10257 = vunpack.c.0.s8 %v10256
      %v10258 = vlaneseq
      %v10259 = vshrl.u32 %v10258, 7
      %v10260 = vsub.s32 %v10257, %v10259
      %v10261 = vrot.slane %v10245, %v10260
      %v10263 = vunpack.c.l.s4 1966171168
      %v10264 = vunpack.c.0.s8 %v10263
      %v10265 = vlaneseq
      %v10266 = vshrl.u32 %v10265, 7
      %v10267 = vsub.s32 %v10264, %v10266
      %v10268 = vrot.slane %v10252, %v10267
      %v10270 = vunpack.c.l.s4 1966171168
      %v10271 = vunpack.c.0.s8 %v10270
      %v10272 = vlaneseq
      %v10273 = vshrl.u32 %v10272, 7
      %v10274 = vsub.s32 %v10271, %v10273
      %v10275 = vrot.slane %v10253, %v10274
      %v10277 = vunpack.c.l.s4 1966171168
      %v10278 = vunpack.c.0.s8 %v10277
      %v10279 = vlaneseq
      %v10280 = vshrl.u32 %v10279, 7
      %v10281 = vsub.s32 %v10278, %v10280
      %v10282 = vrot.slane %v10254, %v10281
      %v10283 = vcombine.high %v10261, %v10261
      %v10284 = vcombine.high %v10268, %v10268
      %v10285 = vcombine.high %v10275, %v10275
      %v10286 = vcombine.high %v10282, %v10282
      %10287 = vrot.lane.b32.xlu0 %v10261, 64
      %v10288 = vpop.permute.xlu0 %10287
      %10289 = vrot.lane.b32.xlu0 %v10275, 64
      %v10290 = vpop.permute.xlu0 %10289
      %10291 = vrot.lane.b32.xlu0 %v10283, 64
      %v10292 = vpop.permute.xlu0 %10291
      %10293 = vrot.lane.b32.xlu0 %v10285, 64
      %v10294 = vpop.permute.xlu0 %10293
      %10295 = vrot.lane.b32.xlu0 %v10268, 64
      %v10296 = vpop.permute.xlu0 %10295
      %10297 = vrot.lane.b32.xlu0 %v10282, 64
      %v10298 = vpop.permute.xlu0 %10297
      %10299 = vrot.lane.b32.xlu0 %v10284, 64
      %v10300 = vpop.permute.xlu0 %10299
      %10301 = vrot.lane.b32.xlu0 %v10286, 64
      %v10302 = vpop.permute.xlu0 %10301
      %10311 = vst.msk [vmem:[%s253 + $0x5] sm:$0x1] %vm9570, %v10288
      %10312 = vst.msk [vmem:[%s253 + $0xd] sm:$0x1] %vm9570, %v10290
      %10313 = vst.msk [vmem:[%s253 + $0x15] sm:$0x1] %vm9570, %v10292
      %10314 = vst.msk [vmem:[%s253 + $0x1d] sm:$0x1] %vm9570, %v10294
      %10315 = vst.msk [vmem:[%s253 + $0x25] sm:$0x1] %vm9570, %v10296
      %10316 = vst.msk [vmem:[%s253 + $0x2d] sm:$0x1] %vm9570, %v10298
      %10317 = vst.msk [vmem:[%s253 + $0x35] sm:$0x1] %vm9570, %v10300
      %10318 = vst.msk [vmem:[%s253 + $0x3d] sm:$0x1] %vm9570, %v10302
      %v10320 = vcombine.high %v9420, %v9420
      %v10322 = vunpack.c.l.s4 1966171168
      %v10323 = vunpack.c.0.s8 %v10322
      %v10324 = vlaneseq
      %v10325 = vshrl.u32 %v10324, 7
      %v10326 = vsub.s32 %v10323, %v10325
      %v10327 = vrot.slane %v9420, %v10326
      %v10329 = vunpack.c.l.s4 1966171168
      %v10330 = vunpack.c.0.s8 %v10329
      %v10331 = vlaneseq
      %v10332 = vshrl.u32 %v10331, 7
      %v10333 = vsub.s32 %v10330, %v10332
      %v10334 = vrot.slane %v10320, %v10333
      %v10335 = vcombine.high %v10327, %v10327
      %v10336 = vcombine.high %v10334, %v10334
      %v10338 = vunpack.c.l.s4 1966171168
      %v10339 = vunpack.c.0.s8 %v10338
      %v10340 = vlaneseq
      %v10341 = vshrl.u32 %v10340, 7
      %v10342 = vsub.s32 %v10339, %v10341
      %v10343 = vrot.slane %v10327, %v10342
      %v10345 = vunpack.c.l.s4 1966171168
      %v10346 = vunpack.c.0.s8 %v10345
      %v10347 = vlaneseq
      %v10348 = vshrl.u32 %v10347, 7
      %v10349 = vsub.s32 %v10346, %v10348
      %v10350 = vrot.slane %v10334, %v10349
      %v10352 = vunpack.c.l.s4 1966171168
      %v10353 = vunpack.c.0.s8 %v10352
      %v10354 = vlaneseq
      %v10355 = vshrl.u32 %v10354, 7
      %v10356 = vsub.s32 %v10353, %v10355
      %v10357 = vrot.slane %v10335, %v10356
      %v10359 = vunpack.c.l.s4 1966171168
      %v10360 = vunpack.c.0.s8 %v10359
      %v10361 = vlaneseq
      %v10362 = vshrl.u32 %v10361, 7
      %v10363 = vsub.s32 %v10360, %v10362
      %v10364 = vrot.slane %v10336, %v10363
      %v10365 = vcombine.high %v10343, %v10343
      %v10366 = vcombine.high %v10350, %v10350
      %v10367 = vcombine.high %v10357, %v10357
      %v10368 = vcombine.high %v10364, %v10364
      %10377 = vst.msk [vmem:[%s253 + $0x6] sm:$0x1] %vm9485, %v10343
      %10378 = vst.msk [vmem:[%s253 + $0xe] sm:$0x1] %vm9485, %v10357
      %10379 = vst.msk [vmem:[%s253 + $0x16] sm:$0x1] %vm9485, %v10365
      %10380 = vst.msk [vmem:[%s253 + $0x1e] sm:$0x1] %vm9485, %v10367
      %10381 = vst.msk [vmem:[%s253 + $0x26] sm:$0x1] %vm9485, %v10350
      %10382 = vst.msk [vmem:[%s253 + $0x2e] sm:$0x1] %vm9485, %v10364
      %10383 = vst.msk [vmem:[%s253 + $0x36] sm:$0x1] %vm9485, %v10366
      %10384 = vst.msk [vmem:[%s253 + $0x3e] sm:$0x1] %vm9485, %v10368
      %v10386 = vcombine.high %v9421, %v9421
      %v10388 = vunpack.c.l.s4 1966171168
      %v10389 = vunpack.c.0.s8 %v10388
      %v10390 = vlaneseq
      %v10391 = vshrl.u32 %v10390, 7
      %v10392 = vsub.s32 %v10389, %v10391
      %v10393 = vrot.slane %v9421, %v10392
      %v10395 = vunpack.c.l.s4 1966171168
      %v10396 = vunpack.c.0.s8 %v10395
      %v10397 = vlaneseq
      %v10398 = vshrl.u32 %v10397, 7
      %v10399 = vsub.s32 %v10396, %v10398
      %v10400 = vrot.slane %v10386, %v10399
      %v10401 = vcombine.high %v10393, %v10393
      %v10402 = vcombine.high %v10400, %v10400
      %v10404 = vunpack.c.l.s4 1966171168
      %v10405 = vunpack.c.0.s8 %v10404
      %v10406 = vlaneseq
      %v10407 = vshrl.u32 %v10406, 7
      %v10408 = vsub.s32 %v10405, %v10407
      %v10409 = vrot.slane %v10393, %v10408
      %v10411 = vunpack.c.l.s4 1966171168
      %v10412 = vunpack.c.0.s8 %v10411
      %v10413 = vlaneseq
      %v10414 = vshrl.u32 %v10413, 7
      %v10415 = vsub.s32 %v10412, %v10414
      %v10416 = vrot.slane %v10400, %v10415
      %v10418 = vunpack.c.l.s4 1966171168
      %v10419 = vunpack.c.0.s8 %v10418
      %v10420 = vlaneseq
      %v10421 = vshrl.u32 %v10420, 7
      %v10422 = vsub.s32 %v10419, %v10421
      %v10423 = vrot.slane %v10401, %v10422
      %v10425 = vunpack.c.l.s4 1966171168
      %v10426 = vunpack.c.0.s8 %v10425
      %v10427 = vlaneseq
      %v10428 = vshrl.u32 %v10427, 7
      %v10429 = vsub.s32 %v10426, %v10428
      %v10430 = vrot.slane %v10402, %v10429
      %v10431 = vcombine.high %v10409, %v10409
      %v10432 = vcombine.high %v10416, %v10416
      %v10433 = vcombine.high %v10423, %v10423
      %v10434 = vcombine.high %v10430, %v10430
      %10435 = vrot.lane.b32.xlu0 %v10409, 64
      %v10436 = vpop.permute.xlu0 %10435
      %10437 = vrot.lane.b32.xlu0 %v10423, 64
      %v10438 = vpop.permute.xlu0 %10437
      %10439 = vrot.lane.b32.xlu0 %v10431, 64
      %v10440 = vpop.permute.xlu0 %10439
      %10441 = vrot.lane.b32.xlu0 %v10433, 64
      %v10442 = vpop.permute.xlu0 %10441
      %10443 = vrot.lane.b32.xlu0 %v10416, 64
      %v10444 = vpop.permute.xlu0 %10443
      %10445 = vrot.lane.b32.xlu0 %v10430, 64
      %v10446 = vpop.permute.xlu0 %10445
      %10447 = vrot.lane.b32.xlu0 %v10432, 64
      %v10448 = vpop.permute.xlu0 %10447
      %10449 = vrot.lane.b32.xlu0 %v10434, 64
      %v10450 = vpop.permute.xlu0 %10449
      %10459 = vst.msk [vmem:[%s253 + $0x6] sm:$0x1] %vm9570, %v10436
      %10460 = vst.msk [vmem:[%s253 + $0xe] sm:$0x1] %vm9570, %v10438
      %10461 = vst.msk [vmem:[%s253 + $0x16] sm:$0x1] %vm9570, %v10440
      %10462 = vst.msk [vmem:[%s253 + $0x1e] sm:$0x1] %vm9570, %v10442
      %10463 = vst.msk [vmem:[%s253 + $0x26] sm:$0x1] %vm9570, %v10444
      %10464 = vst.msk [vmem:[%s253 + $0x2e] sm:$0x1] %vm9570, %v10446
      %10465 = vst.msk [vmem:[%s253 + $0x36] sm:$0x1] %vm9570, %v10448
      %10466 = vst.msk [vmem:[%s253 + $0x3e] sm:$0x1] %vm9570, %v10450
      %v10468 = vcombine.high %v9422, %v9422
      %v10470 = vunpack.c.l.s4 1966171168
      %v10471 = vunpack.c.0.s8 %v10470
      %v10472 = vlaneseq
      %v10473 = vshrl.u32 %v10472, 7
      %v10474 = vsub.s32 %v10471, %v10473
      %v10475 = vrot.slane %v9422, %v10474
      %v10477 = vunpack.c.l.s4 1966171168
      %v10478 = vunpack.c.0.s8 %v10477
      %v10479 = vlaneseq
      %v10480 = vshrl.u32 %v10479, 7
      %v10481 = vsub.s32 %v10478, %v10480
      %v10482 = vrot.slane %v10468, %v10481
      %v10483 = vcombine.high %v10475, %v10475
      %v10484 = vcombine.high %v10482, %v10482
      %v10486 = vunpack.c.l.s4 1966171168
      %v10487 = vunpack.c.0.s8 %v10486
      %v10488 = vlaneseq
      %v10489 = vshrl.u32 %v10488, 7
      %v10490 = vsub.s32 %v10487, %v10489
      %v10491 = vrot.slane %v10475, %v10490
      %v10493 = vunpack.c.l.s4 1966171168
      %v10494 = vunpack.c.0.s8 %v10493
      %v10495 = vlaneseq
      %v10496 = vshrl.u32 %v10495, 7
      %v10497 = vsub.s32 %v10494, %v10496
      %v10498 = vrot.slane %v10482, %v10497
      %v10500 = vunpack.c.l.s4 1966171168
      %v10501 = vunpack.c.0.s8 %v10500
      %v10502 = vlaneseq
      %v10503 = vshrl.u32 %v10502, 7
      %v10504 = vsub.s32 %v10501, %v10503
      %v10505 = vrot.slane %v10483, %v10504
      %v10507 = vunpack.c.l.s4 1966171168
      %v10508 = vunpack.c.0.s8 %v10507
      %v10509 = vlaneseq
      %v10510 = vshrl.u32 %v10509, 7
      %v10511 = vsub.s32 %v10508, %v10510
      %v10512 = vrot.slane %v10484, %v10511
      %v10513 = vcombine.high %v10491, %v10491
      %v10514 = vcombine.high %v10498, %v10498
      %v10515 = vcombine.high %v10505, %v10505
      %v10516 = vcombine.high %v10512, %v10512
      %10525 = vst.msk [vmem:[%s253 + $0x7] sm:$0x1] %vm9485, %v10491
      %10526 = vst.msk [vmem:[%s253 + $0xf] sm:$0x1] %vm9485, %v10505
      %10527 = vst.msk [vmem:[%s253 + $0x17] sm:$0x1] %vm9485, %v10513
      %10528 = vst.msk [vmem:[%s253 + $0x1f] sm:$0x1] %vm9485, %v10515
      %10529 = vst.msk [vmem:[%s253 + $0x27] sm:$0x1] %vm9485, %v10498
      %10530 = vst.msk [vmem:[%s253 + $0x2f] sm:$0x1] %vm9485, %v10512
      %10531 = vst.msk [vmem:[%s253 + $0x37] sm:$0x1] %vm9485, %v10514
      %10532 = vst.msk [vmem:[%s253 + $0x3f] sm:$0x1] %vm9485, %v10516
      %v10534 = vcombine.high %v9423, %v9423
      %v10536 = vunpack.c.l.s4 1966171168
      %v10537 = vunpack.c.0.s8 %v10536
      %v10538 = vlaneseq
      %v10539 = vshrl.u32 %v10538, 7
      %v10540 = vsub.s32 %v10537, %v10539
      %v10541 = vrot.slane %v9423, %v10540
      %v10543 = vunpack.c.l.s4 1966171168
      %v10544 = vunpack.c.0.s8 %v10543
      %v10545 = vlaneseq
      %v10546 = vshrl.u32 %v10545, 7
      %v10547 = vsub.s32 %v10544, %v10546
      %v10548 = vrot.slane %v10534, %v10547
      %v10549 = vcombine.high %v10541, %v10541
      %v10550 = vcombine.high %v10548, %v10548
      %v10552 = vunpack.c.l.s4 1966171168
      %v10553 = vunpack.c.0.s8 %v10552
      %v10554 = vlaneseq
      %v10555 = vshrl.u32 %v10554, 7
      %v10556 = vsub.s32 %v10553, %v10555
      %v10557 = vrot.slane %v10541, %v10556
      %v10559 = vunpack.c.l.s4 1966171168
      %v10560 = vunpack.c.0.s8 %v10559
      %v10561 = vlaneseq
      %v10562 = vshrl.u32 %v10561, 7
      %v10563 = vsub.s32 %v10560, %v10562
      %v10564 = vrot.slane %v10548, %v10563
      %v10566 = vunpack.c.l.s4 1966171168
      %v10567 = vunpack.c.0.s8 %v10566
      %v10568 = vlaneseq
      %v10569 = vshrl.u32 %v10568, 7
      %v10570 = vsub.s32 %v10567, %v10569
      %v10571 = vrot.slane %v10549, %v10570
      %v10573 = vunpack.c.l.s4 1966171168
      %v10574 = vunpack.c.0.s8 %v10573
      %v10575 = vlaneseq
      %v10576 = vshrl.u32 %v10575, 7
      %v10577 = vsub.s32 %v10574, %v10576
      %v10578 = vrot.slane %v10550, %v10577
      %v10579 = vcombine.high %v10557, %v10557
      %v10580 = vcombine.high %v10564, %v10564
      %v10581 = vcombine.high %v10571, %v10571
      %v10582 = vcombine.high %v10578, %v10578
      %10583 = vrot.lane.b32.xlu0 %v10557, 64
      %v10584 = vpop.permute.xlu0 %10583
      %10585 = vrot.lane.b32.xlu0 %v10571, 64
      %v10586 = vpop.permute.xlu0 %10585
      %10587 = vrot.lane.b32.xlu0 %v10579, 64
      %v10588 = vpop.permute.xlu0 %10587
      %10589 = vrot.lane.b32.xlu0 %v10581, 64
      %v10590 = vpop.permute.xlu0 %10589
      %10591 = vrot.lane.b32.xlu0 %v10564, 64
      %v10592 = vpop.permute.xlu0 %10591
      %10593 = vrot.lane.b32.xlu0 %v10578, 64
      %v10594 = vpop.permute.xlu0 %10593
      %10595 = vrot.lane.b32.xlu0 %v10580, 64
      %v10596 = vpop.permute.xlu0 %10595
      %10597 = vrot.lane.b32.xlu0 %v10582, 64
      %v10598 = vpop.permute.xlu0 %10597
      %10607 = vst.msk [vmem:[%s253 + $0x7] sm:$0x1] %vm9570, %v10584
      %10608 = vst.msk [vmem:[%s253 + $0xf] sm:$0x1] %vm9570, %v10586
      %10609 = vst.msk [vmem:[%s253 + $0x17] sm:$0x1] %vm9570, %v10588
      %10610 = vst.msk [vmem:[%s253 + $0x1f] sm:$0x1] %vm9570, %v10590
      %10611 = vst.msk [vmem:[%s253 + $0x27] sm:$0x1] %vm9570, %v10592
      %10612 = vst.msk [vmem:[%s253 + $0x2f] sm:$0x1] %vm9570, %v10594
      %10613 = vst.msk [vmem:[%s253 + $0x37] sm:$0x1] %vm9570, %v10596
      %10614 = vst.msk [vmem:[%s253 + $0x3f] sm:$0x1] %vm9570, %v10598
      %s10615 = smul.u32 8, %s17
      %p10616 = scmp.lt.s32.totalorder %s10615, 15
      %s10617 = scalar_select %p10616, %s10615, 15
      %s10618 = smul.addr %s10617, 8
      %s10619 = scalar_lea.vmem %s6, %s10618
      // Predicated region
      $region45: #{se_encoder_forward.1} parent=43 // pred_check
        %p10620 = pneg %p166
      $region46: #{se_encoder_forward.1} parent=43 // pred_check_branch
        %10622 = sbr.rel (%p10620) target = $region48
      $region47: #{se_encoder_forward.1} parent=43 // pred_region
        %s10623 = smul.u32 8, %s17
      $region48: #{se_encoder_forward.1} parent=43 // pred_fallthru
        _
    $region44: #{se_encoder_forward.1} parent=5 // pred_fallthru
      _
    %p10624 = scmp.le.s32.totalorder 2, %s12
    // Predicated region
    $region49: #{se_encoder_forward.1} parent=5 // pred_check
      %p10625 = pneg %p10624
    $region50: #{se_encoder_forward.1} parent=5 // pred_check_branch
      %10627 = sbr.rel (%p10625) target = $region52
    $region51: #{se_encoder_forward.1} parent=5 // pred_region
      %s10628 = ssub.s32 %s12, 2
      // Predicated region
      $region53: #{se_encoder_forward.1} parent=51 // pred_check
        %p10629 = pneg %p172
      $region54: #{se_encoder_forward.1} parent=51 // pred_check_branch
        %10631 = sbr.rel (%p10629) target = $region56
      $region55: #{se_encoder_forward.1} parent=51 // pred_region
        %s10632 = smul.u32 8, %s18
        %p10633 = scmp.lt.s32.totalorder %s10632, 15
        %s10634 = scalar_select %p10633, %s10632, 15
        %s10635 = smul.addr %s10634, 8
        %s10636 = scalar_lea.vmem %s6, %s10635
      $region56: #{se_encoder_forward.1} parent=51 // pred_fallthru
        _
    $region52: #{se_encoder_forward.1} parent=5 // pred_fallthru
      _
  $region6: #{se_encoder_forward.1} parent=0 // loop_footer
    %s16 = sadd.s32 1, %s12
  $region7: #{se_encoder_forward.1} parent=0 // loop_footer_branch
    %11 = sbr.rel target = $region3
  $region8: #{se_encoder_forward.1} parent=0 // loop_exit
    _

</llo_original>
